<compile_context>
chip_gen: v5e
topology: v5e:2x2
jax: 0.10.0
libtpu: 0.0.40
codegen_flags: <defaults>
</compile_context>

<pallas_src>
import functools

import jax
import jax.numpy as jnp
from jax.experimental import pallas as pl
from jax.experimental.pallas import tpu as pltpu


# ------------------------------ fused kernel --------------------------------

def _actor_fused_kernel(x_ref, w1_ref, b1_ref, w2_ref, b2_ref,
                        w1p_ref, fb1_ref, w2f_ref, fb2_ref, w3f_ref, fb3_ref,
                        o_ref, s1_ref, s2_ref):
    f32 = jnp.float32
    B = x_ref.shape[0]
    H = x_ref.shape[1] - 2          # input is pre-padded by 1 on each side
    W = x_ref.shape[2] - 2
    Cin = x_ref.shape[3]
    C1 = w1_ref.shape[2]            # conv1 out channels (16)
    C2 = w2_ref.shape[2]            # conv2 out channels (16)
    H2 = H // 2
    H4, W4 = H // 4, W // 4
    NH = w1p_ref.shape[3]           # fc1 width (128)

    # ---- conv1 (3x3, pad 1) + ReLU: 9 accumulated MXU dots over tap slices ----
    acc1 = jnp.zeros((B * H * W, C1), f32)
    for ky in range(3):
        for kx in range(3):
            t = ky * 3 + kx
            patch = x_ref[:, ky:ky + H, kx:kx + W, :].reshape(B * H * W, Cin)
            acc1 = acc1 + jnp.dot(patch, w1_ref[t], preferred_element_type=f32)
    y1 = jnp.maximum(acc1 + b1_ref[...], 0.0)

    # ---- pool1, H direction: free leading-dim pair max ----
    y1r = y1.reshape(B, H2, 2, W, C1)
    yh = jnp.maximum(y1r[:, :, 0], y1r[:, :, 1])          # (B, H2, W, C1)

    # ---- pool1, W direction: pair-max kept at full W width ("m").  The
    # stride-2 column selection is folded into conv2's dilated W taps below.
    # s1 layout: rows 1..H2 hold data (zero H padding), cols 2..W+1 hold m
    # (zero W padding of width 2 on each side for the dilated taps).
    s1_ref[...] = jnp.zeros_like(s1_ref)
    s1_ref[:, 1:H2 + 1, 2:W + 2, :] = yh
    m = jnp.maximum(s1_ref[:, 1:H2 + 1, 2:W + 2, :],
                    s1_ref[:, 1:H2 + 1, 3:W + 3, :])      # m[w] = max(yh[w], yh[w+1])
    s1_ref[:, 1:H2 + 1, 2:W + 2, :] = m

    # ---- conv2 (3x3, pad 1 over the pooled grid) + ReLU ----
    # W taps are dilated by 2 over m; only even output columns are meaningful
    # (they equal conv2 applied to the true pooled feature map).
    acc2 = jnp.zeros((B * H2 * W, C2), f32)
    for ky in range(3):
        for kx in range(3):
            t = ky * 3 + kx
            patch = s1_ref[:, ky:ky + H2, 2 * kx:2 * kx + W, :].reshape(B * H2 * W, C1)
            acc2 = acc2 + jnp.dot(patch, w2_ref[t], preferred_element_type=f32)
    y2 = jnp.maximum(acc2 + b2_ref[...], 0.0)

    # ---- pool2, H direction (free); store for position-wise W pooling ----
    y2r = y2.reshape(B, H4, 2, W, C2)
    yh2 = jnp.maximum(y2r[:, :, 0], y2r[:, :, 1])         # (B, H4, W, C2)
    s2_ref[...] = yh2

    # ---- pool2 W direction + flatten + fc1, accumulated per output position.
    # PyTorch's NCHW (channel-major) flatten order is folded into the
    # pre-permuted fc1 weight blocks w1p[i, j] of shape (C2, 128).
    acc_fc = jnp.zeros((B, NH), f32)
    for i in range(H4):
        for j in range(W4):
            pooled = jnp.maximum(s2_ref[:, i, 4 * j, :],
                                 s2_ref[:, i, 4 * j + 2, :])      # (B, C2)
            acc_fc = acc_fc + jnp.dot(pooled, w1p_ref[i, j],
                                      preferred_element_type=f32)
    h1 = jnp.maximum(acc_fc + fb1_ref[...], 0.0)

    # ---- fc2 + ReLU, fc3, softmax(dim=1) ----
    h2 = jnp.maximum(jnp.dot(h1, w2f_ref[...], preferred_element_type=f32)
                     + fb2_ref[...], 0.0)
    logits = jnp.dot(h2, w3f_ref[...], preferred_element_type=f32) + fb3_ref[...]
    mx = jnp.max(logits, axis=1, keepdims=True)
    e = jnp.exp(logits - mx)
    o_ref[...] = e / jnp.sum(e, axis=1, keepdims=True)


def actor_fused_call(x_pad, prep):
    (w1t, b1, w2t, b2, w1p, fb1, w2f, fb2, w3f, fb3) = prep
    B = x_pad.shape[0]
    H = x_pad.shape[1] - 2
    W = x_pad.shape[2] - 2
    C1 = w1t.shape[2]
    C2 = w2t.shape[2]
    O = w3f.shape[1]
    H2, H4 = H // 2, H // 4

    def full(shape):
        return pl.BlockSpec(shape, lambda *_: (0,) * len(shape))

    args = (x_pad, w1t, b1, w2t, b2, w1p, fb1, w2f, fb2, w3f, fb3)
    return pl.pallas_call(
        _actor_fused_kernel,
        out_shape=jax.ShapeDtypeStruct((B, O), jnp.float32),
        grid=(1,),
        in_specs=[full(a.shape) for a in args],
        out_specs=full((B, O)),
        scratch_shapes=[
            pltpu.VMEM((B, H2 + 2, W + 4, C1), jnp.float32),   # padded pool1/"m"
            pltpu.VMEM((B, H4, W, C2), jnp.float32),           # H-pooled conv2
        ],
        compiler_params=pltpu.CompilerParams(
            dimension_semantics=("arbitrary",)),
    )(*args)


# ------------------------ parameter prep (one-time) --------------------------

def prepare_params(params):
    """One-time weight re-layout (hoisted out of the hot path):
       conv weights -> per-tap (9, Cin, Cout); fc weights -> (in, out); fc1
       input columns permuted to consume the NHWC pooled activation directly
       while matching PyTorch's NCHW flatten order."""
    c1_o, c1_i = params['conv1_w'].shape[0], params['conv1_w'].shape[1]
    c2_o, c2_i = params['conv2_w'].shape[0], params['conv2_w'].shape[1]
    w1t = jnp.transpose(params['conv1_w'], (2, 3, 1, 0)).reshape(9, c1_i, c1_o)
    w2t = jnp.transpose(params['conv2_w'], (2, 3, 1, 0)).reshape(9, c2_i, c2_o)
    b1 = params['conv1_b'].reshape(1, -1)
    b2 = params['conv2_b'].reshape(1, -1)

    nh, n_flat = params['fc1_w'].shape
    hw = int(round((n_flat // c2_o) ** 0.5))          # pooled spatial size (4)
    # PyTorch flatten index = c*hw*hw + i*hw + j  ->  w1p[i, j, c, o]
    w1p = jnp.transpose(params['fc1_w'].reshape(nh, c2_o, hw, hw), (2, 3, 1, 0))
    fb1 = params['fc1_b'].reshape(1, -1)
    w2f = params['fc2_w'].T
    fb2 = params['fc2_b'].reshape(1, -1)
    w3f = params['fc3_w'].T
    fb3 = params['fc3_b'].reshape(1, -1)
    return (w1t, b1, w2t, b2, w1p, fb1, w2f, fb2, w3f, fb3)


def init_params(key, input_size, output_size):
    """Deterministic init, PyTorch-style shapes (Linear weight = (out, in))."""
    n_flat = 16 * (input_size // 4) * (input_size // 4)
    ks = jax.random.split(key, 10)

    def u(k, shape, fan_in):
        bound = 1.0 / jnp.sqrt(jnp.float32(fan_in))
        return jax.random.uniform(k, shape, jnp.float32, -bound, bound)

    return dict(
        conv1_w=u(ks[0], (16, 4, 3, 3), 4 * 9),
        conv1_b=u(ks[1], (16,), 4 * 9),
        conv2_w=u(ks[2], (16, 16, 3, 3), 16 * 9),
        conv2_b=u(ks[3], (16,), 16 * 9),
        fc1_w=u(ks[4], (128, n_flat), n_flat),
        fc1_b=u(ks[5], (128,), n_flat),
        fc2_w=u(ks[6], (128, 128), 128),
        fc2_b=u(ks[7], (128,), 128),
        fc3_w=u(ks[8], (output_size, 128), 128),
        fc3_b=u(ks[9], (output_size,), 128),
    )


def actor_forward(prep, x_nchw):
    # PyTorch gives NCHW; the fused kernel consumes zero-padded NHWC.
    x = jnp.transpose(x_nchw, (0, 2, 3, 1)).astype(jnp.float32)
    x = jnp.pad(x, ((0, 0), (1, 1), (1, 1), (0, 0)))
    return actor_fused_call(x, prep)


# ------------------------- pure-JAX reference (check) ------------------------

def actor_forward_reference(params, x_nchw):
    hp = jax.lax.Precision.HIGHEST
    x = jnp.transpose(x_nchw, (0, 2, 3, 1)).astype(jnp.float32)
    B = x.shape[0]

    def conv3x3_relu(x, w_oihw, b):
        Bx, Hx, Wx, Cin = x.shape
        Cout = w_oihw.shape[0]
        xp = jnp.pad(x, ((0, 0), (1, 1), (1, 1), (0, 0)))
        cols = [xp[:, ky:ky + Hx, kx:kx + Wx, :]
                for ky in range(3) for kx in range(3)]
        patches = jnp.concatenate(cols, axis=-1).reshape(-1, 9 * Cin)
        wmat = jnp.transpose(w_oihw, (2, 3, 1, 0)).reshape(9 * Cin, Cout)
        y = jnp.maximum(jnp.dot(patches, wmat, precision=hp) + b, 0.0)
        return y.reshape(Bx, Hx, Wx, Cout)

    def pool2x2(x):
        return jnp.maximum(
            jnp.maximum(x[:, 0::2, 0::2, :], x[:, 0::2, 1::2, :]),
            jnp.maximum(x[:, 1::2, 0::2, :], x[:, 1::2, 1::2, :]))

    y = conv3x3_relu(x, params['conv1_w'], params['conv1_b'])
    y = pool2x2(y)
    y = conv3x3_relu(y, params['conv2_w'], params['conv2_b'])
    y = pool2x2(y)
    flat = jnp.transpose(y, (0, 3, 1, 2)).reshape(B, -1)
    h1 = jnp.maximum(jnp.dot(flat, params['fc1_w'].T, precision=hp) + params['fc1_b'], 0.0)
    h2 = jnp.maximum(jnp.dot(h1, params['fc2_w'].T, precision=hp) + params['fc2_b'], 0.0)
    logits = jnp.dot(h2, params['fc3_w'].T, precision=hp) + params['fc3_b']
    return jax.nn.softmax(logits, axis=1)


if __name__ == "__main__":
    key = jax.random.PRNGKey(0)
    k_param, k_x = jax.random.split(key)

    INPUT = 16    # spatial size (input % 4 == 0, as asserted by the module)
    OUTPUT = 4    # number of discrete actions (e.g. Breakout)
    BATCH = 2

    params = init_params(k_param, INPUT, OUTPUT)
    prep = prepare_params(params)   # one-time weight re-layout, outside hot path
    x = jax.random.normal(k_x, (BATCH, 4, INPUT, INPUT), jnp.float32)  # NCHW

    fwd = jax.jit(functools.partial(actor_forward, prep))
    probs = jax.block_until_ready(fwd(x))

    assert probs.shape == (BATCH, OUTPUT)
    row_sums = jnp.sum(probs, axis=1)
    assert bool(jnp.all(jnp.isfinite(probs)))
    assert bool(jnp.all(jnp.abs(row_sums - 1.0) < 1e-4))

    ref = actor_forward_reference(params, x)
    assert bool(jnp.allclose(probs, ref, atol=1e-3, rtol=1e-3))

    print("KERNEL_OK")
</pallas_src>

<mosaic_0001>
module attributes {stable_mosaic.version = 11 : i64} {
  func.func @_actor_fused_kernel(%arg0: i32, %arg1: memref<2x18x18x4xf32, #tpu.memory_space<vmem>>, %arg2: memref<9x4x16xf32, #tpu.memory_space<vmem>>, %arg3: memref<1x16xf32, #tpu.memory_space<vmem>>, %arg4: memref<9x16x16xf32, #tpu.memory_space<vmem>>, %arg5: memref<1x16xf32, #tpu.memory_space<vmem>>, %arg6: memref<4x4x16x128xf32, #tpu.memory_space<vmem>>, %arg7: memref<1x128xf32, #tpu.memory_space<vmem>>, %arg8: memref<128x128xf32, #tpu.memory_space<vmem>>, %arg9: memref<1x128xf32, #tpu.memory_space<vmem>>, %arg10: memref<128x4xf32, #tpu.memory_space<vmem>>, %arg11: memref<1x4xf32, #tpu.memory_space<vmem>>, %arg12: memref<2x4xf32, #tpu.memory_space<vmem>>, %arg13: memref<2x10x20x16xf32, #tpu.memory_space<vmem>>, %arg14: memref<2x4x16x16xf32, #tpu.memory_space<vmem>>) attributes {dimension_semantics = [#tpu.dimension_semantics<arbitrary>], iteration_bounds = array<i64: 1>, scalar_prefetch = 0 : i64, scratch_operands = 2 : i64, tpu.core_type = #tpu.core_type<tc>, window_params = [{pipeline_mode = #tpu.pipeline_mode<synchronous>, transform_indices = @transform_0, window_bounds = array<i64: 2, 18, 18, 4>}, {pipeline_mode = #tpu.pipeline_mode<synchronous>, transform_indices = @transform_1, window_bounds = array<i64: 9, 4, 16>}, {pipeline_mode = #tpu.pipeline_mode<synchronous>, transform_indices = @transform_2, window_bounds = array<i64: 1, 16>}, {pipeline_mode = #tpu.pipeline_mode<synchronous>, transform_indices = @transform_3, window_bounds = array<i64: 9, 16, 16>}, {pipeline_mode = #tpu.pipeline_mode<synchronous>, transform_indices = @transform_4, window_bounds = array<i64: 1, 16>}, {pipeline_mode = #tpu.pipeline_mode<synchronous>, transform_indices = @transform_5, window_bounds = array<i64: 4, 4, 16, 128>}, {pipeline_mode = #tpu.pipeline_mode<synchronous>, transform_indices = @transform_6, window_bounds = array<i64: 1, 128>}, {pipeline_mode = #tpu.pipeline_mode<synchronous>, transform_indices = @transform_7, window_bounds = array<i64: 128, 128>}, {pipeline_mode = #tpu.pipeline_mode<synchronous>, transform_indices = @transform_8, window_bounds = array<i64: 1, 128>}, {pipeline_mode = #tpu.pipeline_mode<synchronous>, transform_indices = @transform_9, window_bounds = array<i64: 128, 4>}, {pipeline_mode = #tpu.pipeline_mode<synchronous>, transform_indices = @transform_10, window_bounds = array<i64: 1, 4>}, {pipeline_mode = #tpu.pipeline_mode<synchronous>, transform_indices = @transform_11, window_bounds = array<i64: 2, 4>}]} {
    %cst = arith.constant 0.000000e+00 : f32
    %0 = vector.broadcast %cst : f32 to vector<512x16xf32>
    %c0 = arith.constant 0 : index
    %c0_0 = arith.constant 0 : index
    %c0_1 = arith.constant 0 : index
    %c0_2 = arith.constant 0 : index
    %1 = vector.load %arg1[%c0, %c0_0, %c0_1, %c0_2] : memref<2x18x18x4xf32, #tpu.memory_space<vmem>>, vector<2x16x16x4xf32>
    %2 = vector.shape_cast %1 : vector<2x16x16x4xf32> to vector<512x4xf32>
    %c0_3 = arith.constant 0 : index
    %c0_4 = arith.constant 0 : index
    %c0_5 = arith.constant 0 : index
    %3 = vector.load %arg2[%c0_3, %c0_4, %c0_5] : memref<9x4x16xf32, #tpu.memory_space<vmem>>, vector<1x4x16xf32>
    %4 = vector.shape_cast %3 : vector<1x4x16xf32> to vector<4x16xf32>
    %cst_6 = arith.constant dense<0.000000e+00> : vector<512x16xf32>
    %5 = tpu.matmul %2, %4, %cst_6 {dimension_numbers = #tpu.dot_dimension_numbers<[1], [0], [0], [1], [0, 0, 1, 1], [], []>} : vector<512x4xf32>, vector<4x16xf32>, vector<512x16xf32> -> vector<512x16xf32>
    %6 = arith.addf %0, %5 : vector<512x16xf32>
    %c0_7 = arith.constant 0 : index
    %c0_8 = arith.constant 0 : index
    %c1 = arith.constant 1 : index
    %c0_9 = arith.constant 0 : index
    %7 = vector.load %arg1[%c0_7, %c0_8, %c1, %c0_9] : memref<2x18x18x4xf32, #tpu.memory_space<vmem>>, vector<2x16x16x4xf32>
    %8 = vector.shape_cast %7 : vector<2x16x16x4xf32> to vector<512x4xf32>
    %c1_10 = arith.constant 1 : index
    %c0_11 = arith.constant 0 : index
    %c0_12 = arith.constant 0 : index
    %9 = vector.load %arg2[%c1_10, %c0_11, %c0_12] : memref<9x4x16xf32, #tpu.memory_space<vmem>>, vector<1x4x16xf32>
    %10 = vector.shape_cast %9 : vector<1x4x16xf32> to vector<4x16xf32>
    %cst_13 = arith.constant dense<0.000000e+00> : vector<512x16xf32>
    %11 = tpu.matmul %8, %10, %cst_13 {dimension_numbers = #tpu.dot_dimension_numbers<[1], [0], [0], [1], [0, 0, 1, 1], [], []>} : vector<512x4xf32>, vector<4x16xf32>, vector<512x16xf32> -> vector<512x16xf32>
    %12 = arith.addf %6, %11 : vector<512x16xf32>
    %c0_14 = arith.constant 0 : index
    %c0_15 = arith.constant 0 : index
    %c2 = arith.constant 2 : index
    %c0_16 = arith.constant 0 : index
    %13 = vector.load %arg1[%c0_14, %c0_15, %c2, %c0_16] : memref<2x18x18x4xf32, #tpu.memory_space<vmem>>, vector<2x16x16x4xf32>
    %14 = vector.shape_cast %13 : vector<2x16x16x4xf32> to vector<512x4xf32>
    %c2_17 = arith.constant 2 : index
    %c0_18 = arith.constant 0 : index
    %c0_19 = arith.constant 0 : index
    %15 = vector.load %arg2[%c2_17, %c0_18, %c0_19] : memref<9x4x16xf32, #tpu.memory_space<vmem>>, vector<1x4x16xf32>
    %16 = vector.shape_cast %15 : vector<1x4x16xf32> to vector<4x16xf32>
    %cst_20 = arith.constant dense<0.000000e+00> : vector<512x16xf32>
    %17 = tpu.matmul %14, %16, %cst_20 {dimension_numbers = #tpu.dot_dimension_numbers<[1], [0], [0], [1], [0, 0, 1, 1], [], []>} : vector<512x4xf32>, vector<4x16xf32>, vector<512x16xf32> -> vector<512x16xf32>
    %18 = arith.addf %12, %17 : vector<512x16xf32>
    %c0_21 = arith.constant 0 : index
    %c1_22 = arith.constant 1 : index
    %c0_23 = arith.constant 0 : index
    %c0_24 = arith.constant 0 : index
    %19 = vector.load %arg1[%c0_21, %c1_22, %c0_23, %c0_24] : memref<2x18x18x4xf32, #tpu.memory_space<vmem>>, vector<2x16x16x4xf32>
    %20 = vector.shape_cast %19 : vector<2x16x16x4xf32> to vector<512x4xf32>
    %c3 = arith.constant 3 : index
    %c0_25 = arith.constant 0 : index
    %c0_26 = arith.constant 0 : index
    %21 = vector.load %arg2[%c3, %c0_25, %c0_26] : memref<9x4x16xf32, #tpu.memory_space<vmem>>, vector<1x4x16xf32>
    %22 = vector.shape_cast %21 : vector<1x4x16xf32> to vector<4x16xf32>
    %cst_27 = arith.constant dense<0.000000e+00> : vector<512x16xf32>
    %23 = tpu.matmul %20, %22, %cst_27 {dimension_numbers = #tpu.dot_dimension_numbers<[1], [0], [0], [1], [0, 0, 1, 1], [], []>} : vector<512x4xf32>, vector<4x16xf32>, vector<512x16xf32> -> vector<512x16xf32>
    %24 = arith.addf %18, %23 : vector<512x16xf32>
    %c0_28 = arith.constant 0 : index
    %c1_29 = arith.constant 1 : index
    %c1_30 = arith.constant 1 : index
    %c0_31 = arith.constant 0 : index
    %25 = vector.load %arg1[%c0_28, %c1_29, %c1_30, %c0_31] : memref<2x18x18x4xf32, #tpu.memory_space<vmem>>, vector<2x16x16x4xf32>
    %26 = vector.shape_cast %25 : vector<2x16x16x4xf32> to vector<512x4xf32>
    %c4 = arith.constant 4 : index
    %c0_32 = arith.constant 0 : index
    %c0_33 = arith.constant 0 : index
    %27 = vector.load %arg2[%c4, %c0_32, %c0_33] : memref<9x4x16xf32, #tpu.memory_space<vmem>>, vector<1x4x16xf32>
    %28 = vector.shape_cast %27 : vector<1x4x16xf32> to vector<4x16xf32>
    %cst_34 = arith.constant dense<0.000000e+00> : vector<512x16xf32>
    %29 = tpu.matmul %26, %28, %cst_34 {dimension_numbers = #tpu.dot_dimension_numbers<[1], [0], [0], [1], [0, 0, 1, 1], [], []>} : vector<512x4xf32>, vector<4x16xf32>, vector<512x16xf32> -> vector<512x16xf32>
    %30 = arith.addf %24, %29 : vector<512x16xf32>
    %c0_35 = arith.constant 0 : index
    %c1_36 = arith.constant 1 : index
    %c2_37 = arith.constant 2 : index
    %c0_38 = arith.constant 0 : index
    %31 = vector.load %arg1[%c0_35, %c1_36, %c2_37, %c0_38] : memref<2x18x18x4xf32, #tpu.memory_space<vmem>>, vector<2x16x16x4xf32>
    %32 = vector.shape_cast %31 : vector<2x16x16x4xf32> to vector<512x4xf32>
    %c5 = arith.constant 5 : index
    %c0_39 = arith.constant 0 : index
    %c0_40 = arith.constant 0 : index
    %33 = vector.load %arg2[%c5, %c0_39, %c0_40] : memref<9x4x16xf32, #tpu.memory_space<vmem>>, vector<1x4x16xf32>
    %34 = vector.shape_cast %33 : vector<1x4x16xf32> to vector<4x16xf32>
    %cst_41 = arith.constant dense<0.000000e+00> : vector<512x16xf32>
    %35 = tpu.matmul %32, %34, %cst_41 {dimension_numbers = #tpu.dot_dimension_numbers<[1], [0], [0], [1], [0, 0, 1, 1], [], []>} : vector<512x4xf32>, vector<4x16xf32>, vector<512x16xf32> -> vector<512x16xf32>
    %36 = arith.addf %30, %35 : vector<512x16xf32>
    %c0_42 = arith.constant 0 : index
    %c2_43 = arith.constant 2 : index
    %c0_44 = arith.constant 0 : index
    %c0_45 = arith.constant 0 : index
    %37 = vector.load %arg1[%c0_42, %c2_43, %c0_44, %c0_45] : memref<2x18x18x4xf32, #tpu.memory_space<vmem>>, vector<2x16x16x4xf32>
    %38 = vector.shape_cast %37 : vector<2x16x16x4xf32> to vector<512x4xf32>
    %c6 = arith.constant 6 : index
    %c0_46 = arith.constant 0 : index
    %c0_47 = arith.constant 0 : index
    %39 = vector.load %arg2[%c6, %c0_46, %c0_47] : memref<9x4x16xf32, #tpu.memory_space<vmem>>, vector<1x4x16xf32>
    %40 = vector.shape_cast %39 : vector<1x4x16xf32> to vector<4x16xf32>
    %cst_48 = arith.constant dense<0.000000e+00> : vector<512x16xf32>
    %41 = tpu.matmul %38, %40, %cst_48 {dimension_numbers = #tpu.dot_dimension_numbers<[1], [0], [0], [1], [0, 0, 1, 1], [], []>} : vector<512x4xf32>, vector<4x16xf32>, vector<512x16xf32> -> vector<512x16xf32>
    %42 = arith.addf %36, %41 : vector<512x16xf32>
    %c0_49 = arith.constant 0 : index
    %c2_50 = arith.constant 2 : index
    %c1_51 = arith.constant 1 : index
    %c0_52 = arith.constant 0 : index
    %43 = vector.load %arg1[%c0_49, %c2_50, %c1_51, %c0_52] : memref<2x18x18x4xf32, #tpu.memory_space<vmem>>, vector<2x16x16x4xf32>
    %44 = vector.shape_cast %43 : vector<2x16x16x4xf32> to vector<512x4xf32>
    %c7 = arith.constant 7 : index
    %c0_53 = arith.constant 0 : index
    %c0_54 = arith.constant 0 : index
    %45 = vector.load %arg2[%c7, %c0_53, %c0_54] : memref<9x4x16xf32, #tpu.memory_space<vmem>>, vector<1x4x16xf32>
    %46 = vector.shape_cast %45 : vector<1x4x16xf32> to vector<4x16xf32>
    %cst_55 = arith.constant dense<0.000000e+00> : vector<512x16xf32>
    %47 = tpu.matmul %44, %46, %cst_55 {dimension_numbers = #tpu.dot_dimension_numbers<[1], [0], [0], [1], [0, 0, 1, 1], [], []>} : vector<512x4xf32>, vector<4x16xf32>, vector<512x16xf32> -> vector<512x16xf32>
    %48 = arith.addf %42, %47 : vector<512x16xf32>
    %c0_56 = arith.constant 0 : index
    %c2_57 = arith.constant 2 : index
    %c2_58 = arith.constant 2 : index
    %c0_59 = arith.constant 0 : index
    %49 = vector.load %arg1[%c0_56, %c2_57, %c2_58, %c0_59] : memref<2x18x18x4xf32, #tpu.memory_space<vmem>>, vector<2x16x16x4xf32>
    %50 = vector.shape_cast %49 : vector<2x16x16x4xf32> to vector<512x4xf32>
    %c8 = arith.constant 8 : index
    %c0_60 = arith.constant 0 : index
    %c0_61 = arith.constant 0 : index
    %51 = vector.load %arg2[%c8, %c0_60, %c0_61] : memref<9x4x16xf32, #tpu.memory_space<vmem>>, vector<1x4x16xf32>
    %52 = vector.shape_cast %51 : vector<1x4x16xf32> to vector<4x16xf32>
    %cst_62 = arith.constant dense<0.000000e+00> : vector<512x16xf32>
    %53 = tpu.matmul %50, %52, %cst_62 {dimension_numbers = #tpu.dot_dimension_numbers<[1], [0], [0], [1], [0, 0, 1, 1], [], []>} : vector<512x4xf32>, vector<4x16xf32>, vector<512x16xf32> -> vector<512x16xf32>
    %54 = arith.addf %48, %53 : vector<512x16xf32>
    %c0_63 = arith.constant 0 : index
    %c0_64 = arith.constant 0 : index
    %55 = vector.load %arg3[%c0_63, %c0_64] : memref<1x16xf32, #tpu.memory_space<vmem>>, vector<1x16xf32>
    %56 = vector.broadcast %55 : vector<1x16xf32> to vector<512x16xf32>
    %57 = arith.addf %54, %56 : vector<512x16xf32>
    %cst_65 = arith.constant 0.000000e+00 : f32
    %58 = vector.broadcast %cst_65 : f32 to vector<512x16xf32>
    %59 = arith.maximumf %57, %58 : vector<512x16xf32>
    %60 = vector.shape_cast %59 : vector<512x16xf32> to vector<2x8x2x16x16xf32>
    %61 = vector.extract_strided_slice %60 {offsets = [0, 0, 0, 0, 0], sizes = [2, 8, 1, 16, 16], strides = [1, 1, 1, 1, 1]} : vector<2x8x2x16x16xf32> to vector<2x8x1x16x16xf32>
    %62 = vector.shape_cast %61 : vector<2x8x1x16x16xf32> to vector<2x8x16x16xf32>
    %63 = vector.extract_strided_slice %60 {offsets = [0, 0, 1, 0, 0], sizes = [2, 8, 1, 16, 16], strides = [1, 1, 1, 1, 1]} : vector<2x8x2x16x16xf32> to vector<2x8x1x16x16xf32>
    %64 = vector.shape_cast %63 : vector<2x8x1x16x16xf32> to vector<2x8x16x16xf32>
    %65 = arith.maximumf %62, %64 : vector<2x8x16x16xf32>
    %cst_66 = arith.constant 0.000000e+00 : f32
    %66 = vector.broadcast %cst_66 : f32 to vector<2x10x20x16xf32>
    %c0_67 = arith.constant 0 : index
    %c0_68 = arith.constant 0 : index
    %c0_69 = arith.constant 0 : index
    %c0_70 = arith.constant 0 : index
    %67 = vector.load %arg13[%c0_67, %c0_68, %c0_69, %c0_70] : memref<2x10x20x16xf32, #tpu.memory_space<vmem>>, vector<2x10x20x16xf32>
    tpu.vector_store %arg13[%c0_67, %c0_68, %c0_69, %c0_70], %66 {strides = array<i32>} : memref<2x10x20x16xf32, #tpu.memory_space<vmem>>, vector<2x10x20x16xf32>,
    %c0_71 = arith.constant 0 : index
    %c1_72 = arith.constant 1 : index
    %c2_73 = arith.constant 2 : index
    %c0_74 = arith.constant 0 : index
    %68 = vector.load %arg13[%c0_71, %c1_72, %c2_73, %c0_74] : memref<2x10x20x16xf32, #tpu.memory_space<vmem>>, vector<2x8x16x16xf32>
    tpu.vector_store %arg13[%c0_71, %c1_72, %c2_73, %c0_74], %65 {strides = array<i32>} : memref<2x10x20x16xf32, #tpu.memory_space<vmem>>, vector<2x8x16x16xf32>,
    %c0_75 = arith.constant 0 : index
    %c1_76 = arith.constant 1 : index
    %c2_77 = arith.constant 2 : index
    %c0_78 = arith.constant 0 : index
    %69 = vector.load %arg13[%c0_75, %c1_76, %c2_77, %c0_78] : memref<2x10x20x16xf32, #tpu.memory_space<vmem>>, vector<2x8x16x16xf32>
    %c0_79 = arith.constant 0 : index
    %c1_80 = arith.constant 1 : index
    %c3_81 = arith.constant 3 : index
    %c0_82 = arith.constant 0 : index
    %70 = vector.load %arg13[%c0_79, %c1_80, %c3_81, %c0_82] : memref<2x10x20x16xf32, #tpu.memory_space<vmem>>, vector<2x8x16x16xf32>
    %71 = arith.maximumf %69, %70 : vector<2x8x16x16xf32>
    %c0_83 = arith.constant 0 : index
    %c1_84 = arith.constant 1 : index
    %c2_85 = arith.constant 2 : index
    %c0_86 = arith.constant 0 : index
    %72 = vector.load %arg13[%c0_83, %c1_84, %c2_85, %c0_86] : memref<2x10x20x16xf32, #tpu.memory_space<vmem>>, vector<2x8x16x16xf32>
    tpu.vector_store %arg13[%c0_83, %c1_84, %c2_85, %c0_86], %71 {strides = array<i32>} : memref<2x10x20x16xf32, #tpu.memory_space<vmem>>, vector<2x8x16x16xf32>,
    %cst_87 = arith.constant 0.000000e+00 : f32
    %73 = vector.broadcast %cst_87 : f32 to vector<256x16xf32>
    %c0_88 = arith.constant 0 : index
    %c0_89 = arith.constant 0 : index
    %c0_90 = arith.constant 0 : index
    %c0_91 = arith.constant 0 : index
    %74 = vector.load %arg13[%c0_88, %c0_89, %c0_90, %c0_91] : memref<2x10x20x16xf32, #tpu.memory_space<vmem>>, vector<2x8x16x16xf32>
    %75 = vector.shape_cast %74 : vector<2x8x16x16xf32> to vector<256x16xf32>
    %c0_92 = arith.constant 0 : index
    %c0_93 = arith.constant 0 : index
    %c0_94 = arith.constant 0 : index
    %76 = vector.load %arg4[%c0_92, %c0_93, %c0_94] : memref<9x16x16xf32, #tpu.memory_space<vmem>>, vector<1x16x16xf32>
    %77 = vector.shape_cast %76 : vector<1x16x16xf32> to vector<16x16xf32>
    %cst_95 = arith.constant dense<0.000000e+00> : vector<256x16xf32>
    %78 = tpu.matmul %75, %77, %cst_95 {dimension_numbers = #tpu.dot_dimension_numbers<[1], [0], [0], [1], [0, 0, 1, 1], [], []>} : vector<256x16xf32>, vector<16x16xf32>, vector<256x16xf32> -> vector<256x16xf32>
    %79 = arith.addf %73, %78 : vector<256x16xf32>
    %c0_96 = arith.constant 0 : index
    %c0_97 = arith.constant 0 : index
    %c2_98 = arith.constant 2 : index
    %c0_99 = arith.constant 0 : index
    %80 = vector.load %arg13[%c0_96, %c0_97, %c2_98, %c0_99] : memref<2x10x20x16xf32, #tpu.memory_space<vmem>>, vector<2x8x16x16xf32>
    %81 = vector.shape_cast %80 : vector<2x8x16x16xf32> to vector<256x16xf32>
    %c1_100 = arith.constant 1 : index
    %c0_101 = arith.constant 0 : index
    %c0_102 = arith.constant 0 : index
    %82 = vector.load %arg4[%c1_100, %c0_101, %c0_102] : memref<9x16x16xf32, #tpu.memory_space<vmem>>, vector<1x16x16xf32>
    %83 = vector.shape_cast %82 : vector<1x16x16xf32> to vector<16x16xf32>
    %cst_103 = arith.constant dense<0.000000e+00> : vector<256x16xf32>
    %84 = tpu.matmul %81, %83, %cst_103 {dimension_numbers = #tpu.dot_dimension_numbers<[1], [0], [0], [1], [0, 0, 1, 1], [], []>} : vector<256x16xf32>, vector<16x16xf32>, vector<256x16xf32> -> vector<256x16xf32>
    %85 = arith.addf %79, %84 : vector<256x16xf32>
    %c0_104 = arith.constant 0 : index
    %c0_105 = arith.constant 0 : index
    %c4_106 = arith.constant 4 : index
    %c0_107 = arith.constant 0 : index
    %86 = vector.load %arg13[%c0_104, %c0_105, %c4_106, %c0_107] : memref<2x10x20x16xf32, #tpu.memory_space<vmem>>, vector<2x8x16x16xf32>
    %87 = vector.shape_cast %86 : vector<2x8x16x16xf32> to vector<256x16xf32>
    %c2_108 = arith.constant 2 : index
    %c0_109 = arith.constant 0 : index
    %c0_110 = arith.constant 0 : index
    %88 = vector.load %arg4[%c2_108, %c0_109, %c0_110] : memref<9x16x16xf32, #tpu.memory_space<vmem>>, vector<1x16x16xf32>
    %89 = vector.shape_cast %88 : vector<1x16x16xf32> to vector<16x16xf32>
    %cst_111 = arith.constant dense<0.000000e+00> : vector<256x16xf32>
    %90 = tpu.matmul %87, %89, %cst_111 {dimension_numbers = #tpu.dot_dimension_numbers<[1], [0], [0], [1], [0, 0, 1, 1], [], []>} : vector<256x16xf32>, vector<16x16xf32>, vector<256x16xf32> -> vector<256x16xf32>
    %91 = arith.addf %85, %90 : vector<256x16xf32>
    %c0_112 = arith.constant 0 : index
    %c1_113 = arith.constant 1 : index
    %c0_114 = arith.constant 0 : index
    %c0_115 = arith.constant 0 : index
    %92 = vector.load %arg13[%c0_112, %c1_113, %c0_114, %c0_115] : memref<2x10x20x16xf32, #tpu.memory_space<vmem>>, vector<2x8x16x16xf32>
    %93 = vector.shape_cast %92 : vector<2x8x16x16xf32> to vector<256x16xf32>
    %c3_116 = arith.constant 3 : index
    %c0_117 = arith.constant 0 : index
    %c0_118 = arith.constant 0 : index
    %94 = vector.load %arg4[%c3_116, %c0_117, %c0_118] : memref<9x16x16xf32, #tpu.memory_space<vmem>>, vector<1x16x16xf32>
    %95 = vector.shape_cast %94 : vector<1x16x16xf32> to vector<16x16xf32>
    %cst_119 = arith.constant dense<0.000000e+00> : vector<256x16xf32>
    %96 = tpu.matmul %93, %95, %cst_119 {dimension_numbers = #tpu.dot_dimension_numbers<[1], [0], [0], [1], [0, 0, 1, 1], [], []>} : vector<256x16xf32>, vector<16x16xf32>, vector<256x16xf32> -> vector<256x16xf32>
    %97 = arith.addf %91, %96 : vector<256x16xf32>
    %c0_120 = arith.constant 0 : index
    %c1_121 = arith.constant 1 : index
    %c2_122 = arith.constant 2 : index
    %c0_123 = arith.constant 0 : index
    %98 = vector.load %arg13[%c0_120, %c1_121, %c2_122, %c0_123] : memref<2x10x20x16xf32, #tpu.memory_space<vmem>>, vector<2x8x16x16xf32>
    %99 = vector.shape_cast %98 : vector<2x8x16x16xf32> to vector<256x16xf32>
    %c4_124 = arith.constant 4 : index
    %c0_125 = arith.constant 0 : index
    %c0_126 = arith.constant 0 : index
    %100 = vector.load %arg4[%c4_124, %c0_125, %c0_126] : memref<9x16x16xf32, #tpu.memory_space<vmem>>, vector<1x16x16xf32>
    %101 = vector.shape_cast %100 : vector<1x16x16xf32> to vector<16x16xf32>
    %cst_127 = arith.constant dense<0.000000e+00> : vector<256x16xf32>
    %102 = tpu.matmul %99, %101, %cst_127 {dimension_numbers = #tpu.dot_dimension_numbers<[1], [0], [0], [1], [0, 0, 1, 1], [], []>} : vector<256x16xf32>, vector<16x16xf32>, vector<256x16xf32> -> vector<256x16xf32>
    %103 = arith.addf %97, %102 : vector<256x16xf32>
    %c0_128 = arith.constant 0 : index
    %c1_129 = arith.constant 1 : index
    %c4_130 = arith.constant 4 : index
    %c0_131 = arith.constant 0 : index
    %104 = vector.load %arg13[%c0_128, %c1_129, %c4_130, %c0_131] : memref<2x10x20x16xf32, #tpu.memory_space<vmem>>, vector<2x8x16x16xf32>
    %105 = vector.shape_cast %104 : vector<2x8x16x16xf32> to vector<256x16xf32>
    %c5_132 = arith.constant 5 : index
    %c0_133 = arith.constant 0 : index
    %c0_134 = arith.constant 0 : index
    %106 = vector.load %arg4[%c5_132, %c0_133, %c0_134] : memref<9x16x16xf32, #tpu.memory_space<vmem>>, vector<1x16x16xf32>
    %107 = vector.shape_cast %106 : vector<1x16x16xf32> to vector<16x16xf32>
    %cst_135 = arith.constant dense<0.000000e+00> : vector<256x16xf32>
    %108 = tpu.matmul %105, %107, %cst_135 {dimension_numbers = #tpu.dot_dimension_numbers<[1], [0], [0], [1], [0, 0, 1, 1], [], []>} : vector<256x16xf32>, vector<16x16xf32>, vector<256x16xf32> -> vector<256x16xf32>
    %109 = arith.addf %103, %108 : vector<256x16xf32>
    %c0_136 = arith.constant 0 : index
    %c2_137 = arith.constant 2 : index
    %c0_138 = arith.constant 0 : index
    %c0_139 = arith.constant 0 : index
    %110 = vector.load %arg13[%c0_136, %c2_137, %c0_138, %c0_139] : memref<2x10x20x16xf32, #tpu.memory_space<vmem>>, vector<2x8x16x16xf32>
    %111 = vector.shape_cast %110 : vector<2x8x16x16xf32> to vector<256x16xf32>
    %c6_140 = arith.constant 6 : index
    %c0_141 = arith.constant 0 : index
    %c0_142 = arith.constant 0 : index
    %112 = vector.load %arg4[%c6_140, %c0_141, %c0_142] : memref<9x16x16xf32, #tpu.memory_space<vmem>>, vector<1x16x16xf32>
    %113 = vector.shape_cast %112 : vector<1x16x16xf32> to vector<16x16xf32>
    %cst_143 = arith.constant dense<0.000000e+00> : vector<256x16xf32>
    %114 = tpu.matmul %111, %113, %cst_143 {dimension_numbers = #tpu.dot_dimension_numbers<[1], [0], [0], [1], [0, 0, 1, 1], [], []>} : vector<256x16xf32>, vector<16x16xf32>, vector<256x16xf32> -> vector<256x16xf32>
    %115 = arith.addf %109, %114 : vector<256x16xf32>
    %c0_144 = arith.constant 0 : index
    %c2_145 = arith.constant 2 : index
    %c2_146 = arith.constant 2 : index
    %c0_147 = arith.constant 0 : index
    %116 = vector.load %arg13[%c0_144, %c2_145, %c2_146, %c0_147] : memref<2x10x20x16xf32, #tpu.memory_space<vmem>>, vector<2x8x16x16xf32>
    %117 = vector.shape_cast %116 : vector<2x8x16x16xf32> to vector<256x16xf32>
    %c7_148 = arith.constant 7 : index
    %c0_149 = arith.constant 0 : index
    %c0_150 = arith.constant 0 : index
    %118 = vector.load %arg4[%c7_148, %c0_149, %c0_150] : memref<9x16x16xf32, #tpu.memory_space<vmem>>, vector<1x16x16xf32>
    %119 = vector.shape_cast %118 : vector<1x16x16xf32> to vector<16x16xf32>
    %cst_151 = arith.constant dense<0.000000e+00> : vector<256x16xf32>
    %120 = tpu.matmul %117, %119, %cst_151 {dimension_numbers = #tpu.dot_dimension_numbers<[1], [0], [0], [1], [0, 0, 1, 1], [], []>} : vector<256x16xf32>, vector<16x16xf32>, vector<256x16xf32> -> vector<256x16xf32>
    %121 = arith.addf %115, %120 : vector<256x16xf32>
    %c0_152 = arith.constant 0 : index
    %c2_153 = arith.constant 2 : index
    %c4_154 = arith.constant 4 : index
    %c0_155 = arith.constant 0 : index
    %122 = vector.load %arg13[%c0_152, %c2_153, %c4_154, %c0_155] : memref<2x10x20x16xf32, #tpu.memory_space<vmem>>, vector<2x8x16x16xf32>
    %123 = vector.shape_cast %122 : vector<2x8x16x16xf32> to vector<256x16xf32>
    %c8_156 = arith.constant 8 : index
    %c0_157 = arith.constant 0 : index
    %c0_158 = arith.constant 0 : index
    %124 = vector.load %arg4[%c8_156, %c0_157, %c0_158] : memref<9x16x16xf32, #tpu.memory_space<vmem>>, vector<1x16x16xf32>
    %125 = vector.shape_cast %124 : vector<1x16x16xf32> to vector<16x16xf32>
    %cst_159 = arith.constant dense<0.000000e+00> : vector<256x16xf32>
    %126 = tpu.matmul %123, %125, %cst_159 {dimension_numbers = #tpu.dot_dimension_numbers<[1], [0], [0], [1], [0, 0, 1, 1], [], []>} : vector<256x16xf32>, vector<16x16xf32>, vector<256x16xf32> -> vector<256x16xf32>
    %127 = arith.addf %121, %126 : vector<256x16xf32>
    %c0_160 = arith.constant 0 : index
    %c0_161 = arith.constant 0 : index
    %128 = vector.load %arg5[%c0_160, %c0_161] : memref<1x16xf32, #tpu.memory_space<vmem>>, vector<1x16xf32>
    %129 = vector.broadcast %128 : vector<1x16xf32> to vector<256x16xf32>
    %130 = arith.addf %127, %129 : vector<256x16xf32>
    %cst_162 = arith.constant 0.000000e+00 : f32
    %131 = vector.broadcast %cst_162 : f32 to vector<256x16xf32>
    %132 = arith.maximumf %130, %131 : vector<256x16xf32>
    %133 = vector.shape_cast %132 : vector<256x16xf32> to vector<2x4x2x16x16xf32>
    %134 = vector.extract_strided_slice %133 {offsets = [0, 0, 0, 0, 0], sizes = [2, 4, 1, 16, 16], strides = [1, 1, 1, 1, 1]} : vector<2x4x2x16x16xf32> to vector<2x4x1x16x16xf32>
    %135 = vector.shape_cast %134 : vector<2x4x1x16x16xf32> to vector<2x4x16x16xf32>
    %136 = vector.extract_strided_slice %133 {offsets = [0, 0, 1, 0, 0], sizes = [2, 4, 1, 16, 16], strides = [1, 1, 1, 1, 1]} : vector<2x4x2x16x16xf32> to vector<2x4x1x16x16xf32>
    %137 = vector.shape_cast %136 : vector<2x4x1x16x16xf32> to vector<2x4x16x16xf32>
    %138 = arith.maximumf %135, %137 : vector<2x4x16x16xf32>
    %c0_163 = arith.constant 0 : index
    %c0_164 = arith.constant 0 : index
    %c0_165 = arith.constant 0 : index
    %c0_166 = arith.constant 0 : index
    %139 = vector.load %arg14[%c0_163, %c0_164, %c0_165, %c0_166] : memref<2x4x16x16xf32, #tpu.memory_space<vmem>>, vector<2x4x16x16xf32>
    tpu.vector_store %arg14[%c0_163, %c0_164, %c0_165, %c0_166], %138 {strides = array<i32>} : memref<2x4x16x16xf32, #tpu.memory_space<vmem>>, vector<2x4x16x16xf32>,
    %cst_167 = arith.constant 0.000000e+00 : f32
    %140 = vector.broadcast %cst_167 : f32 to vector<2x128xf32>
    %c0_168 = arith.constant 0 : index
    %c0_169 = arith.constant 0 : index
    %c0_170 = arith.constant 0 : index
    %c0_171 = arith.constant 0 : index
    %141 = vector.load %arg14[%c0_168, %c0_169, %c0_170, %c0_171] : memref<2x4x16x16xf32, #tpu.memory_space<vmem>>, vector<2x1x1x16xf32>
    %142 = vector.shape_cast %141 : vector<2x1x1x16xf32> to vector<2x16xf32>
    %c0_172 = arith.constant 0 : index
    %c0_173 = arith.constant 0 : index
    %c2_174 = arith.constant 2 : index
    %c0_175 = arith.constant 0 : index
    %143 = vector.load %arg14[%c0_172, %c0_173, %c2_174, %c0_175] : memref<2x4x16x16xf32, #tpu.memory_space<vmem>>, vector<2x1x1x16xf32>
    %144 = vector.shape_cast %143 : vector<2x1x1x16xf32> to vector<2x16xf32>
    %145 = arith.maximumf %142, %144 : vector<2x16xf32>
    %c0_176 = arith.constant 0 : index
    %c0_177 = arith.constant 0 : index
    %c0_178 = arith.constant 0 : index
    %c0_179 = arith.constant 0 : index
    %146 = vector.load %arg6[%c0_176, %c0_177, %c0_178, %c0_179] : memref<4x4x16x128xf32, #tpu.memory_space<vmem>>, vector<1x1x16x128xf32>
    %147 = vector.shape_cast %146 : vector<1x1x16x128xf32> to vector<16x128xf32>
    %cst_180 = arith.constant dense<0.000000e+00> : vector<2x128xf32>
    %148 = tpu.matmul %145, %147, %cst_180 {dimension_numbers = #tpu.dot_dimension_numbers<[1], [0], [0], [1], [0, 0, 1, 1], [], []>} : vector<2x16xf32>, vector<16x128xf32>, vector<2x128xf32> -> vector<2x128xf32>
    %149 = arith.addf %140, %148 : vector<2x128xf32>
    %c0_181 = arith.constant 0 : index
    %c0_182 = arith.constant 0 : index
    %c4_183 = arith.constant 4 : index
    %c0_184 = arith.constant 0 : index
    %150 = vector.load %arg14[%c0_181, %c0_182, %c4_183, %c0_184] : memref<2x4x16x16xf32, #tpu.memory_space<vmem>>, vector<2x1x1x16xf32>
    %151 = vector.shape_cast %150 : vector<2x1x1x16xf32> to vector<2x16xf32>
    %c0_185 = arith.constant 0 : index
    %c0_186 = arith.constant 0 : index
    %c6_187 = arith.constant 6 : index
    %c0_188 = arith.constant 0 : index
    %152 = vector.load %arg14[%c0_185, %c0_186, %c6_187, %c0_188] : memref<2x4x16x16xf32, #tpu.memory_space<vmem>>, vector<2x1x1x16xf32>
    %153 = vector.shape_cast %152 : vector<2x1x1x16xf32> to vector<2x16xf32>
    %154 = arith.maximumf %151, %153 : vector<2x16xf32>
    %c0_189 = arith.constant 0 : index
    %c1_190 = arith.constant 1 : index
    %c0_191 = arith.constant 0 : index
    %c0_192 = arith.constant 0 : index
    %155 = vector.load %arg6[%c0_189, %c1_190, %c0_191, %c0_192] : memref<4x4x16x128xf32, #tpu.memory_space<vmem>>, vector<1x1x16x128xf32>
    %156 = vector.shape_cast %155 : vector<1x1x16x128xf32> to vector<16x128xf32>
    %cst_193 = arith.constant dense<0.000000e+00> : vector<2x128xf32>
    %157 = tpu.matmul %154, %156, %cst_193 {dimension_numbers = #tpu.dot_dimension_numbers<[1], [0], [0], [1], [0, 0, 1, 1], [], []>} : vector<2x16xf32>, vector<16x128xf32>, vector<2x128xf32> -> vector<2x128xf32>
    %158 = arith.addf %149, %157 : vector<2x128xf32>
    %c0_194 = arith.constant 0 : index
    %c0_195 = arith.constant 0 : index
    %c8_196 = arith.constant 8 : index
    %c0_197 = arith.constant 0 : index
    %159 = vector.load %arg14[%c0_194, %c0_195, %c8_196, %c0_197] : memref<2x4x16x16xf32, #tpu.memory_space<vmem>>, vector<2x1x1x16xf32>
    %160 = vector.shape_cast %159 : vector<2x1x1x16xf32> to vector<2x16xf32>
    %c0_198 = arith.constant 0 : index
    %c0_199 = arith.constant 0 : index
    %c10 = arith.constant 10 : index
    %c0_200 = arith.constant 0 : index
    %161 = vector.load %arg14[%c0_198, %c0_199, %c10, %c0_200] : memref<2x4x16x16xf32, #tpu.memory_space<vmem>>, vector<2x1x1x16xf32>
    %162 = vector.shape_cast %161 : vector<2x1x1x16xf32> to vector<2x16xf32>
    %163 = arith.maximumf %160, %162 : vector<2x16xf32>
    %c0_201 = arith.constant 0 : index
    %c2_202 = arith.constant 2 : index
    %c0_203 = arith.constant 0 : index
    %c0_204 = arith.constant 0 : index
    %164 = vector.load %arg6[%c0_201, %c2_202, %c0_203, %c0_204] : memref<4x4x16x128xf32, #tpu.memory_space<vmem>>, vector<1x1x16x128xf32>
    %165 = vector.shape_cast %164 : vector<1x1x16x128xf32> to vector<16x128xf32>
    %cst_205 = arith.constant dense<0.000000e+00> : vector<2x128xf32>
    %166 = tpu.matmul %163, %165, %cst_205 {dimension_numbers = #tpu.dot_dimension_numbers<[1], [0], [0], [1], [0, 0, 1, 1], [], []>} : vector<2x16xf32>, vector<16x128xf32>, vector<2x128xf32> -> vector<2x128xf32>
    %167 = arith.addf %158, %166 : vector<2x128xf32>
    %c0_206 = arith.constant 0 : index
    %c0_207 = arith.constant 0 : index
    %c12 = arith.constant 12 : index
    %c0_208 = arith.constant 0 : index
    %168 = vector.load %arg14[%c0_206, %c0_207, %c12, %c0_208] : memref<2x4x16x16xf32, #tpu.memory_space<vmem>>, vector<2x1x1x16xf32>
    %169 = vector.shape_cast %168 : vector<2x1x1x16xf32> to vector<2x16xf32>
    %c0_209 = arith.constant 0 : index
    %c0_210 = arith.constant 0 : index
    %c14 = arith.constant 14 : index
    %c0_211 = arith.constant 0 : index
    %170 = vector.load %arg14[%c0_209, %c0_210, %c14, %c0_211] : memref<2x4x16x16xf32, #tpu.memory_space<vmem>>, vector<2x1x1x16xf32>
    %171 = vector.shape_cast %170 : vector<2x1x1x16xf32> to vector<2x16xf32>
    %172 = arith.maximumf %169, %171 : vector<2x16xf32>
    %c0_212 = arith.constant 0 : index
    %c3_213 = arith.constant 3 : index
    %c0_214 = arith.constant 0 : index
    %c0_215 = arith.constant 0 : index
    %173 = vector.load %arg6[%c0_212, %c3_213, %c0_214, %c0_215] : memref<4x4x16x128xf32, #tpu.memory_space<vmem>>, vector<1x1x16x128xf32>
    %174 = vector.shape_cast %173 : vector<1x1x16x128xf32> to vector<16x128xf32>
    %cst_216 = arith.constant dense<0.000000e+00> : vector<2x128xf32>
    %175 = tpu.matmul %172, %174, %cst_216 {dimension_numbers = #tpu.dot_dimension_numbers<[1], [0], [0], [1], [0, 0, 1, 1], [], []>} : vector<2x16xf32>, vector<16x128xf32>, vector<2x128xf32> -> vector<2x128xf32>
    %176 = arith.addf %167, %175 : vector<2x128xf32>
    %c0_217 = arith.constant 0 : index
    %c1_218 = arith.constant 1 : index
    %c0_219 = arith.constant 0 : index
    %c0_220 = arith.constant 0 : index
    %177 = vector.load %arg14[%c0_217, %c1_218, %c0_219, %c0_220] : memref<2x4x16x16xf32, #tpu.memory_space<vmem>>, vector<2x1x1x16xf32>
    %178 = vector.shape_cast %177 : vector<2x1x1x16xf32> to vector<2x16xf32>
    %c0_221 = arith.constant 0 : index
    %c1_222 = arith.constant 1 : index
    %c2_223 = arith.constant 2 : index
    %c0_224 = arith.constant 0 : index
    %179 = vector.load %arg14[%c0_221, %c1_222, %c2_223, %c0_224] : memref<2x4x16x16xf32, #tpu.memory_space<vmem>>, vector<2x1x1x16xf32>
    %180 = vector.shape_cast %179 : vector<2x1x1x16xf32> to vector<2x16xf32>
    %181 = arith.maximumf %178, %180 : vector<2x16xf32>
    %c1_225 = arith.constant 1 : index
    %c0_226 = arith.constant 0 : index
    %c0_227 = arith.constant 0 : index
    %c0_228 = arith.constant 0 : index
    %182 = vector.load %arg6[%c1_225, %c0_226, %c0_227, %c0_228] : memref<4x4x16x128xf32, #tpu.memory_space<vmem>>, vector<1x1x16x128xf32>
    %183 = vector.shape_cast %182 : vector<1x1x16x128xf32> to vector<16x128xf32>
    %cst_229 = arith.constant dense<0.000000e+00> : vector<2x128xf32>
    %184 = tpu.matmul %181, %183, %cst_229 {dimension_numbers = #tpu.dot_dimension_numbers<[1], [0], [0], [1], [0, 0, 1, 1], [], []>} : vector<2x16xf32>, vector<16x128xf32>, vector<2x128xf32> -> vector<2x128xf32>
    %185 = arith.addf %176, %184 : vector<2x128xf32>
    %c0_230 = arith.constant 0 : index
    %c1_231 = arith.constant 1 : index
    %c4_232 = arith.constant 4 : index
    %c0_233 = arith.constant 0 : index
    %186 = vector.load %arg14[%c0_230, %c1_231, %c4_232, %c0_233] : memref<2x4x16x16xf32, #tpu.memory_space<vmem>>, vector<2x1x1x16xf32>
    %187 = vector.shape_cast %186 : vector<2x1x1x16xf32> to vector<2x16xf32>
    %c0_234 = arith.constant 0 : index
    %c1_235 = arith.constant 1 : index
    %c6_236 = arith.constant 6 : index
    %c0_237 = arith.constant 0 : index
    %188 = vector.load %arg14[%c0_234, %c1_235, %c6_236, %c0_237] : memref<2x4x16x16xf32, #tpu.memory_space<vmem>>, vector<2x1x1x16xf32>
    %189 = vector.shape_cast %188 : vector<2x1x1x16xf32> to vector<2x16xf32>
    %190 = arith.maximumf %187, %189 : vector<2x16xf32>
    %c1_238 = arith.constant 1 : index
    %c1_239 = arith.constant 1 : index
    %c0_240 = arith.constant 0 : index
    %c0_241 = arith.constant 0 : index
    %191 = vector.load %arg6[%c1_238, %c1_239, %c0_240, %c0_241] : memref<4x4x16x128xf32, #tpu.memory_space<vmem>>, vector<1x1x16x128xf32>
    %192 = vector.shape_cast %191 : vector<1x1x16x128xf32> to vector<16x128xf32>
    %cst_242 = arith.constant dense<0.000000e+00> : vector<2x128xf32>
    %193 = tpu.matmul %190, %192, %cst_242 {dimension_numbers = #tpu.dot_dimension_numbers<[1], [0], [0], [1], [0, 0, 1, 1], [], []>} : vector<2x16xf32>, vector<16x128xf32>, vector<2x128xf32> -> vector<2x128xf32>
    %194 = arith.addf %185, %193 : vector<2x128xf32>
    %c0_243 = arith.constant 0 : index
    %c1_244 = arith.constant 1 : index
    %c8_245 = arith.constant 8 : index
    %c0_246 = arith.constant 0 : index
    %195 = vector.load %arg14[%c0_243, %c1_244, %c8_245, %c0_246] : memref<2x4x16x16xf32, #tpu.memory_space<vmem>>, vector<2x1x1x16xf32>
    %196 = vector.shape_cast %195 : vector<2x1x1x16xf32> to vector<2x16xf32>
    %c0_247 = arith.constant 0 : index
    %c1_248 = arith.constant 1 : index
    %c10_249 = arith.constant 10 : index
    %c0_250 = arith.constant 0 : index
    %197 = vector.load %arg14[%c0_247, %c1_248, %c10_249, %c0_250] : memref<2x4x16x16xf32, #tpu.memory_space<vmem>>, vector<2x1x1x16xf32>
    %198 = vector.shape_cast %197 : vector<2x1x1x16xf32> to vector<2x16xf32>
    %199 = arith.maximumf %196, %198 : vector<2x16xf32>
    %c1_251 = arith.constant 1 : index
    %c2_252 = arith.constant 2 : index
    %c0_253 = arith.constant 0 : index
    %c0_254 = arith.constant 0 : index
    %200 = vector.load %arg6[%c1_251, %c2_252, %c0_253, %c0_254] : memref<4x4x16x128xf32, #tpu.memory_space<vmem>>, vector<1x1x16x128xf32>
    %201 = vector.shape_cast %200 : vector<1x1x16x128xf32> to vector<16x128xf32>
    %cst_255 = arith.constant dense<0.000000e+00> : vector<2x128xf32>
    %202 = tpu.matmul %199, %201, %cst_255 {dimension_numbers = #tpu.dot_dimension_numbers<[1], [0], [0], [1], [0, 0, 1, 1], [], []>} : vector<2x16xf32>, vector<16x128xf32>, vector<2x128xf32> -> vector<2x128xf32>
    %203 = arith.addf %194, %202 : vector<2x128xf32>
    %c0_256 = arith.constant 0 : index
    %c1_257 = arith.constant 1 : index
    %c12_258 = arith.constant 12 : index
    %c0_259 = arith.constant 0 : index
    %204 = vector.load %arg14[%c0_256, %c1_257, %c12_258, %c0_259] : memref<2x4x16x16xf32, #tpu.memory_space<vmem>>, vector<2x1x1x16xf32>
    %205 = vector.shape_cast %204 : vector<2x1x1x16xf32> to vector<2x16xf32>
    %c0_260 = arith.constant 0 : index
    %c1_261 = arith.constant 1 : index
    %c14_262 = arith.constant 14 : index
    %c0_263 = arith.constant 0 : index
    %206 = vector.load %arg14[%c0_260, %c1_261, %c14_262, %c0_263] : memref<2x4x16x16xf32, #tpu.memory_space<vmem>>, vector<2x1x1x16xf32>
    %207 = vector.shape_cast %206 : vector<2x1x1x16xf32> to vector<2x16xf32>
    %208 = arith.maximumf %205, %207 : vector<2x16xf32>
    %c1_264 = arith.constant 1 : index
    %c3_265 = arith.constant 3 : index
    %c0_266 = arith.constant 0 : index
    %c0_267 = arith.constant 0 : index
    %209 = vector.load %arg6[%c1_264, %c3_265, %c0_266, %c0_267] : memref<4x4x16x128xf32, #tpu.memory_space<vmem>>, vector<1x1x16x128xf32>
    %210 = vector.shape_cast %209 : vector<1x1x16x128xf32> to vector<16x128xf32>
    %cst_268 = arith.constant dense<0.000000e+00> : vector<2x128xf32>
    %211 = tpu.matmul %208, %210, %cst_268 {dimension_numbers = #tpu.dot_dimension_numbers<[1], [0], [0], [1], [0, 0, 1, 1], [], []>} : vector<2x16xf32>, vector<16x128xf32>, vector<2x128xf32> -> vector<2x128xf32>
    %212 = arith.addf %203, %211 : vector<2x128xf32>
    %c0_269 = arith.constant 0 : index
    %c2_270 = arith.constant 2 : index
    %c0_271 = arith.constant 0 : index
    %c0_272 = arith.constant 0 : index
    %213 = vector.load %arg14[%c0_269, %c2_270, %c0_271, %c0_272] : memref<2x4x16x16xf32, #tpu.memory_space<vmem>>, vector<2x1x1x16xf32>
    %214 = vector.shape_cast %213 : vector<2x1x1x16xf32> to vector<2x16xf32>
    %c0_273 = arith.constant 0 : index
    %c2_274 = arith.constant 2 : index
    %c2_275 = arith.constant 2 : index
    %c0_276 = arith.constant 0 : index
    %215 = vector.load %arg14[%c0_273, %c2_274, %c2_275, %c0_276] : memref<2x4x16x16xf32, #tpu.memory_space<vmem>>, vector<2x1x1x16xf32>
    %216 = vector.shape_cast %215 : vector<2x1x1x16xf32> to vector<2x16xf32>
    %217 = arith.maximumf %214, %216 : vector<2x16xf32>
    %c2_277 = arith.constant 2 : index
    %c0_278 = arith.constant 0 : index
    %c0_279 = arith.constant 0 : index
    %c0_280 = arith.constant 0 : index
    %218 = vector.load %arg6[%c2_277, %c0_278, %c0_279, %c0_280] : memref<4x4x16x128xf32, #tpu.memory_space<vmem>>, vector<1x1x16x128xf32>
    %219 = vector.shape_cast %218 : vector<1x1x16x128xf32> to vector<16x128xf32>
    %cst_281 = arith.constant dense<0.000000e+00> : vector<2x128xf32>
    %220 = tpu.matmul %217, %219, %cst_281 {dimension_numbers = #tpu.dot_dimension_numbers<[1], [0], [0], [1], [0, 0, 1, 1], [], []>} : vector<2x16xf32>, vector<16x128xf32>, vector<2x128xf32> -> vector<2x128xf32>
    %221 = arith.addf %212, %220 : vector<2x128xf32>
    %c0_282 = arith.constant 0 : index
    %c2_283 = arith.constant 2 : index
    %c4_284 = arith.constant 4 : index
    %c0_285 = arith.constant 0 : index
    %222 = vector.load %arg14[%c0_282, %c2_283, %c4_284, %c0_285] : memref<2x4x16x16xf32, #tpu.memory_space<vmem>>, vector<2x1x1x16xf32>
    %223 = vector.shape_cast %222 : vector<2x1x1x16xf32> to vector<2x16xf32>
    %c0_286 = arith.constant 0 : index
    %c2_287 = arith.constant 2 : index
    %c6_288 = arith.constant 6 : index
    %c0_289 = arith.constant 0 : index
    %224 = vector.load %arg14[%c0_286, %c2_287, %c6_288, %c0_289] : memref<2x4x16x16xf32, #tpu.memory_space<vmem>>, vector<2x1x1x16xf32>
    %225 = vector.shape_cast %224 : vector<2x1x1x16xf32> to vector<2x16xf32>
    %226 = arith.maximumf %223, %225 : vector<2x16xf32>
    %c2_290 = arith.constant 2 : index
    %c1_291 = arith.constant 1 : index
    %c0_292 = arith.constant 0 : index
    %c0_293 = arith.constant 0 : index
    %227 = vector.load %arg6[%c2_290, %c1_291, %c0_292, %c0_293] : memref<4x4x16x128xf32, #tpu.memory_space<vmem>>, vector<1x1x16x128xf32>
    %228 = vector.shape_cast %227 : vector<1x1x16x128xf32> to vector<16x128xf32>
    %cst_294 = arith.constant dense<0.000000e+00> : vector<2x128xf32>
    %229 = tpu.matmul %226, %228, %cst_294 {dimension_numbers = #tpu.dot_dimension_numbers<[1], [0], [0], [1], [0, 0, 1, 1], [], []>} : vector<2x16xf32>, vector<16x128xf32>, vector<2x128xf32> -> vector<2x128xf32>
    %230 = arith.addf %221, %229 : vector<2x128xf32>
    %c0_295 = arith.constant 0 : index
    %c2_296 = arith.constant 2 : index
    %c8_297 = arith.constant 8 : index
    %c0_298 = arith.constant 0 : index
    %231 = vector.load %arg14[%c0_295, %c2_296, %c8_297, %c0_298] : memref<2x4x16x16xf32, #tpu.memory_space<vmem>>, vector<2x1x1x16xf32>
    %232 = vector.shape_cast %231 : vector<2x1x1x16xf32> to vector<2x16xf32>
    %c0_299 = arith.constant 0 : index
    %c2_300 = arith.constant 2 : index
    %c10_301 = arith.constant 10 : index
    %c0_302 = arith.constant 0 : index
    %233 = vector.load %arg14[%c0_299, %c2_300, %c10_301, %c0_302] : memref<2x4x16x16xf32, #tpu.memory_space<vmem>>, vector<2x1x1x16xf32>
    %234 = vector.shape_cast %233 : vector<2x1x1x16xf32> to vector<2x16xf32>
    %235 = arith.maximumf %232, %234 : vector<2x16xf32>
    %c2_303 = arith.constant 2 : index
    %c2_304 = arith.constant 2 : index
    %c0_305 = arith.constant 0 : index
    %c0_306 = arith.constant 0 : index
    %236 = vector.load %arg6[%c2_303, %c2_304, %c0_305, %c0_306] : memref<4x4x16x128xf32, #tpu.memory_space<vmem>>, vector<1x1x16x128xf32>
    %237 = vector.shape_cast %236 : vector<1x1x16x128xf32> to vector<16x128xf32>
    %cst_307 = arith.constant dense<0.000000e+00> : vector<2x128xf32>
    %238 = tpu.matmul %235, %237, %cst_307 {dimension_numbers = #tpu.dot_dimension_numbers<[1], [0], [0], [1], [0, 0, 1, 1], [], []>} : vector<2x16xf32>, vector<16x128xf32>, vector<2x128xf32> -> vector<2x128xf32>
    %239 = arith.addf %230, %238 : vector<2x128xf32>
    %c0_308 = arith.constant 0 : index
    %c2_309 = arith.constant 2 : index
    %c12_310 = arith.constant 12 : index
    %c0_311 = arith.constant 0 : index
    %240 = vector.load %arg14[%c0_308, %c2_309, %c12_310, %c0_311] : memref<2x4x16x16xf32, #tpu.memory_space<vmem>>, vector<2x1x1x16xf32>
    %241 = vector.shape_cast %240 : vector<2x1x1x16xf32> to vector<2x16xf32>
    %c0_312 = arith.constant 0 : index
    %c2_313 = arith.constant 2 : index
    %c14_314 = arith.constant 14 : index
    %c0_315 = arith.constant 0 : index
    %242 = vector.load %arg14[%c0_312, %c2_313, %c14_314, %c0_315] : memref<2x4x16x16xf32, #tpu.memory_space<vmem>>, vector<2x1x1x16xf32>
    %243 = vector.shape_cast %242 : vector<2x1x1x16xf32> to vector<2x16xf32>
    %244 = arith.maximumf %241, %243 : vector<2x16xf32>
    %c2_316 = arith.constant 2 : index
    %c3_317 = arith.constant 3 : index
    %c0_318 = arith.constant 0 : index
    %c0_319 = arith.constant 0 : index
    %245 = vector.load %arg6[%c2_316, %c3_317, %c0_318, %c0_319] : memref<4x4x16x128xf32, #tpu.memory_space<vmem>>, vector<1x1x16x128xf32>
    %246 = vector.shape_cast %245 : vector<1x1x16x128xf32> to vector<16x128xf32>
    %cst_320 = arith.constant dense<0.000000e+00> : vector<2x128xf32>
    %247 = tpu.matmul %244, %246, %cst_320 {dimension_numbers = #tpu.dot_dimension_numbers<[1], [0], [0], [1], [0, 0, 1, 1], [], []>} : vector<2x16xf32>, vector<16x128xf32>, vector<2x128xf32> -> vector<2x128xf32>
    %248 = arith.addf %239, %247 : vector<2x128xf32>
    %c0_321 = arith.constant 0 : index
    %c3_322 = arith.constant 3 : index
    %c0_323 = arith.constant 0 : index
    %c0_324 = arith.constant 0 : index
    %249 = vector.load %arg14[%c0_321, %c3_322, %c0_323, %c0_324] : memref<2x4x16x16xf32, #tpu.memory_space<vmem>>, vector<2x1x1x16xf32>
    %250 = vector.shape_cast %249 : vector<2x1x1x16xf32> to vector<2x16xf32>
    %c0_325 = arith.constant 0 : index
    %c3_326 = arith.constant 3 : index
    %c2_327 = arith.constant 2 : index
    %c0_328 = arith.constant 0 : index
    %251 = vector.load %arg14[%c0_325, %c3_326, %c2_327, %c0_328] : memref<2x4x16x16xf32, #tpu.memory_space<vmem>>, vector<2x1x1x16xf32>
    %252 = vector.shape_cast %251 : vector<2x1x1x16xf32> to vector<2x16xf32>
    %253 = arith.maximumf %250, %252 : vector<2x16xf32>
    %c3_329 = arith.constant 3 : index
    %c0_330 = arith.constant 0 : index
    %c0_331 = arith.constant 0 : index
    %c0_332 = arith.constant 0 : index
    %254 = vector.load %arg6[%c3_329, %c0_330, %c0_331, %c0_332] : memref<4x4x16x128xf32, #tpu.memory_space<vmem>>, vector<1x1x16x128xf32>
    %255 = vector.shape_cast %254 : vector<1x1x16x128xf32> to vector<16x128xf32>
    %cst_333 = arith.constant dense<0.000000e+00> : vector<2x128xf32>
    %256 = tpu.matmul %253, %255, %cst_333 {dimension_numbers = #tpu.dot_dimension_numbers<[1], [0], [0], [1], [0, 0, 1, 1], [], []>} : vector<2x16xf32>, vector<16x128xf32>, vector<2x128xf32> -> vector<2x128xf32>
    %257 = arith.addf %248, %256 : vector<2x128xf32>
    %c0_334 = arith.constant 0 : index
    %c3_335 = arith.constant 3 : index
    %c4_336 = arith.constant 4 : index
    %c0_337 = arith.constant 0 : index
    %258 = vector.load %arg14[%c0_334, %c3_335, %c4_336, %c0_337] : memref<2x4x16x16xf32, #tpu.memory_space<vmem>>, vector<2x1x1x16xf32>
    %259 = vector.shape_cast %258 : vector<2x1x1x16xf32> to vector<2x16xf32>
    %c0_338 = arith.constant 0 : index
    %c3_339 = arith.constant 3 : index
    %c6_340 = arith.constant 6 : index
    %c0_341 = arith.constant 0 : index
    %260 = vector.load %arg14[%c0_338, %c3_339, %c6_340, %c0_341] : memref<2x4x16x16xf32, #tpu.memory_space<vmem>>, vector<2x1x1x16xf32>
    %261 = vector.shape_cast %260 : vector<2x1x1x16xf32> to vector<2x16xf32>
    %262 = arith.maximumf %259, %261 : vector<2x16xf32>
    %c3_342 = arith.constant 3 : index
    %c1_343 = arith.constant 1 : index
    %c0_344 = arith.constant 0 : index
    %c0_345 = arith.constant 0 : index
    %263 = vector.load %arg6[%c3_342, %c1_343, %c0_344, %c0_345] : memref<4x4x16x128xf32, #tpu.memory_space<vmem>>, vector<1x1x16x128xf32>
    %264 = vector.shape_cast %263 : vector<1x1x16x128xf32> to vector<16x128xf32>
    %cst_346 = arith.constant dense<0.000000e+00> : vector<2x128xf32>
    %265 = tpu.matmul %262, %264, %cst_346 {dimension_numbers = #tpu.dot_dimension_numbers<[1], [0], [0], [1], [0, 0, 1, 1], [], []>} : vector<2x16xf32>, vector<16x128xf32>, vector<2x128xf32> -> vector<2x128xf32>
    %266 = arith.addf %257, %265 : vector<2x128xf32>
    %c0_347 = arith.constant 0 : index
    %c3_348 = arith.constant 3 : index
    %c8_349 = arith.constant 8 : index
    %c0_350 = arith.constant 0 : index
    %267 = vector.load %arg14[%c0_347, %c3_348, %c8_349, %c0_350] : memref<2x4x16x16xf32, #tpu.memory_space<vmem>>, vector<2x1x1x16xf32>
    %268 = vector.shape_cast %267 : vector<2x1x1x16xf32> to vector<2x16xf32>
    %c0_351 = arith.constant 0 : index
    %c3_352 = arith.constant 3 : index
    %c10_353 = arith.constant 10 : index
    %c0_354 = arith.constant 0 : index
    %269 = vector.load %arg14[%c0_351, %c3_352, %c10_353, %c0_354] : memref<2x4x16x16xf32, #tpu.memory_space<vmem>>, vector<2x1x1x16xf32>
    %270 = vector.shape_cast %269 : vector<2x1x1x16xf32> to vector<2x16xf32>
    %271 = arith.maximumf %268, %270 : vector<2x16xf32>
    %c3_355 = arith.constant 3 : index
    %c2_356 = arith.constant 2 : index
    %c0_357 = arith.constant 0 : index
    %c0_358 = arith.constant 0 : index
    %272 = vector.load %arg6[%c3_355, %c2_356, %c0_357, %c0_358] : memref<4x4x16x128xf32, #tpu.memory_space<vmem>>, vector<1x1x16x128xf32>
    %273 = vector.shape_cast %272 : vector<1x1x16x128xf32> to vector<16x128xf32>
    %cst_359 = arith.constant dense<0.000000e+00> : vector<2x128xf32>
    %274 = tpu.matmul %271, %273, %cst_359 {dimension_numbers = #tpu.dot_dimension_numbers<[1], [0], [0], [1], [0, 0, 1, 1], [], []>} : vector<2x16xf32>, vector<16x128xf32>, vector<2x128xf32> -> vector<2x128xf32>
    %275 = arith.addf %266, %274 : vector<2x128xf32>
    %c0_360 = arith.constant 0 : index
    %c3_361 = arith.constant 3 : index
    %c12_362 = arith.constant 12 : index
    %c0_363 = arith.constant 0 : index
    %276 = vector.load %arg14[%c0_360, %c3_361, %c12_362, %c0_363] : memref<2x4x16x16xf32, #tpu.memory_space<vmem>>, vector<2x1x1x16xf32>
    %277 = vector.shape_cast %276 : vector<2x1x1x16xf32> to vector<2x16xf32>
    %c0_364 = arith.constant 0 : index
    %c3_365 = arith.constant 3 : index
    %c14_366 = arith.constant 14 : index
    %c0_367 = arith.constant 0 : index
    %278 = vector.load %arg14[%c0_364, %c3_365, %c14_366, %c0_367] : memref<2x4x16x16xf32, #tpu.memory_space<vmem>>, vector<2x1x1x16xf32>
    %279 = vector.shape_cast %278 : vector<2x1x1x16xf32> to vector<2x16xf32>
    %280 = arith.maximumf %277, %279 : vector<2x16xf32>
    %c3_368 = arith.constant 3 : index
    %c3_369 = arith.constant 3 : index
    %c0_370 = arith.constant 0 : index
    %c0_371 = arith.constant 0 : index
    %281 = vector.load %arg6[%c3_368, %c3_369, %c0_370, %c0_371] : memref<4x4x16x128xf32, #tpu.memory_space<vmem>>, vector<1x1x16x128xf32>
    %282 = vector.shape_cast %281 : vector<1x1x16x128xf32> to vector<16x128xf32>
    %cst_372 = arith.constant dense<0.000000e+00> : vector<2x128xf32>
    %283 = tpu.matmul %280, %282, %cst_372 {dimension_numbers = #tpu.dot_dimension_numbers<[1], [0], [0], [1], [0, 0, 1, 1], [], []>} : vector<2x16xf32>, vector<16x128xf32>, vector<2x128xf32> -> vector<2x128xf32>
    %284 = arith.addf %275, %283 : vector<2x128xf32>
    %c0_373 = arith.constant 0 : index
    %c0_374 = arith.constant 0 : index
    %285 = vector.load %arg7[%c0_373, %c0_374] : memref<1x128xf32, #tpu.memory_space<vmem>>, vector<1x128xf32>
    %286 = vector.broadcast %285 : vector<1x128xf32> to vector<2x128xf32>
    %287 = arith.addf %284, %286 : vector<2x128xf32>
    %cst_375 = arith.constant 0.000000e+00 : f32
    %288 = vector.broadcast %cst_375 : f32 to vector<2x128xf32>
    %289 = arith.maximumf %287, %288 : vector<2x128xf32>
    %c0_376 = arith.constant 0 : index
    %c0_377 = arith.constant 0 : index
    %290 = vector.load %arg8[%c0_376, %c0_377] : memref<128x128xf32, #tpu.memory_space<vmem>>, vector<128x128xf32>
    %cst_378 = arith.constant dense<0.000000e+00> : vector<2x128xf32>
    %291 = tpu.matmul %289, %290, %cst_378 {dimension_numbers = #tpu.dot_dimension_numbers<[1], [0], [0], [1], [0, 0, 1, 1], [], []>} : vector<2x128xf32>, vector<128x128xf32>, vector<2x128xf32> -> vector<2x128xf32>
    %c0_379 = arith.constant 0 : index
    %c0_380 = arith.constant 0 : index
    %292 = vector.load %arg9[%c0_379, %c0_380] : memref<1x128xf32, #tpu.memory_space<vmem>>, vector<1x128xf32>
    %293 = vector.broadcast %292 : vector<1x128xf32> to vector<2x128xf32>
    %294 = arith.addf %291, %293 : vector<2x128xf32>
    %cst_381 = arith.constant 0.000000e+00 : f32
    %295 = vector.broadcast %cst_381 : f32 to vector<2x128xf32>
    %296 = arith.maximumf %294, %295 : vector<2x128xf32>
    %c0_382 = arith.constant 0 : index
    %c0_383 = arith.constant 0 : index
    %297 = vector.load %arg10[%c0_382, %c0_383] : memref<128x4xf32, #tpu.memory_space<vmem>>, vector<128x4xf32>
    %cst_384 = arith.constant dense<0.000000e+00> : vector<2x4xf32>
    %298 = tpu.matmul %296, %297, %cst_384 {dimension_numbers = #tpu.dot_dimension_numbers<[1], [0], [0], [1], [0, 0, 1, 1], [], []>} : vector<2x128xf32>, vector<128x4xf32>, vector<2x4xf32> -> vector<2x4xf32>
    %c0_385 = arith.constant 0 : index
    %c0_386 = arith.constant 0 : index
    %299 = vector.load %arg11[%c0_385, %c0_386] : memref<1x4xf32, #tpu.memory_space<vmem>>, vector<1x4xf32>
    %300 = vector.broadcast %299 : vector<1x4xf32> to vector<2x4xf32>
    %301 = arith.addf %298, %300 : vector<2x4xf32>
    %cst_387 = arith.constant dense<0xFF800000> : vector<2xf32>
    %302 = vector.multi_reduction <maximumf>, %301, %cst_387 [1] : vector<2x4xf32> to vector<2xf32>
    %303 = vector.shape_cast %302 : vector<2xf32> to vector<2x1xf32>
    %304 = vector.broadcast %303 : vector<2x1xf32> to vector<2x4xf32>
    %305 = arith.subf %301, %304 : vector<2x4xf32>
    %306 = math.exp %305 : vector<2x4xf32>
    %cst_388 = arith.constant dense<0.000000e+00> : vector<2xf32>
    %307 = vector.multi_reduction <add>, %306, %cst_388 [1] : vector<2x4xf32> to vector<2xf32>
    %308 = vector.shape_cast %307 : vector<2xf32> to vector<2x1xf32>
    %309 = vector.broadcast %308 : vector<2x1xf32> to vector<2x4xf32>
    %310 = arith.divf %306, %309 : vector<2x4xf32>
    %c0_389 = arith.constant 0 : index
    %c0_390 = arith.constant 0 : index
    %311 = vector.load %arg12[%c0_389, %c0_390] : memref<2x4xf32, #tpu.memory_space<vmem>>, vector<2x4xf32>
    tpu.vector_store %arg12[%c0_389, %c0_390], %310 {strides = array<i32>} : memref<2x4xf32, #tpu.memory_space<vmem>>, vector<2x4xf32>,
    return
  }
  func.func @transform_0(%arg0: i32) -> (i32, i32, i32, i32) {
    %c0_i32 = arith.constant 0 : i32
    %c0_i32_0 = arith.constant 0 : i32
    %c0_i32_1 = arith.constant 0 : i32
    %c0_i32_2 = arith.constant 0 : i32
    %c0_i32_3 = arith.constant 0 : i32
    return %c0_i32, %c0_i32_0, %c0_i32_1, %c0_i32_2 : i32, i32, i32, i32
  }
  func.func @transform_1(%arg0: i32) -> (i32, i32, i32) {
    %c0_i32 = arith.constant 0 : i32
    %c0_i32_0 = arith.constant 0 : i32
    %c0_i32_1 = arith.constant 0 : i32
    %c0_i32_2 = arith.constant 0 : i32
    return %c0_i32, %c0_i32_0, %c0_i32_1 : i32, i32, i32
  }
  func.func @transform_2(%arg0: i32) -> (i32, i32) {
    %c0_i32 = arith.constant 0 : i32
    %c0_i32_0 = arith.constant 0 : i32
    %c0_i32_1 = arith.constant 0 : i32
    return %c0_i32, %c0_i32_0 : i32, i32
  }
  func.func @transform_3(%arg0: i32) -> (i32, i32, i32) {
    %c0_i32 = arith.constant 0 : i32
    %c0_i32_0 = arith.constant 0 : i32
    %c0_i32_1 = arith.constant 0 : i32
    %c0_i32_2 = arith.constant 0 : i32
    return %c0_i32, %c0_i32_0, %c0_i32_1 : i32, i32, i32
  }
  func.func @transform_4(%arg0: i32) -> (i32, i32) {
    %c0_i32 = arith.constant 0 : i32
    %c0_i32_0 = arith.constant 0 : i32
    %c0_i32_1 = arith.constant 0 : i32
    return %c0_i32, %c0_i32_0 : i32, i32
  }
  func.func @transform_5(%arg0: i32) -> (i32, i32, i32, i32) {
    %c0_i32 = arith.constant 0 : i32
    %c0_i32_0 = arith.constant 0 : i32
    %c0_i32_1 = arith.constant 0 : i32
    %c0_i32_2 = arith.constant 0 : i32
    %c0_i32_3 = arith.constant 0 : i32
    return %c0_i32, %c0_i32_0, %c0_i32_1, %c0_i32_2 : i32, i32, i32, i32
  }
  func.func @transform_6(%arg0: i32) -> (i32, i32) {
    %c0_i32 = arith.constant 0 : i32
    %c0_i32_0 = arith.constant 0 : i32
    %c0_i32_1 = arith.constant 0 : i32
    return %c0_i32, %c0_i32_0 : i32, i32
  }
  func.func @transform_7(%arg0: i32) -> (i32, i32) {
    %c0_i32 = arith.constant 0 : i32
    %c0_i32_0 = arith.constant 0 : i32
    %c0_i32_1 = arith.constant 0 : i32
    return %c0_i32, %c0_i32_0 : i32, i32
  }
  func.func @transform_8(%arg0: i32) -> (i32, i32) {
    %c0_i32 = arith.constant 0 : i32
    %c0_i32_0 = arith.constant 0 : i32
    %c0_i32_1 = arith.constant 0 : i32
    return %c0_i32, %c0_i32_0 : i32, i32
  }
  func.func @transform_9(%arg0: i32) -> (i32, i32) {
    %c0_i32 = arith.constant 0 : i32
    %c0_i32_0 = arith.constant 0 : i32
    %c0_i32_1 = arith.constant 0 : i32
    return %c0_i32, %c0_i32_0 : i32, i32
  }
  func.func @transform_10(%arg0: i32) -> (i32, i32) {
    %c0_i32 = arith.constant 0 : i32
    %c0_i32_0 = arith.constant 0 : i32
    %c0_i32_1 = arith.constant 0 : i32
    return %c0_i32, %c0_i32_0 : i32, i32
  }
  func.func @transform_11(%arg0: i32) -> (i32, i32) {
    %c0_i32 = arith.constant 0 : i32
    %c0_i32_0 = arith.constant 0 : i32
    %c0_i32_1 = arith.constant 0 : i32
    return %c0_i32, %c0_i32_0 : i32, i32
  }
}

</mosaic_0001>

<llo_original>
// kernel: actor_forward.1
$region0: #{actor_forward.1}
  #allocation0 [shape = 'u32[]', space=smem, size = 0x4, offset = 0x4, fixed_abs, tag = 'smem constant byte address 0x4 - core index']
  #allocation1 [shape = 'u32[72,128]{1,0:T(1,128)}', space=vmem, size = 0x9000, scoped, tag = 'internal scratch']
  #allocation2 [shape = 'f32[2,10,20,16]{3,2,1,0:T(8,128)}', space=vmem, size = 0x3c000, scoped, tag = 'scratch operand']
  #allocation3 [shape = 'f32[2,4,16,16]{3,2,1,0:T(8,128)}', space=vmem, size = 0x10000, scoped, tag = 'scratch operand']
  %s0 = inlined_call_operand.vmem [shape: f32[2,18,18,4], index: 0, kind: input, shape index: {}]
  %s1 = inlined_call_operand.vmem [shape: f32[9,4,16], index: 1, kind: input, shape index: {}]
  %s2 = inlined_call_operand.vmem [shape: f32[1,16], index: 2, kind: input, shape index: {}]
  %s3 = inlined_call_operand.vmem [shape: f32[9,16,16], index: 3, kind: input, shape index: {}]
  %s4 = inlined_call_operand.vmem [shape: f32[1,16], index: 4, kind: input, shape index: {}]
  %s5 = inlined_call_operand.vmem [shape: f32[4,4,16,128], index: 5, kind: input, shape index: {}]
  %s6 = inlined_call_operand.vmem [shape: f32[1,128], index: 6, kind: input, shape index: {}]
  %s7 = inlined_call_operand.vmem [shape: f32[128,128], index: 7, kind: input, shape index: {}]
  %s8 = inlined_call_operand.vmem [shape: f32[1,128], index: 8, kind: input, shape index: {}]
  %s9 = inlined_call_operand.vmem [shape: f32[128,4], index: 9, kind: input, shape index: {}]
  %s10 = inlined_call_operand.vmem [shape: f32[1,4], index: 10, kind: input, shape index: {}]
  %s11 = inlined_call_operand.hbm [shape: f32[2,4], index: 11, kind: output, shape index: {}]
  %s12 = sld [smem:[#allocation0]]
  $region54: #{actor_forward.1} parent=0
    _
  %s14 = ssub.s32 1, %s12
  %s15 = scalar_select 0, %s14, %s12
  $region1: #{actor_forward.1} parent=0
    #allocation4 [shape = 'u8[1024]{0}', space=vmem, size = 0x400, scoped, tag = 'output window, operand 0, single buffered']
    #allocation5 [shape = 's32[1]{0}', space=sflag, size = 0x4, scoped, tag = 'scoped memory for actor_forward.1']
    %16 = vsyncpa [#allocation5], 0
    // Predicated region
    $region2: #{actor_forward.1} parent=1 // pred_check
      _
    $region3: #{actor_forward.1} parent=1 // pred_check_branch
      %18 = sbr.rel (0) target = $region5
    $region4: #{actor_forward.1} parent=1 // pred_region
      _
    $region5: #{actor_forward.1} parent=1 // pred_fallthru
      _
    // Predicated region
    $region6: #{actor_forward.1} parent=1 // pred_check
      _
    $region7: #{actor_forward.1} parent=1 // pred_check_branch
      %20 = sbr.rel (0) target = $region9
    $region8: #{actor_forward.1} parent=1 // pred_region
      _
    $region9: #{actor_forward.1} parent=1 // pred_fallthru
      _
    // Predicated region
    $region10: #{actor_forward.1} parent=1 // pred_check
      _
    $region11: #{actor_forward.1} parent=1 // pred_check_branch
      %22 = sbr.rel (0) target = $region13
    $region12: #{actor_forward.1} parent=1 // pred_region
      _
    $region13: #{actor_forward.1} parent=1 // pred_fallthru
      _
    // Predicated region
    $region14: #{actor_forward.1} parent=1 // pred_check
      _
    $region15: #{actor_forward.1} parent=1 // pred_check_branch
      %24 = sbr.rel (0) target = $region17
    $region16: #{actor_forward.1} parent=1 // pred_region
      _
    $region17: #{actor_forward.1} parent=1 // pred_fallthru
      _
    // Predicated region
    $region18: #{actor_forward.1} parent=1 // pred_check
      _
    $region19: #{actor_forward.1} parent=1 // pred_check_branch
      %26 = sbr.rel (0) target = $region21
    $region20: #{actor_forward.1} parent=1 // pred_region
      _
    $region21: #{actor_forward.1} parent=1 // pred_fallthru
      _
    // Predicated region
    $region22: #{actor_forward.1} parent=1 // pred_check
      _
    $region23: #{actor_forward.1} parent=1 // pred_check_branch
      %28 = sbr.rel (0) target = $region25
    $region24: #{actor_forward.1} parent=1 // pred_region
      _
    $region25: #{actor_forward.1} parent=1 // pred_fallthru
      _
    // Predicated region
    $region26: #{actor_forward.1} parent=1 // pred_check
      _
    $region27: #{actor_forward.1} parent=1 // pred_check_branch
      %30 = sbr.rel (0) target = $region29
    $region28: #{actor_forward.1} parent=1 // pred_region
      _
    $region29: #{actor_forward.1} parent=1 // pred_fallthru
      _
    // Predicated region
    $region30: #{actor_forward.1} parent=1 // pred_check
      _
    $region31: #{actor_forward.1} parent=1 // pred_check_branch
      %32 = sbr.rel (0) target = $region33
    $region32: #{actor_forward.1} parent=1 // pred_region
      _
    $region33: #{actor_forward.1} parent=1 // pred_fallthru
      _
    // Predicated region
    $region34: #{actor_forward.1} parent=1 // pred_check
      _
    $region35: #{actor_forward.1} parent=1 // pred_check_branch
      %34 = sbr.rel (0) target = $region37
    $region36: #{actor_forward.1} parent=1 // pred_region
      _
    $region37: #{actor_forward.1} parent=1 // pred_fallthru
      _
    // Predicated region
    $region38: #{actor_forward.1} parent=1 // pred_check
      _
    $region39: #{actor_forward.1} parent=1 // pred_check_branch
      %36 = sbr.rel (0) target = $region41
    $region40: #{actor_forward.1} parent=1 // pred_region
      _
    $region41: #{actor_forward.1} parent=1 // pred_fallthru
      _
    // Predicated region
    $region42: #{actor_forward.1} parent=1 // pred_check
      _
    $region43: #{actor_forward.1} parent=1 // pred_check_branch
      %38 = sbr.rel (0) target = $region45
    $region44: #{actor_forward.1} parent=1 // pred_region
      _
    $region45: #{actor_forward.1} parent=1 // pred_fallthru
      _
    %v39 = vld [vmem:[%s0] sm:$0xff]
    %v40 = vld [vmem:[%s0 + $0x8] sm:$0xff]
    %v41 = vld [vmem:[%s0 + $0x18] sm:$0xff]
    %v42 = vld [vmem:[%s0 + $0x20] sm:$0xff]
    %v43 = vld [vmem:[%s0 + $0x30] sm:$0xff]
    %v44 = vld [vmem:[%s0 + $0x38] sm:$0xff]
    %v45 = vld [vmem:[%s0 + $0x48] sm:$0xff]
    %v46 = vld [vmem:[%s0 + $0x50] sm:$0xff]
    %v47 = vld [vmem:[%s0 + $0x60] sm:$0xff]
    %v48 = vld [vmem:[%s0 + $0x68] sm:$0xff]
    %v49 = vld [vmem:[%s0 + $0x78] sm:$0xff]
    %v50 = vld [vmem:[%s0 + $0x80] sm:$0xff]
    %v51 = vld [vmem:[%s0 + $0x90] sm:$0xff]
    %v52 = vld [vmem:[%s0 + $0x98] sm:$0xff]
    %v53 = vld [vmem:[%s0 + $0xa8] sm:$0xff]
    %v54 = vld [vmem:[%s0 + $0xb0] sm:$0xff]
    %v55 = vld [vmem:[%s0 + $0xc0] sm:$0xff]
    %v56 = vld [vmem:[%s0 + $0xc8] sm:$0xff]
    %v57 = vld [vmem:[%s0 + $0xd8] sm:$0xff]
    %v58 = vld [vmem:[%s0 + $0xe0] sm:$0xff]
    %v59 = vld [vmem:[%s0 + $0xf0] sm:$0xff]
    %v60 = vld [vmem:[%s0 + $0xf8] sm:$0xff]
    %v61 = vld [vmem:[%s0 + $0x108] sm:$0xff]
    %v62 = vld [vmem:[%s0 + $0x110] sm:$0xff]
    %v63 = vld [vmem:[%s0 + $0x120] sm:$0xff]
    %v64 = vld [vmem:[%s0 + $0x128] sm:$0xff]
    %v65 = vld [vmem:[%s0 + $0x138] sm:$0xff]
    %v66 = vld [vmem:[%s0 + $0x140] sm:$0xff]
    %v67 = vld [vmem:[%s0 + $0x150] sm:$0xff]
    %v68 = vld [vmem:[%s0 + $0x158] sm:$0xff]
    %v69 = vld [vmem:[%s0 + $0x168] sm:$0xff]
    %v70 = vld [vmem:[%s0 + $0x170] sm:$0xff]
    %v71 = vld [vmem:[%s0 + $0x1b0] sm:$0xff]
    %v72 = vld [vmem:[%s0 + $0x1b8] sm:$0xff]
    %v73 = vld [vmem:[%s0 + $0x1c8] sm:$0xff]
    %v74 = vld [vmem:[%s0 + $0x1d0] sm:$0xff]
    %v75 = vld [vmem:[%s0 + $0x1e0] sm:$0xff]
    %v76 = vld [vmem:[%s0 + $0x1e8] sm:$0xff]
    %v77 = vld [vmem:[%s0 + $0x1f8] sm:$0xff]
    %v78 = vld [vmem:[%s0 + $0x200] sm:$0xff]
    %v79 = vld [vmem:[%s0 + $0x210] sm:$0xff]
    %v80 = vld [vmem:[%s0 + $0x218] sm:$0xff]
    %v81 = vld [vmem:[%s0 + $0x228] sm:$0xff]
    %v82 = vld [vmem:[%s0 + $0x230] sm:$0xff]
    %v83 = vld [vmem:[%s0 + $0x240] sm:$0xff]
    %v84 = vld [vmem:[%s0 + $0x248] sm:$0xff]
    %v85 = vld [vmem:[%s0 + $0x258] sm:$0xff]
    %v86 = vld [vmem:[%s0 + $0x260] sm:$0xff]
    %v87 = vld [vmem:[%s0 + $0x270] sm:$0xff]
    %v88 = vld [vmem:[%s0 + $0x278] sm:$0xff]
    %v89 = vld [vmem:[%s0 + $0x288] sm:$0xff]
    %v90 = vld [vmem:[%s0 + $0x290] sm:$0xff]
    %v91 = vld [vmem:[%s0 + $0x2a0] sm:$0xff]
    %v92 = vld [vmem:[%s0 + $0x2a8] sm:$0xff]
    %v93 = vld [vmem:[%s0 + $0x2b8] sm:$0xff]
    %v94 = vld [vmem:[%s0 + $0x2c0] sm:$0xff]
    %v95 = vld [vmem:[%s0 + $0x2d0] sm:$0xff]
    %v96 = vld [vmem:[%s0 + $0x2d8] sm:$0xff]
    %v97 = vld [vmem:[%s0 + $0x2e8] sm:$0xff]
    %v98 = vld [vmem:[%s0 + $0x2f0] sm:$0xff]
    %v99 = vld [vmem:[%s0 + $0x300] sm:$0xff]
    %v100 = vld [vmem:[%s0 + $0x308] sm:$0xff]
    %v101 = vld [vmem:[%s0 + $0x318] sm:$0xff]
    %v102 = vld [vmem:[%s0 + $0x320] sm:$0xff]
    %v103 = vld [vmem:[%s1] sm:$0xf]
    %v104 = vld [vmem:[%s0 + $0x1] sm:$0xff]
    %v105 = vld [vmem:[%s0 + $0x9] sm:$0xff]
    %v106 = vld [vmem:[%s0 + $0x19] sm:$0xff]
    %v107 = vld [vmem:[%s0 + $0x21] sm:$0xff]
    %v108 = vld [vmem:[%s0 + $0x31] sm:$0xff]
    %v109 = vld [vmem:[%s0 + $0x39] sm:$0xff]
    %v110 = vld [vmem:[%s0 + $0x49] sm:$0xff]
    %v111 = vld [vmem:[%s0 + $0x51] sm:$0xff]
    %v112 = vld [vmem:[%s0 + $0x61] sm:$0xff]
    %v113 = vld [vmem:[%s0 + $0x69] sm:$0xff]
    %v114 = vld [vmem:[%s0 + $0x79] sm:$0xff]
    %v115 = vld [vmem:[%s0 + $0x81] sm:$0xff]
    %v116 = vld [vmem:[%s0 + $0x91] sm:$0xff]
    %v117 = vld [vmem:[%s0 + $0x99] sm:$0xff]
    %v118 = vld [vmem:[%s0 + $0xa9] sm:$0xff]
    %v119 = vld [vmem:[%s0 + $0xb1] sm:$0xff]
    %v120 = vld [vmem:[%s0 + $0xc1] sm:$0xff]
    %v121 = vld [vmem:[%s0 + $0xc9] sm:$0xff]
    %v122 = vld [vmem:[%s0 + $0xd9] sm:$0xff]
    %v123 = vld [vmem:[%s0 + $0xe1] sm:$0xff]
    %v124 = vld [vmem:[%s0 + $0xf1] sm:$0xff]
    %v125 = vld [vmem:[%s0 + $0xf9] sm:$0xff]
    %v126 = vld [vmem:[%s0 + $0x109] sm:$0xff]
    %v127 = vld [vmem:[%s0 + $0x111] sm:$0xff]
    %v128 = vld [vmem:[%s0 + $0x121] sm:$0xff]
    %v129 = vld [vmem:[%s0 + $0x129] sm:$0xff]
    %v130 = vld [vmem:[%s0 + $0x139] sm:$0xff]
    %v131 = vld [vmem:[%s0 + $0x141] sm:$0xff]
    %v132 = vld [vmem:[%s0 + $0x151] sm:$0xff]
    %v133 = vld [vmem:[%s0 + $0x159] sm:$0xff]
    %v134 = vld [vmem:[%s0 + $0x169] sm:$0xff]
    %v135 = vld [vmem:[%s0 + $0x171] sm:$0xff]
    %v136 = vld [vmem:[%s0 + $0x1b1] sm:$0xff]
    %v137 = vld [vmem:[%s0 + $0x1b9] sm:$0xff]
    %v138 = vld [vmem:[%s0 + $0x1c9] sm:$0xff]
    %v139 = vld [vmem:[%s0 + $0x1d1] sm:$0xff]
    %v140 = vld [vmem:[%s0 + $0x1e1] sm:$0xff]
    %v141 = vld [vmem:[%s0 + $0x1e9] sm:$0xff]
    %v142 = vld [vmem:[%s0 + $0x1f9] sm:$0xff]
    %v143 = vld [vmem:[%s0 + $0x201] sm:$0xff]
    %v144 = vld [vmem:[%s0 + $0x211] sm:$0xff]
    %v145 = vld [vmem:[%s0 + $0x219] sm:$0xff]
    %v146 = vld [vmem:[%s0 + $0x229] sm:$0xff]
    %v147 = vld [vmem:[%s0 + $0x231] sm:$0xff]
    %v148 = vld [vmem:[%s0 + $0x241] sm:$0xff]
    %v149 = vld [vmem:[%s0 + $0x249] sm:$0xff]
    %v150 = vld [vmem:[%s0 + $0x259] sm:$0xff]
    %v151 = vld [vmem:[%s0 + $0x261] sm:$0xff]
    %v152 = vld [vmem:[%s0 + $0x271] sm:$0xff]
    %v153 = vld [vmem:[%s0 + $0x279] sm:$0xff]
    %v154 = vld [vmem:[%s0 + $0x289] sm:$0xff]
    %v155 = vld [vmem:[%s0 + $0x291] sm:$0xff]
    %v156 = vld [vmem:[%s0 + $0x2a1] sm:$0xff]
    %v157 = vld [vmem:[%s0 + $0x2a9] sm:$0xff]
    %v158 = vld [vmem:[%s0 + $0x2b9] sm:$0xff]
    %v159 = vld [vmem:[%s0 + $0x2c1] sm:$0xff]
    %v160 = vld [vmem:[%s0 + $0x2d1] sm:$0xff]
    %v161 = vld [vmem:[%s0 + $0x2d9] sm:$0xff]
    %v162 = vld [vmem:[%s0 + $0x2e9] sm:$0xff]
    %v163 = vld [vmem:[%s0 + $0x2f1] sm:$0xff]
    %v164 = vld [vmem:[%s0 + $0x301] sm:$0xff]
    %v165 = vld [vmem:[%s0 + $0x309] sm:$0xff]
    %v166 = vld [vmem:[%s0 + $0x319] sm:$0xff]
    %v167 = vld [vmem:[%s0 + $0x321] sm:$0xff]
    %s168 = scalar_lea.vmem %s1, 4
    %v169 = vld [vmem:[%s168] sm:$0xf]
    %vm170 = vcmask 31744
    %v172 = vsel %vm170, %v104, 0
    %v175 = vsel %vm170, %v105, 0
    %v178 = vsel %vm170, %v106, 0
    %v181 = vsel %vm170, %v107, 0
    %v184 = vsel %vm170, %v108, 0
    %v187 = vsel %vm170, %v109, 0
    %v190 = vsel %vm170, %v110, 0
    %v193 = vsel %vm170, %v111, 0
    %v196 = vsel %vm170, %v112, 0
    %v199 = vsel %vm170, %v113, 0
    %v202 = vsel %vm170, %v114, 0
    %v205 = vsel %vm170, %v115, 0
    %v208 = vsel %vm170, %v116, 0
    %v211 = vsel %vm170, %v117, 0
    %v214 = vsel %vm170, %v118, 0
    %v217 = vsel %vm170, %v119, 0
    %v220 = vsel %vm170, %v120, 0
    %v223 = vsel %vm170, %v121, 0
    %v226 = vsel %vm170, %v122, 0
    %v229 = vsel %vm170, %v123, 0
    %v232 = vsel %vm170, %v124, 0
    %v235 = vsel %vm170, %v125, 0
    %v238 = vsel %vm170, %v126, 0
    %v241 = vsel %vm170, %v127, 0
    %v244 = vsel %vm170, %v128, 0
    %v247 = vsel %vm170, %v129, 0
    %v250 = vsel %vm170, %v130, 0
    %v253 = vsel %vm170, %v131, 0
    %v256 = vsel %vm170, %v132, 0
    %v259 = vsel %vm170, %v133, 0
    %v262 = vsel %vm170, %v134, 0
    %v265 = vsel %vm170, %v135, 0
    %v268 = vsel %vm170, %v136, 0
    %v271 = vsel %vm170, %v137, 0
    %v274 = vsel %vm170, %v138, 0
    %v277 = vsel %vm170, %v139, 0
    %v280 = vsel %vm170, %v140, 0
    %v283 = vsel %vm170, %v141, 0
    %v286 = vsel %vm170, %v142, 0
    %v289 = vsel %vm170, %v143, 0
    %v292 = vsel %vm170, %v144, 0
    %v295 = vsel %vm170, %v145, 0
    %v298 = vsel %vm170, %v146, 0
    %v301 = vsel %vm170, %v147, 0
    %v304 = vsel %vm170, %v148, 0
    %v307 = vsel %vm170, %v149, 0
    %v310 = vsel %vm170, %v150, 0
    %v313 = vsel %vm170, %v151, 0
    %v316 = vsel %vm170, %v152, 0
    %v319 = vsel %vm170, %v153, 0
    %v322 = vsel %vm170, %v154, 0
    %v325 = vsel %vm170, %v155, 0
    %v328 = vsel %vm170, %v156, 0
    %v331 = vsel %vm170, %v157, 0
    %v334 = vsel %vm170, %v158, 0
    %v337 = vsel %vm170, %v159, 0
    %v340 = vsel %vm170, %v160, 0
    %v343 = vsel %vm170, %v161, 0
    %v346 = vsel %vm170, %v162, 0
    %v349 = vsel %vm170, %v163, 0
    %v352 = vsel %vm170, %v164, 0
    %v355 = vsel %vm170, %v165, 0
    %v358 = vsel %vm170, %v166, 0
    %v361 = vsel %vm170, %v167, 0
    %vm363 = vcmask 1043456
    %v365 = vsel %vm363, %v169, 0
    %367 = vmatpush.msra.mxu0 0.0
    %368 = vmatpush.msra.mxu0 0.0
    %369 = vmatpush.msra.mxu0 0.0
    %370 = vmatpush.msra.mxu0 0.0
    %371 = vmatpush.msra.mxu0 0.0
    %372 = vmatpush.msra.mxu0 0.0
    %373 = vmatpush.msra.mxu0 0.0
    %374 = vmatpush.msra.mxu0 0.0
    %375 = vmatpush.msra.mxu0 0.0
    %376 = vmatpush.msra.mxu0 0.0
    %377 = vmatpush.msra.mxu0 0.0
    %378 = vmatpush.msra.mxu0 0.0
    %379 = vmatpush.msra.mxu0 0.0
    %380 = vmatpush.msra.mxu0 0.0
    %381 = vmatpush.msra.mxu0 0.0
    %382 = vmatpush.msra.mxu0 %v365
    %383 = vmatmul.f32.gmra.mxu0 %v172
    %v384 = vpop.f32.mrf.mxu0
    %v385 = vadd.f32 0.0, %v384
    %386 = vmatmul.f32.gmra.mxu0 %v175
    %v387 = vpop.f32.mrf.mxu0
    %v388 = vadd.f32 0.0, %v387
    %389 = vmatmul.f32.gmra.mxu0 %v178
    %v390 = vpop.f32.mrf.mxu0
    %v391 = vadd.f32 0.0, %v390
    %392 = vmatmul.f32.gmra.mxu0 %v181
    %v393 = vpop.f32.mrf.mxu0
    %v394 = vadd.f32 0.0, %v393
    %395 = vmatmul.f32.gmra.mxu0 %v184
    %v396 = vpop.f32.mrf.mxu0
    %v397 = vadd.f32 0.0, %v396
    %398 = vmatmul.f32.gmra.mxu0 %v187
    %v399 = vpop.f32.mrf.mxu0
    %v400 = vadd.f32 0.0, %v399
    %401 = vmatmul.f32.gmra.mxu0 %v190
    %v402 = vpop.f32.mrf.mxu0
    %v403 = vadd.f32 0.0, %v402
    %404 = vmatmul.f32.gmra.mxu0 %v193
    %v405 = vpop.f32.mrf.mxu0
    %v406 = vadd.f32 0.0, %v405
    %407 = vmatmul.f32.gmra.mxu0 %v196
    %v408 = vpop.f32.mrf.mxu0
    %v409 = vadd.f32 0.0, %v408
    %410 = vmatmul.f32.gmra.mxu0 %v199
    %v411 = vpop.f32.mrf.mxu0
    %v412 = vadd.f32 0.0, %v411
    %413 = vmatmul.f32.gmra.mxu0 %v202
    %v414 = vpop.f32.mrf.mxu0
    %v415 = vadd.f32 0.0, %v414
    %416 = vmatmul.f32.gmra.mxu0 %v205
    %v417 = vpop.f32.mrf.mxu0
    %v418 = vadd.f32 0.0, %v417
    %419 = vmatmul.f32.gmra.mxu0 %v208
    %v420 = vpop.f32.mrf.mxu0
    %v421 = vadd.f32 0.0, %v420
    %422 = vmatmul.f32.gmra.mxu0 %v211
    %v423 = vpop.f32.mrf.mxu0
    %v424 = vadd.f32 0.0, %v423
    %425 = vmatmul.f32.gmra.mxu0 %v214
    %v426 = vpop.f32.mrf.mxu0
    %v427 = vadd.f32 0.0, %v426
    %428 = vmatmul.f32.gmra.mxu0 %v217
    %v429 = vpop.f32.mrf.mxu0
    %v430 = vadd.f32 0.0, %v429
    %431 = vmatmul.f32.gmra.mxu0 %v220
    %v432 = vpop.f32.mrf.mxu0
    %v433 = vadd.f32 0.0, %v432
    %434 = vmatmul.f32.gmra.mxu0 %v223
    %v435 = vpop.f32.mrf.mxu0
    %v436 = vadd.f32 0.0, %v435
    %437 = vmatmul.f32.gmra.mxu0 %v226
    %v438 = vpop.f32.mrf.mxu0
    %v439 = vadd.f32 0.0, %v438
    %440 = vmatmul.f32.gmra.mxu0 %v229
    %v441 = vpop.f32.mrf.mxu0
    %v442 = vadd.f32 0.0, %v441
    %443 = vmatmul.f32.gmra.mxu0 %v232
    %v444 = vpop.f32.mrf.mxu0
    %v445 = vadd.f32 0.0, %v444
    %446 = vmatmul.f32.gmra.mxu0 %v235
    %v447 = vpop.f32.mrf.mxu0
    %v448 = vadd.f32 0.0, %v447
    %449 = vmatmul.f32.gmra.mxu0 %v238
    %v450 = vpop.f32.mrf.mxu0
    %v451 = vadd.f32 0.0, %v450
    %452 = vmatmul.f32.gmra.mxu0 %v241
    %v453 = vpop.f32.mrf.mxu0
    %v454 = vadd.f32 0.0, %v453
    %455 = vmatmul.f32.gmra.mxu0 %v244
    %v456 = vpop.f32.mrf.mxu0
    %v457 = vadd.f32 0.0, %v456
    %458 = vmatmul.f32.gmra.mxu0 %v247
    %v459 = vpop.f32.mrf.mxu0
    %v460 = vadd.f32 0.0, %v459
    %461 = vmatmul.f32.gmra.mxu0 %v250
    %v462 = vpop.f32.mrf.mxu0
    %v463 = vadd.f32 0.0, %v462
    %464 = vmatmul.f32.gmra.mxu0 %v253
    %v465 = vpop.f32.mrf.mxu0
    %v466 = vadd.f32 0.0, %v465
    %467 = vmatmul.f32.gmra.mxu0 %v256
    %v468 = vpop.f32.mrf.mxu0
    %v469 = vadd.f32 0.0, %v468
    %470 = vmatmul.f32.gmra.mxu0 %v259
    %v471 = vpop.f32.mrf.mxu0
    %v472 = vadd.f32 0.0, %v471
    %473 = vmatmul.f32.gmra.mxu0 %v262
    %v474 = vpop.f32.mrf.mxu0
    %v475 = vadd.f32 0.0, %v474
    %476 = vmatmul.f32.gmra.mxu0 %v265
    %v477 = vpop.f32.mrf.mxu0
    %v478 = vadd.f32 0.0, %v477
    %479 = vmatmul.f32.gmra.mxu0 %v268
    %v480 = vpop.f32.mrf.mxu0
    %v481 = vadd.f32 0.0, %v480
    %482 = vmatmul.f32.gmra.mxu0 %v271
    %v483 = vpop.f32.mrf.mxu0
    %v484 = vadd.f32 0.0, %v483
    %485 = vmatmul.f32.gmra.mxu0 %v274
    %v486 = vpop.f32.mrf.mxu0
    %v487 = vadd.f32 0.0, %v486
    %488 = vmatmul.f32.gmra.mxu0 %v277
    %v489 = vpop.f32.mrf.mxu0
    %v490 = vadd.f32 0.0, %v489
    %491 = vmatmul.f32.gmra.mxu0 %v280
    %v492 = vpop.f32.mrf.mxu0
    %v493 = vadd.f32 0.0, %v492
    %494 = vmatmul.f32.gmra.mxu0 %v283
    %v495 = vpop.f32.mrf.mxu0
    %v496 = vadd.f32 0.0, %v495
    %497 = vmatmul.f32.gmra.mxu0 %v286
    %v498 = vpop.f32.mrf.mxu0
    %v499 = vadd.f32 0.0, %v498
    %500 = vmatmul.f32.gmra.mxu0 %v289
    %v501 = vpop.f32.mrf.mxu0
    %v502 = vadd.f32 0.0, %v501
    %503 = vmatmul.f32.gmra.mxu0 %v292
    %v504 = vpop.f32.mrf.mxu0
    %v505 = vadd.f32 0.0, %v504
    %506 = vmatmul.f32.gmra.mxu0 %v295
    %v507 = vpop.f32.mrf.mxu0
    %v508 = vadd.f32 0.0, %v507
    %509 = vmatmul.f32.gmra.mxu0 %v298
    %v510 = vpop.f32.mrf.mxu0
    %v511 = vadd.f32 0.0, %v510
    %512 = vmatmul.f32.gmra.mxu0 %v301
    %v513 = vpop.f32.mrf.mxu0
    %v514 = vadd.f32 0.0, %v513
    %515 = vmatmul.f32.gmra.mxu0 %v304
    %v516 = vpop.f32.mrf.mxu0
    %v517 = vadd.f32 0.0, %v516
    %518 = vmatmul.f32.gmra.mxu0 %v307
    %v519 = vpop.f32.mrf.mxu0
    %v520 = vadd.f32 0.0, %v519
    %521 = vmatmul.f32.gmra.mxu0 %v310
    %v522 = vpop.f32.mrf.mxu0
    %v523 = vadd.f32 0.0, %v522
    %524 = vmatmul.f32.gmra.mxu0 %v313
    %v525 = vpop.f32.mrf.mxu0
    %v526 = vadd.f32 0.0, %v525
    %527 = vmatmul.f32.gmra.mxu0 %v316
    %v528 = vpop.f32.mrf.mxu0
    %v529 = vadd.f32 0.0, %v528
    %530 = vmatmul.f32.gmra.mxu0 %v319
    %v531 = vpop.f32.mrf.mxu0
    %v532 = vadd.f32 0.0, %v531
    %533 = vmatmul.f32.gmra.mxu0 %v322
    %v534 = vpop.f32.mrf.mxu0
    %v535 = vadd.f32 0.0, %v534
    %536 = vmatmul.f32.gmra.mxu0 %v325
    %v537 = vpop.f32.mrf.mxu0
    %v538 = vadd.f32 0.0, %v537
    %539 = vmatmul.f32.gmra.mxu0 %v328
    %v540 = vpop.f32.mrf.mxu0
    %v541 = vadd.f32 0.0, %v540
    %542 = vmatmul.f32.gmra.mxu0 %v331
    %v543 = vpop.f32.mrf.mxu0
    %v544 = vadd.f32 0.0, %v543
    %545 = vmatmul.f32.gmra.mxu0 %v334
    %v546 = vpop.f32.mrf.mxu0
    %v547 = vadd.f32 0.0, %v546
    %548 = vmatmul.f32.gmra.mxu0 %v337
    %v549 = vpop.f32.mrf.mxu0
    %v550 = vadd.f32 0.0, %v549
    %551 = vmatmul.f32.gmra.mxu0 %v340
    %v552 = vpop.f32.mrf.mxu0
    %v553 = vadd.f32 0.0, %v552
    %554 = vmatmul.f32.gmra.mxu0 %v343
    %v555 = vpop.f32.mrf.mxu0
    %v556 = vadd.f32 0.0, %v555
    %557 = vmatmul.f32.gmra.mxu0 %v346
    %v558 = vpop.f32.mrf.mxu0
    %v559 = vadd.f32 0.0, %v558
    %560 = vmatmul.f32.gmra.mxu0 %v349
    %v561 = vpop.f32.mrf.mxu0
    %v562 = vadd.f32 0.0, %v561
    %563 = vmatmul.f32.gmra.mxu0 %v352
    %v564 = vpop.f32.mrf.mxu0
    %v565 = vadd.f32 0.0, %v564
    %566 = vmatmul.f32.gmra.mxu0 %v355
    %v567 = vpop.f32.mrf.mxu0
    %v568 = vadd.f32 0.0, %v567
    %569 = vmatmul.f32.gmra.mxu0 %v358
    %v570 = vpop.f32.mrf.mxu0
    %v571 = vadd.f32 0.0, %v570
    %572 = vmatmul.f32.gmra.mxu0 %v361
    %v573 = vpop.f32.mrf.mxu0
    %v574 = vadd.f32 0.0, %v573
    %575 = vdwg.mxu0
    %v577 = vsel %vm170, %v39, 0
    %v580 = vsel %vm170, %v40, 0
    %v583 = vsel %vm170, %v41, 0
    %v586 = vsel %vm170, %v42, 0
    %v589 = vsel %vm170, %v43, 0
    %v592 = vsel %vm170, %v44, 0
    %v595 = vsel %vm170, %v45, 0
    %v598 = vsel %vm170, %v46, 0
    %v601 = vsel %vm170, %v47, 0
    %v604 = vsel %vm170, %v48, 0
    %v607 = vsel %vm170, %v49, 0
    %v610 = vsel %vm170, %v50, 0
    %v613 = vsel %vm170, %v51, 0
    %v616 = vsel %vm170, %v52, 0
    %v619 = vsel %vm170, %v53, 0
    %v622 = vsel %vm170, %v54, 0
    %v625 = vsel %vm170, %v55, 0
    %v628 = vsel %vm170, %v56, 0
    %v631 = vsel %vm170, %v57, 0
    %v634 = vsel %vm170, %v58, 0
    %v637 = vsel %vm170, %v59, 0
    %v640 = vsel %vm170, %v60, 0
    %v643 = vsel %vm170, %v61, 0
    %v646 = vsel %vm170, %v62, 0
    %v649 = vsel %vm170, %v63, 0
    %v652 = vsel %vm170, %v64, 0
    %v655 = vsel %vm170, %v65, 0
    %v658 = vsel %vm170, %v66, 0
    %v661 = vsel %vm170, %v67, 0
    %v664 = vsel %vm170, %v68, 0
    %v667 = vsel %vm170, %v69, 0
    %v670 = vsel %vm170, %v70, 0
    %v673 = vsel %vm170, %v71, 0
    %v676 = vsel %vm170, %v72, 0
    %v679 = vsel %vm170, %v73, 0
    %v682 = vsel %vm170, %v74, 0
    %v685 = vsel %vm170, %v75, 0
    %v688 = vsel %vm170, %v76, 0
    %v691 = vsel %vm170, %v77, 0
    %v694 = vsel %vm170, %v78, 0
    %v697 = vsel %vm170, %v79, 0
    %v700 = vsel %vm170, %v80, 0
    %v703 = vsel %vm170, %v81, 0
    %v706 = vsel %vm170, %v82, 0
    %v709 = vsel %vm170, %v83, 0
    %v712 = vsel %vm170, %v84, 0
    %v715 = vsel %vm170, %v85, 0
    %v718 = vsel %vm170, %v86, 0
    %v721 = vsel %vm170, %v87, 0
    %v724 = vsel %vm170, %v88, 0
    %v727 = vsel %vm170, %v89, 0
    %v730 = vsel %vm170, %v90, 0
    %v733 = vsel %vm170, %v91, 0
    %v736 = vsel %vm170, %v92, 0
    %v739 = vsel %vm170, %v93, 0
    %v742 = vsel %vm170, %v94, 0
    %v745 = vsel %vm170, %v95, 0
    %v748 = vsel %vm170, %v96, 0
    %v751 = vsel %vm170, %v97, 0
    %v754 = vsel %vm170, %v98, 0
    %v757 = vsel %vm170, %v99, 0
    %v760 = vsel %vm170, %v100, 0
    %v763 = vsel %vm170, %v101, 0
    %v766 = vsel %vm170, %v102, 0
    %v769 = vsel %vm363, %v103, 0
    %771 = vmatpush.msra.mxu0 0.0
    %772 = vmatpush.msra.mxu0 0.0
    %773 = vmatpush.msra.mxu0 0.0
    %774 = vmatpush.msra.mxu0 0.0
    %775 = vmatpush.msra.mxu0 0.0
    %776 = vmatpush.msra.mxu0 0.0
    %777 = vmatpush.msra.mxu0 0.0
    %778 = vmatpush.msra.mxu0 0.0
    %779 = vmatpush.msra.mxu0 0.0
    %780 = vmatpush.msra.mxu0 0.0
    %781 = vmatpush.msra.mxu0 0.0
    %782 = vmatpush.msra.mxu0 0.0
    %783 = vmatpush.msra.mxu0 0.0
    %784 = vmatpush.msra.mxu0 0.0
    %785 = vmatpush.msra.mxu0 0.0
    %786 = vmatpush.msra.mxu0 %v769
    %787 = vmatmul.f32.gmra.mxu0 %v577
    %v788 = vpop.f32.mrf.mxu0
    %v789 = vadd.f32 %v385, %v788
    %790 = vmatmul.f32.gmra.mxu0 %v580
    %v791 = vpop.f32.mrf.mxu0
    %v792 = vadd.f32 %v388, %v791
    %793 = vmatmul.f32.gmra.mxu0 %v583
    %v794 = vpop.f32.mrf.mxu0
    %v795 = vadd.f32 %v391, %v794
    %796 = vmatmul.f32.gmra.mxu0 %v586
    %v797 = vpop.f32.mrf.mxu0
    %v798 = vadd.f32 %v394, %v797
    %799 = vmatmul.f32.gmra.mxu0 %v589
    %v800 = vpop.f32.mrf.mxu0
    %v801 = vadd.f32 %v397, %v800
    %802 = vmatmul.f32.gmra.mxu0 %v592
    %v803 = vpop.f32.mrf.mxu0
    %v804 = vadd.f32 %v400, %v803
    %805 = vmatmul.f32.gmra.mxu0 %v595
    %v806 = vpop.f32.mrf.mxu0
    %v807 = vadd.f32 %v403, %v806
    %808 = vmatmul.f32.gmra.mxu0 %v598
    %v809 = vpop.f32.mrf.mxu0
    %v810 = vadd.f32 %v406, %v809
    %811 = vmatmul.f32.gmra.mxu0 %v601
    %v812 = vpop.f32.mrf.mxu0
    %v813 = vadd.f32 %v409, %v812
    %814 = vmatmul.f32.gmra.mxu0 %v604
    %v815 = vpop.f32.mrf.mxu0
    %v816 = vadd.f32 %v412, %v815
    %817 = vmatmul.f32.gmra.mxu0 %v607
    %v818 = vpop.f32.mrf.mxu0
    %v819 = vadd.f32 %v415, %v818
    %820 = vmatmul.f32.gmra.mxu0 %v610
    %v821 = vpop.f32.mrf.mxu0
    %v822 = vadd.f32 %v418, %v821
    %823 = vmatmul.f32.gmra.mxu0 %v613
    %v824 = vpop.f32.mrf.mxu0
    %v825 = vadd.f32 %v421, %v824
    %826 = vmatmul.f32.gmra.mxu0 %v616
    %v827 = vpop.f32.mrf.mxu0
    %v828 = vadd.f32 %v424, %v827
    %829 = vmatmul.f32.gmra.mxu0 %v619
    %v830 = vpop.f32.mrf.mxu0
    %v831 = vadd.f32 %v427, %v830
    %832 = vmatmul.f32.gmra.mxu0 %v622
    %v833 = vpop.f32.mrf.mxu0
    %v834 = vadd.f32 %v430, %v833
    %835 = vmatmul.f32.gmra.mxu0 %v625
    %v836 = vpop.f32.mrf.mxu0
    %v837 = vadd.f32 %v433, %v836
    %838 = vmatmul.f32.gmra.mxu0 %v628
    %v839 = vpop.f32.mrf.mxu0
    %v840 = vadd.f32 %v436, %v839
    %841 = vmatmul.f32.gmra.mxu0 %v631
    %v842 = vpop.f32.mrf.mxu0
    %v843 = vadd.f32 %v439, %v842
    %844 = vmatmul.f32.gmra.mxu0 %v634
    %v845 = vpop.f32.mrf.mxu0
    %v846 = vadd.f32 %v442, %v845
    %847 = vmatmul.f32.gmra.mxu0 %v637
    %v848 = vpop.f32.mrf.mxu0
    %v849 = vadd.f32 %v445, %v848
    %850 = vmatmul.f32.gmra.mxu0 %v640
    %v851 = vpop.f32.mrf.mxu0
    %v852 = vadd.f32 %v448, %v851
    %853 = vmatmul.f32.gmra.mxu0 %v643
    %v854 = vpop.f32.mrf.mxu0
    %v855 = vadd.f32 %v451, %v854
    %856 = vmatmul.f32.gmra.mxu0 %v646
    %v857 = vpop.f32.mrf.mxu0
    %v858 = vadd.f32 %v454, %v857
    %859 = vmatmul.f32.gmra.mxu0 %v649
    %v860 = vpop.f32.mrf.mxu0
    %v861 = vadd.f32 %v457, %v860
    %862 = vmatmul.f32.gmra.mxu0 %v652
    %v863 = vpop.f32.mrf.mxu0
    %v864 = vadd.f32 %v460, %v863
    %865 = vmatmul.f32.gmra.mxu0 %v655
    %v866 = vpop.f32.mrf.mxu0
    %v867 = vadd.f32 %v463, %v866
    %868 = vmatmul.f32.gmra.mxu0 %v658
    %v869 = vpop.f32.mrf.mxu0
    %v870 = vadd.f32 %v466, %v869
    %871 = vmatmul.f32.gmra.mxu0 %v661
    %v872 = vpop.f32.mrf.mxu0
    %v873 = vadd.f32 %v469, %v872
    %874 = vmatmul.f32.gmra.mxu0 %v664
    %v875 = vpop.f32.mrf.mxu0
    %v876 = vadd.f32 %v472, %v875
    %877 = vmatmul.f32.gmra.mxu0 %v667
    %v878 = vpop.f32.mrf.mxu0
    %v879 = vadd.f32 %v475, %v878
    %880 = vmatmul.f32.gmra.mxu0 %v670
    %v881 = vpop.f32.mrf.mxu0
    %v882 = vadd.f32 %v478, %v881
    %883 = vmatmul.f32.gmra.mxu0 %v673
    %v884 = vpop.f32.mrf.mxu0
    %v885 = vadd.f32 %v481, %v884
    %886 = vmatmul.f32.gmra.mxu0 %v676
    %v887 = vpop.f32.mrf.mxu0
    %v888 = vadd.f32 %v484, %v887
    %889 = vmatmul.f32.gmra.mxu0 %v679
    %v890 = vpop.f32.mrf.mxu0
    %v891 = vadd.f32 %v487, %v890
    %892 = vmatmul.f32.gmra.mxu0 %v682
    %v893 = vpop.f32.mrf.mxu0
    %v894 = vadd.f32 %v490, %v893
    %895 = vmatmul.f32.gmra.mxu0 %v685
    %v896 = vpop.f32.mrf.mxu0
    %v897 = vadd.f32 %v493, %v896
    %898 = vmatmul.f32.gmra.mxu0 %v688
    %v899 = vpop.f32.mrf.mxu0
    %v900 = vadd.f32 %v496, %v899
    %901 = vmatmul.f32.gmra.mxu0 %v691
    %v902 = vpop.f32.mrf.mxu0
    %v903 = vadd.f32 %v499, %v902
    %904 = vmatmul.f32.gmra.mxu0 %v694
    %v905 = vpop.f32.mrf.mxu0
    %v906 = vadd.f32 %v502, %v905
    %907 = vmatmul.f32.gmra.mxu0 %v697
    %v908 = vpop.f32.mrf.mxu0
    %v909 = vadd.f32 %v505, %v908
    %910 = vmatmul.f32.gmra.mxu0 %v700
    %v911 = vpop.f32.mrf.mxu0
    %v912 = vadd.f32 %v508, %v911
    %913 = vmatmul.f32.gmra.mxu0 %v703
    %v914 = vpop.f32.mrf.mxu0
    %v915 = vadd.f32 %v511, %v914
    %916 = vmatmul.f32.gmra.mxu0 %v706
    %v917 = vpop.f32.mrf.mxu0
    %v918 = vadd.f32 %v514, %v917
    %919 = vmatmul.f32.gmra.mxu0 %v709
    %v920 = vpop.f32.mrf.mxu0
    %v921 = vadd.f32 %v517, %v920
    %922 = vmatmul.f32.gmra.mxu0 %v712
    %v923 = vpop.f32.mrf.mxu0
    %v924 = vadd.f32 %v520, %v923
    %925 = vmatmul.f32.gmra.mxu0 %v715
    %v926 = vpop.f32.mrf.mxu0
    %v927 = vadd.f32 %v523, %v926
    %928 = vmatmul.f32.gmra.mxu0 %v718
    %v929 = vpop.f32.mrf.mxu0
    %v930 = vadd.f32 %v526, %v929
    %931 = vmatmul.f32.gmra.mxu0 %v721
    %v932 = vpop.f32.mrf.mxu0
    %v933 = vadd.f32 %v529, %v932
    %934 = vmatmul.f32.gmra.mxu0 %v724
    %v935 = vpop.f32.mrf.mxu0
    %v936 = vadd.f32 %v532, %v935
    %937 = vmatmul.f32.gmra.mxu0 %v727
    %v938 = vpop.f32.mrf.mxu0
    %v939 = vadd.f32 %v535, %v938
    %940 = vmatmul.f32.gmra.mxu0 %v730
    %v941 = vpop.f32.mrf.mxu0
    %v942 = vadd.f32 %v538, %v941
    %943 = vmatmul.f32.gmra.mxu0 %v733
    %v944 = vpop.f32.mrf.mxu0
    %v945 = vadd.f32 %v541, %v944
    %946 = vmatmul.f32.gmra.mxu0 %v736
    %v947 = vpop.f32.mrf.mxu0
    %v948 = vadd.f32 %v544, %v947
    %949 = vmatmul.f32.gmra.mxu0 %v739
    %v950 = vpop.f32.mrf.mxu0
    %v951 = vadd.f32 %v547, %v950
    %952 = vmatmul.f32.gmra.mxu0 %v742
    %v953 = vpop.f32.mrf.mxu0
    %v954 = vadd.f32 %v550, %v953
    %955 = vmatmul.f32.gmra.mxu0 %v745
    %v956 = vpop.f32.mrf.mxu0
    %v957 = vadd.f32 %v553, %v956
    %958 = vmatmul.f32.gmra.mxu0 %v748
    %v959 = vpop.f32.mrf.mxu0
    %v960 = vadd.f32 %v556, %v959
    %961 = vmatmul.f32.gmra.mxu0 %v751
    %v962 = vpop.f32.mrf.mxu0
    %v963 = vadd.f32 %v559, %v962
    %964 = vmatmul.f32.gmra.mxu0 %v754
    %v965 = vpop.f32.mrf.mxu0
    %v966 = vadd.f32 %v562, %v965
    %967 = vmatmul.f32.gmra.mxu0 %v757
    %v968 = vpop.f32.mrf.mxu0
    %v969 = vadd.f32 %v565, %v968
    %970 = vmatmul.f32.gmra.mxu0 %v760
    %v971 = vpop.f32.mrf.mxu0
    %v972 = vadd.f32 %v568, %v971
    %973 = vmatmul.f32.gmra.mxu0 %v763
    %v974 = vpop.f32.mrf.mxu0
    %v975 = vadd.f32 %v571, %v974
    %976 = vmatmul.f32.gmra.mxu0 %v766
    %v977 = vpop.f32.mrf.mxu0
    %v978 = vadd.f32 %v574, %v977
    %979 = vdwg.mxu0
    %v980 = vld [vmem:[%s0 + $0x2] sm:$0xff]
    %v981 = vld [vmem:[%s0 + $0xa] sm:$0xff]
    %v982 = vld [vmem:[%s0 + $0x1a] sm:$0xff]
    %v983 = vld [vmem:[%s0 + $0x22] sm:$0xff]
    %v984 = vld [vmem:[%s0 + $0x32] sm:$0xff]
    %v985 = vld [vmem:[%s0 + $0x3a] sm:$0xff]
    %v986 = vld [vmem:[%s0 + $0x4a] sm:$0xff]
    %v987 = vld [vmem:[%s0 + $0x52] sm:$0xff]
    %v988 = vld [vmem:[%s0 + $0x62] sm:$0xff]
    %v989 = vld [vmem:[%s0 + $0x6a] sm:$0xff]
    %v990 = vld [vmem:[%s0 + $0x7a] sm:$0xff]
    %v991 = vld [vmem:[%s0 + $0x82] sm:$0xff]
    %v992 = vld [vmem:[%s0 + $0x92] sm:$0xff]
    %v993 = vld [vmem:[%s0 + $0x9a] sm:$0xff]
    %v994 = vld [vmem:[%s0 + $0xaa] sm:$0xff]
    %v995 = vld [vmem:[%s0 + $0xb2] sm:$0xff]
    %v996 = vld [vmem:[%s0 + $0xc2] sm:$0xff]
    %v997 = vld [vmem:[%s0 + $0xca] sm:$0xff]
    %v998 = vld [vmem:[%s0 + $0xda] sm:$0xff]
    %v999 = vld [vmem:[%s0 + $0xe2] sm:$0xff]
    %v1000 = vld [vmem:[%s0 + $0xf2] sm:$0xff]
    %v1001 = vld [vmem:[%s0 + $0xfa] sm:$0xff]
    %v1002 = vld [vmem:[%s0 + $0x10a] sm:$0xff]
    %v1003 = vld [vmem:[%s0 + $0x112] sm:$0xff]
    %v1004 = vld [vmem:[%s0 + $0x122] sm:$0xff]
    %v1005 = vld [vmem:[%s0 + $0x12a] sm:$0xff]
    %v1006 = vld [vmem:[%s0 + $0x13a] sm:$0xff]
    %v1007 = vld [vmem:[%s0 + $0x142] sm:$0xff]
    %v1008 = vld [vmem:[%s0 + $0x152] sm:$0xff]
    %v1009 = vld [vmem:[%s0 + $0x15a] sm:$0xff]
    %v1010 = vld [vmem:[%s0 + $0x16a] sm:$0xff]
    %v1011 = vld [vmem:[%s0 + $0x172] sm:$0xff]
    %v1012 = vld [vmem:[%s0 + $0x1b2] sm:$0xff]
    %v1013 = vld [vmem:[%s0 + $0x1ba] sm:$0xff]
    %v1014 = vld [vmem:[%s0 + $0x1ca] sm:$0xff]
    %v1015 = vld [vmem:[%s0 + $0x1d2] sm:$0xff]
    %v1016 = vld [vmem:[%s0 + $0x1e2] sm:$0xff]
    %v1017 = vld [vmem:[%s0 + $0x1ea] sm:$0xff]
    %v1018 = vld [vmem:[%s0 + $0x1fa] sm:$0xff]
    %v1019 = vld [vmem:[%s0 + $0x202] sm:$0xff]
    %v1020 = vld [vmem:[%s0 + $0x212] sm:$0xff]
    %v1021 = vld [vmem:[%s0 + $0x21a] sm:$0xff]
    %v1022 = vld [vmem:[%s0 + $0x22a] sm:$0xff]
    %v1023 = vld [vmem:[%s0 + $0x232] sm:$0xff]
    %v1024 = vld [vmem:[%s0 + $0x242] sm:$0xff]
    %v1025 = vld [vmem:[%s0 + $0x24a] sm:$0xff]
    %v1026 = vld [vmem:[%s0 + $0x25a] sm:$0xff]
    %v1027 = vld [vmem:[%s0 + $0x262] sm:$0xff]
    %v1028 = vld [vmem:[%s0 + $0x272] sm:$0xff]
    %v1029 = vld [vmem:[%s0 + $0x27a] sm:$0xff]
    %v1030 = vld [vmem:[%s0 + $0x28a] sm:$0xff]
    %v1031 = vld [vmem:[%s0 + $0x292] sm:$0xff]
    %v1032 = vld [vmem:[%s0 + $0x2a2] sm:$0xff]
    %v1033 = vld [vmem:[%s0 + $0x2aa] sm:$0xff]
    %v1034 = vld [vmem:[%s0 + $0x2ba] sm:$0xff]
    %v1035 = vld [vmem:[%s0 + $0x2c2] sm:$0xff]
    %v1036 = vld [vmem:[%s0 + $0x2d2] sm:$0xff]
    %v1037 = vld [vmem:[%s0 + $0x2da] sm:$0xff]
    %v1038 = vld [vmem:[%s0 + $0x2ea] sm:$0xff]
    %v1039 = vld [vmem:[%s0 + $0x2f2] sm:$0xff]
    %v1040 = vld [vmem:[%s0 + $0x302] sm:$0xff]
    %v1041 = vld [vmem:[%s0 + $0x30a] sm:$0xff]
    %v1042 = vld [vmem:[%s0 + $0x31a] sm:$0xff]
    %v1043 = vld [vmem:[%s0 + $0x322] sm:$0xff]
    %s1044 = scalar_lea.vmem %s1, 8
    %v1045 = vld [vmem:[%s1044] sm:$0xf]
    %v1047 = vsel %vm170, %v980, 0
    %v1050 = vsel %vm170, %v981, 0
    %v1053 = vsel %vm170, %v982, 0
    %v1056 = vsel %vm170, %v983, 0
    %v1059 = vsel %vm170, %v984, 0
    %v1062 = vsel %vm170, %v985, 0
    %v1065 = vsel %vm170, %v986, 0
    %v1068 = vsel %vm170, %v987, 0
    %v1071 = vsel %vm170, %v988, 0
    %v1074 = vsel %vm170, %v989, 0
    %v1077 = vsel %vm170, %v990, 0
    %v1080 = vsel %vm170, %v991, 0
    %v1083 = vsel %vm170, %v992, 0
    %v1086 = vsel %vm170, %v993, 0
    %v1089 = vsel %vm170, %v994, 0
    %v1092 = vsel %vm170, %v995, 0
    %v1095 = vsel %vm170, %v996, 0
    %v1098 = vsel %vm170, %v997, 0
    %v1101 = vsel %vm170, %v998, 0
    %v1104 = vsel %vm170, %v999, 0
    %v1107 = vsel %vm170, %v1000, 0
    %v1110 = vsel %vm170, %v1001, 0
    %v1113 = vsel %vm170, %v1002, 0
    %v1116 = vsel %vm170, %v1003, 0
    %v1119 = vsel %vm170, %v1004, 0
    %v1122 = vsel %vm170, %v1005, 0
    %v1125 = vsel %vm170, %v1006, 0
    %v1128 = vsel %vm170, %v1007, 0
    %v1131 = vsel %vm170, %v1008, 0
    %v1134 = vsel %vm170, %v1009, 0
    %v1137 = vsel %vm170, %v1010, 0
    %v1140 = vsel %vm170, %v1011, 0
    %v1143 = vsel %vm170, %v1012, 0
    %v1146 = vsel %vm170, %v1013, 0
    %v1149 = vsel %vm170, %v1014, 0
    %v1152 = vsel %vm170, %v1015, 0
    %v1155 = vsel %vm170, %v1016, 0
    %v1158 = vsel %vm170, %v1017, 0
    %v1161 = vsel %vm170, %v1018, 0
    %v1164 = vsel %vm170, %v1019, 0
    %v1167 = vsel %vm170, %v1020, 0
    %v1170 = vsel %vm170, %v1021, 0
    %v1173 = vsel %vm170, %v1022, 0
    %v1176 = vsel %vm170, %v1023, 0
    %v1179 = vsel %vm170, %v1024, 0
    %v1182 = vsel %vm170, %v1025, 0
    %v1185 = vsel %vm170, %v1026, 0
    %v1188 = vsel %vm170, %v1027, 0
    %v1191 = vsel %vm170, %v1028, 0
    %v1194 = vsel %vm170, %v1029, 0
    %v1197 = vsel %vm170, %v1030, 0
    %v1200 = vsel %vm170, %v1031, 0
    %v1203 = vsel %vm170, %v1032, 0
    %v1206 = vsel %vm170, %v1033, 0
    %v1209 = vsel %vm170, %v1034, 0
    %v1212 = vsel %vm170, %v1035, 0
    %v1215 = vsel %vm170, %v1036, 0
    %v1218 = vsel %vm170, %v1037, 0
    %v1221 = vsel %vm170, %v1038, 0
    %v1224 = vsel %vm170, %v1039, 0
    %v1227 = vsel %vm170, %v1040, 0
    %v1230 = vsel %vm170, %v1041, 0
    %v1233 = vsel %vm170, %v1042, 0
    %v1236 = vsel %vm170, %v1043, 0
    %v1239 = vsel %vm363, %v1045, 0
    %1241 = vmatpush.msra.mxu0 0.0
    %1242 = vmatpush.msra.mxu0 0.0
    %1243 = vmatpush.msra.mxu0 0.0
    %1244 = vmatpush.msra.mxu0 0.0
    %1245 = vmatpush.msra.mxu0 0.0
    %1246 = vmatpush.msra.mxu0 0.0
    %1247 = vmatpush.msra.mxu0 0.0
    %1248 = vmatpush.msra.mxu0 0.0
    %1249 = vmatpush.msra.mxu0 0.0
    %1250 = vmatpush.msra.mxu0 0.0
    %1251 = vmatpush.msra.mxu0 0.0
    %1252 = vmatpush.msra.mxu0 0.0
    %1253 = vmatpush.msra.mxu0 0.0
    %1254 = vmatpush.msra.mxu0 0.0
    %1255 = vmatpush.msra.mxu0 0.0
    %1256 = vmatpush.msra.mxu0 %v1239
    %1257 = vmatmul.f32.gmra.mxu0 %v1047
    %v1258 = vpop.f32.mrf.mxu0
    %v1259 = vadd.f32 0.0, %v1258
    %1260 = vmatmul.f32.gmra.mxu0 %v1050
    %v1261 = vpop.f32.mrf.mxu0
    %v1262 = vadd.f32 0.0, %v1261
    %1263 = vmatmul.f32.gmra.mxu0 %v1053
    %v1264 = vpop.f32.mrf.mxu0
    %v1265 = vadd.f32 0.0, %v1264
    %1266 = vmatmul.f32.gmra.mxu0 %v1056
    %v1267 = vpop.f32.mrf.mxu0
    %v1268 = vadd.f32 0.0, %v1267
    %1269 = vmatmul.f32.gmra.mxu0 %v1059
    %v1270 = vpop.f32.mrf.mxu0
    %v1271 = vadd.f32 0.0, %v1270
    %1272 = vmatmul.f32.gmra.mxu0 %v1062
    %v1273 = vpop.f32.mrf.mxu0
    %v1274 = vadd.f32 0.0, %v1273
    %1275 = vmatmul.f32.gmra.mxu0 %v1065
    %v1276 = vpop.f32.mrf.mxu0
    %v1277 = vadd.f32 0.0, %v1276
    %1278 = vmatmul.f32.gmra.mxu0 %v1068
    %v1279 = vpop.f32.mrf.mxu0
    %v1280 = vadd.f32 0.0, %v1279
    %1281 = vmatmul.f32.gmra.mxu0 %v1071
    %v1282 = vpop.f32.mrf.mxu0
    %v1283 = vadd.f32 0.0, %v1282
    %1284 = vmatmul.f32.gmra.mxu0 %v1074
    %v1285 = vpop.f32.mrf.mxu0
    %v1286 = vadd.f32 0.0, %v1285
    %1287 = vmatmul.f32.gmra.mxu0 %v1077
    %v1288 = vpop.f32.mrf.mxu0
    %v1289 = vadd.f32 0.0, %v1288
    %1290 = vmatmul.f32.gmra.mxu0 %v1080
    %v1291 = vpop.f32.mrf.mxu0
    %v1292 = vadd.f32 0.0, %v1291
    %1293 = vmatmul.f32.gmra.mxu0 %v1083
    %v1294 = vpop.f32.mrf.mxu0
    %v1295 = vadd.f32 0.0, %v1294
    %1296 = vmatmul.f32.gmra.mxu0 %v1086
    %v1297 = vpop.f32.mrf.mxu0
    %v1298 = vadd.f32 0.0, %v1297
    %1299 = vmatmul.f32.gmra.mxu0 %v1089
    %v1300 = vpop.f32.mrf.mxu0
    %v1301 = vadd.f32 0.0, %v1300
    %1302 = vmatmul.f32.gmra.mxu0 %v1092
    %v1303 = vpop.f32.mrf.mxu0
    %v1304 = vadd.f32 0.0, %v1303
    %1305 = vmatmul.f32.gmra.mxu0 %v1095
    %v1306 = vpop.f32.mrf.mxu0
    %v1307 = vadd.f32 0.0, %v1306
    %1308 = vmatmul.f32.gmra.mxu0 %v1098
    %v1309 = vpop.f32.mrf.mxu0
    %v1310 = vadd.f32 0.0, %v1309
    %1311 = vmatmul.f32.gmra.mxu0 %v1101
    %v1312 = vpop.f32.mrf.mxu0
    %v1313 = vadd.f32 0.0, %v1312
    %1314 = vmatmul.f32.gmra.mxu0 %v1104
    %v1315 = vpop.f32.mrf.mxu0
    %v1316 = vadd.f32 0.0, %v1315
    %1317 = vmatmul.f32.gmra.mxu0 %v1107
    %v1318 = vpop.f32.mrf.mxu0
    %v1319 = vadd.f32 0.0, %v1318
    %1320 = vmatmul.f32.gmra.mxu0 %v1110
    %v1321 = vpop.f32.mrf.mxu0
    %v1322 = vadd.f32 0.0, %v1321
    %1323 = vmatmul.f32.gmra.mxu0 %v1113
    %v1324 = vpop.f32.mrf.mxu0
    %v1325 = vadd.f32 0.0, %v1324
    %1326 = vmatmul.f32.gmra.mxu0 %v1116
    %v1327 = vpop.f32.mrf.mxu0
    %v1328 = vadd.f32 0.0, %v1327
    %1329 = vmatmul.f32.gmra.mxu0 %v1119
    %v1330 = vpop.f32.mrf.mxu0
    %v1331 = vadd.f32 0.0, %v1330
    %1332 = vmatmul.f32.gmra.mxu0 %v1122
    %v1333 = vpop.f32.mrf.mxu0
    %v1334 = vadd.f32 0.0, %v1333
    %1335 = vmatmul.f32.gmra.mxu0 %v1125
    %v1336 = vpop.f32.mrf.mxu0
    %v1337 = vadd.f32 0.0, %v1336
    %1338 = vmatmul.f32.gmra.mxu0 %v1128
    %v1339 = vpop.f32.mrf.mxu0
    %v1340 = vadd.f32 0.0, %v1339
    %1341 = vmatmul.f32.gmra.mxu0 %v1131
    %v1342 = vpop.f32.mrf.mxu0
    %v1343 = vadd.f32 0.0, %v1342
    %1344 = vmatmul.f32.gmra.mxu0 %v1134
    %v1345 = vpop.f32.mrf.mxu0
    %v1346 = vadd.f32 0.0, %v1345
    %1347 = vmatmul.f32.gmra.mxu0 %v1137
    %v1348 = vpop.f32.mrf.mxu0
    %v1349 = vadd.f32 0.0, %v1348
    %1350 = vmatmul.f32.gmra.mxu0 %v1140
    %v1351 = vpop.f32.mrf.mxu0
    %v1352 = vadd.f32 0.0, %v1351
    %1353 = vmatmul.f32.gmra.mxu0 %v1143
    %v1354 = vpop.f32.mrf.mxu0
    %v1355 = vadd.f32 0.0, %v1354
    %1356 = vmatmul.f32.gmra.mxu0 %v1146
    %v1357 = vpop.f32.mrf.mxu0
    %v1358 = vadd.f32 0.0, %v1357
    %1359 = vmatmul.f32.gmra.mxu0 %v1149
    %v1360 = vpop.f32.mrf.mxu0
    %v1361 = vadd.f32 0.0, %v1360
    %1362 = vmatmul.f32.gmra.mxu0 %v1152
    %v1363 = vpop.f32.mrf.mxu0
    %v1364 = vadd.f32 0.0, %v1363
    %1365 = vmatmul.f32.gmra.mxu0 %v1155
    %v1366 = vpop.f32.mrf.mxu0
    %v1367 = vadd.f32 0.0, %v1366
    %1368 = vmatmul.f32.gmra.mxu0 %v1158
    %v1369 = vpop.f32.mrf.mxu0
    %v1370 = vadd.f32 0.0, %v1369
    %1371 = vmatmul.f32.gmra.mxu0 %v1161
    %v1372 = vpop.f32.mrf.mxu0
    %v1373 = vadd.f32 0.0, %v1372
    %1374 = vmatmul.f32.gmra.mxu0 %v1164
    %v1375 = vpop.f32.mrf.mxu0
    %v1376 = vadd.f32 0.0, %v1375
    %1377 = vmatmul.f32.gmra.mxu0 %v1167
    %v1378 = vpop.f32.mrf.mxu0
    %v1379 = vadd.f32 0.0, %v1378
    %1380 = vmatmul.f32.gmra.mxu0 %v1170
    %v1381 = vpop.f32.mrf.mxu0
    %v1382 = vadd.f32 0.0, %v1381
    %1383 = vmatmul.f32.gmra.mxu0 %v1173
    %v1384 = vpop.f32.mrf.mxu0
    %v1385 = vadd.f32 0.0, %v1384
    %1386 = vmatmul.f32.gmra.mxu0 %v1176
    %v1387 = vpop.f32.mrf.mxu0
    %v1388 = vadd.f32 0.0, %v1387
    %1389 = vmatmul.f32.gmra.mxu0 %v1179
    %v1390 = vpop.f32.mrf.mxu0
    %v1391 = vadd.f32 0.0, %v1390
    %1392 = vmatmul.f32.gmra.mxu0 %v1182
    %v1393 = vpop.f32.mrf.mxu0
    %v1394 = vadd.f32 0.0, %v1393
    %1395 = vmatmul.f32.gmra.mxu0 %v1185
    %v1396 = vpop.f32.mrf.mxu0
    %v1397 = vadd.f32 0.0, %v1396
    %1398 = vmatmul.f32.gmra.mxu0 %v1188
    %v1399 = vpop.f32.mrf.mxu0
    %v1400 = vadd.f32 0.0, %v1399
    %1401 = vmatmul.f32.gmra.mxu0 %v1191
    %v1402 = vpop.f32.mrf.mxu0
    %v1403 = vadd.f32 0.0, %v1402
    %1404 = vmatmul.f32.gmra.mxu0 %v1194
    %v1405 = vpop.f32.mrf.mxu0
    %v1406 = vadd.f32 0.0, %v1405
    %1407 = vmatmul.f32.gmra.mxu0 %v1197
    %v1408 = vpop.f32.mrf.mxu0
    %v1409 = vadd.f32 0.0, %v1408
    %1410 = vmatmul.f32.gmra.mxu0 %v1200
    %v1411 = vpop.f32.mrf.mxu0
    %v1412 = vadd.f32 0.0, %v1411
    %1413 = vmatmul.f32.gmra.mxu0 %v1203
    %v1414 = vpop.f32.mrf.mxu0
    %v1415 = vadd.f32 0.0, %v1414
    %1416 = vmatmul.f32.gmra.mxu0 %v1206
    %v1417 = vpop.f32.mrf.mxu0
    %v1418 = vadd.f32 0.0, %v1417
    %1419 = vmatmul.f32.gmra.mxu0 %v1209
    %v1420 = vpop.f32.mrf.mxu0
    %v1421 = vadd.f32 0.0, %v1420
    %1422 = vmatmul.f32.gmra.mxu0 %v1212
    %v1423 = vpop.f32.mrf.mxu0
    %v1424 = vadd.f32 0.0, %v1423
    %1425 = vmatmul.f32.gmra.mxu0 %v1215
    %v1426 = vpop.f32.mrf.mxu0
    %v1427 = vadd.f32 0.0, %v1426
    %1428 = vmatmul.f32.gmra.mxu0 %v1218
    %v1429 = vpop.f32.mrf.mxu0
    %v1430 = vadd.f32 0.0, %v1429
    %1431 = vmatmul.f32.gmra.mxu0 %v1221
    %v1432 = vpop.f32.mrf.mxu0
    %v1433 = vadd.f32 0.0, %v1432
    %1434 = vmatmul.f32.gmra.mxu0 %v1224
    %v1435 = vpop.f32.mrf.mxu0
    %v1436 = vadd.f32 0.0, %v1435
    %1437 = vmatmul.f32.gmra.mxu0 %v1227
    %v1438 = vpop.f32.mrf.mxu0
    %v1439 = vadd.f32 0.0, %v1438
    %1440 = vmatmul.f32.gmra.mxu0 %v1230
    %v1441 = vpop.f32.mrf.mxu0
    %v1442 = vadd.f32 0.0, %v1441
    %1443 = vmatmul.f32.gmra.mxu0 %v1233
    %v1444 = vpop.f32.mrf.mxu0
    %v1445 = vadd.f32 0.0, %v1444
    %1446 = vmatmul.f32.gmra.mxu0 %v1236
    %v1447 = vpop.f32.mrf.mxu0
    %v1448 = vadd.f32 0.0, %v1447
    %1449 = vdwg.mxu0
    %v1450 = vadd.f32 %v789, %v1259
    %v1451 = vadd.f32 %v792, %v1262
    %v1452 = vadd.f32 %v795, %v1265
    %v1453 = vadd.f32 %v798, %v1268
    %v1454 = vadd.f32 %v801, %v1271
    %v1455 = vadd.f32 %v804, %v1274
    %v1456 = vadd.f32 %v807, %v1277
    %v1457 = vadd.f32 %v810, %v1280
    %v1458 = vadd.f32 %v813, %v1283
    %v1459 = vadd.f32 %v816, %v1286
    %v1460 = vadd.f32 %v819, %v1289
    %v1461 = vadd.f32 %v822, %v1292
    %v1462 = vadd.f32 %v825, %v1295
    %v1463 = vadd.f32 %v828, %v1298
    %v1464 = vadd.f32 %v831, %v1301
    %v1465 = vadd.f32 %v834, %v1304
    %v1466 = vadd.f32 %v837, %v1307
    %v1467 = vadd.f32 %v840, %v1310
    %v1468 = vadd.f32 %v843, %v1313
    %v1469 = vadd.f32 %v846, %v1316
    %v1470 = vadd.f32 %v849, %v1319
    %v1471 = vadd.f32 %v852, %v1322
    %v1472 = vadd.f32 %v855, %v1325
    %v1473 = vadd.f32 %v858, %v1328
    %v1474 = vadd.f32 %v861, %v1331
    %v1475 = vadd.f32 %v864, %v1334
    %v1476 = vadd.f32 %v867, %v1337
    %v1477 = vadd.f32 %v870, %v1340
    %v1478 = vadd.f32 %v873, %v1343
    %v1479 = vadd.f32 %v876, %v1346
    %v1480 = vadd.f32 %v879, %v1349
    %v1481 = vadd.f32 %v882, %v1352
    %v1482 = vadd.f32 %v885, %v1355
    %v1483 = vadd.f32 %v888, %v1358
    %v1484 = vadd.f32 %v891, %v1361
    %v1485 = vadd.f32 %v894, %v1364
    %v1486 = vadd.f32 %v897, %v1367
    %v1487 = vadd.f32 %v900, %v1370
    %v1488 = vadd.f32 %v903, %v1373
    %v1489 = vadd.f32 %v906, %v1376
    %v1490 = vadd.f32 %v909, %v1379
    %v1491 = vadd.f32 %v912, %v1382
    %v1492 = vadd.f32 %v915, %v1385
    %v1493 = vadd.f32 %v918, %v1388
    %v1494 = vadd.f32 %v921, %v1391
    %v1495 = vadd.f32 %v924, %v1394
    %v1496 = vadd.f32 %v927, %v1397
    %v1497 = vadd.f32 %v930, %v1400
    %v1498 = vadd.f32 %v933, %v1403
    %v1499 = vadd.f32 %v936, %v1406
    %v1500 = vadd.f32 %v939, %v1409
    %v1501 = vadd.f32 %v942, %v1412
    %v1502 = vadd.f32 %v945, %v1415
    %v1503 = vadd.f32 %v948, %v1418
    %v1504 = vadd.f32 %v951, %v1421
    %v1505 = vadd.f32 %v954, %v1424
    %v1506 = vadd.f32 %v957, %v1427
    %v1507 = vadd.f32 %v960, %v1430
    %v1508 = vadd.f32 %v963, %v1433
    %v1509 = vadd.f32 %v966, %v1436
    %v1510 = vadd.f32 %v969, %v1439
    %v1511 = vadd.f32 %v972, %v1442
    %v1512 = vadd.f32 %v975, %v1445
    %v1513 = vadd.f32 %v978, %v1448
    %s1514 = scalar_lea.vmem %s0, 24
    %v1515 = vld [vmem:[%s1514] sm:$0xff]
    %v1516 = vld [vmem:[%s1514 + $0x8] sm:$0xff]
    %v1517 = vld [vmem:[%s1514 + $0x18] sm:$0xff]
    %v1518 = vld [vmem:[%s1514 + $0x20] sm:$0xff]
    %v1519 = vld [vmem:[%s1514 + $0x30] sm:$0xff]
    %v1520 = vld [vmem:[%s1514 + $0x38] sm:$0xff]
    %v1521 = vld [vmem:[%s1514 + $0x48] sm:$0xff]
    %v1522 = vld [vmem:[%s1514 + $0x50] sm:$0xff]
    %v1523 = vld [vmem:[%s1514 + $0x60] sm:$0xff]
    %v1524 = vld [vmem:[%s1514 + $0x68] sm:$0xff]
    %v1525 = vld [vmem:[%s1514 + $0x78] sm:$0xff]
    %v1526 = vld [vmem:[%s1514 + $0x80] sm:$0xff]
    %v1527 = vld [vmem:[%s1514 + $0x90] sm:$0xff]
    %v1528 = vld [vmem:[%s1514 + $0x98] sm:$0xff]
    %v1529 = vld [vmem:[%s1514 + $0xa8] sm:$0xff]
    %v1530 = vld [vmem:[%s1514 + $0xb0] sm:$0xff]
    %v1531 = vld [vmem:[%s1514 + $0xc0] sm:$0xff]
    %v1532 = vld [vmem:[%s1514 + $0xc8] sm:$0xff]
    %v1533 = vld [vmem:[%s1514 + $0xd8] sm:$0xff]
    %v1534 = vld [vmem:[%s1514 + $0xe0] sm:$0xff]
    %v1535 = vld [vmem:[%s1514 + $0xf0] sm:$0xff]
    %v1536 = vld [vmem:[%s1514 + $0xf8] sm:$0xff]
    %v1537 = vld [vmem:[%s1514 + $0x108] sm:$0xff]
    %v1538 = vld [vmem:[%s1514 + $0x110] sm:$0xff]
    %v1539 = vld [vmem:[%s1514 + $0x120] sm:$0xff]
    %v1540 = vld [vmem:[%s1514 + $0x128] sm:$0xff]
    %v1541 = vld [vmem:[%s1514 + $0x138] sm:$0xff]
    %v1542 = vld [vmem:[%s1514 + $0x140] sm:$0xff]
    %v1543 = vld [vmem:[%s1514 + $0x150] sm:$0xff]
    %v1544 = vld [vmem:[%s1514 + $0x158] sm:$0xff]
    %v1545 = vld [vmem:[%s1514 + $0x168] sm:$0xff]
    %v1546 = vld [vmem:[%s1514 + $0x170] sm:$0xff]
    %v1547 = vld [vmem:[%s1514 + $0x1b0] sm:$0xff]
    %v1548 = vld [vmem:[%s1514 + $0x1b8] sm:$0xff]
    %v1549 = vld [vmem:[%s1514 + $0x1c8] sm:$0xff]
    %v1550 = vld [vmem:[%s1514 + $0x1d0] sm:$0xff]
    %v1551 = vld [vmem:[%s1514 + $0x1e0] sm:$0xff]
    %v1552 = vld [vmem:[%s1514 + $0x1e8] sm:$0xff]
    %v1553 = vld [vmem:[%s1514 + $0x1f8] sm:$0xff]
    %v1554 = vld [vmem:[%s1514 + $0x200] sm:$0xff]
    %v1555 = vld [vmem:[%s1514 + $0x210] sm:$0xff]
    %v1556 = vld [vmem:[%s1514 + $0x218] sm:$0xff]
    %v1557 = vld [vmem:[%s1514 + $0x228] sm:$0xff]
    %v1558 = vld [vmem:[%s1514 + $0x230] sm:$0xff]
    %v1559 = vld [vmem:[%s1514 + $0x240] sm:$0xff]
    %v1560 = vld [vmem:[%s1514 + $0x248] sm:$0xff]
    %v1561 = vld [vmem:[%s1514 + $0x258] sm:$0xff]
    %v1562 = vld [vmem:[%s1514 + $0x260] sm:$0xff]
    %v1563 = vld [vmem:[%s1514 + $0x270] sm:$0xff]
    %v1564 = vld [vmem:[%s1514 + $0x278] sm:$0xff]
    %v1565 = vld [vmem:[%s1514 + $0x288] sm:$0xff]
    %v1566 = vld [vmem:[%s1514 + $0x290] sm:$0xff]
    %v1567 = vld [vmem:[%s1514 + $0x2a0] sm:$0xff]
    %v1568 = vld [vmem:[%s1514 + $0x2a8] sm:$0xff]
    %v1569 = vld [vmem:[%s1514 + $0x2b8] sm:$0xff]
    %v1570 = vld [vmem:[%s1514 + $0x2c0] sm:$0xff]
    %v1571 = vld [vmem:[%s1514 + $0x2d0] sm:$0xff]
    %v1572 = vld [vmem:[%s1514 + $0x2d8] sm:$0xff]
    %v1573 = vld [vmem:[%s1514 + $0x2e8] sm:$0xff]
    %v1574 = vld [vmem:[%s1514 + $0x2f0] sm:$0xff]
    %v1575 = vld [vmem:[%s1514 + $0x300] sm:$0xff]
    %v1576 = vld [vmem:[%s1514 + $0x308] sm:$0xff]
    %v1577 = vld [vmem:[%s1514 + $0x318] sm:$0xff]
    %v1578 = vld [vmem:[%s1514 + $0x320] sm:$0xff]
    %s1579 = scalar_lea.vmem %s1, 12
    %v1580 = vld [vmem:[%s1579] sm:$0xf]
    %v1582 = vsel %vm170, %v1515, 0
    %v1585 = vsel %vm170, %v1516, 0
    %v1588 = vsel %vm170, %v1517, 0
    %v1591 = vsel %vm170, %v1518, 0
    %v1594 = vsel %vm170, %v1519, 0
    %v1597 = vsel %vm170, %v1520, 0
    %v1600 = vsel %vm170, %v1521, 0
    %v1603 = vsel %vm170, %v1522, 0
    %v1606 = vsel %vm170, %v1523, 0
    %v1609 = vsel %vm170, %v1524, 0
    %v1612 = vsel %vm170, %v1525, 0
    %v1615 = vsel %vm170, %v1526, 0
    %v1618 = vsel %vm170, %v1527, 0
    %v1621 = vsel %vm170, %v1528, 0
    %v1624 = vsel %vm170, %v1529, 0
    %v1627 = vsel %vm170, %v1530, 0
    %v1630 = vsel %vm170, %v1531, 0
    %v1633 = vsel %vm170, %v1532, 0
    %v1636 = vsel %vm170, %v1533, 0
    %v1639 = vsel %vm170, %v1534, 0
    %v1642 = vsel %vm170, %v1535, 0
    %v1645 = vsel %vm170, %v1536, 0
    %v1648 = vsel %vm170, %v1537, 0
    %v1651 = vsel %vm170, %v1538, 0
    %v1654 = vsel %vm170, %v1539, 0
    %v1657 = vsel %vm170, %v1540, 0
    %v1660 = vsel %vm170, %v1541, 0
    %v1663 = vsel %vm170, %v1542, 0
    %v1666 = vsel %vm170, %v1543, 0
    %v1669 = vsel %vm170, %v1544, 0
    %v1672 = vsel %vm170, %v1545, 0
    %v1675 = vsel %vm170, %v1546, 0
    %v1678 = vsel %vm170, %v1547, 0
    %v1681 = vsel %vm170, %v1548, 0
    %v1684 = vsel %vm170, %v1549, 0
    %v1687 = vsel %vm170, %v1550, 0
    %v1690 = vsel %vm170, %v1551, 0
    %v1693 = vsel %vm170, %v1552, 0
    %v1696 = vsel %vm170, %v1553, 0
    %v1699 = vsel %vm170, %v1554, 0
    %v1702 = vsel %vm170, %v1555, 0
    %v1705 = vsel %vm170, %v1556, 0
    %v1708 = vsel %vm170, %v1557, 0
    %v1711 = vsel %vm170, %v1558, 0
    %v1714 = vsel %vm170, %v1559, 0
    %v1717 = vsel %vm170, %v1560, 0
    %v1720 = vsel %vm170, %v1561, 0
    %v1723 = vsel %vm170, %v1562, 0
    %v1726 = vsel %vm170, %v1563, 0
    %v1729 = vsel %vm170, %v1564, 0
    %v1732 = vsel %vm170, %v1565, 0
    %v1735 = vsel %vm170, %v1566, 0
    %v1738 = vsel %vm170, %v1567, 0
    %v1741 = vsel %vm170, %v1568, 0
    %v1744 = vsel %vm170, %v1569, 0
    %v1747 = vsel %vm170, %v1570, 0
    %v1750 = vsel %vm170, %v1571, 0
    %v1753 = vsel %vm170, %v1572, 0
    %v1756 = vsel %vm170, %v1573, 0
    %v1759 = vsel %vm170, %v1574, 0
    %v1762 = vsel %vm170, %v1575, 0
    %v1765 = vsel %vm170, %v1576, 0
    %v1768 = vsel %vm170, %v1577, 0
    %v1771 = vsel %vm170, %v1578, 0
    %v1774 = vsel %vm363, %v1580, 0
    %1776 = vmatpush.msra.mxu0 0.0
    %1777 = vmatpush.msra.mxu0 0.0
    %1778 = vmatpush.msra.mxu0 0.0
    %1779 = vmatpush.msra.mxu0 0.0
    %1780 = vmatpush.msra.mxu0 0.0
    %1781 = vmatpush.msra.mxu0 0.0
    %1782 = vmatpush.msra.mxu0 0.0
    %1783 = vmatpush.msra.mxu0 0.0
    %1784 = vmatpush.msra.mxu0 0.0
    %1785 = vmatpush.msra.mxu0 0.0
    %1786 = vmatpush.msra.mxu0 0.0
    %1787 = vmatpush.msra.mxu0 0.0
    %1788 = vmatpush.msra.mxu0 0.0
    %1789 = vmatpush.msra.mxu0 0.0
    %1790 = vmatpush.msra.mxu0 0.0
    %1791 = vmatpush.msra.mxu0 %v1774
    %1792 = vmatmul.f32.gmra.mxu0 %v1582
    %v1793 = vpop.f32.mrf.mxu0
    %v1794 = vadd.f32 0.0, %v1793
    %1795 = vmatmul.f32.gmra.mxu0 %v1585
    %v1796 = vpop.f32.mrf.mxu0
    %v1797 = vadd.f32 0.0, %v1796
    %1798 = vmatmul.f32.gmra.mxu0 %v1588
    %v1799 = vpop.f32.mrf.mxu0
    %v1800 = vadd.f32 0.0, %v1799
    %1801 = vmatmul.f32.gmra.mxu0 %v1591
    %v1802 = vpop.f32.mrf.mxu0
    %v1803 = vadd.f32 0.0, %v1802
    %1804 = vmatmul.f32.gmra.mxu0 %v1594
    %v1805 = vpop.f32.mrf.mxu0
    %v1806 = vadd.f32 0.0, %v1805
    %1807 = vmatmul.f32.gmra.mxu0 %v1597
    %v1808 = vpop.f32.mrf.mxu0
    %v1809 = vadd.f32 0.0, %v1808
    %1810 = vmatmul.f32.gmra.mxu0 %v1600
    %v1811 = vpop.f32.mrf.mxu0
    %v1812 = vadd.f32 0.0, %v1811
    %1813 = vmatmul.f32.gmra.mxu0 %v1603
    %v1814 = vpop.f32.mrf.mxu0
    %v1815 = vadd.f32 0.0, %v1814
    %1816 = vmatmul.f32.gmra.mxu0 %v1606
    %v1817 = vpop.f32.mrf.mxu0
    %v1818 = vadd.f32 0.0, %v1817
    %1819 = vmatmul.f32.gmra.mxu0 %v1609
    %v1820 = vpop.f32.mrf.mxu0
    %v1821 = vadd.f32 0.0, %v1820
    %1822 = vmatmul.f32.gmra.mxu0 %v1612
    %v1823 = vpop.f32.mrf.mxu0
    %v1824 = vadd.f32 0.0, %v1823
    %1825 = vmatmul.f32.gmra.mxu0 %v1615
    %v1826 = vpop.f32.mrf.mxu0
    %v1827 = vadd.f32 0.0, %v1826
    %1828 = vmatmul.f32.gmra.mxu0 %v1618
    %v1829 = vpop.f32.mrf.mxu0
    %v1830 = vadd.f32 0.0, %v1829
    %1831 = vmatmul.f32.gmra.mxu0 %v1621
    %v1832 = vpop.f32.mrf.mxu0
    %v1833 = vadd.f32 0.0, %v1832
    %1834 = vmatmul.f32.gmra.mxu0 %v1624
    %v1835 = vpop.f32.mrf.mxu0
    %v1836 = vadd.f32 0.0, %v1835
    %1837 = vmatmul.f32.gmra.mxu0 %v1627
    %v1838 = vpop.f32.mrf.mxu0
    %v1839 = vadd.f32 0.0, %v1838
    %1840 = vmatmul.f32.gmra.mxu0 %v1630
    %v1841 = vpop.f32.mrf.mxu0
    %v1842 = vadd.f32 0.0, %v1841
    %1843 = vmatmul.f32.gmra.mxu0 %v1633
    %v1844 = vpop.f32.mrf.mxu0
    %v1845 = vadd.f32 0.0, %v1844
    %1846 = vmatmul.f32.gmra.mxu0 %v1636
    %v1847 = vpop.f32.mrf.mxu0
    %v1848 = vadd.f32 0.0, %v1847
    %1849 = vmatmul.f32.gmra.mxu0 %v1639
    %v1850 = vpop.f32.mrf.mxu0
    %v1851 = vadd.f32 0.0, %v1850
    %1852 = vmatmul.f32.gmra.mxu0 %v1642
    %v1853 = vpop.f32.mrf.mxu0
    %v1854 = vadd.f32 0.0, %v1853
    %1855 = vmatmul.f32.gmra.mxu0 %v1645
    %v1856 = vpop.f32.mrf.mxu0
    %v1857 = vadd.f32 0.0, %v1856
    %1858 = vmatmul.f32.gmra.mxu0 %v1648
    %v1859 = vpop.f32.mrf.mxu0
    %v1860 = vadd.f32 0.0, %v1859
    %1861 = vmatmul.f32.gmra.mxu0 %v1651
    %v1862 = vpop.f32.mrf.mxu0
    %v1863 = vadd.f32 0.0, %v1862
    %1864 = vmatmul.f32.gmra.mxu0 %v1654
    %v1865 = vpop.f32.mrf.mxu0
    %v1866 = vadd.f32 0.0, %v1865
    %1867 = vmatmul.f32.gmra.mxu0 %v1657
    %v1868 = vpop.f32.mrf.mxu0
    %v1869 = vadd.f32 0.0, %v1868
    %1870 = vmatmul.f32.gmra.mxu0 %v1660
    %v1871 = vpop.f32.mrf.mxu0
    %v1872 = vadd.f32 0.0, %v1871
    %1873 = vmatmul.f32.gmra.mxu0 %v1663
    %v1874 = vpop.f32.mrf.mxu0
    %v1875 = vadd.f32 0.0, %v1874
    %1876 = vmatmul.f32.gmra.mxu0 %v1666
    %v1877 = vpop.f32.mrf.mxu0
    %v1878 = vadd.f32 0.0, %v1877
    %1879 = vmatmul.f32.gmra.mxu0 %v1669
    %v1880 = vpop.f32.mrf.mxu0
    %v1881 = vadd.f32 0.0, %v1880
    %1882 = vmatmul.f32.gmra.mxu0 %v1672
    %v1883 = vpop.f32.mrf.mxu0
    %v1884 = vadd.f32 0.0, %v1883
    %1885 = vmatmul.f32.gmra.mxu0 %v1675
    %v1886 = vpop.f32.mrf.mxu0
    %v1887 = vadd.f32 0.0, %v1886
    %1888 = vmatmul.f32.gmra.mxu0 %v1678
    %v1889 = vpop.f32.mrf.mxu0
    %v1890 = vadd.f32 0.0, %v1889
    %1891 = vmatmul.f32.gmra.mxu0 %v1681
    %v1892 = vpop.f32.mrf.mxu0
    %v1893 = vadd.f32 0.0, %v1892
    %1894 = vmatmul.f32.gmra.mxu0 %v1684
    %v1895 = vpop.f32.mrf.mxu0
    %v1896 = vadd.f32 0.0, %v1895
    %1897 = vmatmul.f32.gmra.mxu0 %v1687
    %v1898 = vpop.f32.mrf.mxu0
    %v1899 = vadd.f32 0.0, %v1898
    %1900 = vmatmul.f32.gmra.mxu0 %v1690
    %v1901 = vpop.f32.mrf.mxu0
    %v1902 = vadd.f32 0.0, %v1901
    %1903 = vmatmul.f32.gmra.mxu0 %v1693
    %v1904 = vpop.f32.mrf.mxu0
    %v1905 = vadd.f32 0.0, %v1904
    %1906 = vmatmul.f32.gmra.mxu0 %v1696
    %v1907 = vpop.f32.mrf.mxu0
    %v1908 = vadd.f32 0.0, %v1907
    %1909 = vmatmul.f32.gmra.mxu0 %v1699
    %v1910 = vpop.f32.mrf.mxu0
    %v1911 = vadd.f32 0.0, %v1910
    %1912 = vmatmul.f32.gmra.mxu0 %v1702
    %v1913 = vpop.f32.mrf.mxu0
    %v1914 = vadd.f32 0.0, %v1913
    %1915 = vmatmul.f32.gmra.mxu0 %v1705
    %v1916 = vpop.f32.mrf.mxu0
    %v1917 = vadd.f32 0.0, %v1916
    %1918 = vmatmul.f32.gmra.mxu0 %v1708
    %v1919 = vpop.f32.mrf.mxu0
    %v1920 = vadd.f32 0.0, %v1919
    %1921 = vmatmul.f32.gmra.mxu0 %v1711
    %v1922 = vpop.f32.mrf.mxu0
    %v1923 = vadd.f32 0.0, %v1922
    %1924 = vmatmul.f32.gmra.mxu0 %v1714
    %v1925 = vpop.f32.mrf.mxu0
    %v1926 = vadd.f32 0.0, %v1925
    %1927 = vmatmul.f32.gmra.mxu0 %v1717
    %v1928 = vpop.f32.mrf.mxu0
    %v1929 = vadd.f32 0.0, %v1928
    %1930 = vmatmul.f32.gmra.mxu0 %v1720
    %v1931 = vpop.f32.mrf.mxu0
    %v1932 = vadd.f32 0.0, %v1931
    %1933 = vmatmul.f32.gmra.mxu0 %v1723
    %v1934 = vpop.f32.mrf.mxu0
    %v1935 = vadd.f32 0.0, %v1934
    %1936 = vmatmul.f32.gmra.mxu0 %v1726
    %v1937 = vpop.f32.mrf.mxu0
    %v1938 = vadd.f32 0.0, %v1937
    %1939 = vmatmul.f32.gmra.mxu0 %v1729
    %v1940 = vpop.f32.mrf.mxu0
    %v1941 = vadd.f32 0.0, %v1940
    %1942 = vmatmul.f32.gmra.mxu0 %v1732
    %v1943 = vpop.f32.mrf.mxu0
    %v1944 = vadd.f32 0.0, %v1943
    %1945 = vmatmul.f32.gmra.mxu0 %v1735
    %v1946 = vpop.f32.mrf.mxu0
    %v1947 = vadd.f32 0.0, %v1946
    %1948 = vmatmul.f32.gmra.mxu0 %v1738
    %v1949 = vpop.f32.mrf.mxu0
    %v1950 = vadd.f32 0.0, %v1949
    %1951 = vmatmul.f32.gmra.mxu0 %v1741
    %v1952 = vpop.f32.mrf.mxu0
    %v1953 = vadd.f32 0.0, %v1952
    %1954 = vmatmul.f32.gmra.mxu0 %v1744
    %v1955 = vpop.f32.mrf.mxu0
    %v1956 = vadd.f32 0.0, %v1955
    %1957 = vmatmul.f32.gmra.mxu0 %v1747
    %v1958 = vpop.f32.mrf.mxu0
    %v1959 = vadd.f32 0.0, %v1958
    %1960 = vmatmul.f32.gmra.mxu0 %v1750
    %v1961 = vpop.f32.mrf.mxu0
    %v1962 = vadd.f32 0.0, %v1961
    %1963 = vmatmul.f32.gmra.mxu0 %v1753
    %v1964 = vpop.f32.mrf.mxu0
    %v1965 = vadd.f32 0.0, %v1964
    %1966 = vmatmul.f32.gmra.mxu0 %v1756
    %v1967 = vpop.f32.mrf.mxu0
    %v1968 = vadd.f32 0.0, %v1967
    %1969 = vmatmul.f32.gmra.mxu0 %v1759
    %v1970 = vpop.f32.mrf.mxu0
    %v1971 = vadd.f32 0.0, %v1970
    %1972 = vmatmul.f32.gmra.mxu0 %v1762
    %v1973 = vpop.f32.mrf.mxu0
    %v1974 = vadd.f32 0.0, %v1973
    %1975 = vmatmul.f32.gmra.mxu0 %v1765
    %v1976 = vpop.f32.mrf.mxu0
    %v1977 = vadd.f32 0.0, %v1976
    %1978 = vmatmul.f32.gmra.mxu0 %v1768
    %v1979 = vpop.f32.mrf.mxu0
    %v1980 = vadd.f32 0.0, %v1979
    %1981 = vmatmul.f32.gmra.mxu0 %v1771
    %v1982 = vpop.f32.mrf.mxu0
    %v1983 = vadd.f32 0.0, %v1982
    %1984 = vdwg.mxu0
    %v1985 = vadd.f32 %v1450, %v1794
    %v1986 = vadd.f32 %v1451, %v1797
    %v1987 = vadd.f32 %v1452, %v1800
    %v1988 = vadd.f32 %v1453, %v1803
    %v1989 = vadd.f32 %v1454, %v1806
    %v1990 = vadd.f32 %v1455, %v1809
    %v1991 = vadd.f32 %v1456, %v1812
    %v1992 = vadd.f32 %v1457, %v1815
    %v1993 = vadd.f32 %v1458, %v1818
    %v1994 = vadd.f32 %v1459, %v1821
    %v1995 = vadd.f32 %v1460, %v1824
    %v1996 = vadd.f32 %v1461, %v1827
    %v1997 = vadd.f32 %v1462, %v1830
    %v1998 = vadd.f32 %v1463, %v1833
    %v1999 = vadd.f32 %v1464, %v1836
    %v2000 = vadd.f32 %v1465, %v1839
    %v2001 = vadd.f32 %v1466, %v1842
    %v2002 = vadd.f32 %v1467, %v1845
    %v2003 = vadd.f32 %v1468, %v1848
    %v2004 = vadd.f32 %v1469, %v1851
    %v2005 = vadd.f32 %v1470, %v1854
    %v2006 = vadd.f32 %v1471, %v1857
    %v2007 = vadd.f32 %v1472, %v1860
    %v2008 = vadd.f32 %v1473, %v1863
    %v2009 = vadd.f32 %v1474, %v1866
    %v2010 = vadd.f32 %v1475, %v1869
    %v2011 = vadd.f32 %v1476, %v1872
    %v2012 = vadd.f32 %v1477, %v1875
    %v2013 = vadd.f32 %v1478, %v1878
    %v2014 = vadd.f32 %v1479, %v1881
    %v2015 = vadd.f32 %v1480, %v1884
    %v2016 = vadd.f32 %v1481, %v1887
    %v2017 = vadd.f32 %v1482, %v1890
    %v2018 = vadd.f32 %v1483, %v1893
    %v2019 = vadd.f32 %v1484, %v1896
    %v2020 = vadd.f32 %v1485, %v1899
    %v2021 = vadd.f32 %v1486, %v1902
    %v2022 = vadd.f32 %v1487, %v1905
    %v2023 = vadd.f32 %v1488, %v1908
    %v2024 = vadd.f32 %v1489, %v1911
    %v2025 = vadd.f32 %v1490, %v1914
    %v2026 = vadd.f32 %v1491, %v1917
    %v2027 = vadd.f32 %v1492, %v1920
    %v2028 = vadd.f32 %v1493, %v1923
    %v2029 = vadd.f32 %v1494, %v1926
    %v2030 = vadd.f32 %v1495, %v1929
    %v2031 = vadd.f32 %v1496, %v1932
    %v2032 = vadd.f32 %v1497, %v1935
    %v2033 = vadd.f32 %v1498, %v1938
    %v2034 = vadd.f32 %v1499, %v1941
    %v2035 = vadd.f32 %v1500, %v1944
    %v2036 = vadd.f32 %v1501, %v1947
    %v2037 = vadd.f32 %v1502, %v1950
    %v2038 = vadd.f32 %v1503, %v1953
    %v2039 = vadd.f32 %v1504, %v1956
    %v2040 = vadd.f32 %v1505, %v1959
    %v2041 = vadd.f32 %v1506, %v1962
    %v2042 = vadd.f32 %v1507, %v1965
    %v2043 = vadd.f32 %v1508, %v1968
    %v2044 = vadd.f32 %v1509, %v1971
    %v2045 = vadd.f32 %v1510, %v1974
    %v2046 = vadd.f32 %v1511, %v1977
    %v2047 = vadd.f32 %v1512, %v1980
    %v2048 = vadd.f32 %v1513, %v1983
    %v2049 = vld [vmem:[%s1514 + $0x1] sm:$0xff]
    %v2050 = vld [vmem:[%s1514 + $0x9] sm:$0xff]
    %v2051 = vld [vmem:[%s1514 + $0x19] sm:$0xff]
    %v2052 = vld [vmem:[%s1514 + $0x21] sm:$0xff]
    %v2053 = vld [vmem:[%s1514 + $0x31] sm:$0xff]
    %v2054 = vld [vmem:[%s1514 + $0x39] sm:$0xff]
    %v2055 = vld [vmem:[%s1514 + $0x49] sm:$0xff]
    %v2056 = vld [vmem:[%s1514 + $0x51] sm:$0xff]
    %v2057 = vld [vmem:[%s1514 + $0x61] sm:$0xff]
    %v2058 = vld [vmem:[%s1514 + $0x69] sm:$0xff]
    %v2059 = vld [vmem:[%s1514 + $0x79] sm:$0xff]
    %v2060 = vld [vmem:[%s1514 + $0x81] sm:$0xff]
    %v2061 = vld [vmem:[%s1514 + $0x91] sm:$0xff]
    %v2062 = vld [vmem:[%s1514 + $0x99] sm:$0xff]
    %v2063 = vld [vmem:[%s1514 + $0xa9] sm:$0xff]
    %v2064 = vld [vmem:[%s1514 + $0xb1] sm:$0xff]
    %v2065 = vld [vmem:[%s1514 + $0xc1] sm:$0xff]
    %v2066 = vld [vmem:[%s1514 + $0xc9] sm:$0xff]
    %v2067 = vld [vmem:[%s1514 + $0xd9] sm:$0xff]
    %v2068 = vld [vmem:[%s1514 + $0xe1] sm:$0xff]
    %v2069 = vld [vmem:[%s1514 + $0xf1] sm:$0xff]
    %v2070 = vld [vmem:[%s1514 + $0xf9] sm:$0xff]
    %v2071 = vld [vmem:[%s1514 + $0x109] sm:$0xff]
    %v2072 = vld [vmem:[%s1514 + $0x111] sm:$0xff]
    %v2073 = vld [vmem:[%s1514 + $0x121] sm:$0xff]
    %v2074 = vld [vmem:[%s1514 + $0x129] sm:$0xff]
    %v2075 = vld [vmem:[%s1514 + $0x139] sm:$0xff]
    %v2076 = vld [vmem:[%s1514 + $0x141] sm:$0xff]
    %v2077 = vld [vmem:[%s1514 + $0x151] sm:$0xff]
    %v2078 = vld [vmem:[%s1514 + $0x159] sm:$0xff]
    %v2079 = vld [vmem:[%s1514 + $0x169] sm:$0xff]
    %v2080 = vld [vmem:[%s1514 + $0x171] sm:$0xff]
    %v2081 = vld [vmem:[%s1514 + $0x1b1] sm:$0xff]
    %v2082 = vld [vmem:[%s1514 + $0x1b9] sm:$0xff]
    %v2083 = vld [vmem:[%s1514 + $0x1c9] sm:$0xff]
    %v2084 = vld [vmem:[%s1514 + $0x1d1] sm:$0xff]
    %v2085 = vld [vmem:[%s1514 + $0x1e1] sm:$0xff]
    %v2086 = vld [vmem:[%s1514 + $0x1e9] sm:$0xff]
    %v2087 = vld [vmem:[%s1514 + $0x1f9] sm:$0xff]
    %v2088 = vld [vmem:[%s1514 + $0x201] sm:$0xff]
    %v2089 = vld [vmem:[%s1514 + $0x211] sm:$0xff]
    %v2090 = vld [vmem:[%s1514 + $0x219] sm:$0xff]
    %v2091 = vld [vmem:[%s1514 + $0x229] sm:$0xff]
    %v2092 = vld [vmem:[%s1514 + $0x231] sm:$0xff]
    %v2093 = vld [vmem:[%s1514 + $0x241] sm:$0xff]
    %v2094 = vld [vmem:[%s1514 + $0x249] sm:$0xff]
    %v2095 = vld [vmem:[%s1514 + $0x259] sm:$0xff]
    %v2096 = vld [vmem:[%s1514 + $0x261] sm:$0xff]
    %v2097 = vld [vmem:[%s1514 + $0x271] sm:$0xff]
    %v2098 = vld [vmem:[%s1514 + $0x279] sm:$0xff]
    %v2099 = vld [vmem:[%s1514 + $0x289] sm:$0xff]
    %v2100 = vld [vmem:[%s1514 + $0x291] sm:$0xff]
    %v2101 = vld [vmem:[%s1514 + $0x2a1] sm:$0xff]
    %v2102 = vld [vmem:[%s1514 + $0x2a9] sm:$0xff]
    %v2103 = vld [vmem:[%s1514 + $0x2b9] sm:$0xff]
    %v2104 = vld [vmem:[%s1514 + $0x2c1] sm:$0xff]
    %v2105 = vld [vmem:[%s1514 + $0x2d1] sm:$0xff]
    %v2106 = vld [vmem:[%s1514 + $0x2d9] sm:$0xff]
    %v2107 = vld [vmem:[%s1514 + $0x2e9] sm:$0xff]
    %v2108 = vld [vmem:[%s1514 + $0x2f1] sm:$0xff]
    %v2109 = vld [vmem:[%s1514 + $0x301] sm:$0xff]
    %v2110 = vld [vmem:[%s1514 + $0x309] sm:$0xff]
    %v2111 = vld [vmem:[%s1514 + $0x319] sm:$0xff]
    %v2112 = vld [vmem:[%s1514 + $0x321] sm:$0xff]
    %s2113 = scalar_lea.vmem %s1, 16
    %v2114 = vld [vmem:[%s2113] sm:$0xf]
    %v2116 = vsel %vm170, %v2049, 0
    %v2119 = vsel %vm170, %v2050, 0
    %v2122 = vsel %vm170, %v2051, 0
    %v2125 = vsel %vm170, %v2052, 0
    %v2128 = vsel %vm170, %v2053, 0
    %v2131 = vsel %vm170, %v2054, 0
    %v2134 = vsel %vm170, %v2055, 0
    %v2137 = vsel %vm170, %v2056, 0
    %v2140 = vsel %vm170, %v2057, 0
    %v2143 = vsel %vm170, %v2058, 0
    %v2146 = vsel %vm170, %v2059, 0
    %v2149 = vsel %vm170, %v2060, 0
    %v2152 = vsel %vm170, %v2061, 0
    %v2155 = vsel %vm170, %v2062, 0
    %v2158 = vsel %vm170, %v2063, 0
    %v2161 = vsel %vm170, %v2064, 0
    %v2164 = vsel %vm170, %v2065, 0
    %v2167 = vsel %vm170, %v2066, 0
    %v2170 = vsel %vm170, %v2067, 0
    %v2173 = vsel %vm170, %v2068, 0
    %v2176 = vsel %vm170, %v2069, 0
    %v2179 = vsel %vm170, %v2070, 0
    %v2182 = vsel %vm170, %v2071, 0
    %v2185 = vsel %vm170, %v2072, 0
    %v2188 = vsel %vm170, %v2073, 0
    %v2191 = vsel %vm170, %v2074, 0
    %v2194 = vsel %vm170, %v2075, 0
    %v2197 = vsel %vm170, %v2076, 0
    %v2200 = vsel %vm170, %v2077, 0
    %v2203 = vsel %vm170, %v2078, 0
    %v2206 = vsel %vm170, %v2079, 0
    %v2209 = vsel %vm170, %v2080, 0
    %v2212 = vsel %vm170, %v2081, 0
    %v2215 = vsel %vm170, %v2082, 0
    %v2218 = vsel %vm170, %v2083, 0
    %v2221 = vsel %vm170, %v2084, 0
    %v2224 = vsel %vm170, %v2085, 0
    %v2227 = vsel %vm170, %v2086, 0
    %v2230 = vsel %vm170, %v2087, 0
    %v2233 = vsel %vm170, %v2088, 0
    %v2236 = vsel %vm170, %v2089, 0
    %v2239 = vsel %vm170, %v2090, 0
    %v2242 = vsel %vm170, %v2091, 0
    %v2245 = vsel %vm170, %v2092, 0
    %v2248 = vsel %vm170, %v2093, 0
    %v2251 = vsel %vm170, %v2094, 0
    %v2254 = vsel %vm170, %v2095, 0
    %v2257 = vsel %vm170, %v2096, 0
    %v2260 = vsel %vm170, %v2097, 0
    %v2263 = vsel %vm170, %v2098, 0
    %v2266 = vsel %vm170, %v2099, 0
    %v2269 = vsel %vm170, %v2100, 0
    %v2272 = vsel %vm170, %v2101, 0
    %v2275 = vsel %vm170, %v2102, 0
    %v2278 = vsel %vm170, %v2103, 0
    %v2281 = vsel %vm170, %v2104, 0
    %v2284 = vsel %vm170, %v2105, 0
    %v2287 = vsel %vm170, %v2106, 0
    %v2290 = vsel %vm170, %v2107, 0
    %v2293 = vsel %vm170, %v2108, 0
    %v2296 = vsel %vm170, %v2109, 0
    %v2299 = vsel %vm170, %v2110, 0
    %v2302 = vsel %vm170, %v2111, 0
    %v2305 = vsel %vm170, %v2112, 0
    %v2308 = vsel %vm363, %v2114, 0
    %2310 = vmatpush.msra.mxu0 0.0
    %2311 = vmatpush.msra.mxu0 0.0
    %2312 = vmatpush.msra.mxu0 0.0
    %2313 = vmatpush.msra.mxu0 0.0
    %2314 = vmatpush.msra.mxu0 0.0
    %2315 = vmatpush.msra.mxu0 0.0
    %2316 = vmatpush.msra.mxu0 0.0
    %2317 = vmatpush.msra.mxu0 0.0
    %2318 = vmatpush.msra.mxu0 0.0
    %2319 = vmatpush.msra.mxu0 0.0
    %2320 = vmatpush.msra.mxu0 0.0
    %2321 = vmatpush.msra.mxu0 0.0
    %2322 = vmatpush.msra.mxu0 0.0
    %2323 = vmatpush.msra.mxu0 0.0
    %2324 = vmatpush.msra.mxu0 0.0
    %2325 = vmatpush.msra.mxu0 %v2308
    %2326 = vmatmul.f32.gmra.mxu0 %v2116
    %v2327 = vpop.f32.mrf.mxu0
    %v2328 = vadd.f32 0.0, %v2327
    %2329 = vmatmul.f32.gmra.mxu0 %v2119
    %v2330 = vpop.f32.mrf.mxu0
    %v2331 = vadd.f32 0.0, %v2330
    %2332 = vmatmul.f32.gmra.mxu0 %v2122
    %v2333 = vpop.f32.mrf.mxu0
    %v2334 = vadd.f32 0.0, %v2333
    %2335 = vmatmul.f32.gmra.mxu0 %v2125
    %v2336 = vpop.f32.mrf.mxu0
    %v2337 = vadd.f32 0.0, %v2336
    %2338 = vmatmul.f32.gmra.mxu0 %v2128
    %v2339 = vpop.f32.mrf.mxu0
    %v2340 = vadd.f32 0.0, %v2339
    %2341 = vmatmul.f32.gmra.mxu0 %v2131
    %v2342 = vpop.f32.mrf.mxu0
    %v2343 = vadd.f32 0.0, %v2342
    %2344 = vmatmul.f32.gmra.mxu0 %v2134
    %v2345 = vpop.f32.mrf.mxu0
    %v2346 = vadd.f32 0.0, %v2345
    %2347 = vmatmul.f32.gmra.mxu0 %v2137
    %v2348 = vpop.f32.mrf.mxu0
    %v2349 = vadd.f32 0.0, %v2348
    %2350 = vmatmul.f32.gmra.mxu0 %v2140
    %v2351 = vpop.f32.mrf.mxu0
    %v2352 = vadd.f32 0.0, %v2351
    %2353 = vmatmul.f32.gmra.mxu0 %v2143
    %v2354 = vpop.f32.mrf.mxu0
    %v2355 = vadd.f32 0.0, %v2354
    %2356 = vmatmul.f32.gmra.mxu0 %v2146
    %v2357 = vpop.f32.mrf.mxu0
    %v2358 = vadd.f32 0.0, %v2357
    %2359 = vmatmul.f32.gmra.mxu0 %v2149
    %v2360 = vpop.f32.mrf.mxu0
    %v2361 = vadd.f32 0.0, %v2360
    %2362 = vmatmul.f32.gmra.mxu0 %v2152
    %v2363 = vpop.f32.mrf.mxu0
    %v2364 = vadd.f32 0.0, %v2363
    %2365 = vmatmul.f32.gmra.mxu0 %v2155
    %v2366 = vpop.f32.mrf.mxu0
    %v2367 = vadd.f32 0.0, %v2366
    %2368 = vmatmul.f32.gmra.mxu0 %v2158
    %v2369 = vpop.f32.mrf.mxu0
    %v2370 = vadd.f32 0.0, %v2369
    %2371 = vmatmul.f32.gmra.mxu0 %v2161
    %v2372 = vpop.f32.mrf.mxu0
    %v2373 = vadd.f32 0.0, %v2372
    %2374 = vmatmul.f32.gmra.mxu0 %v2164
    %v2375 = vpop.f32.mrf.mxu0
    %v2376 = vadd.f32 0.0, %v2375
    %2377 = vmatmul.f32.gmra.mxu0 %v2167
    %v2378 = vpop.f32.mrf.mxu0
    %v2379 = vadd.f32 0.0, %v2378
    %2380 = vmatmul.f32.gmra.mxu0 %v2170
    %v2381 = vpop.f32.mrf.mxu0
    %v2382 = vadd.f32 0.0, %v2381
    %2383 = vmatmul.f32.gmra.mxu0 %v2173
    %v2384 = vpop.f32.mrf.mxu0
    %v2385 = vadd.f32 0.0, %v2384
    %2386 = vmatmul.f32.gmra.mxu0 %v2176
    %v2387 = vpop.f32.mrf.mxu0
    %v2388 = vadd.f32 0.0, %v2387
    %2389 = vmatmul.f32.gmra.mxu0 %v2179
    %v2390 = vpop.f32.mrf.mxu0
    %v2391 = vadd.f32 0.0, %v2390
    %2392 = vmatmul.f32.gmra.mxu0 %v2182
    %v2393 = vpop.f32.mrf.mxu0
    %v2394 = vadd.f32 0.0, %v2393
    %2395 = vmatmul.f32.gmra.mxu0 %v2185
    %v2396 = vpop.f32.mrf.mxu0
    %v2397 = vadd.f32 0.0, %v2396
    %2398 = vmatmul.f32.gmra.mxu0 %v2188
    %v2399 = vpop.f32.mrf.mxu0
    %v2400 = vadd.f32 0.0, %v2399
    %2401 = vmatmul.f32.gmra.mxu0 %v2191
    %v2402 = vpop.f32.mrf.mxu0
    %v2403 = vadd.f32 0.0, %v2402
    %2404 = vmatmul.f32.gmra.mxu0 %v2194
    %v2405 = vpop.f32.mrf.mxu0
    %v2406 = vadd.f32 0.0, %v2405
    %2407 = vmatmul.f32.gmra.mxu0 %v2197
    %v2408 = vpop.f32.mrf.mxu0
    %v2409 = vadd.f32 0.0, %v2408
    %2410 = vmatmul.f32.gmra.mxu0 %v2200
    %v2411 = vpop.f32.mrf.mxu0
    %v2412 = vadd.f32 0.0, %v2411
    %2413 = vmatmul.f32.gmra.mxu0 %v2203
    %v2414 = vpop.f32.mrf.mxu0
    %v2415 = vadd.f32 0.0, %v2414
    %2416 = vmatmul.f32.gmra.mxu0 %v2206
    %v2417 = vpop.f32.mrf.mxu0
    %v2418 = vadd.f32 0.0, %v2417
    %2419 = vmatmul.f32.gmra.mxu0 %v2209
    %v2420 = vpop.f32.mrf.mxu0
    %v2421 = vadd.f32 0.0, %v2420
    %2422 = vmatmul.f32.gmra.mxu0 %v2212
    %v2423 = vpop.f32.mrf.mxu0
    %v2424 = vadd.f32 0.0, %v2423
    %2425 = vmatmul.f32.gmra.mxu0 %v2215
    %v2426 = vpop.f32.mrf.mxu0
    %v2427 = vadd.f32 0.0, %v2426
    %2428 = vmatmul.f32.gmra.mxu0 %v2218
    %v2429 = vpop.f32.mrf.mxu0
    %v2430 = vadd.f32 0.0, %v2429
    %2431 = vmatmul.f32.gmra.mxu0 %v2221
    %v2432 = vpop.f32.mrf.mxu0
    %v2433 = vadd.f32 0.0, %v2432
    %2434 = vmatmul.f32.gmra.mxu0 %v2224
    %v2435 = vpop.f32.mrf.mxu0
    %v2436 = vadd.f32 0.0, %v2435
    %2437 = vmatmul.f32.gmra.mxu0 %v2227
    %v2438 = vpop.f32.mrf.mxu0
    %v2439 = vadd.f32 0.0, %v2438
    %2440 = vmatmul.f32.gmra.mxu0 %v2230
    %v2441 = vpop.f32.mrf.mxu0
    %v2442 = vadd.f32 0.0, %v2441
    %2443 = vmatmul.f32.gmra.mxu0 %v2233
    %v2444 = vpop.f32.mrf.mxu0
    %v2445 = vadd.f32 0.0, %v2444
    %2446 = vmatmul.f32.gmra.mxu0 %v2236
    %v2447 = vpop.f32.mrf.mxu0
    %v2448 = vadd.f32 0.0, %v2447
    %2449 = vmatmul.f32.gmra.mxu0 %v2239
    %v2450 = vpop.f32.mrf.mxu0
    %v2451 = vadd.f32 0.0, %v2450
    %2452 = vmatmul.f32.gmra.mxu0 %v2242
    %v2453 = vpop.f32.mrf.mxu0
    %v2454 = vadd.f32 0.0, %v2453
    %2455 = vmatmul.f32.gmra.mxu0 %v2245
    %v2456 = vpop.f32.mrf.mxu0
    %v2457 = vadd.f32 0.0, %v2456
    %2458 = vmatmul.f32.gmra.mxu0 %v2248
    %v2459 = vpop.f32.mrf.mxu0
    %v2460 = vadd.f32 0.0, %v2459
    %2461 = vmatmul.f32.gmra.mxu0 %v2251
    %v2462 = vpop.f32.mrf.mxu0
    %v2463 = vadd.f32 0.0, %v2462
    %2464 = vmatmul.f32.gmra.mxu0 %v2254
    %v2465 = vpop.f32.mrf.mxu0
    %v2466 = vadd.f32 0.0, %v2465
    %2467 = vmatmul.f32.gmra.mxu0 %v2257
    %v2468 = vpop.f32.mrf.mxu0
    %v2469 = vadd.f32 0.0, %v2468
    %2470 = vmatmul.f32.gmra.mxu0 %v2260
    %v2471 = vpop.f32.mrf.mxu0
    %v2472 = vadd.f32 0.0, %v2471
    %2473 = vmatmul.f32.gmra.mxu0 %v2263
    %v2474 = vpop.f32.mrf.mxu0
    %v2475 = vadd.f32 0.0, %v2474
    %2476 = vmatmul.f32.gmra.mxu0 %v2266
    %v2477 = vpop.f32.mrf.mxu0
    %v2478 = vadd.f32 0.0, %v2477
    %2479 = vmatmul.f32.gmra.mxu0 %v2269
    %v2480 = vpop.f32.mrf.mxu0
    %v2481 = vadd.f32 0.0, %v2480
    %2482 = vmatmul.f32.gmra.mxu0 %v2272
    %v2483 = vpop.f32.mrf.mxu0
    %v2484 = vadd.f32 0.0, %v2483
    %2485 = vmatmul.f32.gmra.mxu0 %v2275
    %v2486 = vpop.f32.mrf.mxu0
    %v2487 = vadd.f32 0.0, %v2486
    %2488 = vmatmul.f32.gmra.mxu0 %v2278
    %v2489 = vpop.f32.mrf.mxu0
    %v2490 = vadd.f32 0.0, %v2489
    %2491 = vmatmul.f32.gmra.mxu0 %v2281
    %v2492 = vpop.f32.mrf.mxu0
    %v2493 = vadd.f32 0.0, %v2492
    %2494 = vmatmul.f32.gmra.mxu0 %v2284
    %v2495 = vpop.f32.mrf.mxu0
    %v2496 = vadd.f32 0.0, %v2495
    %2497 = vmatmul.f32.gmra.mxu0 %v2287
    %v2498 = vpop.f32.mrf.mxu0
    %v2499 = vadd.f32 0.0, %v2498
    %2500 = vmatmul.f32.gmra.mxu0 %v2290
    %v2501 = vpop.f32.mrf.mxu0
    %v2502 = vadd.f32 0.0, %v2501
    %2503 = vmatmul.f32.gmra.mxu0 %v2293
    %v2504 = vpop.f32.mrf.mxu0
    %v2505 = vadd.f32 0.0, %v2504
    %2506 = vmatmul.f32.gmra.mxu0 %v2296
    %v2507 = vpop.f32.mrf.mxu0
    %v2508 = vadd.f32 0.0, %v2507
    %2509 = vmatmul.f32.gmra.mxu0 %v2299
    %v2510 = vpop.f32.mrf.mxu0
    %v2511 = vadd.f32 0.0, %v2510
    %2512 = vmatmul.f32.gmra.mxu0 %v2302
    %v2513 = vpop.f32.mrf.mxu0
    %v2514 = vadd.f32 0.0, %v2513
    %2515 = vmatmul.f32.gmra.mxu0 %v2305
    %v2516 = vpop.f32.mrf.mxu0
    %v2517 = vadd.f32 0.0, %v2516
    %2518 = vdwg.mxu0
    %v2519 = vadd.f32 %v1985, %v2328
    %v2520 = vadd.f32 %v1986, %v2331
    %v2521 = vadd.f32 %v1987, %v2334
    %v2522 = vadd.f32 %v1988, %v2337
    %v2523 = vadd.f32 %v1989, %v2340
    %v2524 = vadd.f32 %v1990, %v2343
    %v2525 = vadd.f32 %v1991, %v2346
    %v2526 = vadd.f32 %v1992, %v2349
    %v2527 = vadd.f32 %v1993, %v2352
    %v2528 = vadd.f32 %v1994, %v2355
    %v2529 = vadd.f32 %v1995, %v2358
    %v2530 = vadd.f32 %v1996, %v2361
    %v2531 = vadd.f32 %v1997, %v2364
    %v2532 = vadd.f32 %v1998, %v2367
    %v2533 = vadd.f32 %v1999, %v2370
    %v2534 = vadd.f32 %v2000, %v2373
    %v2535 = vadd.f32 %v2001, %v2376
    %v2536 = vadd.f32 %v2002, %v2379
    %v2537 = vadd.f32 %v2003, %v2382
    %v2538 = vadd.f32 %v2004, %v2385
    %v2539 = vadd.f32 %v2005, %v2388
    %v2540 = vadd.f32 %v2006, %v2391
    %v2541 = vadd.f32 %v2007, %v2394
    %v2542 = vadd.f32 %v2008, %v2397
    %v2543 = vadd.f32 %v2009, %v2400
    %v2544 = vadd.f32 %v2010, %v2403
    %v2545 = vadd.f32 %v2011, %v2406
    %v2546 = vadd.f32 %v2012, %v2409
    %v2547 = vadd.f32 %v2013, %v2412
    %v2548 = vadd.f32 %v2014, %v2415
    %v2549 = vadd.f32 %v2015, %v2418
    %v2550 = vadd.f32 %v2016, %v2421
    %v2551 = vadd.f32 %v2017, %v2424
    %v2552 = vadd.f32 %v2018, %v2427
    %v2553 = vadd.f32 %v2019, %v2430
    %v2554 = vadd.f32 %v2020, %v2433
    %v2555 = vadd.f32 %v2021, %v2436
    %v2556 = vadd.f32 %v2022, %v2439
    %v2557 = vadd.f32 %v2023, %v2442
    %v2558 = vadd.f32 %v2024, %v2445
    %v2559 = vadd.f32 %v2025, %v2448
    %v2560 = vadd.f32 %v2026, %v2451
    %v2561 = vadd.f32 %v2027, %v2454
    %v2562 = vadd.f32 %v2028, %v2457
    %v2563 = vadd.f32 %v2029, %v2460
    %v2564 = vadd.f32 %v2030, %v2463
    %v2565 = vadd.f32 %v2031, %v2466
    %v2566 = vadd.f32 %v2032, %v2469
    %v2567 = vadd.f32 %v2033, %v2472
    %v2568 = vadd.f32 %v2034, %v2475
    %v2569 = vadd.f32 %v2035, %v2478
    %v2570 = vadd.f32 %v2036, %v2481
    %v2571 = vadd.f32 %v2037, %v2484
    %v2572 = vadd.f32 %v2038, %v2487
    %v2573 = vadd.f32 %v2039, %v2490
    %v2574 = vadd.f32 %v2040, %v2493
    %v2575 = vadd.f32 %v2041, %v2496
    %v2576 = vadd.f32 %v2042, %v2499
    %v2577 = vadd.f32 %v2043, %v2502
    %v2578 = vadd.f32 %v2044, %v2505
    %v2579 = vadd.f32 %v2045, %v2508
    %v2580 = vadd.f32 %v2046, %v2511
    %v2581 = vadd.f32 %v2047, %v2514
    %v2582 = vadd.f32 %v2048, %v2517
    %v2583 = vld [vmem:[%s1514 + $0x2] sm:$0xff]
    %v2584 = vld [vmem:[%s1514 + $0xa] sm:$0xff]
    %v2585 = vld [vmem:[%s1514 + $0x1a] sm:$0xff]
    %v2586 = vld [vmem:[%s1514 + $0x22] sm:$0xff]
    %v2587 = vld [vmem:[%s1514 + $0x32] sm:$0xff]
    %v2588 = vld [vmem:[%s1514 + $0x3a] sm:$0xff]
    %v2589 = vld [vmem:[%s1514 + $0x4a] sm:$0xff]
    %v2590 = vld [vmem:[%s1514 + $0x52] sm:$0xff]
    %v2591 = vld [vmem:[%s1514 + $0x62] sm:$0xff]
    %v2592 = vld [vmem:[%s1514 + $0x6a] sm:$0xff]
    %v2593 = vld [vmem:[%s1514 + $0x7a] sm:$0xff]
    %v2594 = vld [vmem:[%s1514 + $0x82] sm:$0xff]
    %v2595 = vld [vmem:[%s1514 + $0x92] sm:$0xff]
    %v2596 = vld [vmem:[%s1514 + $0x9a] sm:$0xff]
    %v2597 = vld [vmem:[%s1514 + $0xaa] sm:$0xff]
    %v2598 = vld [vmem:[%s1514 + $0xb2] sm:$0xff]
    %v2599 = vld [vmem:[%s1514 + $0xc2] sm:$0xff]
    %v2600 = vld [vmem:[%s1514 + $0xca] sm:$0xff]
    %v2601 = vld [vmem:[%s1514 + $0xda] sm:$0xff]
    %v2602 = vld [vmem:[%s1514 + $0xe2] sm:$0xff]
    %v2603 = vld [vmem:[%s1514 + $0xf2] sm:$0xff]
    %v2604 = vld [vmem:[%s1514 + $0xfa] sm:$0xff]
    %v2605 = vld [vmem:[%s1514 + $0x10a] sm:$0xff]
    %v2606 = vld [vmem:[%s1514 + $0x112] sm:$0xff]
    %v2607 = vld [vmem:[%s1514 + $0x122] sm:$0xff]
    %v2608 = vld [vmem:[%s1514 + $0x12a] sm:$0xff]
    %v2609 = vld [vmem:[%s1514 + $0x13a] sm:$0xff]
    %v2610 = vld [vmem:[%s1514 + $0x142] sm:$0xff]
    %v2611 = vld [vmem:[%s1514 + $0x152] sm:$0xff]
    %v2612 = vld [vmem:[%s1514 + $0x15a] sm:$0xff]
    %v2613 = vld [vmem:[%s1514 + $0x16a] sm:$0xff]
    %v2614 = vld [vmem:[%s1514 + $0x172] sm:$0xff]
    %v2615 = vld [vmem:[%s1514 + $0x1b2] sm:$0xff]
    %v2616 = vld [vmem:[%s1514 + $0x1ba] sm:$0xff]
    %v2617 = vld [vmem:[%s1514 + $0x1ca] sm:$0xff]
    %v2618 = vld [vmem:[%s1514 + $0x1d2] sm:$0xff]
    %v2619 = vld [vmem:[%s1514 + $0x1e2] sm:$0xff]
    %v2620 = vld [vmem:[%s1514 + $0x1ea] sm:$0xff]
    %v2621 = vld [vmem:[%s1514 + $0x1fa] sm:$0xff]
    %v2622 = vld [vmem:[%s1514 + $0x202] sm:$0xff]
    %v2623 = vld [vmem:[%s1514 + $0x212] sm:$0xff]
    %v2624 = vld [vmem:[%s1514 + $0x21a] sm:$0xff]
    %v2625 = vld [vmem:[%s1514 + $0x22a] sm:$0xff]
    %v2626 = vld [vmem:[%s1514 + $0x232] sm:$0xff]
    %v2627 = vld [vmem:[%s1514 + $0x242] sm:$0xff]
    %v2628 = vld [vmem:[%s1514 + $0x24a] sm:$0xff]
    %v2629 = vld [vmem:[%s1514 + $0x25a] sm:$0xff]
    %v2630 = vld [vmem:[%s1514 + $0x262] sm:$0xff]
    %v2631 = vld [vmem:[%s1514 + $0x272] sm:$0xff]
    %v2632 = vld [vmem:[%s1514 + $0x27a] sm:$0xff]
    %v2633 = vld [vmem:[%s1514 + $0x28a] sm:$0xff]
    %v2634 = vld [vmem:[%s1514 + $0x292] sm:$0xff]
    %v2635 = vld [vmem:[%s1514 + $0x2a2] sm:$0xff]
    %v2636 = vld [vmem:[%s1514 + $0x2aa] sm:$0xff]
    %v2637 = vld [vmem:[%s1514 + $0x2ba] sm:$0xff]
    %v2638 = vld [vmem:[%s1514 + $0x2c2] sm:$0xff]
    %v2639 = vld [vmem:[%s1514 + $0x2d2] sm:$0xff]
    %v2640 = vld [vmem:[%s1514 + $0x2da] sm:$0xff]
    %v2641 = vld [vmem:[%s1514 + $0x2ea] sm:$0xff]
    %v2642 = vld [vmem:[%s1514 + $0x2f2] sm:$0xff]
    %v2643 = vld [vmem:[%s1514 + $0x302] sm:$0xff]
    %v2644 = vld [vmem:[%s1514 + $0x30a] sm:$0xff]
    %v2645 = vld [vmem:[%s1514 + $0x31a] sm:$0xff]
    %v2646 = vld [vmem:[%s1514 + $0x322] sm:$0xff]
    %s2647 = scalar_lea.vmem %s1, 20
    %v2648 = vld [vmem:[%s2647] sm:$0xf]
    %v2650 = vsel %vm170, %v2583, 0
    %v2653 = vsel %vm170, %v2584, 0
    %v2656 = vsel %vm170, %v2585, 0
    %v2659 = vsel %vm170, %v2586, 0
    %v2662 = vsel %vm170, %v2587, 0
    %v2665 = vsel %vm170, %v2588, 0
    %v2668 = vsel %vm170, %v2589, 0
    %v2671 = vsel %vm170, %v2590, 0
    %v2674 = vsel %vm170, %v2591, 0
    %v2677 = vsel %vm170, %v2592, 0
    %v2680 = vsel %vm170, %v2593, 0
    %v2683 = vsel %vm170, %v2594, 0
    %v2686 = vsel %vm170, %v2595, 0
    %v2689 = vsel %vm170, %v2596, 0
    %v2692 = vsel %vm170, %v2597, 0
    %v2695 = vsel %vm170, %v2598, 0
    %v2698 = vsel %vm170, %v2599, 0
    %v2701 = vsel %vm170, %v2600, 0
    %v2704 = vsel %vm170, %v2601, 0
    %v2707 = vsel %vm170, %v2602, 0
    %v2710 = vsel %vm170, %v2603, 0
    %v2713 = vsel %vm170, %v2604, 0
    %v2716 = vsel %vm170, %v2605, 0
    %v2719 = vsel %vm170, %v2606, 0
    %v2722 = vsel %vm170, %v2607, 0
    %v2725 = vsel %vm170, %v2608, 0
    %v2728 = vsel %vm170, %v2609, 0
    %v2731 = vsel %vm170, %v2610, 0
    %v2734 = vsel %vm170, %v2611, 0
    %v2737 = vsel %vm170, %v2612, 0
    %v2740 = vsel %vm170, %v2613, 0
    %v2743 = vsel %vm170, %v2614, 0
    %v2746 = vsel %vm170, %v2615, 0
    %v2749 = vsel %vm170, %v2616, 0
    %v2752 = vsel %vm170, %v2617, 0
    %v2755 = vsel %vm170, %v2618, 0
    %v2758 = vsel %vm170, %v2619, 0
    %v2761 = vsel %vm170, %v2620, 0
    %v2764 = vsel %vm170, %v2621, 0
    %v2767 = vsel %vm170, %v2622, 0
    %v2770 = vsel %vm170, %v2623, 0
    %v2773 = vsel %vm170, %v2624, 0
    %v2776 = vsel %vm170, %v2625, 0
    %v2779 = vsel %vm170, %v2626, 0
    %v2782 = vsel %vm170, %v2627, 0
    %v2785 = vsel %vm170, %v2628, 0
    %v2788 = vsel %vm170, %v2629, 0
    %v2791 = vsel %vm170, %v2630, 0
    %v2794 = vsel %vm170, %v2631, 0
    %v2797 = vsel %vm170, %v2632, 0
    %v2800 = vsel %vm170, %v2633, 0
    %v2803 = vsel %vm170, %v2634, 0
    %v2806 = vsel %vm170, %v2635, 0
    %v2809 = vsel %vm170, %v2636, 0
    %v2812 = vsel %vm170, %v2637, 0
    %v2815 = vsel %vm170, %v2638, 0
    %v2818 = vsel %vm170, %v2639, 0
    %v2821 = vsel %vm170, %v2640, 0
    %v2824 = vsel %vm170, %v2641, 0
    %v2827 = vsel %vm170, %v2642, 0
    %v2830 = vsel %vm170, %v2643, 0
    %v2833 = vsel %vm170, %v2644, 0
    %v2836 = vsel %vm170, %v2645, 0
    %v2839 = vsel %vm170, %v2646, 0
    %v2842 = vsel %vm363, %v2648, 0
    %2844 = vmatpush.msra.mxu0 0.0
    %2845 = vmatpush.msra.mxu0 0.0
    %2846 = vmatpush.msra.mxu0 0.0
    %2847 = vmatpush.msra.mxu0 0.0
    %2848 = vmatpush.msra.mxu0 0.0
    %2849 = vmatpush.msra.mxu0 0.0
    %2850 = vmatpush.msra.mxu0 0.0
    %2851 = vmatpush.msra.mxu0 0.0
    %2852 = vmatpush.msra.mxu0 0.0
    %2853 = vmatpush.msra.mxu0 0.0
    %2854 = vmatpush.msra.mxu0 0.0
    %2855 = vmatpush.msra.mxu0 0.0
    %2856 = vmatpush.msra.mxu0 0.0
    %2857 = vmatpush.msra.mxu0 0.0
    %2858 = vmatpush.msra.mxu0 0.0
    %2859 = vmatpush.msra.mxu0 %v2842
    %2860 = vmatmul.f32.gmra.mxu0 %v2650
    %v2861 = vpop.f32.mrf.mxu0
    %v2862 = vadd.f32 0.0, %v2861
    %2863 = vmatmul.f32.gmra.mxu0 %v2653
    %v2864 = vpop.f32.mrf.mxu0
    %v2865 = vadd.f32 0.0, %v2864
    %2866 = vmatmul.f32.gmra.mxu0 %v2656
    %v2867 = vpop.f32.mrf.mxu0
    %v2868 = vadd.f32 0.0, %v2867
    %2869 = vmatmul.f32.gmra.mxu0 %v2659
    %v2870 = vpop.f32.mrf.mxu0
    %v2871 = vadd.f32 0.0, %v2870
    %2872 = vmatmul.f32.gmra.mxu0 %v2662
    %v2873 = vpop.f32.mrf.mxu0
    %v2874 = vadd.f32 0.0, %v2873
    %2875 = vmatmul.f32.gmra.mxu0 %v2665
    %v2876 = vpop.f32.mrf.mxu0
    %v2877 = vadd.f32 0.0, %v2876
    %2878 = vmatmul.f32.gmra.mxu0 %v2668
    %v2879 = vpop.f32.mrf.mxu0
    %v2880 = vadd.f32 0.0, %v2879
    %2881 = vmatmul.f32.gmra.mxu0 %v2671
    %v2882 = vpop.f32.mrf.mxu0
    %v2883 = vadd.f32 0.0, %v2882
    %2884 = vmatmul.f32.gmra.mxu0 %v2674
    %v2885 = vpop.f32.mrf.mxu0
    %v2886 = vadd.f32 0.0, %v2885
    %2887 = vmatmul.f32.gmra.mxu0 %v2677
    %v2888 = vpop.f32.mrf.mxu0
    %v2889 = vadd.f32 0.0, %v2888
    %2890 = vmatmul.f32.gmra.mxu0 %v2680
    %v2891 = vpop.f32.mrf.mxu0
    %v2892 = vadd.f32 0.0, %v2891
    %2893 = vmatmul.f32.gmra.mxu0 %v2683
    %v2894 = vpop.f32.mrf.mxu0
    %v2895 = vadd.f32 0.0, %v2894
    %2896 = vmatmul.f32.gmra.mxu0 %v2686
    %v2897 = vpop.f32.mrf.mxu0
    %v2898 = vadd.f32 0.0, %v2897
    %2899 = vmatmul.f32.gmra.mxu0 %v2689
    %v2900 = vpop.f32.mrf.mxu0
    %v2901 = vadd.f32 0.0, %v2900
    %2902 = vmatmul.f32.gmra.mxu0 %v2692
    %v2903 = vpop.f32.mrf.mxu0
    %v2904 = vadd.f32 0.0, %v2903
    %2905 = vmatmul.f32.gmra.mxu0 %v2695
    %v2906 = vpop.f32.mrf.mxu0
    %v2907 = vadd.f32 0.0, %v2906
    %2908 = vmatmul.f32.gmra.mxu0 %v2698
    %v2909 = vpop.f32.mrf.mxu0
    %v2910 = vadd.f32 0.0, %v2909
    %2911 = vmatmul.f32.gmra.mxu0 %v2701
    %v2912 = vpop.f32.mrf.mxu0
    %v2913 = vadd.f32 0.0, %v2912
    %2914 = vmatmul.f32.gmra.mxu0 %v2704
    %v2915 = vpop.f32.mrf.mxu0
    %v2916 = vadd.f32 0.0, %v2915
    %2917 = vmatmul.f32.gmra.mxu0 %v2707
    %v2918 = vpop.f32.mrf.mxu0
    %v2919 = vadd.f32 0.0, %v2918
    %2920 = vmatmul.f32.gmra.mxu0 %v2710
    %v2921 = vpop.f32.mrf.mxu0
    %v2922 = vadd.f32 0.0, %v2921
    %2923 = vmatmul.f32.gmra.mxu0 %v2713
    %v2924 = vpop.f32.mrf.mxu0
    %v2925 = vadd.f32 0.0, %v2924
    %2926 = vmatmul.f32.gmra.mxu0 %v2716
    %v2927 = vpop.f32.mrf.mxu0
    %v2928 = vadd.f32 0.0, %v2927
    %2929 = vmatmul.f32.gmra.mxu0 %v2719
    %v2930 = vpop.f32.mrf.mxu0
    %v2931 = vadd.f32 0.0, %v2930
    %2932 = vmatmul.f32.gmra.mxu0 %v2722
    %v2933 = vpop.f32.mrf.mxu0
    %v2934 = vadd.f32 0.0, %v2933
    %2935 = vmatmul.f32.gmra.mxu0 %v2725
    %v2936 = vpop.f32.mrf.mxu0
    %v2937 = vadd.f32 0.0, %v2936
    %2938 = vmatmul.f32.gmra.mxu0 %v2728
    %v2939 = vpop.f32.mrf.mxu0
    %v2940 = vadd.f32 0.0, %v2939
    %2941 = vmatmul.f32.gmra.mxu0 %v2731
    %v2942 = vpop.f32.mrf.mxu0
    %v2943 = vadd.f32 0.0, %v2942
    %2944 = vmatmul.f32.gmra.mxu0 %v2734
    %v2945 = vpop.f32.mrf.mxu0
    %v2946 = vadd.f32 0.0, %v2945
    %2947 = vmatmul.f32.gmra.mxu0 %v2737
    %v2948 = vpop.f32.mrf.mxu0
    %v2949 = vadd.f32 0.0, %v2948
    %2950 = vmatmul.f32.gmra.mxu0 %v2740
    %v2951 = vpop.f32.mrf.mxu0
    %v2952 = vadd.f32 0.0, %v2951
    %2953 = vmatmul.f32.gmra.mxu0 %v2743
    %v2954 = vpop.f32.mrf.mxu0
    %v2955 = vadd.f32 0.0, %v2954
    %2956 = vmatmul.f32.gmra.mxu0 %v2746
    %v2957 = vpop.f32.mrf.mxu0
    %v2958 = vadd.f32 0.0, %v2957
    %2959 = vmatmul.f32.gmra.mxu0 %v2749
    %v2960 = vpop.f32.mrf.mxu0
    %v2961 = vadd.f32 0.0, %v2960
    %2962 = vmatmul.f32.gmra.mxu0 %v2752
    %v2963 = vpop.f32.mrf.mxu0
    %v2964 = vadd.f32 0.0, %v2963
    %2965 = vmatmul.f32.gmra.mxu0 %v2755
    %v2966 = vpop.f32.mrf.mxu0
    %v2967 = vadd.f32 0.0, %v2966
    %2968 = vmatmul.f32.gmra.mxu0 %v2758
    %v2969 = vpop.f32.mrf.mxu0
    %v2970 = vadd.f32 0.0, %v2969
    %2971 = vmatmul.f32.gmra.mxu0 %v2761
    %v2972 = vpop.f32.mrf.mxu0
    %v2973 = vadd.f32 0.0, %v2972
    %2974 = vmatmul.f32.gmra.mxu0 %v2764
    %v2975 = vpop.f32.mrf.mxu0
    %v2976 = vadd.f32 0.0, %v2975
    %2977 = vmatmul.f32.gmra.mxu0 %v2767
    %v2978 = vpop.f32.mrf.mxu0
    %v2979 = vadd.f32 0.0, %v2978
    %2980 = vmatmul.f32.gmra.mxu0 %v2770
    %v2981 = vpop.f32.mrf.mxu0
    %v2982 = vadd.f32 0.0, %v2981
    %2983 = vmatmul.f32.gmra.mxu0 %v2773
    %v2984 = vpop.f32.mrf.mxu0
    %v2985 = vadd.f32 0.0, %v2984
    %2986 = vmatmul.f32.gmra.mxu0 %v2776
    %v2987 = vpop.f32.mrf.mxu0
    %v2988 = vadd.f32 0.0, %v2987
    %2989 = vmatmul.f32.gmra.mxu0 %v2779
    %v2990 = vpop.f32.mrf.mxu0
    %v2991 = vadd.f32 0.0, %v2990
    %2992 = vmatmul.f32.gmra.mxu0 %v2782
    %v2993 = vpop.f32.mrf.mxu0
    %v2994 = vadd.f32 0.0, %v2993
    %2995 = vmatmul.f32.gmra.mxu0 %v2785
    %v2996 = vpop.f32.mrf.mxu0
    %v2997 = vadd.f32 0.0, %v2996
    %2998 = vmatmul.f32.gmra.mxu0 %v2788
    %v2999 = vpop.f32.mrf.mxu0
    %v3000 = vadd.f32 0.0, %v2999
    %3001 = vmatmul.f32.gmra.mxu0 %v2791
    %v3002 = vpop.f32.mrf.mxu0
    %v3003 = vadd.f32 0.0, %v3002
    %3004 = vmatmul.f32.gmra.mxu0 %v2794
    %v3005 = vpop.f32.mrf.mxu0
    %v3006 = vadd.f32 0.0, %v3005
    %3007 = vmatmul.f32.gmra.mxu0 %v2797
    %v3008 = vpop.f32.mrf.mxu0
    %v3009 = vadd.f32 0.0, %v3008
    %3010 = vmatmul.f32.gmra.mxu0 %v2800
    %v3011 = vpop.f32.mrf.mxu0
    %v3012 = vadd.f32 0.0, %v3011
    %3013 = vmatmul.f32.gmra.mxu0 %v2803
    %v3014 = vpop.f32.mrf.mxu0
    %v3015 = vadd.f32 0.0, %v3014
    %3016 = vmatmul.f32.gmra.mxu0 %v2806
    %v3017 = vpop.f32.mrf.mxu0
    %v3018 = vadd.f32 0.0, %v3017
    %3019 = vmatmul.f32.gmra.mxu0 %v2809
    %v3020 = vpop.f32.mrf.mxu0
    %v3021 = vadd.f32 0.0, %v3020
    %3022 = vmatmul.f32.gmra.mxu0 %v2812
    %v3023 = vpop.f32.mrf.mxu0
    %v3024 = vadd.f32 0.0, %v3023
    %3025 = vmatmul.f32.gmra.mxu0 %v2815
    %v3026 = vpop.f32.mrf.mxu0
    %v3027 = vadd.f32 0.0, %v3026
    %3028 = vmatmul.f32.gmra.mxu0 %v2818
    %v3029 = vpop.f32.mrf.mxu0
    %v3030 = vadd.f32 0.0, %v3029
    %3031 = vmatmul.f32.gmra.mxu0 %v2821
    %v3032 = vpop.f32.mrf.mxu0
    %v3033 = vadd.f32 0.0, %v3032
    %3034 = vmatmul.f32.gmra.mxu0 %v2824
    %v3035 = vpop.f32.mrf.mxu0
    %v3036 = vadd.f32 0.0, %v3035
    %3037 = vmatmul.f32.gmra.mxu0 %v2827
    %v3038 = vpop.f32.mrf.mxu0
    %v3039 = vadd.f32 0.0, %v3038
    %3040 = vmatmul.f32.gmra.mxu0 %v2830
    %v3041 = vpop.f32.mrf.mxu0
    %v3042 = vadd.f32 0.0, %v3041
    %3043 = vmatmul.f32.gmra.mxu0 %v2833
    %v3044 = vpop.f32.mrf.mxu0
    %v3045 = vadd.f32 0.0, %v3044
    %3046 = vmatmul.f32.gmra.mxu0 %v2836
    %v3047 = vpop.f32.mrf.mxu0
    %v3048 = vadd.f32 0.0, %v3047
    %3049 = vmatmul.f32.gmra.mxu0 %v2839
    %v3050 = vpop.f32.mrf.mxu0
    %v3051 = vadd.f32 0.0, %v3050
    %3052 = vdwg.mxu0
    %v3053 = vadd.f32 %v2519, %v2862
    %v3054 = vadd.f32 %v2520, %v2865
    %v3055 = vadd.f32 %v2521, %v2868
    %v3056 = vadd.f32 %v2522, %v2871
    %v3057 = vadd.f32 %v2523, %v2874
    %v3058 = vadd.f32 %v2524, %v2877
    %v3059 = vadd.f32 %v2525, %v2880
    %v3060 = vadd.f32 %v2526, %v2883
    %v3061 = vadd.f32 %v2527, %v2886
    %v3062 = vadd.f32 %v2528, %v2889
    %v3063 = vadd.f32 %v2529, %v2892
    %v3064 = vadd.f32 %v2530, %v2895
    %v3065 = vadd.f32 %v2531, %v2898
    %v3066 = vadd.f32 %v2532, %v2901
    %v3067 = vadd.f32 %v2533, %v2904
    %v3068 = vadd.f32 %v2534, %v2907
    %v3069 = vadd.f32 %v2535, %v2910
    %v3070 = vadd.f32 %v2536, %v2913
    %v3071 = vadd.f32 %v2537, %v2916
    %v3072 = vadd.f32 %v2538, %v2919
    %v3073 = vadd.f32 %v2539, %v2922
    %v3074 = vadd.f32 %v2540, %v2925
    %v3075 = vadd.f32 %v2541, %v2928
    %v3076 = vadd.f32 %v2542, %v2931
    %v3077 = vadd.f32 %v2543, %v2934
    %v3078 = vadd.f32 %v2544, %v2937
    %v3079 = vadd.f32 %v2545, %v2940
    %v3080 = vadd.f32 %v2546, %v2943
    %v3081 = vadd.f32 %v2547, %v2946
    %v3082 = vadd.f32 %v2548, %v2949
    %v3083 = vadd.f32 %v2549, %v2952
    %v3084 = vadd.f32 %v2550, %v2955
    %v3085 = vadd.f32 %v2551, %v2958
    %v3086 = vadd.f32 %v2552, %v2961
    %v3087 = vadd.f32 %v2553, %v2964
    %v3088 = vadd.f32 %v2554, %v2967
    %v3089 = vadd.f32 %v2555, %v2970
    %v3090 = vadd.f32 %v2556, %v2973
    %v3091 = vadd.f32 %v2557, %v2976
    %v3092 = vadd.f32 %v2558, %v2979
    %v3093 = vadd.f32 %v2559, %v2982
    %v3094 = vadd.f32 %v2560, %v2985
    %v3095 = vadd.f32 %v2561, %v2988
    %v3096 = vadd.f32 %v2562, %v2991
    %v3097 = vadd.f32 %v2563, %v2994
    %v3098 = vadd.f32 %v2564, %v2997
    %v3099 = vadd.f32 %v2565, %v3000
    %v3100 = vadd.f32 %v2566, %v3003
    %v3101 = vadd.f32 %v2567, %v3006
    %v3102 = vadd.f32 %v2568, %v3009
    %v3103 = vadd.f32 %v2569, %v3012
    %v3104 = vadd.f32 %v2570, %v3015
    %v3105 = vadd.f32 %v2571, %v3018
    %v3106 = vadd.f32 %v2572, %v3021
    %v3107 = vadd.f32 %v2573, %v3024
    %v3108 = vadd.f32 %v2574, %v3027
    %v3109 = vadd.f32 %v2575, %v3030
    %v3110 = vadd.f32 %v2576, %v3033
    %v3111 = vadd.f32 %v2577, %v3036
    %v3112 = vadd.f32 %v2578, %v3039
    %v3113 = vadd.f32 %v2579, %v3042
    %v3114 = vadd.f32 %v2580, %v3045
    %v3115 = vadd.f32 %v2581, %v3048
    %v3116 = vadd.f32 %v2582, %v3051
    %s3117 = scalar_lea.vmem %s0, 48
    %v3118 = vld [vmem:[%s3117] sm:$0xff]
    %v3119 = vld [vmem:[%s3117 + $0x8] sm:$0xff]
    %v3120 = vld [vmem:[%s3117 + $0x18] sm:$0xff]
    %v3121 = vld [vmem:[%s3117 + $0x20] sm:$0xff]
    %v3122 = vld [vmem:[%s3117 + $0x30] sm:$0xff]
    %v3123 = vld [vmem:[%s3117 + $0x38] sm:$0xff]
    %v3124 = vld [vmem:[%s3117 + $0x48] sm:$0xff]
    %v3125 = vld [vmem:[%s3117 + $0x50] sm:$0xff]
    %v3126 = vld [vmem:[%s3117 + $0x60] sm:$0xff]
    %v3127 = vld [vmem:[%s3117 + $0x68] sm:$0xff]
    %v3128 = vld [vmem:[%s3117 + $0x78] sm:$0xff]
    %v3129 = vld [vmem:[%s3117 + $0x80] sm:$0xff]
    %v3130 = vld [vmem:[%s3117 + $0x90] sm:$0xff]
    %v3131 = vld [vmem:[%s3117 + $0x98] sm:$0xff]
    %v3132 = vld [vmem:[%s3117 + $0xa8] sm:$0xff]
    %v3133 = vld [vmem:[%s3117 + $0xb0] sm:$0xff]
    %v3134 = vld [vmem:[%s3117 + $0xc0] sm:$0xff]
    %v3135 = vld [vmem:[%s3117 + $0xc8] sm:$0xff]
    %v3136 = vld [vmem:[%s3117 + $0xd8] sm:$0xff]
    %v3137 = vld [vmem:[%s3117 + $0xe0] sm:$0xff]
    %v3138 = vld [vmem:[%s3117 + $0xf0] sm:$0xff]
    %v3139 = vld [vmem:[%s3117 + $0xf8] sm:$0xff]
    %v3140 = vld [vmem:[%s3117 + $0x108] sm:$0xff]
    %v3141 = vld [vmem:[%s3117 + $0x110] sm:$0xff]
    %v3142 = vld [vmem:[%s3117 + $0x120] sm:$0xff]
    %v3143 = vld [vmem:[%s3117 + $0x128] sm:$0xff]
    %v3144 = vld [vmem:[%s3117 + $0x138] sm:$0xff]
    %v3145 = vld [vmem:[%s3117 + $0x140] sm:$0xff]
    %v3146 = vld [vmem:[%s3117 + $0x150] sm:$0xff]
    %v3147 = vld [vmem:[%s3117 + $0x158] sm:$0xff]
    %v3148 = vld [vmem:[%s3117 + $0x168] sm:$0xff]
    %v3149 = vld [vmem:[%s3117 + $0x170] sm:$0xff]
    %v3150 = vld [vmem:[%s3117 + $0x1b0] sm:$0xff]
    %v3151 = vld [vmem:[%s3117 + $0x1b8] sm:$0xff]
    %v3152 = vld [vmem:[%s3117 + $0x1c8] sm:$0xff]
    %v3153 = vld [vmem:[%s3117 + $0x1d0] sm:$0xff]
    %v3154 = vld [vmem:[%s3117 + $0x1e0] sm:$0xff]
    %v3155 = vld [vmem:[%s3117 + $0x1e8] sm:$0xff]
    %v3156 = vld [vmem:[%s3117 + $0x1f8] sm:$0xff]
    %v3157 = vld [vmem:[%s3117 + $0x200] sm:$0xff]
    %v3158 = vld [vmem:[%s3117 + $0x210] sm:$0xff]
    %v3159 = vld [vmem:[%s3117 + $0x218] sm:$0xff]
    %v3160 = vld [vmem:[%s3117 + $0x228] sm:$0xff]
    %v3161 = vld [vmem:[%s3117 + $0x230] sm:$0xff]
    %v3162 = vld [vmem:[%s3117 + $0x240] sm:$0xff]
    %v3163 = vld [vmem:[%s3117 + $0x248] sm:$0xff]
    %v3164 = vld [vmem:[%s3117 + $0x258] sm:$0xff]
    %v3165 = vld [vmem:[%s3117 + $0x260] sm:$0xff]
    %v3166 = vld [vmem:[%s3117 + $0x270] sm:$0xff]
    %v3167 = vld [vmem:[%s3117 + $0x278] sm:$0xff]
    %v3168 = vld [vmem:[%s3117 + $0x288] sm:$0xff]
    %v3169 = vld [vmem:[%s3117 + $0x290] sm:$0xff]
    %v3170 = vld [vmem:[%s3117 + $0x2a0] sm:$0xff]
    %v3171 = vld [vmem:[%s3117 + $0x2a8] sm:$0xff]
    %v3172 = vld [vmem:[%s3117 + $0x2b8] sm:$0xff]
    %v3173 = vld [vmem:[%s3117 + $0x2c0] sm:$0xff]
    %v3174 = vld [vmem:[%s3117 + $0x2d0] sm:$0xff]
    %v3175 = vld [vmem:[%s3117 + $0x2d8] sm:$0xff]
    %v3176 = vld [vmem:[%s3117 + $0x2e8] sm:$0xff]
    %v3177 = vld [vmem:[%s3117 + $0x2f0] sm:$0xff]
    %v3178 = vld [vmem:[%s3117 + $0x300] sm:$0xff]
    %v3179 = vld [vmem:[%s3117 + $0x308] sm:$0xff]
    %v3180 = vld [vmem:[%s3117 + $0x318] sm:$0xff]
    %v3181 = vld [vmem:[%s3117 + $0x320] sm:$0xff]
    %s3182 = scalar_lea.vmem %s1, 24
    %v3183 = vld [vmem:[%s3182] sm:$0xf]
    %v3185 = vsel %vm170, %v3118, 0
    %v3188 = vsel %vm170, %v3119, 0
    %v3191 = vsel %vm170, %v3120, 0
    %v3194 = vsel %vm170, %v3121, 0
    %v3197 = vsel %vm170, %v3122, 0
    %v3200 = vsel %vm170, %v3123, 0
    %v3203 = vsel %vm170, %v3124, 0
    %v3206 = vsel %vm170, %v3125, 0
    %v3209 = vsel %vm170, %v3126, 0
    %v3212 = vsel %vm170, %v3127, 0
    %v3215 = vsel %vm170, %v3128, 0
    %v3218 = vsel %vm170, %v3129, 0
    %v3221 = vsel %vm170, %v3130, 0
    %v3224 = vsel %vm170, %v3131, 0
    %v3227 = vsel %vm170, %v3132, 0
    %v3230 = vsel %vm170, %v3133, 0
    %v3233 = vsel %vm170, %v3134, 0
    %v3236 = vsel %vm170, %v3135, 0
    %v3239 = vsel %vm170, %v3136, 0
    %v3242 = vsel %vm170, %v3137, 0
    %v3245 = vsel %vm170, %v3138, 0
    %v3248 = vsel %vm170, %v3139, 0
    %v3251 = vsel %vm170, %v3140, 0
    %v3254 = vsel %vm170, %v3141, 0
    %v3257 = vsel %vm170, %v3142, 0
    %v3260 = vsel %vm170, %v3143, 0
    %v3263 = vsel %vm170, %v3144, 0
    %v3266 = vsel %vm170, %v3145, 0
    %v3269 = vsel %vm170, %v3146, 0
    %v3272 = vsel %vm170, %v3147, 0
    %v3275 = vsel %vm170, %v3148, 0
    %v3278 = vsel %vm170, %v3149, 0
    %v3281 = vsel %vm170, %v3150, 0
    %v3284 = vsel %vm170, %v3151, 0
    %v3287 = vsel %vm170, %v3152, 0
    %v3290 = vsel %vm170, %v3153, 0
    %v3293 = vsel %vm170, %v3154, 0
    %v3296 = vsel %vm170, %v3155, 0
    %v3299 = vsel %vm170, %v3156, 0
    %v3302 = vsel %vm170, %v3157, 0
    %v3305 = vsel %vm170, %v3158, 0
    %v3308 = vsel %vm170, %v3159, 0
    %v3311 = vsel %vm170, %v3160, 0
    %v3314 = vsel %vm170, %v3161, 0
    %v3317 = vsel %vm170, %v3162, 0
    %v3320 = vsel %vm170, %v3163, 0
    %v3323 = vsel %vm170, %v3164, 0
    %v3326 = vsel %vm170, %v3165, 0
    %v3329 = vsel %vm170, %v3166, 0
    %v3332 = vsel %vm170, %v3167, 0
    %v3335 = vsel %vm170, %v3168, 0
    %v3338 = vsel %vm170, %v3169, 0
    %v3341 = vsel %vm170, %v3170, 0
    %v3344 = vsel %vm170, %v3171, 0
    %v3347 = vsel %vm170, %v3172, 0
    %v3350 = vsel %vm170, %v3173, 0
    %v3353 = vsel %vm170, %v3174, 0
    %v3356 = vsel %vm170, %v3175, 0
    %v3359 = vsel %vm170, %v3176, 0
    %v3362 = vsel %vm170, %v3177, 0
    %v3365 = vsel %vm170, %v3178, 0
    %v3368 = vsel %vm170, %v3179, 0
    %v3371 = vsel %vm170, %v3180, 0
    %v3374 = vsel %vm170, %v3181, 0
    %v3377 = vsel %vm363, %v3183, 0
    %3379 = vmatpush.msra.mxu0 0.0
    %3380 = vmatpush.msra.mxu0 0.0
    %3381 = vmatpush.msra.mxu0 0.0
    %3382 = vmatpush.msra.mxu0 0.0
    %3383 = vmatpush.msra.mxu0 0.0
    %3384 = vmatpush.msra.mxu0 0.0
    %3385 = vmatpush.msra.mxu0 0.0
    %3386 = vmatpush.msra.mxu0 0.0
    %3387 = vmatpush.msra.mxu0 0.0
    %3388 = vmatpush.msra.mxu0 0.0
    %3389 = vmatpush.msra.mxu0 0.0
    %3390 = vmatpush.msra.mxu0 0.0
    %3391 = vmatpush.msra.mxu0 0.0
    %3392 = vmatpush.msra.mxu0 0.0
    %3393 = vmatpush.msra.mxu0 0.0
    %3394 = vmatpush.msra.mxu0 %v3377
    %3395 = vmatmul.f32.gmra.mxu0 %v3185
    %v3396 = vpop.f32.mrf.mxu0
    %v3397 = vadd.f32 0.0, %v3396
    %3398 = vmatmul.f32.gmra.mxu0 %v3188
    %v3399 = vpop.f32.mrf.mxu0
    %v3400 = vadd.f32 0.0, %v3399
    %3401 = vmatmul.f32.gmra.mxu0 %v3191
    %v3402 = vpop.f32.mrf.mxu0
    %v3403 = vadd.f32 0.0, %v3402
    %3404 = vmatmul.f32.gmra.mxu0 %v3194
    %v3405 = vpop.f32.mrf.mxu0
    %v3406 = vadd.f32 0.0, %v3405
    %3407 = vmatmul.f32.gmra.mxu0 %v3197
    %v3408 = vpop.f32.mrf.mxu0
    %v3409 = vadd.f32 0.0, %v3408
    %3410 = vmatmul.f32.gmra.mxu0 %v3200
    %v3411 = vpop.f32.mrf.mxu0
    %v3412 = vadd.f32 0.0, %v3411
    %3413 = vmatmul.f32.gmra.mxu0 %v3203
    %v3414 = vpop.f32.mrf.mxu0
    %v3415 = vadd.f32 0.0, %v3414
    %3416 = vmatmul.f32.gmra.mxu0 %v3206
    %v3417 = vpop.f32.mrf.mxu0
    %v3418 = vadd.f32 0.0, %v3417
    %3419 = vmatmul.f32.gmra.mxu0 %v3209
    %v3420 = vpop.f32.mrf.mxu0
    %v3421 = vadd.f32 0.0, %v3420
    %3422 = vmatmul.f32.gmra.mxu0 %v3212
    %v3423 = vpop.f32.mrf.mxu0
    %v3424 = vadd.f32 0.0, %v3423
    %3425 = vmatmul.f32.gmra.mxu0 %v3215
    %v3426 = vpop.f32.mrf.mxu0
    %v3427 = vadd.f32 0.0, %v3426
    %3428 = vmatmul.f32.gmra.mxu0 %v3218
    %v3429 = vpop.f32.mrf.mxu0
    %v3430 = vadd.f32 0.0, %v3429
    %3431 = vmatmul.f32.gmra.mxu0 %v3221
    %v3432 = vpop.f32.mrf.mxu0
    %v3433 = vadd.f32 0.0, %v3432
    %3434 = vmatmul.f32.gmra.mxu0 %v3224
    %v3435 = vpop.f32.mrf.mxu0
    %v3436 = vadd.f32 0.0, %v3435
    %3437 = vmatmul.f32.gmra.mxu0 %v3227
    %v3438 = vpop.f32.mrf.mxu0
    %v3439 = vadd.f32 0.0, %v3438
    %3440 = vmatmul.f32.gmra.mxu0 %v3230
    %v3441 = vpop.f32.mrf.mxu0
    %v3442 = vadd.f32 0.0, %v3441
    %3443 = vmatmul.f32.gmra.mxu0 %v3233
    %v3444 = vpop.f32.mrf.mxu0
    %v3445 = vadd.f32 0.0, %v3444
    %3446 = vmatmul.f32.gmra.mxu0 %v3236
    %v3447 = vpop.f32.mrf.mxu0
    %v3448 = vadd.f32 0.0, %v3447
    %3449 = vmatmul.f32.gmra.mxu0 %v3239
    %v3450 = vpop.f32.mrf.mxu0
    %v3451 = vadd.f32 0.0, %v3450
    %3452 = vmatmul.f32.gmra.mxu0 %v3242
    %v3453 = vpop.f32.mrf.mxu0
    %v3454 = vadd.f32 0.0, %v3453
    %3455 = vmatmul.f32.gmra.mxu0 %v3245
    %v3456 = vpop.f32.mrf.mxu0
    %v3457 = vadd.f32 0.0, %v3456
    %3458 = vmatmul.f32.gmra.mxu0 %v3248
    %v3459 = vpop.f32.mrf.mxu0
    %v3460 = vadd.f32 0.0, %v3459
    %3461 = vmatmul.f32.gmra.mxu0 %v3251
    %v3462 = vpop.f32.mrf.mxu0
    %v3463 = vadd.f32 0.0, %v3462
    %3464 = vmatmul.f32.gmra.mxu0 %v3254
    %v3465 = vpop.f32.mrf.mxu0
    %v3466 = vadd.f32 0.0, %v3465
    %3467 = vmatmul.f32.gmra.mxu0 %v3257
    %v3468 = vpop.f32.mrf.mxu0
    %v3469 = vadd.f32 0.0, %v3468
    %3470 = vmatmul.f32.gmra.mxu0 %v3260
    %v3471 = vpop.f32.mrf.mxu0
    %v3472 = vadd.f32 0.0, %v3471
    %3473 = vmatmul.f32.gmra.mxu0 %v3263
    %v3474 = vpop.f32.mrf.mxu0
    %v3475 = vadd.f32 0.0, %v3474
    %3476 = vmatmul.f32.gmra.mxu0 %v3266
    %v3477 = vpop.f32.mrf.mxu0
    %v3478 = vadd.f32 0.0, %v3477
    %3479 = vmatmul.f32.gmra.mxu0 %v3269
    %v3480 = vpop.f32.mrf.mxu0
    %v3481 = vadd.f32 0.0, %v3480
    %3482 = vmatmul.f32.gmra.mxu0 %v3272
    %v3483 = vpop.f32.mrf.mxu0
    %v3484 = vadd.f32 0.0, %v3483
    %3485 = vmatmul.f32.gmra.mxu0 %v3275
    %v3486 = vpop.f32.mrf.mxu0
    %v3487 = vadd.f32 0.0, %v3486
    %3488 = vmatmul.f32.gmra.mxu0 %v3278
    %v3489 = vpop.f32.mrf.mxu0
    %v3490 = vadd.f32 0.0, %v3489
    %3491 = vmatmul.f32.gmra.mxu0 %v3281
    %v3492 = vpop.f32.mrf.mxu0
    %v3493 = vadd.f32 0.0, %v3492
    %3494 = vmatmul.f32.gmra.mxu0 %v3284
    %v3495 = vpop.f32.mrf.mxu0
    %v3496 = vadd.f32 0.0, %v3495
    %3497 = vmatmul.f32.gmra.mxu0 %v3287
    %v3498 = vpop.f32.mrf.mxu0
    %v3499 = vadd.f32 0.0, %v3498
    %3500 = vmatmul.f32.gmra.mxu0 %v3290
    %v3501 = vpop.f32.mrf.mxu0
    %v3502 = vadd.f32 0.0, %v3501
    %3503 = vmatmul.f32.gmra.mxu0 %v3293
    %v3504 = vpop.f32.mrf.mxu0
    %v3505 = vadd.f32 0.0, %v3504
    %3506 = vmatmul.f32.gmra.mxu0 %v3296
    %v3507 = vpop.f32.mrf.mxu0
    %v3508 = vadd.f32 0.0, %v3507
    %3509 = vmatmul.f32.gmra.mxu0 %v3299
    %v3510 = vpop.f32.mrf.mxu0
    %v3511 = vadd.f32 0.0, %v3510
    %3512 = vmatmul.f32.gmra.mxu0 %v3302
    %v3513 = vpop.f32.mrf.mxu0
    %v3514 = vadd.f32 0.0, %v3513
    %3515 = vmatmul.f32.gmra.mxu0 %v3305
    %v3516 = vpop.f32.mrf.mxu0
    %v3517 = vadd.f32 0.0, %v3516
    %3518 = vmatmul.f32.gmra.mxu0 %v3308
    %v3519 = vpop.f32.mrf.mxu0
    %v3520 = vadd.f32 0.0, %v3519
    %3521 = vmatmul.f32.gmra.mxu0 %v3311
    %v3522 = vpop.f32.mrf.mxu0
    %v3523 = vadd.f32 0.0, %v3522
    %3524 = vmatmul.f32.gmra.mxu0 %v3314
    %v3525 = vpop.f32.mrf.mxu0
    %v3526 = vadd.f32 0.0, %v3525
    %3527 = vmatmul.f32.gmra.mxu0 %v3317
    %v3528 = vpop.f32.mrf.mxu0
    %v3529 = vadd.f32 0.0, %v3528
    %3530 = vmatmul.f32.gmra.mxu0 %v3320
    %v3531 = vpop.f32.mrf.mxu0
    %v3532 = vadd.f32 0.0, %v3531
    %3533 = vmatmul.f32.gmra.mxu0 %v3323
    %v3534 = vpop.f32.mrf.mxu0
    %v3535 = vadd.f32 0.0, %v3534
    %3536 = vmatmul.f32.gmra.mxu0 %v3326
    %v3537 = vpop.f32.mrf.mxu0
    %v3538 = vadd.f32 0.0, %v3537
    %3539 = vmatmul.f32.gmra.mxu0 %v3329
    %v3540 = vpop.f32.mrf.mxu0
    %v3541 = vadd.f32 0.0, %v3540
    %3542 = vmatmul.f32.gmra.mxu0 %v3332
    %v3543 = vpop.f32.mrf.mxu0
    %v3544 = vadd.f32 0.0, %v3543
    %3545 = vmatmul.f32.gmra.mxu0 %v3335
    %v3546 = vpop.f32.mrf.mxu0
    %v3547 = vadd.f32 0.0, %v3546
    %3548 = vmatmul.f32.gmra.mxu0 %v3338
    %v3549 = vpop.f32.mrf.mxu0
    %v3550 = vadd.f32 0.0, %v3549
    %3551 = vmatmul.f32.gmra.mxu0 %v3341
    %v3552 = vpop.f32.mrf.mxu0
    %v3553 = vadd.f32 0.0, %v3552
    %3554 = vmatmul.f32.gmra.mxu0 %v3344
    %v3555 = vpop.f32.mrf.mxu0
    %v3556 = vadd.f32 0.0, %v3555
    %3557 = vmatmul.f32.gmra.mxu0 %v3347
    %v3558 = vpop.f32.mrf.mxu0
    %v3559 = vadd.f32 0.0, %v3558
    %3560 = vmatmul.f32.gmra.mxu0 %v3350
    %v3561 = vpop.f32.mrf.mxu0
    %v3562 = vadd.f32 0.0, %v3561
    %3563 = vmatmul.f32.gmra.mxu0 %v3353
    %v3564 = vpop.f32.mrf.mxu0
    %v3565 = vadd.f32 0.0, %v3564
    %3566 = vmatmul.f32.gmra.mxu0 %v3356
    %v3567 = vpop.f32.mrf.mxu0
    %v3568 = vadd.f32 0.0, %v3567
    %3569 = vmatmul.f32.gmra.mxu0 %v3359
    %v3570 = vpop.f32.mrf.mxu0
    %v3571 = vadd.f32 0.0, %v3570
    %3572 = vmatmul.f32.gmra.mxu0 %v3362
    %v3573 = vpop.f32.mrf.mxu0
    %v3574 = vadd.f32 0.0, %v3573
    %3575 = vmatmul.f32.gmra.mxu0 %v3365
    %v3576 = vpop.f32.mrf.mxu0
    %v3577 = vadd.f32 0.0, %v3576
    %3578 = vmatmul.f32.gmra.mxu0 %v3368
    %v3579 = vpop.f32.mrf.mxu0
    %v3580 = vadd.f32 0.0, %v3579
    %3581 = vmatmul.f32.gmra.mxu0 %v3371
    %v3582 = vpop.f32.mrf.mxu0
    %v3583 = vadd.f32 0.0, %v3582
    %3584 = vmatmul.f32.gmra.mxu0 %v3374
    %v3585 = vpop.f32.mrf.mxu0
    %v3586 = vadd.f32 0.0, %v3585
    %3587 = vdwg.mxu0
    %v3588 = vadd.f32 %v3053, %v3397
    %v3589 = vadd.f32 %v3054, %v3400
    %v3590 = vadd.f32 %v3055, %v3403
    %v3591 = vadd.f32 %v3056, %v3406
    %v3592 = vadd.f32 %v3057, %v3409
    %v3593 = vadd.f32 %v3058, %v3412
    %v3594 = vadd.f32 %v3059, %v3415
    %v3595 = vadd.f32 %v3060, %v3418
    %v3596 = vadd.f32 %v3061, %v3421
    %v3597 = vadd.f32 %v3062, %v3424
    %v3598 = vadd.f32 %v3063, %v3427
    %v3599 = vadd.f32 %v3064, %v3430
    %v3600 = vadd.f32 %v3065, %v3433
    %v3601 = vadd.f32 %v3066, %v3436
    %v3602 = vadd.f32 %v3067, %v3439
    %v3603 = vadd.f32 %v3068, %v3442
    %v3604 = vadd.f32 %v3069, %v3445
    %v3605 = vadd.f32 %v3070, %v3448
    %v3606 = vadd.f32 %v3071, %v3451
    %v3607 = vadd.f32 %v3072, %v3454
    %v3608 = vadd.f32 %v3073, %v3457
    %v3609 = vadd.f32 %v3074, %v3460
    %v3610 = vadd.f32 %v3075, %v3463
    %v3611 = vadd.f32 %v3076, %v3466
    %v3612 = vadd.f32 %v3077, %v3469
    %v3613 = vadd.f32 %v3078, %v3472
    %v3614 = vadd.f32 %v3079, %v3475
    %v3615 = vadd.f32 %v3080, %v3478
    %v3616 = vadd.f32 %v3081, %v3481
    %v3617 = vadd.f32 %v3082, %v3484
    %v3618 = vadd.f32 %v3083, %v3487
    %v3619 = vadd.f32 %v3084, %v3490
    %v3620 = vadd.f32 %v3085, %v3493
    %v3621 = vadd.f32 %v3086, %v3496
    %v3622 = vadd.f32 %v3087, %v3499
    %v3623 = vadd.f32 %v3088, %v3502
    %v3624 = vadd.f32 %v3089, %v3505
    %v3625 = vadd.f32 %v3090, %v3508
    %v3626 = vadd.f32 %v3091, %v3511
    %v3627 = vadd.f32 %v3092, %v3514
    %v3628 = vadd.f32 %v3093, %v3517
    %v3629 = vadd.f32 %v3094, %v3520
    %v3630 = vadd.f32 %v3095, %v3523
    %v3631 = vadd.f32 %v3096, %v3526
    %v3632 = vadd.f32 %v3097, %v3529
    %v3633 = vadd.f32 %v3098, %v3532
    %v3634 = vadd.f32 %v3099, %v3535
    %v3635 = vadd.f32 %v3100, %v3538
    %v3636 = vadd.f32 %v3101, %v3541
    %v3637 = vadd.f32 %v3102, %v3544
    %v3638 = vadd.f32 %v3103, %v3547
    %v3639 = vadd.f32 %v3104, %v3550
    %v3640 = vadd.f32 %v3105, %v3553
    %v3641 = vadd.f32 %v3106, %v3556
    %v3642 = vadd.f32 %v3107, %v3559
    %v3643 = vadd.f32 %v3108, %v3562
    %v3644 = vadd.f32 %v3109, %v3565
    %v3645 = vadd.f32 %v3110, %v3568
    %v3646 = vadd.f32 %v3111, %v3571
    %v3647 = vadd.f32 %v3112, %v3574
    %v3648 = vadd.f32 %v3113, %v3577
    %v3649 = vadd.f32 %v3114, %v3580
    %v3650 = vadd.f32 %v3115, %v3583
    %v3651 = vadd.f32 %v3116, %v3586
    %v3652 = vld [vmem:[%s3117 + $0x1] sm:$0xff]
    %v3653 = vld [vmem:[%s3117 + $0x9] sm:$0xff]
    %v3654 = vld [vmem:[%s3117 + $0x19] sm:$0xff]
    %v3655 = vld [vmem:[%s3117 + $0x21] sm:$0xff]
    %v3656 = vld [vmem:[%s3117 + $0x31] sm:$0xff]
    %v3657 = vld [vmem:[%s3117 + $0x39] sm:$0xff]
    %v3658 = vld [vmem:[%s3117 + $0x49] sm:$0xff]
    %v3659 = vld [vmem:[%s3117 + $0x51] sm:$0xff]
    %v3660 = vld [vmem:[%s3117 + $0x61] sm:$0xff]
    %v3661 = vld [vmem:[%s3117 + $0x69] sm:$0xff]
    %v3662 = vld [vmem:[%s3117 + $0x79] sm:$0xff]
    %v3663 = vld [vmem:[%s3117 + $0x81] sm:$0xff]
    %v3664 = vld [vmem:[%s3117 + $0x91] sm:$0xff]
    %v3665 = vld [vmem:[%s3117 + $0x99] sm:$0xff]
    %v3666 = vld [vmem:[%s3117 + $0xa9] sm:$0xff]
    %v3667 = vld [vmem:[%s3117 + $0xb1] sm:$0xff]
    %v3668 = vld [vmem:[%s3117 + $0xc1] sm:$0xff]
    %v3669 = vld [vmem:[%s3117 + $0xc9] sm:$0xff]
    %v3670 = vld [vmem:[%s3117 + $0xd9] sm:$0xff]
    %v3671 = vld [vmem:[%s3117 + $0xe1] sm:$0xff]
    %v3672 = vld [vmem:[%s3117 + $0xf1] sm:$0xff]
    %v3673 = vld [vmem:[%s3117 + $0xf9] sm:$0xff]
    %v3674 = vld [vmem:[%s3117 + $0x109] sm:$0xff]
    %v3675 = vld [vmem:[%s3117 + $0x111] sm:$0xff]
    %v3676 = vld [vmem:[%s3117 + $0x121] sm:$0xff]
    %v3677 = vld [vmem:[%s3117 + $0x129] sm:$0xff]
    %v3678 = vld [vmem:[%s3117 + $0x139] sm:$0xff]
    %v3679 = vld [vmem:[%s3117 + $0x141] sm:$0xff]
    %v3680 = vld [vmem:[%s3117 + $0x151] sm:$0xff]
    %v3681 = vld [vmem:[%s3117 + $0x159] sm:$0xff]
    %v3682 = vld [vmem:[%s3117 + $0x169] sm:$0xff]
    %v3683 = vld [vmem:[%s3117 + $0x171] sm:$0xff]
    %v3684 = vld [vmem:[%s3117 + $0x1b1] sm:$0xff]
    %v3685 = vld [vmem:[%s3117 + $0x1b9] sm:$0xff]
    %v3686 = vld [vmem:[%s3117 + $0x1c9] sm:$0xff]
    %v3687 = vld [vmem:[%s3117 + $0x1d1] sm:$0xff]
    %v3688 = vld [vmem:[%s3117 + $0x1e1] sm:$0xff]
    %v3689 = vld [vmem:[%s3117 + $0x1e9] sm:$0xff]
    %v3690 = vld [vmem:[%s3117 + $0x1f9] sm:$0xff]
    %v3691 = vld [vmem:[%s3117 + $0x201] sm:$0xff]
    %v3692 = vld [vmem:[%s3117 + $0x211] sm:$0xff]
    %v3693 = vld [vmem:[%s3117 + $0x219] sm:$0xff]
    %v3694 = vld [vmem:[%s3117 + $0x229] sm:$0xff]
    %v3695 = vld [vmem:[%s3117 + $0x231] sm:$0xff]
    %v3696 = vld [vmem:[%s3117 + $0x241] sm:$0xff]
    %v3697 = vld [vmem:[%s3117 + $0x249] sm:$0xff]
    %v3698 = vld [vmem:[%s3117 + $0x259] sm:$0xff]
    %v3699 = vld [vmem:[%s3117 + $0x261] sm:$0xff]
    %v3700 = vld [vmem:[%s3117 + $0x271] sm:$0xff]
    %v3701 = vld [vmem:[%s3117 + $0x279] sm:$0xff]
    %v3702 = vld [vmem:[%s3117 + $0x289] sm:$0xff]
    %v3703 = vld [vmem:[%s3117 + $0x291] sm:$0xff]
    %v3704 = vld [vmem:[%s3117 + $0x2a1] sm:$0xff]
    %v3705 = vld [vmem:[%s3117 + $0x2a9] sm:$0xff]
    %v3706 = vld [vmem:[%s3117 + $0x2b9] sm:$0xff]
    %v3707 = vld [vmem:[%s3117 + $0x2c1] sm:$0xff]
    %v3708 = vld [vmem:[%s3117 + $0x2d1] sm:$0xff]
    %v3709 = vld [vmem:[%s3117 + $0x2d9] sm:$0xff]
    %v3710 = vld [vmem:[%s3117 + $0x2e9] sm:$0xff]
    %v3711 = vld [vmem:[%s3117 + $0x2f1] sm:$0xff]
    %v3712 = vld [vmem:[%s3117 + $0x301] sm:$0xff]
    %v3713 = vld [vmem:[%s3117 + $0x309] sm:$0xff]
    %v3714 = vld [vmem:[%s3117 + $0x319] sm:$0xff]
    %v3715 = vld [vmem:[%s3117 + $0x321] sm:$0xff]
    %s3716 = scalar_lea.vmem %s1, 28
    %v3717 = vld [vmem:[%s3716] sm:$0xf]
    %v3719 = vsel %vm170, %v3652, 0
    %v3722 = vsel %vm170, %v3653, 0
    %v3725 = vsel %vm170, %v3654, 0
    %v3728 = vsel %vm170, %v3655, 0
    %v3731 = vsel %vm170, %v3656, 0
    %v3734 = vsel %vm170, %v3657, 0
    %v3737 = vsel %vm170, %v3658, 0
    %v3740 = vsel %vm170, %v3659, 0
    %v3743 = vsel %vm170, %v3660, 0
    %v3746 = vsel %vm170, %v3661, 0
    %v3749 = vsel %vm170, %v3662, 0
    %v3752 = vsel %vm170, %v3663, 0
    %v3755 = vsel %vm170, %v3664, 0
    %v3758 = vsel %vm170, %v3665, 0
    %v3761 = vsel %vm170, %v3666, 0
    %v3764 = vsel %vm170, %v3667, 0
    %v3767 = vsel %vm170, %v3668, 0
    %v3770 = vsel %vm170, %v3669, 0
    %v3773 = vsel %vm170, %v3670, 0
    %v3776 = vsel %vm170, %v3671, 0
    %v3779 = vsel %vm170, %v3672, 0
    %v3782 = vsel %vm170, %v3673, 0
    %v3785 = vsel %vm170, %v3674, 0
    %v3788 = vsel %vm170, %v3675, 0
    %v3791 = vsel %vm170, %v3676, 0
    %v3794 = vsel %vm170, %v3677, 0
    %v3797 = vsel %vm170, %v3678, 0
    %v3800 = vsel %vm170, %v3679, 0
    %v3803 = vsel %vm170, %v3680, 0
    %v3806 = vsel %vm170, %v3681, 0
    %v3809 = vsel %vm170, %v3682, 0
    %v3812 = vsel %vm170, %v3683, 0
    %v3815 = vsel %vm170, %v3684, 0
    %v3818 = vsel %vm170, %v3685, 0
    %v3821 = vsel %vm170, %v3686, 0
    %v3824 = vsel %vm170, %v3687, 0
    %v3827 = vsel %vm170, %v3688, 0
    %v3830 = vsel %vm170, %v3689, 0
    %v3833 = vsel %vm170, %v3690, 0
    %v3836 = vsel %vm170, %v3691, 0
    %v3839 = vsel %vm170, %v3692, 0
    %v3842 = vsel %vm170, %v3693, 0
    %v3845 = vsel %vm170, %v3694, 0
    %v3848 = vsel %vm170, %v3695, 0
    %v3851 = vsel %vm170, %v3696, 0
    %v3854 = vsel %vm170, %v3697, 0
    %v3857 = vsel %vm170, %v3698, 0
    %v3860 = vsel %vm170, %v3699, 0
    %v3863 = vsel %vm170, %v3700, 0
    %v3866 = vsel %vm170, %v3701, 0
    %v3869 = vsel %vm170, %v3702, 0
    %v3872 = vsel %vm170, %v3703, 0
    %v3875 = vsel %vm170, %v3704, 0
    %v3878 = vsel %vm170, %v3705, 0
    %v3881 = vsel %vm170, %v3706, 0
    %v3884 = vsel %vm170, %v3707, 0
    %v3887 = vsel %vm170, %v3708, 0
    %v3890 = vsel %vm170, %v3709, 0
    %v3893 = vsel %vm170, %v3710, 0
    %v3896 = vsel %vm170, %v3711, 0
    %v3899 = vsel %vm170, %v3712, 0
    %v3902 = vsel %vm170, %v3713, 0
    %v3905 = vsel %vm170, %v3714, 0
    %v3908 = vsel %vm170, %v3715, 0
    %v3911 = vsel %vm363, %v3717, 0
    %3913 = vmatpush.msra.mxu0 0.0
    %3914 = vmatpush.msra.mxu0 0.0
    %3915 = vmatpush.msra.mxu0 0.0
    %3916 = vmatpush.msra.mxu0 0.0
    %3917 = vmatpush.msra.mxu0 0.0
    %3918 = vmatpush.msra.mxu0 0.0
    %3919 = vmatpush.msra.mxu0 0.0
    %3920 = vmatpush.msra.mxu0 0.0
    %3921 = vmatpush.msra.mxu0 0.0
    %3922 = vmatpush.msra.mxu0 0.0
    %3923 = vmatpush.msra.mxu0 0.0
    %3924 = vmatpush.msra.mxu0 0.0
    %3925 = vmatpush.msra.mxu0 0.0
    %3926 = vmatpush.msra.mxu0 0.0
    %3927 = vmatpush.msra.mxu0 0.0
    %3928 = vmatpush.msra.mxu0 %v3911
    %3929 = vmatmul.f32.gmra.mxu0 %v3719
    %v3930 = vpop.f32.mrf.mxu0
    %v3931 = vadd.f32 0.0, %v3930
    %3932 = vmatmul.f32.gmra.mxu0 %v3722
    %v3933 = vpop.f32.mrf.mxu0
    %v3934 = vadd.f32 0.0, %v3933
    %3935 = vmatmul.f32.gmra.mxu0 %v3725
    %v3936 = vpop.f32.mrf.mxu0
    %v3937 = vadd.f32 0.0, %v3936
    %3938 = vmatmul.f32.gmra.mxu0 %v3728
    %v3939 = vpop.f32.mrf.mxu0
    %v3940 = vadd.f32 0.0, %v3939
    %3941 = vmatmul.f32.gmra.mxu0 %v3731
    %v3942 = vpop.f32.mrf.mxu0
    %v3943 = vadd.f32 0.0, %v3942
    %3944 = vmatmul.f32.gmra.mxu0 %v3734
    %v3945 = vpop.f32.mrf.mxu0
    %v3946 = vadd.f32 0.0, %v3945
    %3947 = vmatmul.f32.gmra.mxu0 %v3737
    %v3948 = vpop.f32.mrf.mxu0
    %v3949 = vadd.f32 0.0, %v3948
    %3950 = vmatmul.f32.gmra.mxu0 %v3740
    %v3951 = vpop.f32.mrf.mxu0
    %v3952 = vadd.f32 0.0, %v3951
    %3953 = vmatmul.f32.gmra.mxu0 %v3743
    %v3954 = vpop.f32.mrf.mxu0
    %v3955 = vadd.f32 0.0, %v3954
    %3956 = vmatmul.f32.gmra.mxu0 %v3746
    %v3957 = vpop.f32.mrf.mxu0
    %v3958 = vadd.f32 0.0, %v3957
    %3959 = vmatmul.f32.gmra.mxu0 %v3749
    %v3960 = vpop.f32.mrf.mxu0
    %v3961 = vadd.f32 0.0, %v3960
    %3962 = vmatmul.f32.gmra.mxu0 %v3752
    %v3963 = vpop.f32.mrf.mxu0
    %v3964 = vadd.f32 0.0, %v3963
    %3965 = vmatmul.f32.gmra.mxu0 %v3755
    %v3966 = vpop.f32.mrf.mxu0
    %v3967 = vadd.f32 0.0, %v3966
    %3968 = vmatmul.f32.gmra.mxu0 %v3758
    %v3969 = vpop.f32.mrf.mxu0
    %v3970 = vadd.f32 0.0, %v3969
    %3971 = vmatmul.f32.gmra.mxu0 %v3761
    %v3972 = vpop.f32.mrf.mxu0
    %v3973 = vadd.f32 0.0, %v3972
    %3974 = vmatmul.f32.gmra.mxu0 %v3764
    %v3975 = vpop.f32.mrf.mxu0
    %v3976 = vadd.f32 0.0, %v3975
    %3977 = vmatmul.f32.gmra.mxu0 %v3767
    %v3978 = vpop.f32.mrf.mxu0
    %v3979 = vadd.f32 0.0, %v3978
    %3980 = vmatmul.f32.gmra.mxu0 %v3770
    %v3981 = vpop.f32.mrf.mxu0
    %v3982 = vadd.f32 0.0, %v3981
    %3983 = vmatmul.f32.gmra.mxu0 %v3773
    %v3984 = vpop.f32.mrf.mxu0
    %v3985 = vadd.f32 0.0, %v3984
    %3986 = vmatmul.f32.gmra.mxu0 %v3776
    %v3987 = vpop.f32.mrf.mxu0
    %v3988 = vadd.f32 0.0, %v3987
    %3989 = vmatmul.f32.gmra.mxu0 %v3779
    %v3990 = vpop.f32.mrf.mxu0
    %v3991 = vadd.f32 0.0, %v3990
    %3992 = vmatmul.f32.gmra.mxu0 %v3782
    %v3993 = vpop.f32.mrf.mxu0
    %v3994 = vadd.f32 0.0, %v3993
    %3995 = vmatmul.f32.gmra.mxu0 %v3785
    %v3996 = vpop.f32.mrf.mxu0
    %v3997 = vadd.f32 0.0, %v3996
    %3998 = vmatmul.f32.gmra.mxu0 %v3788
    %v3999 = vpop.f32.mrf.mxu0
    %v4000 = vadd.f32 0.0, %v3999
    %4001 = vmatmul.f32.gmra.mxu0 %v3791
    %v4002 = vpop.f32.mrf.mxu0
    %v4003 = vadd.f32 0.0, %v4002
    %4004 = vmatmul.f32.gmra.mxu0 %v3794
    %v4005 = vpop.f32.mrf.mxu0
    %v4006 = vadd.f32 0.0, %v4005
    %4007 = vmatmul.f32.gmra.mxu0 %v3797
    %v4008 = vpop.f32.mrf.mxu0
    %v4009 = vadd.f32 0.0, %v4008
    %4010 = vmatmul.f32.gmra.mxu0 %v3800
    %v4011 = vpop.f32.mrf.mxu0
    %v4012 = vadd.f32 0.0, %v4011
    %4013 = vmatmul.f32.gmra.mxu0 %v3803
    %v4014 = vpop.f32.mrf.mxu0
    %v4015 = vadd.f32 0.0, %v4014
    %4016 = vmatmul.f32.gmra.mxu0 %v3806
    %v4017 = vpop.f32.mrf.mxu0
    %v4018 = vadd.f32 0.0, %v4017
    %4019 = vmatmul.f32.gmra.mxu0 %v3809
    %v4020 = vpop.f32.mrf.mxu0
    %v4021 = vadd.f32 0.0, %v4020
    %4022 = vmatmul.f32.gmra.mxu0 %v3812
    %v4023 = vpop.f32.mrf.mxu0
    %v4024 = vadd.f32 0.0, %v4023
    %4025 = vmatmul.f32.gmra.mxu0 %v3815
    %v4026 = vpop.f32.mrf.mxu0
    %v4027 = vadd.f32 0.0, %v4026
    %4028 = vmatmul.f32.gmra.mxu0 %v3818
    %v4029 = vpop.f32.mrf.mxu0
    %v4030 = vadd.f32 0.0, %v4029
    %4031 = vmatmul.f32.gmra.mxu0 %v3821
    %v4032 = vpop.f32.mrf.mxu0
    %v4033 = vadd.f32 0.0, %v4032
    %4034 = vmatmul.f32.gmra.mxu0 %v3824
    %v4035 = vpop.f32.mrf.mxu0
    %v4036 = vadd.f32 0.0, %v4035
    %4037 = vmatmul.f32.gmra.mxu0 %v3827
    %v4038 = vpop.f32.mrf.mxu0
    %v4039 = vadd.f32 0.0, %v4038
    %4040 = vmatmul.f32.gmra.mxu0 %v3830
    %v4041 = vpop.f32.mrf.mxu0
    %v4042 = vadd.f32 0.0, %v4041
    %4043 = vmatmul.f32.gmra.mxu0 %v3833
    %v4044 = vpop.f32.mrf.mxu0
    %v4045 = vadd.f32 0.0, %v4044
    %4046 = vmatmul.f32.gmra.mxu0 %v3836
    %v4047 = vpop.f32.mrf.mxu0
    %v4048 = vadd.f32 0.0, %v4047
    %4049 = vmatmul.f32.gmra.mxu0 %v3839
    %v4050 = vpop.f32.mrf.mxu0
    %v4051 = vadd.f32 0.0, %v4050
    %4052 = vmatmul.f32.gmra.mxu0 %v3842
    %v4053 = vpop.f32.mrf.mxu0
    %v4054 = vadd.f32 0.0, %v4053
    %4055 = vmatmul.f32.gmra.mxu0 %v3845
    %v4056 = vpop.f32.mrf.mxu0
    %v4057 = vadd.f32 0.0, %v4056
    %4058 = vmatmul.f32.gmra.mxu0 %v3848
    %v4059 = vpop.f32.mrf.mxu0
    %v4060 = vadd.f32 0.0, %v4059
    %4061 = vmatmul.f32.gmra.mxu0 %v3851
    %v4062 = vpop.f32.mrf.mxu0
    %v4063 = vadd.f32 0.0, %v4062
    %4064 = vmatmul.f32.gmra.mxu0 %v3854
    %v4065 = vpop.f32.mrf.mxu0
    %v4066 = vadd.f32 0.0, %v4065
    %4067 = vmatmul.f32.gmra.mxu0 %v3857
    %v4068 = vpop.f32.mrf.mxu0
    %v4069 = vadd.f32 0.0, %v4068
    %4070 = vmatmul.f32.gmra.mxu0 %v3860
    %v4071 = vpop.f32.mrf.mxu0
    %v4072 = vadd.f32 0.0, %v4071
    %4073 = vmatmul.f32.gmra.mxu0 %v3863
    %v4074 = vpop.f32.mrf.mxu0
    %v4075 = vadd.f32 0.0, %v4074
    %4076 = vmatmul.f32.gmra.mxu0 %v3866
    %v4077 = vpop.f32.mrf.mxu0
    %v4078 = vadd.f32 0.0, %v4077
    %4079 = vmatmul.f32.gmra.mxu0 %v3869
    %v4080 = vpop.f32.mrf.mxu0
    %v4081 = vadd.f32 0.0, %v4080
    %4082 = vmatmul.f32.gmra.mxu0 %v3872
    %v4083 = vpop.f32.mrf.mxu0
    %v4084 = vadd.f32 0.0, %v4083
    %4085 = vmatmul.f32.gmra.mxu0 %v3875
    %v4086 = vpop.f32.mrf.mxu0
    %v4087 = vadd.f32 0.0, %v4086
    %4088 = vmatmul.f32.gmra.mxu0 %v3878
    %v4089 = vpop.f32.mrf.mxu0
    %v4090 = vadd.f32 0.0, %v4089
    %4091 = vmatmul.f32.gmra.mxu0 %v3881
    %v4092 = vpop.f32.mrf.mxu0
    %v4093 = vadd.f32 0.0, %v4092
    %4094 = vmatmul.f32.gmra.mxu0 %v3884
    %v4095 = vpop.f32.mrf.mxu0
    %v4096 = vadd.f32 0.0, %v4095
    %4097 = vmatmul.f32.gmra.mxu0 %v3887
    %v4098 = vpop.f32.mrf.mxu0
    %v4099 = vadd.f32 0.0, %v4098
    %4100 = vmatmul.f32.gmra.mxu0 %v3890
    %v4101 = vpop.f32.mrf.mxu0
    %v4102 = vadd.f32 0.0, %v4101
    %4103 = vmatmul.f32.gmra.mxu0 %v3893
    %v4104 = vpop.f32.mrf.mxu0
    %v4105 = vadd.f32 0.0, %v4104
    %4106 = vmatmul.f32.gmra.mxu0 %v3896
    %v4107 = vpop.f32.mrf.mxu0
    %v4108 = vadd.f32 0.0, %v4107
    %4109 = vmatmul.f32.gmra.mxu0 %v3899
    %v4110 = vpop.f32.mrf.mxu0
    %v4111 = vadd.f32 0.0, %v4110
    %4112 = vmatmul.f32.gmra.mxu0 %v3902
    %v4113 = vpop.f32.mrf.mxu0
    %v4114 = vadd.f32 0.0, %v4113
    %4115 = vmatmul.f32.gmra.mxu0 %v3905
    %v4116 = vpop.f32.mrf.mxu0
    %v4117 = vadd.f32 0.0, %v4116
    %4118 = vmatmul.f32.gmra.mxu0 %v3908
    %v4119 = vpop.f32.mrf.mxu0
    %v4120 = vadd.f32 0.0, %v4119
    %4121 = vdwg.mxu0
    %v4122 = vadd.f32 %v3588, %v3931
    %v4123 = vadd.f32 %v3589, %v3934
    %v4124 = vadd.f32 %v3590, %v3937
    %v4125 = vadd.f32 %v3591, %v3940
    %v4126 = vadd.f32 %v3592, %v3943
    %v4127 = vadd.f32 %v3593, %v3946
    %v4128 = vadd.f32 %v3594, %v3949
    %v4129 = vadd.f32 %v3595, %v3952
    %v4130 = vadd.f32 %v3596, %v3955
    %v4131 = vadd.f32 %v3597, %v3958
    %v4132 = vadd.f32 %v3598, %v3961
    %v4133 = vadd.f32 %v3599, %v3964
    %v4134 = vadd.f32 %v3600, %v3967
    %v4135 = vadd.f32 %v3601, %v3970
    %v4136 = vadd.f32 %v3602, %v3973
    %v4137 = vadd.f32 %v3603, %v3976
    %v4138 = vadd.f32 %v3604, %v3979
    %v4139 = vadd.f32 %v3605, %v3982
    %v4140 = vadd.f32 %v3606, %v3985
    %v4141 = vadd.f32 %v3607, %v3988
    %v4142 = vadd.f32 %v3608, %v3991
    %v4143 = vadd.f32 %v3609, %v3994
    %v4144 = vadd.f32 %v3610, %v3997
    %v4145 = vadd.f32 %v3611, %v4000
    %v4146 = vadd.f32 %v3612, %v4003
    %v4147 = vadd.f32 %v3613, %v4006
    %v4148 = vadd.f32 %v3614, %v4009
    %v4149 = vadd.f32 %v3615, %v4012
    %v4150 = vadd.f32 %v3616, %v4015
    %v4151 = vadd.f32 %v3617, %v4018
    %v4152 = vadd.f32 %v3618, %v4021
    %v4153 = vadd.f32 %v3619, %v4024
    %v4154 = vadd.f32 %v3620, %v4027
    %v4155 = vadd.f32 %v3621, %v4030
    %v4156 = vadd.f32 %v3622, %v4033
    %v4157 = vadd.f32 %v3623, %v4036
    %v4158 = vadd.f32 %v3624, %v4039
    %v4159 = vadd.f32 %v3625, %v4042
    %v4160 = vadd.f32 %v3626, %v4045
    %v4161 = vadd.f32 %v3627, %v4048
    %v4162 = vadd.f32 %v3628, %v4051
    %v4163 = vadd.f32 %v3629, %v4054
    %v4164 = vadd.f32 %v3630, %v4057
    %v4165 = vadd.f32 %v3631, %v4060
    %v4166 = vadd.f32 %v3632, %v4063
    %v4167 = vadd.f32 %v3633, %v4066
    %v4168 = vadd.f32 %v3634, %v4069
    %v4169 = vadd.f32 %v3635, %v4072
    %v4170 = vadd.f32 %v3636, %v4075
    %v4171 = vadd.f32 %v3637, %v4078
    %v4172 = vadd.f32 %v3638, %v4081
    %v4173 = vadd.f32 %v3639, %v4084
    %v4174 = vadd.f32 %v3640, %v4087
    %v4175 = vadd.f32 %v3641, %v4090
    %v4176 = vadd.f32 %v3642, %v4093
    %v4177 = vadd.f32 %v3643, %v4096
    %v4178 = vadd.f32 %v3644, %v4099
    %v4179 = vadd.f32 %v3645, %v4102
    %v4180 = vadd.f32 %v3646, %v4105
    %v4181 = vadd.f32 %v3647, %v4108
    %v4182 = vadd.f32 %v3648, %v4111
    %v4183 = vadd.f32 %v3649, %v4114
    %v4184 = vadd.f32 %v3650, %v4117
    %v4185 = vadd.f32 %v3651, %v4120
    %v4186 = vld [vmem:[%s3117 + $0x2] sm:$0xff]
    %v4187 = vld [vmem:[%s3117 + $0xa] sm:$0xff]
    %v4188 = vld [vmem:[%s3117 + $0x1a] sm:$0xff]
    %v4189 = vld [vmem:[%s3117 + $0x22] sm:$0xff]
    %v4190 = vld [vmem:[%s3117 + $0x32] sm:$0xff]
    %v4191 = vld [vmem:[%s3117 + $0x3a] sm:$0xff]
    %v4192 = vld [vmem:[%s3117 + $0x4a] sm:$0xff]
    %v4193 = vld [vmem:[%s3117 + $0x52] sm:$0xff]
    %v4194 = vld [vmem:[%s3117 + $0x62] sm:$0xff]
    %v4195 = vld [vmem:[%s3117 + $0x6a] sm:$0xff]
    %v4196 = vld [vmem:[%s3117 + $0x7a] sm:$0xff]
    %v4197 = vld [vmem:[%s3117 + $0x82] sm:$0xff]
    %v4198 = vld [vmem:[%s3117 + $0x92] sm:$0xff]
    %v4199 = vld [vmem:[%s3117 + $0x9a] sm:$0xff]
    %v4200 = vld [vmem:[%s3117 + $0xaa] sm:$0xff]
    %v4201 = vld [vmem:[%s3117 + $0xb2] sm:$0xff]
    %v4202 = vld [vmem:[%s3117 + $0xc2] sm:$0xff]
    %v4203 = vld [vmem:[%s3117 + $0xca] sm:$0xff]
    %v4204 = vld [vmem:[%s3117 + $0xda] sm:$0xff]
    %v4205 = vld [vmem:[%s3117 + $0xe2] sm:$0xff]
    %v4206 = vld [vmem:[%s3117 + $0xf2] sm:$0xff]
    %v4207 = vld [vmem:[%s3117 + $0xfa] sm:$0xff]
    %v4208 = vld [vmem:[%s3117 + $0x10a] sm:$0xff]
    %v4209 = vld [vmem:[%s3117 + $0x112] sm:$0xff]
    %v4210 = vld [vmem:[%s3117 + $0x122] sm:$0xff]
    %v4211 = vld [vmem:[%s3117 + $0x12a] sm:$0xff]
    %v4212 = vld [vmem:[%s3117 + $0x13a] sm:$0xff]
    %v4213 = vld [vmem:[%s3117 + $0x142] sm:$0xff]
    %v4214 = vld [vmem:[%s3117 + $0x152] sm:$0xff]
    %v4215 = vld [vmem:[%s3117 + $0x15a] sm:$0xff]
    %v4216 = vld [vmem:[%s3117 + $0x16a] sm:$0xff]
    %v4217 = vld [vmem:[%s3117 + $0x172] sm:$0xff]
    %v4218 = vld [vmem:[%s3117 + $0x1b2] sm:$0xff]
    %v4219 = vld [vmem:[%s3117 + $0x1ba] sm:$0xff]
    %v4220 = vld [vmem:[%s3117 + $0x1ca] sm:$0xff]
    %v4221 = vld [vmem:[%s3117 + $0x1d2] sm:$0xff]
    %v4222 = vld [vmem:[%s3117 + $0x1e2] sm:$0xff]
    %v4223 = vld [vmem:[%s3117 + $0x1ea] sm:$0xff]
    %v4224 = vld [vmem:[%s3117 + $0x1fa] sm:$0xff]
    %v4225 = vld [vmem:[%s3117 + $0x202] sm:$0xff]
    %v4226 = vld [vmem:[%s3117 + $0x212] sm:$0xff]
    %v4227 = vld [vmem:[%s3117 + $0x21a] sm:$0xff]
    %v4228 = vld [vmem:[%s3117 + $0x22a] sm:$0xff]
    %v4229 = vld [vmem:[%s3117 + $0x232] sm:$0xff]
    %v4230 = vld [vmem:[%s3117 + $0x242] sm:$0xff]
    %v4231 = vld [vmem:[%s3117 + $0x24a] sm:$0xff]
    %v4232 = vld [vmem:[%s3117 + $0x25a] sm:$0xff]
    %v4233 = vld [vmem:[%s3117 + $0x262] sm:$0xff]
    %v4234 = vld [vmem:[%s3117 + $0x272] sm:$0xff]
    %v4235 = vld [vmem:[%s3117 + $0x27a] sm:$0xff]
    %v4236 = vld [vmem:[%s3117 + $0x28a] sm:$0xff]
    %v4237 = vld [vmem:[%s3117 + $0x292] sm:$0xff]
    %v4238 = vld [vmem:[%s3117 + $0x2a2] sm:$0xff]
    %v4239 = vld [vmem:[%s3117 + $0x2aa] sm:$0xff]
    %v4240 = vld [vmem:[%s3117 + $0x2ba] sm:$0xff]
    %v4241 = vld [vmem:[%s3117 + $0x2c2] sm:$0xff]
    %v4242 = vld [vmem:[%s3117 + $0x2d2] sm:$0xff]
    %v4243 = vld [vmem:[%s3117 + $0x2da] sm:$0xff]
    %v4244 = vld [vmem:[%s3117 + $0x2ea] sm:$0xff]
    %v4245 = vld [vmem:[%s3117 + $0x2f2] sm:$0xff]
    %v4246 = vld [vmem:[%s3117 + $0x302] sm:$0xff]
    %v4247 = vld [vmem:[%s3117 + $0x30a] sm:$0xff]
    %v4248 = vld [vmem:[%s3117 + $0x31a] sm:$0xff]
    %v4249 = vld [vmem:[%s3117 + $0x322] sm:$0xff]
    %s4250 = scalar_lea.vmem %s1, 32
    %v4251 = vld [vmem:[%s4250] sm:$0xf]
    %v4253 = vsel %vm170, %v4186, 0
    %v4256 = vsel %vm170, %v4187, 0
    %v4259 = vsel %vm170, %v4188, 0
    %v4262 = vsel %vm170, %v4189, 0
    %v4265 = vsel %vm170, %v4190, 0
    %v4268 = vsel %vm170, %v4191, 0
    %v4271 = vsel %vm170, %v4192, 0
    %v4274 = vsel %vm170, %v4193, 0
    %v4277 = vsel %vm170, %v4194, 0
    %v4280 = vsel %vm170, %v4195, 0
    %v4283 = vsel %vm170, %v4196, 0
    %v4286 = vsel %vm170, %v4197, 0
    %v4289 = vsel %vm170, %v4198, 0
    %v4292 = vsel %vm170, %v4199, 0
    %v4295 = vsel %vm170, %v4200, 0
    %v4298 = vsel %vm170, %v4201, 0
    %v4301 = vsel %vm170, %v4202, 0
    %v4304 = vsel %vm170, %v4203, 0
    %v4307 = vsel %vm170, %v4204, 0
    %v4310 = vsel %vm170, %v4205, 0
    %v4313 = vsel %vm170, %v4206, 0
    %v4316 = vsel %vm170, %v4207, 0
    %v4319 = vsel %vm170, %v4208, 0
    %v4322 = vsel %vm170, %v4209, 0
    %v4325 = vsel %vm170, %v4210, 0
    %v4328 = vsel %vm170, %v4211, 0
    %v4331 = vsel %vm170, %v4212, 0
    %v4334 = vsel %vm170, %v4213, 0
    %v4337 = vsel %vm170, %v4214, 0
    %v4340 = vsel %vm170, %v4215, 0
    %v4343 = vsel %vm170, %v4216, 0
    %v4346 = vsel %vm170, %v4217, 0
    %v4349 = vsel %vm170, %v4218, 0
    %v4352 = vsel %vm170, %v4219, 0
    %v4355 = vsel %vm170, %v4220, 0
    %v4358 = vsel %vm170, %v4221, 0
    %v4361 = vsel %vm170, %v4222, 0
    %v4364 = vsel %vm170, %v4223, 0
    %v4367 = vsel %vm170, %v4224, 0
    %v4370 = vsel %vm170, %v4225, 0
    %v4373 = vsel %vm170, %v4226, 0
    %v4376 = vsel %vm170, %v4227, 0
    %v4379 = vsel %vm170, %v4228, 0
    %v4382 = vsel %vm170, %v4229, 0
    %v4385 = vsel %vm170, %v4230, 0
    %v4388 = vsel %vm170, %v4231, 0
    %v4391 = vsel %vm170, %v4232, 0
    %v4394 = vsel %vm170, %v4233, 0
    %v4397 = vsel %vm170, %v4234, 0
    %v4400 = vsel %vm170, %v4235, 0
    %v4403 = vsel %vm170, %v4236, 0
    %v4406 = vsel %vm170, %v4237, 0
    %v4409 = vsel %vm170, %v4238, 0
    %v4412 = vsel %vm170, %v4239, 0
    %v4415 = vsel %vm170, %v4240, 0
    %v4418 = vsel %vm170, %v4241, 0
    %v4421 = vsel %vm170, %v4242, 0
    %v4424 = vsel %vm170, %v4243, 0
    %v4427 = vsel %vm170, %v4244, 0
    %v4430 = vsel %vm170, %v4245, 0
    %v4433 = vsel %vm170, %v4246, 0
    %v4436 = vsel %vm170, %v4247, 0
    %v4439 = vsel %vm170, %v4248, 0
    %v4442 = vsel %vm170, %v4249, 0
    %v4445 = vsel %vm363, %v4251, 0
    %4447 = vmatpush.msra.mxu0 0.0
    %4448 = vmatpush.msra.mxu0 0.0
    %4449 = vmatpush.msra.mxu0 0.0
    %4450 = vmatpush.msra.mxu0 0.0
    %4451 = vmatpush.msra.mxu0 0.0
    %4452 = vmatpush.msra.mxu0 0.0
    %4453 = vmatpush.msra.mxu0 0.0
    %4454 = vmatpush.msra.mxu0 0.0
    %4455 = vmatpush.msra.mxu0 0.0
    %4456 = vmatpush.msra.mxu0 0.0
    %4457 = vmatpush.msra.mxu0 0.0
    %4458 = vmatpush.msra.mxu0 0.0
    %4459 = vmatpush.msra.mxu0 0.0
    %4460 = vmatpush.msra.mxu0 0.0
    %4461 = vmatpush.msra.mxu0 0.0
    %4462 = vmatpush.msra.mxu0 %v4445
    %4463 = vmatmul.f32.gmra.mxu0 %v4253
    %v4464 = vpop.f32.mrf.mxu0
    %v4465 = vadd.f32 0.0, %v4464
    %4466 = vmatmul.f32.gmra.mxu0 %v4256
    %v4467 = vpop.f32.mrf.mxu0
    %v4468 = vadd.f32 0.0, %v4467
    %4469 = vmatmul.f32.gmra.mxu0 %v4259
    %v4470 = vpop.f32.mrf.mxu0
    %v4471 = vadd.f32 0.0, %v4470
    %4472 = vmatmul.f32.gmra.mxu0 %v4262
    %v4473 = vpop.f32.mrf.mxu0
    %v4474 = vadd.f32 0.0, %v4473
    %4475 = vmatmul.f32.gmra.mxu0 %v4265
    %v4476 = vpop.f32.mrf.mxu0
    %v4477 = vadd.f32 0.0, %v4476
    %4478 = vmatmul.f32.gmra.mxu0 %v4268
    %v4479 = vpop.f32.mrf.mxu0
    %v4480 = vadd.f32 0.0, %v4479
    %4481 = vmatmul.f32.gmra.mxu0 %v4271
    %v4482 = vpop.f32.mrf.mxu0
    %v4483 = vadd.f32 0.0, %v4482
    %4484 = vmatmul.f32.gmra.mxu0 %v4274
    %v4485 = vpop.f32.mrf.mxu0
    %v4486 = vadd.f32 0.0, %v4485
    %4487 = vmatmul.f32.gmra.mxu0 %v4277
    %v4488 = vpop.f32.mrf.mxu0
    %v4489 = vadd.f32 0.0, %v4488
    %4490 = vmatmul.f32.gmra.mxu0 %v4280
    %v4491 = vpop.f32.mrf.mxu0
    %v4492 = vadd.f32 0.0, %v4491
    %4493 = vmatmul.f32.gmra.mxu0 %v4283
    %v4494 = vpop.f32.mrf.mxu0
    %v4495 = vadd.f32 0.0, %v4494
    %4496 = vmatmul.f32.gmra.mxu0 %v4286
    %v4497 = vpop.f32.mrf.mxu0
    %v4498 = vadd.f32 0.0, %v4497
    %4499 = vmatmul.f32.gmra.mxu0 %v4289
    %v4500 = vpop.f32.mrf.mxu0
    %v4501 = vadd.f32 0.0, %v4500
    %4502 = vmatmul.f32.gmra.mxu0 %v4292
    %v4503 = vpop.f32.mrf.mxu0
    %v4504 = vadd.f32 0.0, %v4503
    %4505 = vmatmul.f32.gmra.mxu0 %v4295
    %v4506 = vpop.f32.mrf.mxu0
    %v4507 = vadd.f32 0.0, %v4506
    %4508 = vmatmul.f32.gmra.mxu0 %v4298
    %v4509 = vpop.f32.mrf.mxu0
    %v4510 = vadd.f32 0.0, %v4509
    %4511 = vmatmul.f32.gmra.mxu0 %v4301
    %v4512 = vpop.f32.mrf.mxu0
    %v4513 = vadd.f32 0.0, %v4512
    %4514 = vmatmul.f32.gmra.mxu0 %v4304
    %v4515 = vpop.f32.mrf.mxu0
    %v4516 = vadd.f32 0.0, %v4515
    %4517 = vmatmul.f32.gmra.mxu0 %v4307
    %v4518 = vpop.f32.mrf.mxu0
    %v4519 = vadd.f32 0.0, %v4518
    %4520 = vmatmul.f32.gmra.mxu0 %v4310
    %v4521 = vpop.f32.mrf.mxu0
    %v4522 = vadd.f32 0.0, %v4521
    %4523 = vmatmul.f32.gmra.mxu0 %v4313
    %v4524 = vpop.f32.mrf.mxu0
    %v4525 = vadd.f32 0.0, %v4524
    %4526 = vmatmul.f32.gmra.mxu0 %v4316
    %v4527 = vpop.f32.mrf.mxu0
    %v4528 = vadd.f32 0.0, %v4527
    %4529 = vmatmul.f32.gmra.mxu0 %v4319
    %v4530 = vpop.f32.mrf.mxu0
    %v4531 = vadd.f32 0.0, %v4530
    %4532 = vmatmul.f32.gmra.mxu0 %v4322
    %v4533 = vpop.f32.mrf.mxu0
    %v4534 = vadd.f32 0.0, %v4533
    %4535 = vmatmul.f32.gmra.mxu0 %v4325
    %v4536 = vpop.f32.mrf.mxu0
    %v4537 = vadd.f32 0.0, %v4536
    %4538 = vmatmul.f32.gmra.mxu0 %v4328
    %v4539 = vpop.f32.mrf.mxu0
    %v4540 = vadd.f32 0.0, %v4539
    %4541 = vmatmul.f32.gmra.mxu0 %v4331
    %v4542 = vpop.f32.mrf.mxu0
    %v4543 = vadd.f32 0.0, %v4542
    %4544 = vmatmul.f32.gmra.mxu0 %v4334
    %v4545 = vpop.f32.mrf.mxu0
    %v4546 = vadd.f32 0.0, %v4545
    %4547 = vmatmul.f32.gmra.mxu0 %v4337
    %v4548 = vpop.f32.mrf.mxu0
    %v4549 = vadd.f32 0.0, %v4548
    %4550 = vmatmul.f32.gmra.mxu0 %v4340
    %v4551 = vpop.f32.mrf.mxu0
    %v4552 = vadd.f32 0.0, %v4551
    %4553 = vmatmul.f32.gmra.mxu0 %v4343
    %v4554 = vpop.f32.mrf.mxu0
    %v4555 = vadd.f32 0.0, %v4554
    %4556 = vmatmul.f32.gmra.mxu0 %v4346
    %v4557 = vpop.f32.mrf.mxu0
    %v4558 = vadd.f32 0.0, %v4557
    %4559 = vmatmul.f32.gmra.mxu0 %v4349
    %v4560 = vpop.f32.mrf.mxu0
    %v4561 = vadd.f32 0.0, %v4560
    %4562 = vmatmul.f32.gmra.mxu0 %v4352
    %v4563 = vpop.f32.mrf.mxu0
    %v4564 = vadd.f32 0.0, %v4563
    %4565 = vmatmul.f32.gmra.mxu0 %v4355
    %v4566 = vpop.f32.mrf.mxu0
    %v4567 = vadd.f32 0.0, %v4566
    %4568 = vmatmul.f32.gmra.mxu0 %v4358
    %v4569 = vpop.f32.mrf.mxu0
    %v4570 = vadd.f32 0.0, %v4569
    %4571 = vmatmul.f32.gmra.mxu0 %v4361
    %v4572 = vpop.f32.mrf.mxu0
    %v4573 = vadd.f32 0.0, %v4572
    %4574 = vmatmul.f32.gmra.mxu0 %v4364
    %v4575 = vpop.f32.mrf.mxu0
    %v4576 = vadd.f32 0.0, %v4575
    %4577 = vmatmul.f32.gmra.mxu0 %v4367
    %v4578 = vpop.f32.mrf.mxu0
    %v4579 = vadd.f32 0.0, %v4578
    %4580 = vmatmul.f32.gmra.mxu0 %v4370
    %v4581 = vpop.f32.mrf.mxu0
    %v4582 = vadd.f32 0.0, %v4581
    %4583 = vmatmul.f32.gmra.mxu0 %v4373
    %v4584 = vpop.f32.mrf.mxu0
    %v4585 = vadd.f32 0.0, %v4584
    %4586 = vmatmul.f32.gmra.mxu0 %v4376
    %v4587 = vpop.f32.mrf.mxu0
    %v4588 = vadd.f32 0.0, %v4587
    %4589 = vmatmul.f32.gmra.mxu0 %v4379
    %v4590 = vpop.f32.mrf.mxu0
    %v4591 = vadd.f32 0.0, %v4590
    %4592 = vmatmul.f32.gmra.mxu0 %v4382
    %v4593 = vpop.f32.mrf.mxu0
    %v4594 = vadd.f32 0.0, %v4593
    %4595 = vmatmul.f32.gmra.mxu0 %v4385
    %v4596 = vpop.f32.mrf.mxu0
    %v4597 = vadd.f32 0.0, %v4596
    %4598 = vmatmul.f32.gmra.mxu0 %v4388
    %v4599 = vpop.f32.mrf.mxu0
    %v4600 = vadd.f32 0.0, %v4599
    %4601 = vmatmul.f32.gmra.mxu0 %v4391
    %v4602 = vpop.f32.mrf.mxu0
    %v4603 = vadd.f32 0.0, %v4602
    %4604 = vmatmul.f32.gmra.mxu0 %v4394
    %v4605 = vpop.f32.mrf.mxu0
    %v4606 = vadd.f32 0.0, %v4605
    %4607 = vmatmul.f32.gmra.mxu0 %v4397
    %v4608 = vpop.f32.mrf.mxu0
    %v4609 = vadd.f32 0.0, %v4608
    %4610 = vmatmul.f32.gmra.mxu0 %v4400
    %v4611 = vpop.f32.mrf.mxu0
    %v4612 = vadd.f32 0.0, %v4611
    %4613 = vmatmul.f32.gmra.mxu0 %v4403
    %v4614 = vpop.f32.mrf.mxu0
    %v4615 = vadd.f32 0.0, %v4614
    %4616 = vmatmul.f32.gmra.mxu0 %v4406
    %v4617 = vpop.f32.mrf.mxu0
    %v4618 = vadd.f32 0.0, %v4617
    %4619 = vmatmul.f32.gmra.mxu0 %v4409
    %v4620 = vpop.f32.mrf.mxu0
    %v4621 = vadd.f32 0.0, %v4620
    %4622 = vmatmul.f32.gmra.mxu0 %v4412
    %v4623 = vpop.f32.mrf.mxu0
    %v4624 = vadd.f32 0.0, %v4623
    %4625 = vmatmul.f32.gmra.mxu0 %v4415
    %v4626 = vpop.f32.mrf.mxu0
    %v4627 = vadd.f32 0.0, %v4626
    %4628 = vmatmul.f32.gmra.mxu0 %v4418
    %v4629 = vpop.f32.mrf.mxu0
    %v4630 = vadd.f32 0.0, %v4629
    %4631 = vmatmul.f32.gmra.mxu0 %v4421
    %v4632 = vpop.f32.mrf.mxu0
    %v4633 = vadd.f32 0.0, %v4632
    %4634 = vmatmul.f32.gmra.mxu0 %v4424
    %v4635 = vpop.f32.mrf.mxu0
    %v4636 = vadd.f32 0.0, %v4635
    %4637 = vmatmul.f32.gmra.mxu0 %v4427
    %v4638 = vpop.f32.mrf.mxu0
    %v4639 = vadd.f32 0.0, %v4638
    %4640 = vmatmul.f32.gmra.mxu0 %v4430
    %v4641 = vpop.f32.mrf.mxu0
    %v4642 = vadd.f32 0.0, %v4641
    %4643 = vmatmul.f32.gmra.mxu0 %v4433
    %v4644 = vpop.f32.mrf.mxu0
    %v4645 = vadd.f32 0.0, %v4644
    %4646 = vmatmul.f32.gmra.mxu0 %v4436
    %v4647 = vpop.f32.mrf.mxu0
    %v4648 = vadd.f32 0.0, %v4647
    %4649 = vmatmul.f32.gmra.mxu0 %v4439
    %v4650 = vpop.f32.mrf.mxu0
    %v4651 = vadd.f32 0.0, %v4650
    %4652 = vmatmul.f32.gmra.mxu0 %v4442
    %v4653 = vpop.f32.mrf.mxu0
    %v4654 = vadd.f32 0.0, %v4653
    %4655 = vdwg.mxu0
    %v4656 = vadd.f32 %v4122, %v4465
    %v4657 = vadd.f32 %v4123, %v4468
    %v4658 = vadd.f32 %v4124, %v4471
    %v4659 = vadd.f32 %v4125, %v4474
    %v4660 = vadd.f32 %v4126, %v4477
    %v4661 = vadd.f32 %v4127, %v4480
    %v4662 = vadd.f32 %v4128, %v4483
    %v4663 = vadd.f32 %v4129, %v4486
    %v4664 = vadd.f32 %v4130, %v4489
    %v4665 = vadd.f32 %v4131, %v4492
    %v4666 = vadd.f32 %v4132, %v4495
    %v4667 = vadd.f32 %v4133, %v4498
    %v4668 = vadd.f32 %v4134, %v4501
    %v4669 = vadd.f32 %v4135, %v4504
    %v4670 = vadd.f32 %v4136, %v4507
    %v4671 = vadd.f32 %v4137, %v4510
    %v4672 = vadd.f32 %v4138, %v4513
    %v4673 = vadd.f32 %v4139, %v4516
    %v4674 = vadd.f32 %v4140, %v4519
    %v4675 = vadd.f32 %v4141, %v4522
    %v4676 = vadd.f32 %v4142, %v4525
    %v4677 = vadd.f32 %v4143, %v4528
    %v4678 = vadd.f32 %v4144, %v4531
    %v4679 = vadd.f32 %v4145, %v4534
    %v4680 = vadd.f32 %v4146, %v4537
    %v4681 = vadd.f32 %v4147, %v4540
    %v4682 = vadd.f32 %v4148, %v4543
    %v4683 = vadd.f32 %v4149, %v4546
    %v4684 = vadd.f32 %v4150, %v4549
    %v4685 = vadd.f32 %v4151, %v4552
    %v4686 = vadd.f32 %v4152, %v4555
    %v4687 = vadd.f32 %v4153, %v4558
    %v4688 = vadd.f32 %v4154, %v4561
    %v4689 = vadd.f32 %v4155, %v4564
    %v4690 = vadd.f32 %v4156, %v4567
    %v4691 = vadd.f32 %v4157, %v4570
    %v4692 = vadd.f32 %v4158, %v4573
    %v4693 = vadd.f32 %v4159, %v4576
    %v4694 = vadd.f32 %v4160, %v4579
    %v4695 = vadd.f32 %v4161, %v4582
    %v4696 = vadd.f32 %v4162, %v4585
    %v4697 = vadd.f32 %v4163, %v4588
    %v4698 = vadd.f32 %v4164, %v4591
    %v4699 = vadd.f32 %v4165, %v4594
    %v4700 = vadd.f32 %v4166, %v4597
    %v4701 = vadd.f32 %v4167, %v4600
    %v4702 = vadd.f32 %v4168, %v4603
    %v4703 = vadd.f32 %v4169, %v4606
    %v4704 = vadd.f32 %v4170, %v4609
    %v4705 = vadd.f32 %v4171, %v4612
    %v4706 = vadd.f32 %v4172, %v4615
    %v4707 = vadd.f32 %v4173, %v4618
    %v4708 = vadd.f32 %v4174, %v4621
    %v4709 = vadd.f32 %v4175, %v4624
    %v4710 = vadd.f32 %v4176, %v4627
    %v4711 = vadd.f32 %v4177, %v4630
    %v4712 = vadd.f32 %v4178, %v4633
    %v4713 = vadd.f32 %v4179, %v4636
    %v4714 = vadd.f32 %v4180, %v4639
    %v4715 = vadd.f32 %v4181, %v4642
    %v4716 = vadd.f32 %v4182, %v4645
    %v4717 = vadd.f32 %v4183, %v4648
    %v4718 = vadd.f32 %v4184, %v4651
    %v4719 = vadd.f32 %v4185, %v4654
    %v4720 = vld [vmem:[%s2] sm:$0x1]
    %v4722 = vperm.slane %v4720, 0
    %v4724 = vadd.f32 %v4656, %v4722
    %v4725 = vadd.f32 %v4657, %v4722
    %v4726 = vadd.f32 %v4658, %v4722
    %v4727 = vadd.f32 %v4659, %v4722
    %v4728 = vadd.f32 %v4660, %v4722
    %v4729 = vadd.f32 %v4661, %v4722
    %v4730 = vadd.f32 %v4662, %v4722
    %v4731 = vadd.f32 %v4663, %v4722
    %v4732 = vadd.f32 %v4664, %v4722
    %v4733 = vadd.f32 %v4665, %v4722
    %v4734 = vadd.f32 %v4666, %v4722
    %v4735 = vadd.f32 %v4667, %v4722
    %v4736 = vadd.f32 %v4668, %v4722
    %v4737 = vadd.f32 %v4669, %v4722
    %v4738 = vadd.f32 %v4670, %v4722
    %v4739 = vadd.f32 %v4671, %v4722
    %v4740 = vadd.f32 %v4672, %v4722
    %v4741 = vadd.f32 %v4673, %v4722
    %v4742 = vadd.f32 %v4674, %v4722
    %v4743 = vadd.f32 %v4675, %v4722
    %v4744 = vadd.f32 %v4676, %v4722
    %v4745 = vadd.f32 %v4677, %v4722
    %v4746 = vadd.f32 %v4678, %v4722
    %v4747 = vadd.f32 %v4679, %v4722
    %v4748 = vadd.f32 %v4680, %v4722
    %v4749 = vadd.f32 %v4681, %v4722
    %v4750 = vadd.f32 %v4682, %v4722
    %v4751 = vadd.f32 %v4683, %v4722
    %v4752 = vadd.f32 %v4684, %v4722
    %v4753 = vadd.f32 %v4685, %v4722
    %v4754 = vadd.f32 %v4686, %v4722
    %v4755 = vadd.f32 %v4687, %v4722
    %v4756 = vadd.f32 %v4688, %v4722
    %v4757 = vadd.f32 %v4689, %v4722
    %v4758 = vadd.f32 %v4690, %v4722
    %v4759 = vadd.f32 %v4691, %v4722
    %v4760 = vadd.f32 %v4692, %v4722
    %v4761 = vadd.f32 %v4693, %v4722
    %v4762 = vadd.f32 %v4694, %v4722
    %v4763 = vadd.f32 %v4695, %v4722
    %v4764 = vadd.f32 %v4696, %v4722
    %v4765 = vadd.f32 %v4697, %v4722
    %v4766 = vadd.f32 %v4698, %v4722
    %v4767 = vadd.f32 %v4699, %v4722
    %v4768 = vadd.f32 %v4700, %v4722
    %v4769 = vadd.f32 %v4701, %v4722
    %v4770 = vadd.f32 %v4702, %v4722
    %v4771 = vadd.f32 %v4703, %v4722
    %v4772 = vadd.f32 %v4704, %v4722
    %v4773 = vadd.f32 %v4705, %v4722
    %v4774 = vadd.f32 %v4706, %v4722
    %v4775 = vadd.f32 %v4707, %v4722
    %v4776 = vadd.f32 %v4708, %v4722
    %v4777 = vadd.f32 %v4709, %v4722
    %v4778 = vadd.f32 %v4710, %v4722
    %v4779 = vadd.f32 %v4711, %v4722
    %v4780 = vadd.f32 %v4712, %v4722
    %v4781 = vadd.f32 %v4713, %v4722
    %v4782 = vadd.f32 %v4714, %v4722
    %v4783 = vadd.f32 %v4715, %v4722
    %v4784 = vadd.f32 %v4716, %v4722
    %v4785 = vadd.f32 %v4717, %v4722
    %v4786 = vadd.f32 %v4718, %v4722
    %v4787 = vadd.f32 %v4719, %v4722
    %v4788 = vmax.f32 %v4724, 0.0
    %v4789 = vmax.f32 %v4725, 0.0
    %v4790 = vmax.f32 %v4726, 0.0
    %v4791 = vmax.f32 %v4727, 0.0
    %v4792 = vmax.f32 %v4728, 0.0
    %v4793 = vmax.f32 %v4729, 0.0
    %v4794 = vmax.f32 %v4730, 0.0
    %v4795 = vmax.f32 %v4731, 0.0
    %v4796 = vmax.f32 %v4732, 0.0
    %v4797 = vmax.f32 %v4733, 0.0
    %v4798 = vmax.f32 %v4734, 0.0
    %v4799 = vmax.f32 %v4735, 0.0
    %v4800 = vmax.f32 %v4736, 0.0
    %v4801 = vmax.f32 %v4737, 0.0
    %v4802 = vmax.f32 %v4738, 0.0
    %v4803 = vmax.f32 %v4739, 0.0
    %v4804 = vmax.f32 %v4740, 0.0
    %v4805 = vmax.f32 %v4741, 0.0
    %v4806 = vmax.f32 %v4742, 0.0
    %v4807 = vmax.f32 %v4743, 0.0
    %v4808 = vmax.f32 %v4744, 0.0
    %v4809 = vmax.f32 %v4745, 0.0
    %v4810 = vmax.f32 %v4746, 0.0
    %v4811 = vmax.f32 %v4747, 0.0
    %v4812 = vmax.f32 %v4748, 0.0
    %v4813 = vmax.f32 %v4749, 0.0
    %v4814 = vmax.f32 %v4750, 0.0
    %v4815 = vmax.f32 %v4751, 0.0
    %v4816 = vmax.f32 %v4752, 0.0
    %v4817 = vmax.f32 %v4753, 0.0
    %v4818 = vmax.f32 %v4754, 0.0
    %v4819 = vmax.f32 %v4755, 0.0
    %v4820 = vmax.f32 %v4756, 0.0
    %v4821 = vmax.f32 %v4757, 0.0
    %v4822 = vmax.f32 %v4758, 0.0
    %v4823 = vmax.f32 %v4759, 0.0
    %v4824 = vmax.f32 %v4760, 0.0
    %v4825 = vmax.f32 %v4761, 0.0
    %v4826 = vmax.f32 %v4762, 0.0
    %v4827 = vmax.f32 %v4763, 0.0
    %v4828 = vmax.f32 %v4764, 0.0
    %v4829 = vmax.f32 %v4765, 0.0
    %v4830 = vmax.f32 %v4766, 0.0
    %v4831 = vmax.f32 %v4767, 0.0
    %v4832 = vmax.f32 %v4768, 0.0
    %v4833 = vmax.f32 %v4769, 0.0
    %v4834 = vmax.f32 %v4770, 0.0
    %v4835 = vmax.f32 %v4771, 0.0
    %v4836 = vmax.f32 %v4772, 0.0
    %v4837 = vmax.f32 %v4773, 0.0
    %v4838 = vmax.f32 %v4774, 0.0
    %v4839 = vmax.f32 %v4775, 0.0
    %v4840 = vmax.f32 %v4776, 0.0
    %v4841 = vmax.f32 %v4777, 0.0
    %v4842 = vmax.f32 %v4778, 0.0
    %v4843 = vmax.f32 %v4779, 0.0
    %v4844 = vmax.f32 %v4780, 0.0
    %v4845 = vmax.f32 %v4781, 0.0
    %v4846 = vmax.f32 %v4782, 0.0
    %v4847 = vmax.f32 %v4783, 0.0
    %v4848 = vmax.f32 %v4784, 0.0
    %v4849 = vmax.f32 %v4785, 0.0
    %v4850 = vmax.f32 %v4786, 0.0
    %v4851 = vmax.f32 %v4787, 0.0
    %v4852 = vmax.f32 %v4788, %v4790
    %v4853 = vmax.f32 %v4789, %v4791
    %v4854 = vmax.f32 %v4792, %v4794
    %v4855 = vmax.f32 %v4793, %v4795
    %v4856 = vmax.f32 %v4796, %v4798
    %v4857 = vmax.f32 %v4797, %v4799
    %v4858 = vmax.f32 %v4800, %v4802
    %v4859 = vmax.f32 %v4801, %v4803
    %v4860 = vmax.f32 %v4804, %v4806
    %v4861 = vmax.f32 %v4805, %v4807
    %v4862 = vmax.f32 %v4808, %v4810
    %v4863 = vmax.f32 %v4809, %v4811
    %v4864 = vmax.f32 %v4812, %v4814
    %v4865 = vmax.f32 %v4813, %v4815
    %v4866 = vmax.f32 %v4816, %v4818
    %v4867 = vmax.f32 %v4817, %v4819
    %v4868 = vmax.f32 %v4820, %v4822
    %v4869 = vmax.f32 %v4821, %v4823
    %v4870 = vmax.f32 %v4824, %v4826
    %v4871 = vmax.f32 %v4825, %v4827
    %v4872 = vmax.f32 %v4828, %v4830
    %v4873 = vmax.f32 %v4829, %v4831
    %v4874 = vmax.f32 %v4832, %v4834
    %v4875 = vmax.f32 %v4833, %v4835
    %v4876 = vmax.f32 %v4836, %v4838
    %v4877 = vmax.f32 %v4837, %v4839
    %v4878 = vmax.f32 %v4840, %v4842
    %v4879 = vmax.f32 %v4841, %v4843
    %v4880 = vmax.f32 %v4844, %v4846
    %v4881 = vmax.f32 %v4845, %v4847
    %v4882 = vmax.f32 %v4848, %v4850
    %v4883 = vmax.f32 %v4849, %v4851
    %vm4884 = vcmask 130048
    %4885 = vst.msk [vmem:[#allocation2] sm:$0xff] %vm4884, 0.0
    %4886 = vst.msk [vmem:[#allocation2 + $0x8] sm:$0xff] %vm4884, 0.0
    %vm4887 = vcmask 125952
    %4888 = vst.msk [vmem:[#allocation2 + $0x10] sm:$0xf] %vm4887, 0.0
    %4889 = vst.msk [vmem:[#allocation2 + $0x18] sm:$0xff] %vm4884, 0.0
    %4890 = vst.msk [vmem:[#allocation2 + $0x20] sm:$0xff] %vm4884, 0.0
    %4891 = vst.msk [vmem:[#allocation2 + $0x28] sm:$0xf] %vm4887, 0.0
    %4892 = vst.msk [vmem:[#allocation2 + $0x30] sm:$0xff] %vm4884, 0.0
    %4893 = vst.msk [vmem:[#allocation2 + $0x38] sm:$0xff] %vm4884, 0.0
    %4894 = vst.msk [vmem:[#allocation2 + $0x40] sm:$0xf] %vm4887, 0.0
    %4895 = vst.msk [vmem:[#allocation2 + $0x48] sm:$0xff] %vm4884, 0.0
    %4896 = vst.msk [vmem:[#allocation2 + $0x50] sm:$0xff] %vm4884, 0.0
    %4897 = vst.msk [vmem:[#allocation2 + $0x58] sm:$0xf] %vm4887, 0.0
    %4898 = vst.msk [vmem:[#allocation2 + $0x60] sm:$0xff] %vm4884, 0.0
    %4899 = vst.msk [vmem:[#allocation2 + $0x68] sm:$0xff] %vm4884, 0.0
    %4900 = vst.msk [vmem:[#allocation2 + $0x70] sm:$0xf] %vm4887, 0.0
    %4901 = vst.msk [vmem:[#allocation2 + $0x78] sm:$0xff] %vm4884, 0.0
    %4902 = vst.msk [vmem:[#allocation2 + $0x80] sm:$0xff] %vm4884, 0.0
    %4903 = vst.msk [vmem:[#allocation2 + $0x88] sm:$0xf] %vm4887, 0.0
    %4904 = vst.msk [vmem:[#allocation2 + $0x90] sm:$0xff] %vm4884, 0.0
    %4905 = vst.msk [vmem:[#allocation2 + $0x98] sm:$0xff] %vm4884, 0.0
    %4906 = vst.msk [vmem:[#allocation2 + $0xa0] sm:$0xf] %vm4887, 0.0
    %4907 = vst.msk [vmem:[#allocation2 + $0xa8] sm:$0xff] %vm4884, 0.0
    %4908 = vst.msk [vmem:[#allocation2 + $0xb0] sm:$0xff] %vm4884, 0.0
    %4909 = vst.msk [vmem:[#allocation2 + $0xb8] sm:$0xf] %vm4887, 0.0
    %4910 = vst.msk [vmem:[#allocation2 + $0xc0] sm:$0xff] %vm4884, 0.0
    %4911 = vst.msk [vmem:[#allocation2 + $0xc8] sm:$0xff] %vm4884, 0.0
    %4912 = vst.msk [vmem:[#allocation2 + $0xd0] sm:$0xf] %vm4887, 0.0
    %4913 = vst.msk [vmem:[#allocation2 + $0xd8] sm:$0xff] %vm4884, 0.0
    %4914 = vst.msk [vmem:[#allocation2 + $0xe0] sm:$0xff] %vm4884, 0.0
    %4915 = vst.msk [vmem:[#allocation2 + $0xe8] sm:$0xf] %vm4887, 0.0
    %4916 = vst.msk [vmem:[#allocation2 + $0xf0] sm:$0xff] %vm4884, 0.0
    %4917 = vst.msk [vmem:[#allocation2 + $0xf8] sm:$0xff] %vm4884, 0.0
    %4918 = vst.msk [vmem:[#allocation2 + $0x100] sm:$0xf] %vm4887, 0.0
    %4919 = vst.msk [vmem:[#allocation2 + $0x108] sm:$0xff] %vm4884, 0.0
    %4920 = vst.msk [vmem:[#allocation2 + $0x110] sm:$0xff] %vm4884, 0.0
    %4921 = vst.msk [vmem:[#allocation2 + $0x118] sm:$0xf] %vm4887, 0.0
    %4922 = vst.msk [vmem:[#allocation2 + $0x120] sm:$0xff] %vm4884, 0.0
    %4923 = vst.msk [vmem:[#allocation2 + $0x128] sm:$0xff] %vm4884, 0.0
    %4924 = vst.msk [vmem:[#allocation2 + $0x130] sm:$0xf] %vm4887, 0.0
    %4925 = vst.msk [vmem:[#allocation2 + $0x138] sm:$0xff] %vm4884, 0.0
    %4926 = vst.msk [vmem:[#allocation2 + $0x140] sm:$0xff] %vm4884, 0.0
    %4927 = vst.msk [vmem:[#allocation2 + $0x148] sm:$0xf] %vm4887, 0.0
    %4928 = vst.msk [vmem:[#allocation2 + $0x150] sm:$0xff] %vm4884, 0.0
    %4929 = vst.msk [vmem:[#allocation2 + $0x158] sm:$0xff] %vm4884, 0.0
    %4930 = vst.msk [vmem:[#allocation2 + $0x160] sm:$0xf] %vm4887, 0.0
    %4931 = vst.msk [vmem:[#allocation2 + $0x168] sm:$0xff] %vm4884, 0.0
    %4932 = vst.msk [vmem:[#allocation2 + $0x170] sm:$0xff] %vm4884, 0.0
    %4933 = vst.msk [vmem:[#allocation2 + $0x178] sm:$0xf] %vm4887, 0.0
    %4934 = vst.msk [vmem:[#allocation2 + $0x180] sm:$0xff] %vm4884, 0.0
    %4935 = vst.msk [vmem:[#allocation2 + $0x188] sm:$0xff] %vm4884, 0.0
    %4936 = vst.msk [vmem:[#allocation2 + $0x190] sm:$0xf] %vm4887, 0.0
    %4937 = vst.msk [vmem:[#allocation2 + $0x198] sm:$0xff] %vm4884, 0.0
    %4938 = vst.msk [vmem:[#allocation2 + $0x1a0] sm:$0xff] %vm4884, 0.0
    %4939 = vst.msk [vmem:[#allocation2 + $0x1a8] sm:$0xf] %vm4887, 0.0
    %4940 = vst.msk [vmem:[#allocation2 + $0x1b0] sm:$0xff] %vm4884, 0.0
    %4941 = vst.msk [vmem:[#allocation2 + $0x1b8] sm:$0xff] %vm4884, 0.0
    %4942 = vst.msk [vmem:[#allocation2 + $0x1c0] sm:$0xf] %vm4887, 0.0
    %4943 = vst.msk [vmem:[#allocation2 + $0x1c8] sm:$0xff] %vm4884, 0.0
    %4944 = vst.msk [vmem:[#allocation2 + $0x1d0] sm:$0xff] %vm4884, 0.0
    %4945 = vst.msk [vmem:[#allocation2 + $0x1d8] sm:$0xf] %vm4887, 0.0
    %s4946 = scalar_lea.vmem [#allocation2], 24
    %4947 = vst.msk [vmem:[%s4946 + $0x2] sm:$0xff] %vm4884, %v4852
    %4948 = vst.msk [vmem:[%s4946 + $0xa] sm:$0xff] %vm4884, %v4853
    %4949 = vst.msk [vmem:[%s4946 + $0x1a] sm:$0xff] %vm4884, %v4854
    %4950 = vst.msk [vmem:[%s4946 + $0x22] sm:$0xff] %vm4884, %v4855
    %4951 = vst.msk [vmem:[%s4946 + $0x32] sm:$0xff] %vm4884, %v4856
    %4952 = vst.msk [vmem:[%s4946 + $0x3a] sm:$0xff] %vm4884, %v4857
    %4953 = vst.msk [vmem:[%s4946 + $0x4a] sm:$0xff] %vm4884, %v4858
    %4954 = vst.msk [vmem:[%s4946 + $0x52] sm:$0xff] %vm4884, %v4859
    %4955 = vst.msk [vmem:[%s4946 + $0x62] sm:$0xff] %vm4884, %v4860
    %4956 = vst.msk [vmem:[%s4946 + $0x6a] sm:$0xff] %vm4884, %v4861
    %4957 = vst.msk [vmem:[%s4946 + $0x7a] sm:$0xff] %vm4884, %v4862
    %4958 = vst.msk [vmem:[%s4946 + $0x82] sm:$0xff] %vm4884, %v4863
    %4959 = vst.msk [vmem:[%s4946 + $0x92] sm:$0xff] %vm4884, %v4864
    %4960 = vst.msk [vmem:[%s4946 + $0x9a] sm:$0xff] %vm4884, %v4865
    %4961 = vst.msk [vmem:[%s4946 + $0xaa] sm:$0xff] %vm4884, %v4866
    %4962 = vst.msk [vmem:[%s4946 + $0xb2] sm:$0xff] %vm4884, %v4867
    %4963 = vst.msk [vmem:[%s4946 + $0xf2] sm:$0xff] %vm4884, %v4868
    %4964 = vst.msk [vmem:[%s4946 + $0xfa] sm:$0xff] %vm4884, %v4869
    %4965 = vst.msk [vmem:[%s4946 + $0x10a] sm:$0xff] %vm4884, %v4870
    %4966 = vst.msk [vmem:[%s4946 + $0x112] sm:$0xff] %vm4884, %v4871
    %4967 = vst.msk [vmem:[%s4946 + $0x122] sm:$0xff] %vm4884, %v4872
    %4968 = vst.msk [vmem:[%s4946 + $0x12a] sm:$0xff] %vm4884, %v4873
    %4969 = vst.msk [vmem:[%s4946 + $0x13a] sm:$0xff] %vm4884, %v4874
    %4970 = vst.msk [vmem:[%s4946 + $0x142] sm:$0xff] %vm4884, %v4875
    %4971 = vst.msk [vmem:[%s4946 + $0x152] sm:$0xff] %vm4884, %v4876
    %4972 = vst.msk [vmem:[%s4946 + $0x15a] sm:$0xff] %vm4884, %v4877
    %4973 = vst.msk [vmem:[%s4946 + $0x16a] sm:$0xff] %vm4884, %v4878
    %4974 = vst.msk [vmem:[%s4946 + $0x172] sm:$0xff] %vm4884, %v4879
    %4975 = vst.msk [vmem:[%s4946 + $0x182] sm:$0xff] %vm4884, %v4880
    %4976 = vst.msk [vmem:[%s4946 + $0x18a] sm:$0xff] %vm4884, %v4881
    %4977 = vst.msk [vmem:[%s4946 + $0x19a] sm:$0xff] %vm4884, %v4882
    %4978 = vst.msk [vmem:[%s4946 + $0x1a2] sm:$0xff] %vm4884, %v4883
    %v4979 = vld [vmem:[%s4946 + $0x2] sm:$0xff]
    %v4980 = vld [vmem:[%s4946 + $0xa] sm:$0xff]
    %v4981 = vld [vmem:[%s4946 + $0x1a] sm:$0xff]
    %v4982 = vld [vmem:[%s4946 + $0x22] sm:$0xff]
    %v4983 = vld [vmem:[%s4946 + $0x32] sm:$0xff]
    %v4984 = vld [vmem:[%s4946 + $0x3a] sm:$0xff]
    %v4985 = vld [vmem:[%s4946 + $0x4a] sm:$0xff]
    %v4986 = vld [vmem:[%s4946 + $0x52] sm:$0xff]
    %v4987 = vld [vmem:[%s4946 + $0x62] sm:$0xff]
    %v4988 = vld [vmem:[%s4946 + $0x6a] sm:$0xff]
    %v4989 = vld [vmem:[%s4946 + $0x7a] sm:$0xff]
    %v4990 = vld [vmem:[%s4946 + $0x82] sm:$0xff]
    %v4991 = vld [vmem:[%s4946 + $0x92] sm:$0xff]
    %v4992 = vld [vmem:[%s4946 + $0x9a] sm:$0xff]
    %v4993 = vld [vmem:[%s4946 + $0xaa] sm:$0xff]
    %v4994 = vld [vmem:[%s4946 + $0xb2] sm:$0xff]
    %v4995 = vld [vmem:[%s4946 + $0xf2] sm:$0xff]
    %v4996 = vld [vmem:[%s4946 + $0xfa] sm:$0xff]
    %v4997 = vld [vmem:[%s4946 + $0x10a] sm:$0xff]
    %v4998 = vld [vmem:[%s4946 + $0x112] sm:$0xff]
    %v4999 = vld [vmem:[%s4946 + $0x122] sm:$0xff]
    %v5000 = vld [vmem:[%s4946 + $0x12a] sm:$0xff]
    %v5001 = vld [vmem:[%s4946 + $0x13a] sm:$0xff]
    %v5002 = vld [vmem:[%s4946 + $0x142] sm:$0xff]
    %v5003 = vld [vmem:[%s4946 + $0x152] sm:$0xff]
    %v5004 = vld [vmem:[%s4946 + $0x15a] sm:$0xff]
    %v5005 = vld [vmem:[%s4946 + $0x16a] sm:$0xff]
    %v5006 = vld [vmem:[%s4946 + $0x172] sm:$0xff]
    %v5007 = vld [vmem:[%s4946 + $0x182] sm:$0xff]
    %v5008 = vld [vmem:[%s4946 + $0x18a] sm:$0xff]
    %v5009 = vld [vmem:[%s4946 + $0x19a] sm:$0xff]
    %v5010 = vld [vmem:[%s4946 + $0x1a2] sm:$0xff]
    %v5011 = vld [vmem:[%s4946 + $0x3] sm:$0xff]
    %v5012 = vld [vmem:[%s4946 + $0xb] sm:$0xff]
    %v5013 = vld [vmem:[%s4946 + $0x1b] sm:$0xff]
    %v5014 = vld [vmem:[%s4946 + $0x23] sm:$0xff]
    %v5015 = vld [vmem:[%s4946 + $0x33] sm:$0xff]
    %v5016 = vld [vmem:[%s4946 + $0x3b] sm:$0xff]
    %v5017 = vld [vmem:[%s4946 + $0x4b] sm:$0xff]
    %v5018 = vld [vmem:[%s4946 + $0x53] sm:$0xff]
    %v5019 = vld [vmem:[%s4946 + $0x63] sm:$0xff]
    %v5020 = vld [vmem:[%s4946 + $0x6b] sm:$0xff]
    %v5021 = vld [vmem:[%s4946 + $0x7b] sm:$0xff]
    %v5022 = vld [vmem:[%s4946 + $0x83] sm:$0xff]
    %v5023 = vld [vmem:[%s4946 + $0x93] sm:$0xff]
    %v5024 = vld [vmem:[%s4946 + $0x9b] sm:$0xff]
    %v5025 = vld [vmem:[%s4946 + $0xab] sm:$0xff]
    %v5026 = vld [vmem:[%s4946 + $0xb3] sm:$0xff]
    %v5027 = vld [vmem:[%s4946 + $0xf3] sm:$0xff]
    %v5028 = vld [vmem:[%s4946 + $0xfb] sm:$0xff]
    %v5029 = vld [vmem:[%s4946 + $0x10b] sm:$0xff]
    %v5030 = vld [vmem:[%s4946 + $0x113] sm:$0xff]
    %v5031 = vld [vmem:[%s4946 + $0x123] sm:$0xff]
    %v5032 = vld [vmem:[%s4946 + $0x12b] sm:$0xff]
    %v5033 = vld [vmem:[%s4946 + $0x13b] sm:$0xff]
    %v5034 = vld [vmem:[%s4946 + $0x143] sm:$0xff]
    %v5035 = vld [vmem:[%s4946 + $0x153] sm:$0xff]
    %v5036 = vld [vmem:[%s4946 + $0x15b] sm:$0xff]
    %v5037 = vld [vmem:[%s4946 + $0x16b] sm:$0xff]
    %v5038 = vld [vmem:[%s4946 + $0x173] sm:$0xff]
    %v5039 = vld [vmem:[%s4946 + $0x183] sm:$0xff]
    %v5040 = vld [vmem:[%s4946 + $0x18b] sm:$0xff]
    %v5041 = vld [vmem:[%s4946 + $0x19b] sm:$0xff]
    %v5042 = vld [vmem:[%s4946 + $0x1a3] sm:$0xff]
    %v5043 = vmax.f32 %v4979, %v5011
    %v5044 = vmax.f32 %v4980, %v5012
    %v5045 = vmax.f32 %v4981, %v5013
    %v5046 = vmax.f32 %v4982, %v5014
    %v5047 = vmax.f32 %v4983, %v5015
    %v5048 = vmax.f32 %v4984, %v5016
    %v5049 = vmax.f32 %v4985, %v5017
    %v5050 = vmax.f32 %v4986, %v5018
    %v5051 = vmax.f32 %v4987, %v5019
    %v5052 = vmax.f32 %v4988, %v5020
    %v5053 = vmax.f32 %v4989, %v5021
    %v5054 = vmax.f32 %v4990, %v5022
    %v5055 = vmax.f32 %v4991, %v5023
    %v5056 = vmax.f32 %v4992, %v5024
    %v5057 = vmax.f32 %v4993, %v5025
    %v5058 = vmax.f32 %v4994, %v5026
    %v5059 = vmax.f32 %v4995, %v5027
    %v5060 = vmax.f32 %v4996, %v5028
    %v5061 = vmax.f32 %v4997, %v5029
    %v5062 = vmax.f32 %v4998, %v5030
    %v5063 = vmax.f32 %v4999, %v5031
    %v5064 = vmax.f32 %v5000, %v5032
    %v5065 = vmax.f32 %v5001, %v5033
    %v5066 = vmax.f32 %v5002, %v5034
    %v5067 = vmax.f32 %v5003, %v5035
    %v5068 = vmax.f32 %v5004, %v5036
    %v5069 = vmax.f32 %v5005, %v5037
    %v5070 = vmax.f32 %v5006, %v5038
    %v5071 = vmax.f32 %v5007, %v5039
    %v5072 = vmax.f32 %v5008, %v5040
    %v5073 = vmax.f32 %v5009, %v5041
    %v5074 = vmax.f32 %v5010, %v5042
    %5075 = vst.msk [vmem:[%s4946 + $0x2] sm:$0xff] %vm4884, %v5043
    %5076 = vst.msk [vmem:[%s4946 + $0xa] sm:$0xff] %vm4884, %v5044
    %5077 = vst.msk [vmem:[%s4946 + $0x1a] sm:$0xff] %vm4884, %v5045
    %5078 = vst.msk [vmem:[%s4946 + $0x22] sm:$0xff] %vm4884, %v5046
    %5079 = vst.msk [vmem:[%s4946 + $0x32] sm:$0xff] %vm4884, %v5047
    %5080 = vst.msk [vmem:[%s4946 + $0x3a] sm:$0xff] %vm4884, %v5048
    %5081 = vst.msk [vmem:[%s4946 + $0x4a] sm:$0xff] %vm4884, %v5049
    %5082 = vst.msk [vmem:[%s4946 + $0x52] sm:$0xff] %vm4884, %v5050
    %5083 = vst.msk [vmem:[%s4946 + $0x62] sm:$0xff] %vm4884, %v5051
    %5084 = vst.msk [vmem:[%s4946 + $0x6a] sm:$0xff] %vm4884, %v5052
    %5085 = vst.msk [vmem:[%s4946 + $0x7a] sm:$0xff] %vm4884, %v5053
    %5086 = vst.msk [vmem:[%s4946 + $0x82] sm:$0xff] %vm4884, %v5054
    %5087 = vst.msk [vmem:[%s4946 + $0x92] sm:$0xff] %vm4884, %v5055
    %5088 = vst.msk [vmem:[%s4946 + $0x9a] sm:$0xff] %vm4884, %v5056
    %5089 = vst.msk [vmem:[%s4946 + $0xaa] sm:$0xff] %vm4884, %v5057
    %5090 = vst.msk [vmem:[%s4946 + $0xb2] sm:$0xff] %vm4884, %v5058
    %5091 = vst.msk [vmem:[%s4946 + $0xf2] sm:$0xff] %vm4884, %v5059
    %5092 = vst.msk [vmem:[%s4946 + $0xfa] sm:$0xff] %vm4884, %v5060
    %5093 = vst.msk [vmem:[%s4946 + $0x10a] sm:$0xff] %vm4884, %v5061
    %5094 = vst.msk [vmem:[%s4946 + $0x112] sm:$0xff] %vm4884, %v5062
    %5095 = vst.msk [vmem:[%s4946 + $0x122] sm:$0xff] %vm4884, %v5063
    %5096 = vst.msk [vmem:[%s4946 + $0x12a] sm:$0xff] %vm4884, %v5064
    %5097 = vst.msk [vmem:[%s4946 + $0x13a] sm:$0xff] %vm4884, %v5065
    %5098 = vst.msk [vmem:[%s4946 + $0x142] sm:$0xff] %vm4884, %v5066
    %5099 = vst.msk [vmem:[%s4946 + $0x152] sm:$0xff] %vm4884, %v5067
    %5100 = vst.msk [vmem:[%s4946 + $0x15a] sm:$0xff] %vm4884, %v5068
    %5101 = vst.msk [vmem:[%s4946 + $0x16a] sm:$0xff] %vm4884, %v5069
    %5102 = vst.msk [vmem:[%s4946 + $0x172] sm:$0xff] %vm4884, %v5070
    %5103 = vst.msk [vmem:[%s4946 + $0x182] sm:$0xff] %vm4884, %v5071
    %5104 = vst.msk [vmem:[%s4946 + $0x18a] sm:$0xff] %vm4884, %v5072
    %5105 = vst.msk [vmem:[%s4946 + $0x19a] sm:$0xff] %vm4884, %v5073
    %5106 = vst.msk [vmem:[%s4946 + $0x1a2] sm:$0xff] %vm4884, %v5074
    %v5107 = vld [vmem:[#allocation2] sm:$0xff]
    %v5108 = vld [vmem:[#allocation2 + $0x8] sm:$0xff]
    %v5109 = vld [vmem:[#allocation2 + $0x18] sm:$0xff]
    %v5110 = vld [vmem:[#allocation2 + $0x20] sm:$0xff]
    %v5111 = vld [vmem:[#allocation2 + $0x30] sm:$0xff]
    %v5112 = vld [vmem:[#allocation2 + $0x38] sm:$0xff]
    %v5113 = vld [vmem:[#allocation2 + $0x48] sm:$0xff]
    %v5114 = vld [vmem:[#allocation2 + $0x50] sm:$0xff]
    %v5115 = vld [vmem:[#allocation2 + $0x60] sm:$0xff]
    %v5116 = vld [vmem:[#allocation2 + $0x68] sm:$0xff]
    %v5117 = vld [vmem:[#allocation2 + $0x78] sm:$0xff]
    %v5118 = vld [vmem:[#allocation2 + $0x80] sm:$0xff]
    %v5119 = vld [vmem:[#allocation2 + $0x90] sm:$0xff]
    %v5120 = vld [vmem:[#allocation2 + $0x98] sm:$0xff]
    %v5121 = vld [vmem:[#allocation2 + $0xa8] sm:$0xff]
    %v5122 = vld [vmem:[#allocation2 + $0xb0] sm:$0xff]
    %v5123 = vld [vmem:[#allocation2 + $0xf0] sm:$0xff]
    %v5124 = vld [vmem:[#allocation2 + $0xf8] sm:$0xff]
    %v5125 = vld [vmem:[#allocation2 + $0x108] sm:$0xff]
    %v5126 = vld [vmem:[#allocation2 + $0x110] sm:$0xff]
    %v5127 = vld [vmem:[#allocation2 + $0x120] sm:$0xff]
    %v5128 = vld [vmem:[#allocation2 + $0x128] sm:$0xff]
    %v5129 = vld [vmem:[#allocation2 + $0x138] sm:$0xff]
    %v5130 = vld [vmem:[#allocation2 + $0x140] sm:$0xff]
    %v5131 = vld [vmem:[#allocation2 + $0x150] sm:$0xff]
    %v5132 = vld [vmem:[#allocation2 + $0x158] sm:$0xff]
    %v5133 = vld [vmem:[#allocation2 + $0x168] sm:$0xff]
    %v5134 = vld [vmem:[#allocation2 + $0x170] sm:$0xff]
    %v5135 = vld [vmem:[#allocation2 + $0x180] sm:$0xff]
    %v5136 = vld [vmem:[#allocation2 + $0x188] sm:$0xff]
    %v5137 = vld [vmem:[#allocation2 + $0x198] sm:$0xff]
    %v5138 = vld [vmem:[#allocation2 + $0x1a0] sm:$0xff]
    %v5139 = vld [vmem:[%s3] sm:$0xff]
    %v5140 = vld [vmem:[%s3 + $0x8] sm:$0xff]
    %v5141 = vld [vmem:[#allocation2 + $0x2] sm:$0xff]
    %v5142 = vld [vmem:[#allocation2 + $0xa] sm:$0xff]
    %v5143 = vld [vmem:[#allocation2 + $0x1a] sm:$0xff]
    %v5144 = vld [vmem:[#allocation2 + $0x22] sm:$0xff]
    %v5145 = vld [vmem:[#allocation2 + $0x32] sm:$0xff]
    %v5146 = vld [vmem:[#allocation2 + $0x3a] sm:$0xff]
    %v5147 = vld [vmem:[#allocation2 + $0x4a] sm:$0xff]
    %v5148 = vld [vmem:[#allocation2 + $0x52] sm:$0xff]
    %v5149 = vld [vmem:[#allocation2 + $0x62] sm:$0xff]
    %v5150 = vld [vmem:[#allocation2 + $0x6a] sm:$0xff]
    %v5151 = vld [vmem:[#allocation2 + $0x7a] sm:$0xff]
    %v5152 = vld [vmem:[#allocation2 + $0x82] sm:$0xff]
    %v5153 = vld [vmem:[#allocation2 + $0x92] sm:$0xff]
    %v5154 = vld [vmem:[#allocation2 + $0x9a] sm:$0xff]
    %v5155 = vld [vmem:[#allocation2 + $0xaa] sm:$0xff]
    %v5156 = vld [vmem:[#allocation2 + $0xb2] sm:$0xff]
    %v5157 = vld [vmem:[#allocation2 + $0xf2] sm:$0xff]
    %v5158 = vld [vmem:[#allocation2 + $0xfa] sm:$0xff]
    %v5159 = vld [vmem:[#allocation2 + $0x10a] sm:$0xff]
    %v5160 = vld [vmem:[#allocation2 + $0x112] sm:$0xff]
    %v5161 = vld [vmem:[#allocation2 + $0x122] sm:$0xff]
    %v5162 = vld [vmem:[#allocation2 + $0x12a] sm:$0xff]
    %v5163 = vld [vmem:[#allocation2 + $0x13a] sm:$0xff]
    %v5164 = vld [vmem:[#allocation2 + $0x142] sm:$0xff]
    %v5165 = vld [vmem:[#allocation2 + $0x152] sm:$0xff]
    %v5166 = vld [vmem:[#allocation2 + $0x15a] sm:$0xff]
    %v5167 = vld [vmem:[#allocation2 + $0x16a] sm:$0xff]
    %v5168 = vld [vmem:[#allocation2 + $0x172] sm:$0xff]
    %v5169 = vld [vmem:[#allocation2 + $0x182] sm:$0xff]
    %v5170 = vld [vmem:[#allocation2 + $0x18a] sm:$0xff]
    %v5171 = vld [vmem:[#allocation2 + $0x19a] sm:$0xff]
    %v5172 = vld [vmem:[#allocation2 + $0x1a2] sm:$0xff]
    %s5173 = scalar_lea.vmem %s3, 16
    %v5174 = vld [vmem:[%s5173] sm:$0xff]
    %v5175 = vld [vmem:[%s5173 + $0x8] sm:$0xff]
    %v5177 = vsel %vm4884, %v5141, 0
    %v5180 = vsel %vm4884, %v5142, 0
    %v5183 = vsel %vm4884, %v5143, 0
    %v5186 = vsel %vm4884, %v5144, 0
    %v5189 = vsel %vm4884, %v5145, 0
    %v5192 = vsel %vm4884, %v5146, 0
    %v5195 = vsel %vm4884, %v5147, 0
    %v5198 = vsel %vm4884, %v5148, 0
    %v5201 = vsel %vm4884, %v5149, 0
    %v5204 = vsel %vm4884, %v5150, 0
    %v5207 = vsel %vm4884, %v5151, 0
    %v5210 = vsel %vm4884, %v5152, 0
    %v5213 = vsel %vm4884, %v5153, 0
    %v5216 = vsel %vm4884, %v5154, 0
    %v5219 = vsel %vm4884, %v5155, 0
    %v5222 = vsel %vm4884, %v5156, 0
    %v5225 = vsel %vm4884, %v5157, 0
    %v5228 = vsel %vm4884, %v5158, 0
    %v5231 = vsel %vm4884, %v5159, 0
    %v5234 = vsel %vm4884, %v5160, 0
    %v5237 = vsel %vm4884, %v5161, 0
    %v5240 = vsel %vm4884, %v5162, 0
    %v5243 = vsel %vm4884, %v5163, 0
    %v5246 = vsel %vm4884, %v5164, 0
    %v5249 = vsel %vm4884, %v5165, 0
    %v5252 = vsel %vm4884, %v5166, 0
    %v5255 = vsel %vm4884, %v5167, 0
    %v5258 = vsel %vm4884, %v5168, 0
    %v5261 = vsel %vm4884, %v5169, 0
    %v5264 = vsel %vm4884, %v5170, 0
    %v5267 = vsel %vm4884, %v5171, 0
    %v5270 = vsel %vm4884, %v5172, 0
    %5272 = vmatpush.msra.mxu0 0.0
    %5273 = vmatpush.msra.mxu0 0.0
    %5274 = vmatpush.msra.mxu0 0.0
    %5275 = vmatpush.msra.mxu0 0.0
    %5276 = vmatpush.msra.mxu0 0.0
    %5277 = vmatpush.msra.mxu0 0.0
    %5278 = vmatpush.msra.mxu0 0.0
    %5279 = vmatpush.msra.mxu0 0.0
    %5280 = vmatpush.msra.mxu0 0.0
    %5281 = vmatpush.msra.mxu0 0.0
    %5282 = vmatpush.msra.mxu0 0.0
    %5283 = vmatpush.msra.mxu0 0.0
    %5284 = vmatpush.msra.mxu0 0.0
    %5285 = vmatpush.msra.mxu0 0.0
    %5286 = vmatpush.msra.mxu0 %v5175
    %5287 = vmatpush.msra.mxu0 %v5174
    %5288 = vmatmul.f32.gmra.mxu0 %v5177
    %v5289 = vpop.f32.mrf.mxu0
    %v5290 = vadd.f32 0.0, %v5289
    %5291 = vmatmul.f32.gmra.mxu0 %v5180
    %v5292 = vpop.f32.mrf.mxu0
    %v5293 = vadd.f32 0.0, %v5292
    %5294 = vmatmul.f32.gmra.mxu0 %v5183
    %v5295 = vpop.f32.mrf.mxu0
    %v5296 = vadd.f32 0.0, %v5295
    %5297 = vmatmul.f32.gmra.mxu0 %v5186
    %v5298 = vpop.f32.mrf.mxu0
    %v5299 = vadd.f32 0.0, %v5298
    %5300 = vmatmul.f32.gmra.mxu0 %v5189
    %v5301 = vpop.f32.mrf.mxu0
    %v5302 = vadd.f32 0.0, %v5301
    %5303 = vmatmul.f32.gmra.mxu0 %v5192
    %v5304 = vpop.f32.mrf.mxu0
    %v5305 = vadd.f32 0.0, %v5304
    %5306 = vmatmul.f32.gmra.mxu0 %v5195
    %v5307 = vpop.f32.mrf.mxu0
    %v5308 = vadd.f32 0.0, %v5307
    %5309 = vmatmul.f32.gmra.mxu0 %v5198
    %v5310 = vpop.f32.mrf.mxu0
    %v5311 = vadd.f32 0.0, %v5310
    %5312 = vmatmul.f32.gmra.mxu0 %v5201
    %v5313 = vpop.f32.mrf.mxu0
    %v5314 = vadd.f32 0.0, %v5313
    %5315 = vmatmul.f32.gmra.mxu0 %v5204
    %v5316 = vpop.f32.mrf.mxu0
    %v5317 = vadd.f32 0.0, %v5316
    %5318 = vmatmul.f32.gmra.mxu0 %v5207
    %v5319 = vpop.f32.mrf.mxu0
    %v5320 = vadd.f32 0.0, %v5319
    %5321 = vmatmul.f32.gmra.mxu0 %v5210
    %v5322 = vpop.f32.mrf.mxu0
    %v5323 = vadd.f32 0.0, %v5322
    %5324 = vmatmul.f32.gmra.mxu0 %v5213
    %v5325 = vpop.f32.mrf.mxu0
    %v5326 = vadd.f32 0.0, %v5325
    %5327 = vmatmul.f32.gmra.mxu0 %v5216
    %v5328 = vpop.f32.mrf.mxu0
    %v5329 = vadd.f32 0.0, %v5328
    %5330 = vmatmul.f32.gmra.mxu0 %v5219
    %v5331 = vpop.f32.mrf.mxu0
    %v5332 = vadd.f32 0.0, %v5331
    %5333 = vmatmul.f32.gmra.mxu0 %v5222
    %v5334 = vpop.f32.mrf.mxu0
    %v5335 = vadd.f32 0.0, %v5334
    %5336 = vmatmul.f32.gmra.mxu0 %v5225
    %v5337 = vpop.f32.mrf.mxu0
    %v5338 = vadd.f32 0.0, %v5337
    %5339 = vmatmul.f32.gmra.mxu0 %v5228
    %v5340 = vpop.f32.mrf.mxu0
    %v5341 = vadd.f32 0.0, %v5340
    %5342 = vmatmul.f32.gmra.mxu0 %v5231
    %v5343 = vpop.f32.mrf.mxu0
    %v5344 = vadd.f32 0.0, %v5343
    %5345 = vmatmul.f32.gmra.mxu0 %v5234
    %v5346 = vpop.f32.mrf.mxu0
    %v5347 = vadd.f32 0.0, %v5346
    %5348 = vmatmul.f32.gmra.mxu0 %v5237
    %v5349 = vpop.f32.mrf.mxu0
    %v5350 = vadd.f32 0.0, %v5349
    %5351 = vmatmul.f32.gmra.mxu0 %v5240
    %v5352 = vpop.f32.mrf.mxu0
    %v5353 = vadd.f32 0.0, %v5352
    %5354 = vmatmul.f32.gmra.mxu0 %v5243
    %v5355 = vpop.f32.mrf.mxu0
    %v5356 = vadd.f32 0.0, %v5355
    %5357 = vmatmul.f32.gmra.mxu0 %v5246
    %v5358 = vpop.f32.mrf.mxu0
    %v5359 = vadd.f32 0.0, %v5358
    %5360 = vmatmul.f32.gmra.mxu0 %v5249
    %v5361 = vpop.f32.mrf.mxu0
    %v5362 = vadd.f32 0.0, %v5361
    %5363 = vmatmul.f32.gmra.mxu0 %v5252
    %v5364 = vpop.f32.mrf.mxu0
    %v5365 = vadd.f32 0.0, %v5364
    %5366 = vmatmul.f32.gmra.mxu0 %v5255
    %v5367 = vpop.f32.mrf.mxu0
    %v5368 = vadd.f32 0.0, %v5367
    %5369 = vmatmul.f32.gmra.mxu0 %v5258
    %v5370 = vpop.f32.mrf.mxu0
    %v5371 = vadd.f32 0.0, %v5370
    %5372 = vmatmul.f32.gmra.mxu0 %v5261
    %v5373 = vpop.f32.mrf.mxu0
    %v5374 = vadd.f32 0.0, %v5373
    %5375 = vmatmul.f32.gmra.mxu0 %v5264
    %v5376 = vpop.f32.mrf.mxu0
    %v5377 = vadd.f32 0.0, %v5376
    %5378 = vmatmul.f32.gmra.mxu0 %v5267
    %v5379 = vpop.f32.mrf.mxu0
    %v5380 = vadd.f32 0.0, %v5379
    %5381 = vmatmul.f32.gmra.mxu0 %v5270
    %v5382 = vpop.f32.mrf.mxu0
    %v5383 = vadd.f32 0.0, %v5382
    %5384 = vdwg.mxu0
    %v5386 = vsel %vm4884, %v5107, 0
    %v5389 = vsel %vm4884, %v5108, 0
    %v5392 = vsel %vm4884, %v5109, 0
    %v5395 = vsel %vm4884, %v5110, 0
    %v5398 = vsel %vm4884, %v5111, 0
    %v5401 = vsel %vm4884, %v5112, 0
    %v5404 = vsel %vm4884, %v5113, 0
    %v5407 = vsel %vm4884, %v5114, 0
    %v5410 = vsel %vm4884, %v5115, 0
    %v5413 = vsel %vm4884, %v5116, 0
    %v5416 = vsel %vm4884, %v5117, 0
    %v5419 = vsel %vm4884, %v5118, 0
    %v5422 = vsel %vm4884, %v5119, 0
    %v5425 = vsel %vm4884, %v5120, 0
    %v5428 = vsel %vm4884, %v5121, 0
    %v5431 = vsel %vm4884, %v5122, 0
    %v5434 = vsel %vm4884, %v5123, 0
    %v5437 = vsel %vm4884, %v5124, 0
    %v5440 = vsel %vm4884, %v5125, 0
    %v5443 = vsel %vm4884, %v5126, 0
    %v5446 = vsel %vm4884, %v5127, 0
    %v5449 = vsel %vm4884, %v5128, 0
    %v5452 = vsel %vm4884, %v5129, 0
    %v5455 = vsel %vm4884, %v5130, 0
    %v5458 = vsel %vm4884, %v5131, 0
    %v5461 = vsel %vm4884, %v5132, 0
    %v5464 = vsel %vm4884, %v5133, 0
    %v5467 = vsel %vm4884, %v5134, 0
    %v5470 = vsel %vm4884, %v5135, 0
    %v5473 = vsel %vm4884, %v5136, 0
    %v5476 = vsel %vm4884, %v5137, 0
    %v5479 = vsel %vm4884, %v5138, 0
    %5481 = vmatpush.msra.mxu0 0.0
    %5482 = vmatpush.msra.mxu0 0.0
    %5483 = vmatpush.msra.mxu0 0.0
    %5484 = vmatpush.msra.mxu0 0.0
    %5485 = vmatpush.msra.mxu0 0.0
    %5486 = vmatpush.msra.mxu0 0.0
    %5487 = vmatpush.msra.mxu0 0.0
    %5488 = vmatpush.msra.mxu0 0.0
    %5489 = vmatpush.msra.mxu0 0.0
    %5490 = vmatpush.msra.mxu0 0.0
    %5491 = vmatpush.msra.mxu0 0.0
    %5492 = vmatpush.msra.mxu0 0.0
    %5493 = vmatpush.msra.mxu0 0.0
    %5494 = vmatpush.msra.mxu0 0.0
    %5495 = vmatpush.msra.mxu0 %v5140
    %5496 = vmatpush.msra.mxu0 %v5139
    %5497 = vmatmul.f32.gmra.mxu0 %v5386
    %v5498 = vpop.f32.mrf.mxu0
    %v5499 = vadd.f32 %v5290, %v5498
    %5500 = vmatmul.f32.gmra.mxu0 %v5389
    %v5501 = vpop.f32.mrf.mxu0
    %v5502 = vadd.f32 %v5293, %v5501
    %5503 = vmatmul.f32.gmra.mxu0 %v5392
    %v5504 = vpop.f32.mrf.mxu0
    %v5505 = vadd.f32 %v5296, %v5504
    %5506 = vmatmul.f32.gmra.mxu0 %v5395
    %v5507 = vpop.f32.mrf.mxu0
    %v5508 = vadd.f32 %v5299, %v5507
    %5509 = vmatmul.f32.gmra.mxu0 %v5398
    %v5510 = vpop.f32.mrf.mxu0
    %v5511 = vadd.f32 %v5302, %v5510
    %5512 = vmatmul.f32.gmra.mxu0 %v5401
    %v5513 = vpop.f32.mrf.mxu0
    %v5514 = vadd.f32 %v5305, %v5513
    %5515 = vmatmul.f32.gmra.mxu0 %v5404
    %v5516 = vpop.f32.mrf.mxu0
    %v5517 = vadd.f32 %v5308, %v5516
    %5518 = vmatmul.f32.gmra.mxu0 %v5407
    %v5519 = vpop.f32.mrf.mxu0
    %v5520 = vadd.f32 %v5311, %v5519
    %5521 = vmatmul.f32.gmra.mxu0 %v5410
    %v5522 = vpop.f32.mrf.mxu0
    %v5523 = vadd.f32 %v5314, %v5522
    %5524 = vmatmul.f32.gmra.mxu0 %v5413
    %v5525 = vpop.f32.mrf.mxu0
    %v5526 = vadd.f32 %v5317, %v5525
    %5527 = vmatmul.f32.gmra.mxu0 %v5416
    %v5528 = vpop.f32.mrf.mxu0
    %v5529 = vadd.f32 %v5320, %v5528
    %5530 = vmatmul.f32.gmra.mxu0 %v5419
    %v5531 = vpop.f32.mrf.mxu0
    %v5532 = vadd.f32 %v5323, %v5531
    %5533 = vmatmul.f32.gmra.mxu0 %v5422
    %v5534 = vpop.f32.mrf.mxu0
    %v5535 = vadd.f32 %v5326, %v5534
    %5536 = vmatmul.f32.gmra.mxu0 %v5425
    %v5537 = vpop.f32.mrf.mxu0
    %v5538 = vadd.f32 %v5329, %v5537
    %5539 = vmatmul.f32.gmra.mxu0 %v5428
    %v5540 = vpop.f32.mrf.mxu0
    %v5541 = vadd.f32 %v5332, %v5540
    %5542 = vmatmul.f32.gmra.mxu0 %v5431
    %v5543 = vpop.f32.mrf.mxu0
    %v5544 = vadd.f32 %v5335, %v5543
    %5545 = vmatmul.f32.gmra.mxu0 %v5434
    %v5546 = vpop.f32.mrf.mxu0
    %v5547 = vadd.f32 %v5338, %v5546
    %5548 = vmatmul.f32.gmra.mxu0 %v5437
    %v5549 = vpop.f32.mrf.mxu0
    %v5550 = vadd.f32 %v5341, %v5549
    %5551 = vmatmul.f32.gmra.mxu0 %v5440
    %v5552 = vpop.f32.mrf.mxu0
    %v5553 = vadd.f32 %v5344, %v5552
    %5554 = vmatmul.f32.gmra.mxu0 %v5443
    %v5555 = vpop.f32.mrf.mxu0
    %v5556 = vadd.f32 %v5347, %v5555
    %5557 = vmatmul.f32.gmra.mxu0 %v5446
    %v5558 = vpop.f32.mrf.mxu0
    %v5559 = vadd.f32 %v5350, %v5558
    %5560 = vmatmul.f32.gmra.mxu0 %v5449
    %v5561 = vpop.f32.mrf.mxu0
    %v5562 = vadd.f32 %v5353, %v5561
    %5563 = vmatmul.f32.gmra.mxu0 %v5452
    %v5564 = vpop.f32.mrf.mxu0
    %v5565 = vadd.f32 %v5356, %v5564
    %5566 = vmatmul.f32.gmra.mxu0 %v5455
    %v5567 = vpop.f32.mrf.mxu0
    %v5568 = vadd.f32 %v5359, %v5567
    %5569 = vmatmul.f32.gmra.mxu0 %v5458
    %v5570 = vpop.f32.mrf.mxu0
    %v5571 = vadd.f32 %v5362, %v5570
    %5572 = vmatmul.f32.gmra.mxu0 %v5461
    %v5573 = vpop.f32.mrf.mxu0
    %v5574 = vadd.f32 %v5365, %v5573
    %5575 = vmatmul.f32.gmra.mxu0 %v5464
    %v5576 = vpop.f32.mrf.mxu0
    %v5577 = vadd.f32 %v5368, %v5576
    %5578 = vmatmul.f32.gmra.mxu0 %v5467
    %v5579 = vpop.f32.mrf.mxu0
    %v5580 = vadd.f32 %v5371, %v5579
    %5581 = vmatmul.f32.gmra.mxu0 %v5470
    %v5582 = vpop.f32.mrf.mxu0
    %v5583 = vadd.f32 %v5374, %v5582
    %5584 = vmatmul.f32.gmra.mxu0 %v5473
    %v5585 = vpop.f32.mrf.mxu0
    %v5586 = vadd.f32 %v5377, %v5585
    %5587 = vmatmul.f32.gmra.mxu0 %v5476
    %v5588 = vpop.f32.mrf.mxu0
    %v5589 = vadd.f32 %v5380, %v5588
    %5590 = vmatmul.f32.gmra.mxu0 %v5479
    %v5591 = vpop.f32.mrf.mxu0
    %v5592 = vadd.f32 %v5383, %v5591
    %5593 = vdwg.mxu0
    %v5594 = vld [vmem:[#allocation2 + $0x4] sm:$0xff]
    %v5595 = vld [vmem:[#allocation2 + $0xc] sm:$0xff]
    %v5596 = vld [vmem:[#allocation2 + $0x1c] sm:$0xff]
    %v5597 = vld [vmem:[#allocation2 + $0x24] sm:$0xff]
    %v5598 = vld [vmem:[#allocation2 + $0x34] sm:$0xff]
    %v5599 = vld [vmem:[#allocation2 + $0x3c] sm:$0xff]
    %v5600 = vld [vmem:[#allocation2 + $0x4c] sm:$0xff]
    %v5601 = vld [vmem:[#allocation2 + $0x54] sm:$0xff]
    %v5602 = vld [vmem:[#allocation2 + $0x64] sm:$0xff]
    %v5603 = vld [vmem:[#allocation2 + $0x6c] sm:$0xff]
    %v5604 = vld [vmem:[#allocation2 + $0x7c] sm:$0xff]
    %v5605 = vld [vmem:[#allocation2 + $0x84] sm:$0xff]
    %v5606 = vld [vmem:[#allocation2 + $0x94] sm:$0xff]
    %v5607 = vld [vmem:[#allocation2 + $0x9c] sm:$0xff]
    %v5608 = vld [vmem:[#allocation2 + $0xac] sm:$0xff]
    %v5609 = vld [vmem:[#allocation2 + $0xb4] sm:$0xff]
    %v5610 = vld [vmem:[#allocation2 + $0xf4] sm:$0xff]
    %v5611 = vld [vmem:[#allocation2 + $0xfc] sm:$0xff]
    %v5612 = vld [vmem:[#allocation2 + $0x10c] sm:$0xff]
    %v5613 = vld [vmem:[#allocation2 + $0x114] sm:$0xff]
    %v5614 = vld [vmem:[#allocation2 + $0x124] sm:$0xff]
    %v5615 = vld [vmem:[#allocation2 + $0x12c] sm:$0xff]
    %v5616 = vld [vmem:[#allocation2 + $0x13c] sm:$0xff]
    %v5617 = vld [vmem:[#allocation2 + $0x144] sm:$0xff]
    %v5618 = vld [vmem:[#allocation2 + $0x154] sm:$0xff]
    %v5619 = vld [vmem:[#allocation2 + $0x15c] sm:$0xff]
    %v5620 = vld [vmem:[#allocation2 + $0x16c] sm:$0xff]
    %v5621 = vld [vmem:[#allocation2 + $0x174] sm:$0xff]
    %v5622 = vld [vmem:[#allocation2 + $0x184] sm:$0xff]
    %v5623 = vld [vmem:[#allocation2 + $0x18c] sm:$0xff]
    %v5624 = vld [vmem:[#allocation2 + $0x19c] sm:$0xff]
    %v5625 = vld [vmem:[#allocation2 + $0x1a4] sm:$0xff]
    %s5626 = scalar_lea.vmem %s3, 32
    %v5627 = vld [vmem:[%s5626] sm:$0xff]
    %v5628 = vld [vmem:[%s5626 + $0x8] sm:$0xff]
    %v5630 = vsel %vm4884, %v5594, 0
    %v5633 = vsel %vm4884, %v5595, 0
    %v5636 = vsel %vm4884, %v5596, 0
    %v5639 = vsel %vm4884, %v5597, 0
    %v5642 = vsel %vm4884, %v5598, 0
    %v5645 = vsel %vm4884, %v5599, 0
    %v5648 = vsel %vm4884, %v5600, 0
    %v5651 = vsel %vm4884, %v5601, 0
    %v5654 = vsel %vm4884, %v5602, 0
    %v5657 = vsel %vm4884, %v5603, 0
    %v5660 = vsel %vm4884, %v5604, 0
    %v5663 = vsel %vm4884, %v5605, 0
    %v5666 = vsel %vm4884, %v5606, 0
    %v5669 = vsel %vm4884, %v5607, 0
    %v5672 = vsel %vm4884, %v5608, 0
    %v5675 = vsel %vm4884, %v5609, 0
    %v5678 = vsel %vm4884, %v5610, 0
    %v5681 = vsel %vm4884, %v5611, 0
    %v5684 = vsel %vm4884, %v5612, 0
    %v5687 = vsel %vm4884, %v5613, 0
    %v5690 = vsel %vm4884, %v5614, 0
    %v5693 = vsel %vm4884, %v5615, 0
    %v5696 = vsel %vm4884, %v5616, 0
    %v5699 = vsel %vm4884, %v5617, 0
    %v5702 = vsel %vm4884, %v5618, 0
    %v5705 = vsel %vm4884, %v5619, 0
    %v5708 = vsel %vm4884, %v5620, 0
    %v5711 = vsel %vm4884, %v5621, 0
    %v5714 = vsel %vm4884, %v5622, 0
    %v5717 = vsel %vm4884, %v5623, 0
    %v5720 = vsel %vm4884, %v5624, 0
    %v5723 = vsel %vm4884, %v5625, 0
    %5725 = vmatpush.msra.mxu0 0.0
    %5726 = vmatpush.msra.mxu0 0.0
    %5727 = vmatpush.msra.mxu0 0.0
    %5728 = vmatpush.msra.mxu0 0.0
    %5729 = vmatpush.msra.mxu0 0.0
    %5730 = vmatpush.msra.mxu0 0.0
    %5731 = vmatpush.msra.mxu0 0.0
    %5732 = vmatpush.msra.mxu0 0.0
    %5733 = vmatpush.msra.mxu0 0.0
    %5734 = vmatpush.msra.mxu0 0.0
    %5735 = vmatpush.msra.mxu0 0.0
    %5736 = vmatpush.msra.mxu0 0.0
    %5737 = vmatpush.msra.mxu0 0.0
    %5738 = vmatpush.msra.mxu0 0.0
    %5739 = vmatpush.msra.mxu0 %v5628
    %5740 = vmatpush.msra.mxu0 %v5627
    %5741 = vmatmul.f32.gmra.mxu0 %v5630
    %v5742 = vpop.f32.mrf.mxu0
    %v5743 = vadd.f32 0.0, %v5742
    %5744 = vmatmul.f32.gmra.mxu0 %v5633
    %v5745 = vpop.f32.mrf.mxu0
    %v5746 = vadd.f32 0.0, %v5745
    %5747 = vmatmul.f32.gmra.mxu0 %v5636
    %v5748 = vpop.f32.mrf.mxu0
    %v5749 = vadd.f32 0.0, %v5748
    %5750 = vmatmul.f32.gmra.mxu0 %v5639
    %v5751 = vpop.f32.mrf.mxu0
    %v5752 = vadd.f32 0.0, %v5751
    %5753 = vmatmul.f32.gmra.mxu0 %v5642
    %v5754 = vpop.f32.mrf.mxu0
    %v5755 = vadd.f32 0.0, %v5754
    %5756 = vmatmul.f32.gmra.mxu0 %v5645
    %v5757 = vpop.f32.mrf.mxu0
    %v5758 = vadd.f32 0.0, %v5757
    %5759 = vmatmul.f32.gmra.mxu0 %v5648
    %v5760 = vpop.f32.mrf.mxu0
    %v5761 = vadd.f32 0.0, %v5760
    %5762 = vmatmul.f32.gmra.mxu0 %v5651
    %v5763 = vpop.f32.mrf.mxu0
    %v5764 = vadd.f32 0.0, %v5763
    %5765 = vmatmul.f32.gmra.mxu0 %v5654
    %v5766 = vpop.f32.mrf.mxu0
    %v5767 = vadd.f32 0.0, %v5766
    %5768 = vmatmul.f32.gmra.mxu0 %v5657
    %v5769 = vpop.f32.mrf.mxu0
    %v5770 = vadd.f32 0.0, %v5769
    %5771 = vmatmul.f32.gmra.mxu0 %v5660
    %v5772 = vpop.f32.mrf.mxu0
    %v5773 = vadd.f32 0.0, %v5772
    %5774 = vmatmul.f32.gmra.mxu0 %v5663
    %v5775 = vpop.f32.mrf.mxu0
    %v5776 = vadd.f32 0.0, %v5775
    %5777 = vmatmul.f32.gmra.mxu0 %v5666
    %v5778 = vpop.f32.mrf.mxu0
    %v5779 = vadd.f32 0.0, %v5778
    %5780 = vmatmul.f32.gmra.mxu0 %v5669
    %v5781 = vpop.f32.mrf.mxu0
    %v5782 = vadd.f32 0.0, %v5781
    %5783 = vmatmul.f32.gmra.mxu0 %v5672
    %v5784 = vpop.f32.mrf.mxu0
    %v5785 = vadd.f32 0.0, %v5784
    %5786 = vmatmul.f32.gmra.mxu0 %v5675
    %v5787 = vpop.f32.mrf.mxu0
    %v5788 = vadd.f32 0.0, %v5787
    %5789 = vmatmul.f32.gmra.mxu0 %v5678
    %v5790 = vpop.f32.mrf.mxu0
    %v5791 = vadd.f32 0.0, %v5790
    %5792 = vmatmul.f32.gmra.mxu0 %v5681
    %v5793 = vpop.f32.mrf.mxu0
    %v5794 = vadd.f32 0.0, %v5793
    %5795 = vmatmul.f32.gmra.mxu0 %v5684
    %v5796 = vpop.f32.mrf.mxu0
    %v5797 = vadd.f32 0.0, %v5796
    %5798 = vmatmul.f32.gmra.mxu0 %v5687
    %v5799 = vpop.f32.mrf.mxu0
    %v5800 = vadd.f32 0.0, %v5799
    %5801 = vmatmul.f32.gmra.mxu0 %v5690
    %v5802 = vpop.f32.mrf.mxu0
    %v5803 = vadd.f32 0.0, %v5802
    %5804 = vmatmul.f32.gmra.mxu0 %v5693
    %v5805 = vpop.f32.mrf.mxu0
    %v5806 = vadd.f32 0.0, %v5805
    %5807 = vmatmul.f32.gmra.mxu0 %v5696
    %v5808 = vpop.f32.mrf.mxu0
    %v5809 = vadd.f32 0.0, %v5808
    %5810 = vmatmul.f32.gmra.mxu0 %v5699
    %v5811 = vpop.f32.mrf.mxu0
    %v5812 = vadd.f32 0.0, %v5811
    %5813 = vmatmul.f32.gmra.mxu0 %v5702
    %v5814 = vpop.f32.mrf.mxu0
    %v5815 = vadd.f32 0.0, %v5814
    %5816 = vmatmul.f32.gmra.mxu0 %v5705
    %v5817 = vpop.f32.mrf.mxu0
    %v5818 = vadd.f32 0.0, %v5817
    %5819 = vmatmul.f32.gmra.mxu0 %v5708
    %v5820 = vpop.f32.mrf.mxu0
    %v5821 = vadd.f32 0.0, %v5820
    %5822 = vmatmul.f32.gmra.mxu0 %v5711
    %v5823 = vpop.f32.mrf.mxu0
    %v5824 = vadd.f32 0.0, %v5823
    %5825 = vmatmul.f32.gmra.mxu0 %v5714
    %v5826 = vpop.f32.mrf.mxu0
    %v5827 = vadd.f32 0.0, %v5826
    %5828 = vmatmul.f32.gmra.mxu0 %v5717
    %v5829 = vpop.f32.mrf.mxu0
    %v5830 = vadd.f32 0.0, %v5829
    %5831 = vmatmul.f32.gmra.mxu0 %v5720
    %v5832 = vpop.f32.mrf.mxu0
    %v5833 = vadd.f32 0.0, %v5832
    %5834 = vmatmul.f32.gmra.mxu0 %v5723
    %v5835 = vpop.f32.mrf.mxu0
    %v5836 = vadd.f32 0.0, %v5835
    %5837 = vdwg.mxu0
    %v5838 = vadd.f32 %v5499, %v5743
    %v5839 = vadd.f32 %v5502, %v5746
    %v5840 = vadd.f32 %v5505, %v5749
    %v5841 = vadd.f32 %v5508, %v5752
    %v5842 = vadd.f32 %v5511, %v5755
    %v5843 = vadd.f32 %v5514, %v5758
    %v5844 = vadd.f32 %v5517, %v5761
    %v5845 = vadd.f32 %v5520, %v5764
    %v5846 = vadd.f32 %v5523, %v5767
    %v5847 = vadd.f32 %v5526, %v5770
    %v5848 = vadd.f32 %v5529, %v5773
    %v5849 = vadd.f32 %v5532, %v5776
    %v5850 = vadd.f32 %v5535, %v5779
    %v5851 = vadd.f32 %v5538, %v5782
    %v5852 = vadd.f32 %v5541, %v5785
    %v5853 = vadd.f32 %v5544, %v5788
    %v5854 = vadd.f32 %v5547, %v5791
    %v5855 = vadd.f32 %v5550, %v5794
    %v5856 = vadd.f32 %v5553, %v5797
    %v5857 = vadd.f32 %v5556, %v5800
    %v5858 = vadd.f32 %v5559, %v5803
    %v5859 = vadd.f32 %v5562, %v5806
    %v5860 = vadd.f32 %v5565, %v5809
    %v5861 = vadd.f32 %v5568, %v5812
    %v5862 = vadd.f32 %v5571, %v5815
    %v5863 = vadd.f32 %v5574, %v5818
    %v5864 = vadd.f32 %v5577, %v5821
    %v5865 = vadd.f32 %v5580, %v5824
    %v5866 = vadd.f32 %v5583, %v5827
    %v5867 = vadd.f32 %v5586, %v5830
    %v5868 = vadd.f32 %v5589, %v5833
    %v5869 = vadd.f32 %v5592, %v5836
    %v5870 = vld [vmem:[%s4946] sm:$0xff]
    %v5871 = vld [vmem:[%s4946 + $0x8] sm:$0xff]
    %v5872 = vld [vmem:[%s4946 + $0x18] sm:$0xff]
    %v5873 = vld [vmem:[%s4946 + $0x20] sm:$0xff]
    %v5874 = vld [vmem:[%s4946 + $0x30] sm:$0xff]
    %v5875 = vld [vmem:[%s4946 + $0x38] sm:$0xff]
    %v5876 = vld [vmem:[%s4946 + $0x48] sm:$0xff]
    %v5877 = vld [vmem:[%s4946 + $0x50] sm:$0xff]
    %v5878 = vld [vmem:[%s4946 + $0x60] sm:$0xff]
    %v5879 = vld [vmem:[%s4946 + $0x68] sm:$0xff]
    %v5880 = vld [vmem:[%s4946 + $0x78] sm:$0xff]
    %v5881 = vld [vmem:[%s4946 + $0x80] sm:$0xff]
    %v5882 = vld [vmem:[%s4946 + $0x90] sm:$0xff]
    %v5883 = vld [vmem:[%s4946 + $0x98] sm:$0xff]
    %v5884 = vld [vmem:[%s4946 + $0xa8] sm:$0xff]
    %v5885 = vld [vmem:[%s4946 + $0xb0] sm:$0xff]
    %v5886 = vld [vmem:[%s4946 + $0xf0] sm:$0xff]
    %v5887 = vld [vmem:[%s4946 + $0xf8] sm:$0xff]
    %v5888 = vld [vmem:[%s4946 + $0x108] sm:$0xff]
    %v5889 = vld [vmem:[%s4946 + $0x110] sm:$0xff]
    %v5890 = vld [vmem:[%s4946 + $0x120] sm:$0xff]
    %v5891 = vld [vmem:[%s4946 + $0x128] sm:$0xff]
    %v5892 = vld [vmem:[%s4946 + $0x138] sm:$0xff]
    %v5893 = vld [vmem:[%s4946 + $0x140] sm:$0xff]
    %v5894 = vld [vmem:[%s4946 + $0x150] sm:$0xff]
    %v5895 = vld [vmem:[%s4946 + $0x158] sm:$0xff]
    %v5896 = vld [vmem:[%s4946 + $0x168] sm:$0xff]
    %v5897 = vld [vmem:[%s4946 + $0x170] sm:$0xff]
    %v5898 = vld [vmem:[%s4946 + $0x180] sm:$0xff]
    %v5899 = vld [vmem:[%s4946 + $0x188] sm:$0xff]
    %v5900 = vld [vmem:[%s4946 + $0x198] sm:$0xff]
    %v5901 = vld [vmem:[%s4946 + $0x1a0] sm:$0xff]
    %s5902 = scalar_lea.vmem %s3, 48
    %v5903 = vld [vmem:[%s5902] sm:$0xff]
    %v5904 = vld [vmem:[%s5902 + $0x8] sm:$0xff]
    %v5906 = vsel %vm4884, %v5870, 0
    %v5909 = vsel %vm4884, %v5871, 0
    %v5912 = vsel %vm4884, %v5872, 0
    %v5915 = vsel %vm4884, %v5873, 0
    %v5918 = vsel %vm4884, %v5874, 0
    %v5921 = vsel %vm4884, %v5875, 0
    %v5924 = vsel %vm4884, %v5876, 0
    %v5927 = vsel %vm4884, %v5877, 0
    %v5930 = vsel %vm4884, %v5878, 0
    %v5933 = vsel %vm4884, %v5879, 0
    %v5936 = vsel %vm4884, %v5880, 0
    %v5939 = vsel %vm4884, %v5881, 0
    %v5942 = vsel %vm4884, %v5882, 0
    %v5945 = vsel %vm4884, %v5883, 0
    %v5948 = vsel %vm4884, %v5884, 0
    %v5951 = vsel %vm4884, %v5885, 0
    %v5954 = vsel %vm4884, %v5886, 0
    %v5957 = vsel %vm4884, %v5887, 0
    %v5960 = vsel %vm4884, %v5888, 0
    %v5963 = vsel %vm4884, %v5889, 0
    %v5966 = vsel %vm4884, %v5890, 0
    %v5969 = vsel %vm4884, %v5891, 0
    %v5972 = vsel %vm4884, %v5892, 0
    %v5975 = vsel %vm4884, %v5893, 0
    %v5978 = vsel %vm4884, %v5894, 0
    %v5981 = vsel %vm4884, %v5895, 0
    %v5984 = vsel %vm4884, %v5896, 0
    %v5987 = vsel %vm4884, %v5897, 0
    %v5990 = vsel %vm4884, %v5898, 0
    %v5993 = vsel %vm4884, %v5899, 0
    %v5996 = vsel %vm4884, %v5900, 0
    %v5999 = vsel %vm4884, %v5901, 0
    %6001 = vmatpush.msra.mxu0 0.0
    %6002 = vmatpush.msra.mxu0 0.0
    %6003 = vmatpush.msra.mxu0 0.0
    %6004 = vmatpush.msra.mxu0 0.0
    %6005 = vmatpush.msra.mxu0 0.0
    %6006 = vmatpush.msra.mxu0 0.0
    %6007 = vmatpush.msra.mxu0 0.0
    %6008 = vmatpush.msra.mxu0 0.0
    %6009 = vmatpush.msra.mxu0 0.0
    %6010 = vmatpush.msra.mxu0 0.0
    %6011 = vmatpush.msra.mxu0 0.0
    %6012 = vmatpush.msra.mxu0 0.0
    %6013 = vmatpush.msra.mxu0 0.0
    %6014 = vmatpush.msra.mxu0 0.0
    %6015 = vmatpush.msra.mxu0 %v5904
    %6016 = vmatpush.msra.mxu0 %v5903
    %6017 = vmatmul.f32.gmra.mxu0 %v5906
    %v6018 = vpop.f32.mrf.mxu0
    %v6019 = vadd.f32 0.0, %v6018
    %6020 = vmatmul.f32.gmra.mxu0 %v5909
    %v6021 = vpop.f32.mrf.mxu0
    %v6022 = vadd.f32 0.0, %v6021
    %6023 = vmatmul.f32.gmra.mxu0 %v5912
    %v6024 = vpop.f32.mrf.mxu0
    %v6025 = vadd.f32 0.0, %v6024
    %6026 = vmatmul.f32.gmra.mxu0 %v5915
    %v6027 = vpop.f32.mrf.mxu0
    %v6028 = vadd.f32 0.0, %v6027
    %6029 = vmatmul.f32.gmra.mxu0 %v5918
    %v6030 = vpop.f32.mrf.mxu0
    %v6031 = vadd.f32 0.0, %v6030
    %6032 = vmatmul.f32.gmra.mxu0 %v5921
    %v6033 = vpop.f32.mrf.mxu0
    %v6034 = vadd.f32 0.0, %v6033
    %6035 = vmatmul.f32.gmra.mxu0 %v5924
    %v6036 = vpop.f32.mrf.mxu0
    %v6037 = vadd.f32 0.0, %v6036
    %6038 = vmatmul.f32.gmra.mxu0 %v5927
    %v6039 = vpop.f32.mrf.mxu0
    %v6040 = vadd.f32 0.0, %v6039
    %6041 = vmatmul.f32.gmra.mxu0 %v5930
    %v6042 = vpop.f32.mrf.mxu0
    %v6043 = vadd.f32 0.0, %v6042
    %6044 = vmatmul.f32.gmra.mxu0 %v5933
    %v6045 = vpop.f32.mrf.mxu0
    %v6046 = vadd.f32 0.0, %v6045
    %6047 = vmatmul.f32.gmra.mxu0 %v5936
    %v6048 = vpop.f32.mrf.mxu0
    %v6049 = vadd.f32 0.0, %v6048
    %6050 = vmatmul.f32.gmra.mxu0 %v5939
    %v6051 = vpop.f32.mrf.mxu0
    %v6052 = vadd.f32 0.0, %v6051
    %6053 = vmatmul.f32.gmra.mxu0 %v5942
    %v6054 = vpop.f32.mrf.mxu0
    %v6055 = vadd.f32 0.0, %v6054
    %6056 = vmatmul.f32.gmra.mxu0 %v5945
    %v6057 = vpop.f32.mrf.mxu0
    %v6058 = vadd.f32 0.0, %v6057
    %6059 = vmatmul.f32.gmra.mxu0 %v5948
    %v6060 = vpop.f32.mrf.mxu0
    %v6061 = vadd.f32 0.0, %v6060
    %6062 = vmatmul.f32.gmra.mxu0 %v5951
    %v6063 = vpop.f32.mrf.mxu0
    %v6064 = vadd.f32 0.0, %v6063
    %6065 = vmatmul.f32.gmra.mxu0 %v5954
    %v6066 = vpop.f32.mrf.mxu0
    %v6067 = vadd.f32 0.0, %v6066
    %6068 = vmatmul.f32.gmra.mxu0 %v5957
    %v6069 = vpop.f32.mrf.mxu0
    %v6070 = vadd.f32 0.0, %v6069
    %6071 = vmatmul.f32.gmra.mxu0 %v5960
    %v6072 = vpop.f32.mrf.mxu0
    %v6073 = vadd.f32 0.0, %v6072
    %6074 = vmatmul.f32.gmra.mxu0 %v5963
    %v6075 = vpop.f32.mrf.mxu0
    %v6076 = vadd.f32 0.0, %v6075
    %6077 = vmatmul.f32.gmra.mxu0 %v5966
    %v6078 = vpop.f32.mrf.mxu0
    %v6079 = vadd.f32 0.0, %v6078
    %6080 = vmatmul.f32.gmra.mxu0 %v5969
    %v6081 = vpop.f32.mrf.mxu0
    %v6082 = vadd.f32 0.0, %v6081
    %6083 = vmatmul.f32.gmra.mxu0 %v5972
    %v6084 = vpop.f32.mrf.mxu0
    %v6085 = vadd.f32 0.0, %v6084
    %6086 = vmatmul.f32.gmra.mxu0 %v5975
    %v6087 = vpop.f32.mrf.mxu0
    %v6088 = vadd.f32 0.0, %v6087
    %6089 = vmatmul.f32.gmra.mxu0 %v5978
    %v6090 = vpop.f32.mrf.mxu0
    %v6091 = vadd.f32 0.0, %v6090
    %6092 = vmatmul.f32.gmra.mxu0 %v5981
    %v6093 = vpop.f32.mrf.mxu0
    %v6094 = vadd.f32 0.0, %v6093
    %6095 = vmatmul.f32.gmra.mxu0 %v5984
    %v6096 = vpop.f32.mrf.mxu0
    %v6097 = vadd.f32 0.0, %v6096
    %6098 = vmatmul.f32.gmra.mxu0 %v5987
    %v6099 = vpop.f32.mrf.mxu0
    %v6100 = vadd.f32 0.0, %v6099
    %6101 = vmatmul.f32.gmra.mxu0 %v5990
    %v6102 = vpop.f32.mrf.mxu0
    %v6103 = vadd.f32 0.0, %v6102
    %6104 = vmatmul.f32.gmra.mxu0 %v5993
    %v6105 = vpop.f32.mrf.mxu0
    %v6106 = vadd.f32 0.0, %v6105
    %6107 = vmatmul.f32.gmra.mxu0 %v5996
    %v6108 = vpop.f32.mrf.mxu0
    %v6109 = vadd.f32 0.0, %v6108
    %6110 = vmatmul.f32.gmra.mxu0 %v5999
    %v6111 = vpop.f32.mrf.mxu0
    %v6112 = vadd.f32 0.0, %v6111
    %6113 = vdwg.mxu0
    %v6114 = vadd.f32 %v5838, %v6019
    %v6115 = vadd.f32 %v5839, %v6022
    %v6116 = vadd.f32 %v5840, %v6025
    %v6117 = vadd.f32 %v5841, %v6028
    %v6118 = vadd.f32 %v5842, %v6031
    %v6119 = vadd.f32 %v5843, %v6034
    %v6120 = vadd.f32 %v5844, %v6037
    %v6121 = vadd.f32 %v5845, %v6040
    %v6122 = vadd.f32 %v5846, %v6043
    %v6123 = vadd.f32 %v5847, %v6046
    %v6124 = vadd.f32 %v5848, %v6049
    %v6125 = vadd.f32 %v5849, %v6052
    %v6126 = vadd.f32 %v5850, %v6055
    %v6127 = vadd.f32 %v5851, %v6058
    %v6128 = vadd.f32 %v5852, %v6061
    %v6129 = vadd.f32 %v5853, %v6064
    %v6130 = vadd.f32 %v5854, %v6067
    %v6131 = vadd.f32 %v5855, %v6070
    %v6132 = vadd.f32 %v5856, %v6073
    %v6133 = vadd.f32 %v5857, %v6076
    %v6134 = vadd.f32 %v5858, %v6079
    %v6135 = vadd.f32 %v5859, %v6082
    %v6136 = vadd.f32 %v5860, %v6085
    %v6137 = vadd.f32 %v5861, %v6088
    %v6138 = vadd.f32 %v5862, %v6091
    %v6139 = vadd.f32 %v5863, %v6094
    %v6140 = vadd.f32 %v5864, %v6097
    %v6141 = vadd.f32 %v5865, %v6100
    %v6142 = vadd.f32 %v5866, %v6103
    %v6143 = vadd.f32 %v5867, %v6106
    %v6144 = vadd.f32 %v5868, %v6109
    %v6145 = vadd.f32 %v5869, %v6112
    %v6146 = vld [vmem:[%s4946 + $0x2] sm:$0xff]
    %v6147 = vld [vmem:[%s4946 + $0xa] sm:$0xff]
    %v6148 = vld [vmem:[%s4946 + $0x1a] sm:$0xff]
    %v6149 = vld [vmem:[%s4946 + $0x22] sm:$0xff]
    %v6150 = vld [vmem:[%s4946 + $0x32] sm:$0xff]
    %v6151 = vld [vmem:[%s4946 + $0x3a] sm:$0xff]
    %v6152 = vld [vmem:[%s4946 + $0x4a] sm:$0xff]
    %v6153 = vld [vmem:[%s4946 + $0x52] sm:$0xff]
    %v6154 = vld [vmem:[%s4946 + $0x62] sm:$0xff]
    %v6155 = vld [vmem:[%s4946 + $0x6a] sm:$0xff]
    %v6156 = vld [vmem:[%s4946 + $0x7a] sm:$0xff]
    %v6157 = vld [vmem:[%s4946 + $0x82] sm:$0xff]
    %v6158 = vld [vmem:[%s4946 + $0x92] sm:$0xff]
    %v6159 = vld [vmem:[%s4946 + $0x9a] sm:$0xff]
    %v6160 = vld [vmem:[%s4946 + $0xaa] sm:$0xff]
    %v6161 = vld [vmem:[%s4946 + $0xb2] sm:$0xff]
    %v6162 = vld [vmem:[%s4946 + $0xf2] sm:$0xff]
    %v6163 = vld [vmem:[%s4946 + $0xfa] sm:$0xff]
    %v6164 = vld [vmem:[%s4946 + $0x10a] sm:$0xff]
    %v6165 = vld [vmem:[%s4946 + $0x112] sm:$0xff]
    %v6166 = vld [vmem:[%s4946 + $0x122] sm:$0xff]
    %v6167 = vld [vmem:[%s4946 + $0x12a] sm:$0xff]
    %v6168 = vld [vmem:[%s4946 + $0x13a] sm:$0xff]
    %v6169 = vld [vmem:[%s4946 + $0x142] sm:$0xff]
    %v6170 = vld [vmem:[%s4946 + $0x152] sm:$0xff]
    %v6171 = vld [vmem:[%s4946 + $0x15a] sm:$0xff]
    %v6172 = vld [vmem:[%s4946 + $0x16a] sm:$0xff]
    %v6173 = vld [vmem:[%s4946 + $0x172] sm:$0xff]
    %v6174 = vld [vmem:[%s4946 + $0x182] sm:$0xff]
    %v6175 = vld [vmem:[%s4946 + $0x18a] sm:$0xff]
    %v6176 = vld [vmem:[%s4946 + $0x19a] sm:$0xff]
    %v6177 = vld [vmem:[%s4946 + $0x1a2] sm:$0xff]
    %s6178 = scalar_lea.vmem %s3, 64
    %v6179 = vld [vmem:[%s6178] sm:$0xff]
    %v6180 = vld [vmem:[%s6178 + $0x8] sm:$0xff]
    %v6182 = vsel %vm4884, %v6146, 0
    %v6185 = vsel %vm4884, %v6147, 0
    %v6188 = vsel %vm4884, %v6148, 0
    %v6191 = vsel %vm4884, %v6149, 0
    %v6194 = vsel %vm4884, %v6150, 0
    %v6197 = vsel %vm4884, %v6151, 0
    %v6200 = vsel %vm4884, %v6152, 0
    %v6203 = vsel %vm4884, %v6153, 0
    %v6206 = vsel %vm4884, %v6154, 0
    %v6209 = vsel %vm4884, %v6155, 0
    %v6212 = vsel %vm4884, %v6156, 0
    %v6215 = vsel %vm4884, %v6157, 0
    %v6218 = vsel %vm4884, %v6158, 0
    %v6221 = vsel %vm4884, %v6159, 0
    %v6224 = vsel %vm4884, %v6160, 0
    %v6227 = vsel %vm4884, %v6161, 0
    %v6230 = vsel %vm4884, %v6162, 0
    %v6233 = vsel %vm4884, %v6163, 0
    %v6236 = vsel %vm4884, %v6164, 0
    %v6239 = vsel %vm4884, %v6165, 0
    %v6242 = vsel %vm4884, %v6166, 0
    %v6245 = vsel %vm4884, %v6167, 0
    %v6248 = vsel %vm4884, %v6168, 0
    %v6251 = vsel %vm4884, %v6169, 0
    %v6254 = vsel %vm4884, %v6170, 0
    %v6257 = vsel %vm4884, %v6171, 0
    %v6260 = vsel %vm4884, %v6172, 0
    %v6263 = vsel %vm4884, %v6173, 0
    %v6266 = vsel %vm4884, %v6174, 0
    %v6269 = vsel %vm4884, %v6175, 0
    %v6272 = vsel %vm4884, %v6176, 0
    %v6275 = vsel %vm4884, %v6177, 0
    %6277 = vmatpush.msra.mxu0 0.0
    %6278 = vmatpush.msra.mxu0 0.0
    %6279 = vmatpush.msra.mxu0 0.0
    %6280 = vmatpush.msra.mxu0 0.0
    %6281 = vmatpush.msra.mxu0 0.0
    %6282 = vmatpush.msra.mxu0 0.0
    %6283 = vmatpush.msra.mxu0 0.0
    %6284 = vmatpush.msra.mxu0 0.0
    %6285 = vmatpush.msra.mxu0 0.0
    %6286 = vmatpush.msra.mxu0 0.0
    %6287 = vmatpush.msra.mxu0 0.0
    %6288 = vmatpush.msra.mxu0 0.0
    %6289 = vmatpush.msra.mxu0 0.0
    %6290 = vmatpush.msra.mxu0 0.0
    %6291 = vmatpush.msra.mxu0 %v6180
    %6292 = vmatpush.msra.mxu0 %v6179
    %6293 = vmatmul.f32.gmra.mxu0 %v6182
    %v6294 = vpop.f32.mrf.mxu0
    %v6295 = vadd.f32 0.0, %v6294
    %6296 = vmatmul.f32.gmra.mxu0 %v6185
    %v6297 = vpop.f32.mrf.mxu0
    %v6298 = vadd.f32 0.0, %v6297
    %6299 = vmatmul.f32.gmra.mxu0 %v6188
    %v6300 = vpop.f32.mrf.mxu0
    %v6301 = vadd.f32 0.0, %v6300
    %6302 = vmatmul.f32.gmra.mxu0 %v6191
    %v6303 = vpop.f32.mrf.mxu0
    %v6304 = vadd.f32 0.0, %v6303
    %6305 = vmatmul.f32.gmra.mxu0 %v6194
    %v6306 = vpop.f32.mrf.mxu0
    %v6307 = vadd.f32 0.0, %v6306
    %6308 = vmatmul.f32.gmra.mxu0 %v6197
    %v6309 = vpop.f32.mrf.mxu0
    %v6310 = vadd.f32 0.0, %v6309
    %6311 = vmatmul.f32.gmra.mxu0 %v6200
    %v6312 = vpop.f32.mrf.mxu0
    %v6313 = vadd.f32 0.0, %v6312
    %6314 = vmatmul.f32.gmra.mxu0 %v6203
    %v6315 = vpop.f32.mrf.mxu0
    %v6316 = vadd.f32 0.0, %v6315
    %6317 = vmatmul.f32.gmra.mxu0 %v6206
    %v6318 = vpop.f32.mrf.mxu0
    %v6319 = vadd.f32 0.0, %v6318
    %6320 = vmatmul.f32.gmra.mxu0 %v6209
    %v6321 = vpop.f32.mrf.mxu0
    %v6322 = vadd.f32 0.0, %v6321
    %6323 = vmatmul.f32.gmra.mxu0 %v6212
    %v6324 = vpop.f32.mrf.mxu0
    %v6325 = vadd.f32 0.0, %v6324
    %6326 = vmatmul.f32.gmra.mxu0 %v6215
    %v6327 = vpop.f32.mrf.mxu0
    %v6328 = vadd.f32 0.0, %v6327
    %6329 = vmatmul.f32.gmra.mxu0 %v6218
    %v6330 = vpop.f32.mrf.mxu0
    %v6331 = vadd.f32 0.0, %v6330
    %6332 = vmatmul.f32.gmra.mxu0 %v6221
    %v6333 = vpop.f32.mrf.mxu0
    %v6334 = vadd.f32 0.0, %v6333
    %6335 = vmatmul.f32.gmra.mxu0 %v6224
    %v6336 = vpop.f32.mrf.mxu0
    %v6337 = vadd.f32 0.0, %v6336
    %6338 = vmatmul.f32.gmra.mxu0 %v6227
    %v6339 = vpop.f32.mrf.mxu0
    %v6340 = vadd.f32 0.0, %v6339
    %6341 = vmatmul.f32.gmra.mxu0 %v6230
    %v6342 = vpop.f32.mrf.mxu0
    %v6343 = vadd.f32 0.0, %v6342
    %6344 = vmatmul.f32.gmra.mxu0 %v6233
    %v6345 = vpop.f32.mrf.mxu0
    %v6346 = vadd.f32 0.0, %v6345
    %6347 = vmatmul.f32.gmra.mxu0 %v6236
    %v6348 = vpop.f32.mrf.mxu0
    %v6349 = vadd.f32 0.0, %v6348
    %6350 = vmatmul.f32.gmra.mxu0 %v6239
    %v6351 = vpop.f32.mrf.mxu0
    %v6352 = vadd.f32 0.0, %v6351
    %6353 = vmatmul.f32.gmra.mxu0 %v6242
    %v6354 = vpop.f32.mrf.mxu0
    %v6355 = vadd.f32 0.0, %v6354
    %6356 = vmatmul.f32.gmra.mxu0 %v6245
    %v6357 = vpop.f32.mrf.mxu0
    %v6358 = vadd.f32 0.0, %v6357
    %6359 = vmatmul.f32.gmra.mxu0 %v6248
    %v6360 = vpop.f32.mrf.mxu0
    %v6361 = vadd.f32 0.0, %v6360
    %6362 = vmatmul.f32.gmra.mxu0 %v6251
    %v6363 = vpop.f32.mrf.mxu0
    %v6364 = vadd.f32 0.0, %v6363
    %6365 = vmatmul.f32.gmra.mxu0 %v6254
    %v6366 = vpop.f32.mrf.mxu0
    %v6367 = vadd.f32 0.0, %v6366
    %6368 = vmatmul.f32.gmra.mxu0 %v6257
    %v6369 = vpop.f32.mrf.mxu0
    %v6370 = vadd.f32 0.0, %v6369
    %6371 = vmatmul.f32.gmra.mxu0 %v6260
    %v6372 = vpop.f32.mrf.mxu0
    %v6373 = vadd.f32 0.0, %v6372
    %6374 = vmatmul.f32.gmra.mxu0 %v6263
    %v6375 = vpop.f32.mrf.mxu0
    %v6376 = vadd.f32 0.0, %v6375
    %6377 = vmatmul.f32.gmra.mxu0 %v6266
    %v6378 = vpop.f32.mrf.mxu0
    %v6379 = vadd.f32 0.0, %v6378
    %6380 = vmatmul.f32.gmra.mxu0 %v6269
    %v6381 = vpop.f32.mrf.mxu0
    %v6382 = vadd.f32 0.0, %v6381
    %6383 = vmatmul.f32.gmra.mxu0 %v6272
    %v6384 = vpop.f32.mrf.mxu0
    %v6385 = vadd.f32 0.0, %v6384
    %6386 = vmatmul.f32.gmra.mxu0 %v6275
    %v6387 = vpop.f32.mrf.mxu0
    %v6388 = vadd.f32 0.0, %v6387
    %6389 = vdwg.mxu0
    %v6390 = vadd.f32 %v6114, %v6295
    %v6391 = vadd.f32 %v6115, %v6298
    %v6392 = vadd.f32 %v6116, %v6301
    %v6393 = vadd.f32 %v6117, %v6304
    %v6394 = vadd.f32 %v6118, %v6307
    %v6395 = vadd.f32 %v6119, %v6310
    %v6396 = vadd.f32 %v6120, %v6313
    %v6397 = vadd.f32 %v6121, %v6316
    %v6398 = vadd.f32 %v6122, %v6319
    %v6399 = vadd.f32 %v6123, %v6322
    %v6400 = vadd.f32 %v6124, %v6325
    %v6401 = vadd.f32 %v6125, %v6328
    %v6402 = vadd.f32 %v6126, %v6331
    %v6403 = vadd.f32 %v6127, %v6334
    %v6404 = vadd.f32 %v6128, %v6337
    %v6405 = vadd.f32 %v6129, %v6340
    %v6406 = vadd.f32 %v6130, %v6343
    %v6407 = vadd.f32 %v6131, %v6346
    %v6408 = vadd.f32 %v6132, %v6349
    %v6409 = vadd.f32 %v6133, %v6352
    %v6410 = vadd.f32 %v6134, %v6355
    %v6411 = vadd.f32 %v6135, %v6358
    %v6412 = vadd.f32 %v6136, %v6361
    %v6413 = vadd.f32 %v6137, %v6364
    %v6414 = vadd.f32 %v6138, %v6367
    %v6415 = vadd.f32 %v6139, %v6370
    %v6416 = vadd.f32 %v6140, %v6373
    %v6417 = vadd.f32 %v6141, %v6376
    %v6418 = vadd.f32 %v6142, %v6379
    %v6419 = vadd.f32 %v6143, %v6382
    %v6420 = vadd.f32 %v6144, %v6385
    %v6421 = vadd.f32 %v6145, %v6388
    %v6422 = vld [vmem:[%s4946 + $0x4] sm:$0xff]
    %v6423 = vld [vmem:[%s4946 + $0xc] sm:$0xff]
    %v6424 = vld [vmem:[%s4946 + $0x1c] sm:$0xff]
    %v6425 = vld [vmem:[%s4946 + $0x24] sm:$0xff]
    %v6426 = vld [vmem:[%s4946 + $0x34] sm:$0xff]
    %v6427 = vld [vmem:[%s4946 + $0x3c] sm:$0xff]
    %v6428 = vld [vmem:[%s4946 + $0x4c] sm:$0xff]
    %v6429 = vld [vmem:[%s4946 + $0x54] sm:$0xff]
    %v6430 = vld [vmem:[%s4946 + $0x64] sm:$0xff]
    %v6431 = vld [vmem:[%s4946 + $0x6c] sm:$0xff]
    %v6432 = vld [vmem:[%s4946 + $0x7c] sm:$0xff]
    %v6433 = vld [vmem:[%s4946 + $0x84] sm:$0xff]
    %v6434 = vld [vmem:[%s4946 + $0x94] sm:$0xff]
    %v6435 = vld [vmem:[%s4946 + $0x9c] sm:$0xff]
    %v6436 = vld [vmem:[%s4946 + $0xac] sm:$0xff]
    %v6437 = vld [vmem:[%s4946 + $0xb4] sm:$0xff]
    %v6438 = vld [vmem:[%s4946 + $0xf4] sm:$0xff]
    %v6439 = vld [vmem:[%s4946 + $0xfc] sm:$0xff]
    %v6440 = vld [vmem:[%s4946 + $0x10c] sm:$0xff]
    %v6441 = vld [vmem:[%s4946 + $0x114] sm:$0xff]
    %v6442 = vld [vmem:[%s4946 + $0x124] sm:$0xff]
    %v6443 = vld [vmem:[%s4946 + $0x12c] sm:$0xff]
    %v6444 = vld [vmem:[%s4946 + $0x13c] sm:$0xff]
    %v6445 = vld [vmem:[%s4946 + $0x144] sm:$0xff]
    %v6446 = vld [vmem:[%s4946 + $0x154] sm:$0xff]
    %v6447 = vld [vmem:[%s4946 + $0x15c] sm:$0xff]
    %v6448 = vld [vmem:[%s4946 + $0x16c] sm:$0xff]
    %v6449 = vld [vmem:[%s4946 + $0x174] sm:$0xff]
    %v6450 = vld [vmem:[%s4946 + $0x184] sm:$0xff]
    %v6451 = vld [vmem:[%s4946 + $0x18c] sm:$0xff]
    %v6452 = vld [vmem:[%s4946 + $0x19c] sm:$0xff]
    %v6453 = vld [vmem:[%s4946 + $0x1a4] sm:$0xff]
    %s6454 = scalar_lea.vmem %s3, 80
    %v6455 = vld [vmem:[%s6454] sm:$0xff]
    %v6456 = vld [vmem:[%s6454 + $0x8] sm:$0xff]
    %v6458 = vsel %vm4884, %v6422, 0
    %v6461 = vsel %vm4884, %v6423, 0
    %v6464 = vsel %vm4884, %v6424, 0
    %v6467 = vsel %vm4884, %v6425, 0
    %v6470 = vsel %vm4884, %v6426, 0
    %v6473 = vsel %vm4884, %v6427, 0
    %v6476 = vsel %vm4884, %v6428, 0
    %v6479 = vsel %vm4884, %v6429, 0
    %v6482 = vsel %vm4884, %v6430, 0
    %v6485 = vsel %vm4884, %v6431, 0
    %v6488 = vsel %vm4884, %v6432, 0
    %v6491 = vsel %vm4884, %v6433, 0
    %v6494 = vsel %vm4884, %v6434, 0
    %v6497 = vsel %vm4884, %v6435, 0
    %v6500 = vsel %vm4884, %v6436, 0
    %v6503 = vsel %vm4884, %v6437, 0
    %v6506 = vsel %vm4884, %v6438, 0
    %v6509 = vsel %vm4884, %v6439, 0
    %v6512 = vsel %vm4884, %v6440, 0
    %v6515 = vsel %vm4884, %v6441, 0
    %v6518 = vsel %vm4884, %v6442, 0
    %v6521 = vsel %vm4884, %v6443, 0
    %v6524 = vsel %vm4884, %v6444, 0
    %v6527 = vsel %vm4884, %v6445, 0
    %v6530 = vsel %vm4884, %v6446, 0
    %v6533 = vsel %vm4884, %v6447, 0
    %v6536 = vsel %vm4884, %v6448, 0
    %v6539 = vsel %vm4884, %v6449, 0
    %v6542 = vsel %vm4884, %v6450, 0
    %v6545 = vsel %vm4884, %v6451, 0
    %v6548 = vsel %vm4884, %v6452, 0
    %v6551 = vsel %vm4884, %v6453, 0
    %6553 = vmatpush.msra.mxu0 0.0
    %6554 = vmatpush.msra.mxu0 0.0
    %6555 = vmatpush.msra.mxu0 0.0
    %6556 = vmatpush.msra.mxu0 0.0
    %6557 = vmatpush.msra.mxu0 0.0
    %6558 = vmatpush.msra.mxu0 0.0
    %6559 = vmatpush.msra.mxu0 0.0
    %6560 = vmatpush.msra.mxu0 0.0
    %6561 = vmatpush.msra.mxu0 0.0
    %6562 = vmatpush.msra.mxu0 0.0
    %6563 = vmatpush.msra.mxu0 0.0
    %6564 = vmatpush.msra.mxu0 0.0
    %6565 = vmatpush.msra.mxu0 0.0
    %6566 = vmatpush.msra.mxu0 0.0
    %6567 = vmatpush.msra.mxu0 %v6456
    %6568 = vmatpush.msra.mxu0 %v6455
    %6569 = vmatmul.f32.gmra.mxu0 %v6458
    %v6570 = vpop.f32.mrf.mxu0
    %v6571 = vadd.f32 0.0, %v6570
    %6572 = vmatmul.f32.gmra.mxu0 %v6461
    %v6573 = vpop.f32.mrf.mxu0
    %v6574 = vadd.f32 0.0, %v6573
    %6575 = vmatmul.f32.gmra.mxu0 %v6464
    %v6576 = vpop.f32.mrf.mxu0
    %v6577 = vadd.f32 0.0, %v6576
    %6578 = vmatmul.f32.gmra.mxu0 %v6467
    %v6579 = vpop.f32.mrf.mxu0
    %v6580 = vadd.f32 0.0, %v6579
    %6581 = vmatmul.f32.gmra.mxu0 %v6470
    %v6582 = vpop.f32.mrf.mxu0
    %v6583 = vadd.f32 0.0, %v6582
    %6584 = vmatmul.f32.gmra.mxu0 %v6473
    %v6585 = vpop.f32.mrf.mxu0
    %v6586 = vadd.f32 0.0, %v6585
    %6587 = vmatmul.f32.gmra.mxu0 %v6476
    %v6588 = vpop.f32.mrf.mxu0
    %v6589 = vadd.f32 0.0, %v6588
    %6590 = vmatmul.f32.gmra.mxu0 %v6479
    %v6591 = vpop.f32.mrf.mxu0
    %v6592 = vadd.f32 0.0, %v6591
    %6593 = vmatmul.f32.gmra.mxu0 %v6482
    %v6594 = vpop.f32.mrf.mxu0
    %v6595 = vadd.f32 0.0, %v6594
    %6596 = vmatmul.f32.gmra.mxu0 %v6485
    %v6597 = vpop.f32.mrf.mxu0
    %v6598 = vadd.f32 0.0, %v6597
    %6599 = vmatmul.f32.gmra.mxu0 %v6488
    %v6600 = vpop.f32.mrf.mxu0
    %v6601 = vadd.f32 0.0, %v6600
    %6602 = vmatmul.f32.gmra.mxu0 %v6491
    %v6603 = vpop.f32.mrf.mxu0
    %v6604 = vadd.f32 0.0, %v6603
    %6605 = vmatmul.f32.gmra.mxu0 %v6494
    %v6606 = vpop.f32.mrf.mxu0
    %v6607 = vadd.f32 0.0, %v6606
    %6608 = vmatmul.f32.gmra.mxu0 %v6497
    %v6609 = vpop.f32.mrf.mxu0
    %v6610 = vadd.f32 0.0, %v6609
    %6611 = vmatmul.f32.gmra.mxu0 %v6500
    %v6612 = vpop.f32.mrf.mxu0
    %v6613 = vadd.f32 0.0, %v6612
    %6614 = vmatmul.f32.gmra.mxu0 %v6503
    %v6615 = vpop.f32.mrf.mxu0
    %v6616 = vadd.f32 0.0, %v6615
    %6617 = vmatmul.f32.gmra.mxu0 %v6506
    %v6618 = vpop.f32.mrf.mxu0
    %v6619 = vadd.f32 0.0, %v6618
    %6620 = vmatmul.f32.gmra.mxu0 %v6509
    %v6621 = vpop.f32.mrf.mxu0
    %v6622 = vadd.f32 0.0, %v6621
    %6623 = vmatmul.f32.gmra.mxu0 %v6512
    %v6624 = vpop.f32.mrf.mxu0
    %v6625 = vadd.f32 0.0, %v6624
    %6626 = vmatmul.f32.gmra.mxu0 %v6515
    %v6627 = vpop.f32.mrf.mxu0
    %v6628 = vadd.f32 0.0, %v6627
    %6629 = vmatmul.f32.gmra.mxu0 %v6518
    %v6630 = vpop.f32.mrf.mxu0
    %v6631 = vadd.f32 0.0, %v6630
    %6632 = vmatmul.f32.gmra.mxu0 %v6521
    %v6633 = vpop.f32.mrf.mxu0
    %v6634 = vadd.f32 0.0, %v6633
    %6635 = vmatmul.f32.gmra.mxu0 %v6524
    %v6636 = vpop.f32.mrf.mxu0
    %v6637 = vadd.f32 0.0, %v6636
    %6638 = vmatmul.f32.gmra.mxu0 %v6527
    %v6639 = vpop.f32.mrf.mxu0
    %v6640 = vadd.f32 0.0, %v6639
    %6641 = vmatmul.f32.gmra.mxu0 %v6530
    %v6642 = vpop.f32.mrf.mxu0
    %v6643 = vadd.f32 0.0, %v6642
    %6644 = vmatmul.f32.gmra.mxu0 %v6533
    %v6645 = vpop.f32.mrf.mxu0
    %v6646 = vadd.f32 0.0, %v6645
    %6647 = vmatmul.f32.gmra.mxu0 %v6536
    %v6648 = vpop.f32.mrf.mxu0
    %v6649 = vadd.f32 0.0, %v6648
    %6650 = vmatmul.f32.gmra.mxu0 %v6539
    %v6651 = vpop.f32.mrf.mxu0
    %v6652 = vadd.f32 0.0, %v6651
    %6653 = vmatmul.f32.gmra.mxu0 %v6542
    %v6654 = vpop.f32.mrf.mxu0
    %v6655 = vadd.f32 0.0, %v6654
    %6656 = vmatmul.f32.gmra.mxu0 %v6545
    %v6657 = vpop.f32.mrf.mxu0
    %v6658 = vadd.f32 0.0, %v6657
    %6659 = vmatmul.f32.gmra.mxu0 %v6548
    %v6660 = vpop.f32.mrf.mxu0
    %v6661 = vadd.f32 0.0, %v6660
    %6662 = vmatmul.f32.gmra.mxu0 %v6551
    %v6663 = vpop.f32.mrf.mxu0
    %v6664 = vadd.f32 0.0, %v6663
    %6665 = vdwg.mxu0
    %v6666 = vadd.f32 %v6390, %v6571
    %v6667 = vadd.f32 %v6391, %v6574
    %v6668 = vadd.f32 %v6392, %v6577
    %v6669 = vadd.f32 %v6393, %v6580
    %v6670 = vadd.f32 %v6394, %v6583
    %v6671 = vadd.f32 %v6395, %v6586
    %v6672 = vadd.f32 %v6396, %v6589
    %v6673 = vadd.f32 %v6397, %v6592
    %v6674 = vadd.f32 %v6398, %v6595
    %v6675 = vadd.f32 %v6399, %v6598
    %v6676 = vadd.f32 %v6400, %v6601
    %v6677 = vadd.f32 %v6401, %v6604
    %v6678 = vadd.f32 %v6402, %v6607
    %v6679 = vadd.f32 %v6403, %v6610
    %v6680 = vadd.f32 %v6404, %v6613
    %v6681 = vadd.f32 %v6405, %v6616
    %v6682 = vadd.f32 %v6406, %v6619
    %v6683 = vadd.f32 %v6407, %v6622
    %v6684 = vadd.f32 %v6408, %v6625
    %v6685 = vadd.f32 %v6409, %v6628
    %v6686 = vadd.f32 %v6410, %v6631
    %v6687 = vadd.f32 %v6411, %v6634
    %v6688 = vadd.f32 %v6412, %v6637
    %v6689 = vadd.f32 %v6413, %v6640
    %v6690 = vadd.f32 %v6414, %v6643
    %v6691 = vadd.f32 %v6415, %v6646
    %v6692 = vadd.f32 %v6416, %v6649
    %v6693 = vadd.f32 %v6417, %v6652
    %v6694 = vadd.f32 %v6418, %v6655
    %v6695 = vadd.f32 %v6419, %v6658
    %v6696 = vadd.f32 %v6420, %v6661
    %v6697 = vadd.f32 %v6421, %v6664
    %s6698 = scalar_lea.vmem [#allocation2], 48
    %v6699 = vld [vmem:[%s6698] sm:$0xff]
    %v6700 = vld [vmem:[%s6698 + $0x8] sm:$0xff]
    %v6701 = vld [vmem:[%s6698 + $0x18] sm:$0xff]
    %v6702 = vld [vmem:[%s6698 + $0x20] sm:$0xff]
    %v6703 = vld [vmem:[%s6698 + $0x30] sm:$0xff]
    %v6704 = vld [vmem:[%s6698 + $0x38] sm:$0xff]
    %v6705 = vld [vmem:[%s6698 + $0x48] sm:$0xff]
    %v6706 = vld [vmem:[%s6698 + $0x50] sm:$0xff]
    %v6707 = vld [vmem:[%s6698 + $0x60] sm:$0xff]
    %v6708 = vld [vmem:[%s6698 + $0x68] sm:$0xff]
    %v6709 = vld [vmem:[%s6698 + $0x78] sm:$0xff]
    %v6710 = vld [vmem:[%s6698 + $0x80] sm:$0xff]
    %v6711 = vld [vmem:[%s6698 + $0x90] sm:$0xff]
    %v6712 = vld [vmem:[%s6698 + $0x98] sm:$0xff]
    %v6713 = vld [vmem:[%s6698 + $0xa8] sm:$0xff]
    %v6714 = vld [vmem:[%s6698 + $0xb0] sm:$0xff]
    %v6715 = vld [vmem:[%s6698 + $0xf0] sm:$0xff]
    %v6716 = vld [vmem:[%s6698 + $0xf8] sm:$0xff]
    %v6717 = vld [vmem:[%s6698 + $0x108] sm:$0xff]
    %v6718 = vld [vmem:[%s6698 + $0x110] sm:$0xff]
    %v6719 = vld [vmem:[%s6698 + $0x120] sm:$0xff]
    %v6720 = vld [vmem:[%s6698 + $0x128] sm:$0xff]
    %v6721 = vld [vmem:[%s6698 + $0x138] sm:$0xff]
    %v6722 = vld [vmem:[%s6698 + $0x140] sm:$0xff]
    %v6723 = vld [vmem:[%s6698 + $0x150] sm:$0xff]
    %v6724 = vld [vmem:[%s6698 + $0x158] sm:$0xff]
    %v6725 = vld [vmem:[%s6698 + $0x168] sm:$0xff]
    %v6726 = vld [vmem:[%s6698 + $0x170] sm:$0xff]
    %v6727 = vld [vmem:[%s6698 + $0x180] sm:$0xff]
    %v6728 = vld [vmem:[%s6698 + $0x188] sm:$0xff]
    %v6729 = vld [vmem:[%s6698 + $0x198] sm:$0xff]
    %v6730 = vld [vmem:[%s6698 + $0x1a0] sm:$0xff]
    %s6731 = scalar_lea.vmem %s3, 96
    %v6732 = vld [vmem:[%s6731] sm:$0xff]
    %v6733 = vld [vmem:[%s6731 + $0x8] sm:$0xff]
    %v6735 = vsel %vm4884, %v6699, 0
    %v6738 = vsel %vm4884, %v6700, 0
    %v6741 = vsel %vm4884, %v6701, 0
    %v6744 = vsel %vm4884, %v6702, 0
    %v6747 = vsel %vm4884, %v6703, 0
    %v6750 = vsel %vm4884, %v6704, 0
    %v6753 = vsel %vm4884, %v6705, 0
    %v6756 = vsel %vm4884, %v6706, 0
    %v6759 = vsel %vm4884, %v6707, 0
    %v6762 = vsel %vm4884, %v6708, 0
    %v6765 = vsel %vm4884, %v6709, 0
    %v6768 = vsel %vm4884, %v6710, 0
    %v6771 = vsel %vm4884, %v6711, 0
    %v6774 = vsel %vm4884, %v6712, 0
    %v6777 = vsel %vm4884, %v6713, 0
    %v6780 = vsel %vm4884, %v6714, 0
    %v6783 = vsel %vm4884, %v6715, 0
    %v6786 = vsel %vm4884, %v6716, 0
    %v6789 = vsel %vm4884, %v6717, 0
    %v6792 = vsel %vm4884, %v6718, 0
    %v6795 = vsel %vm4884, %v6719, 0
    %v6798 = vsel %vm4884, %v6720, 0
    %v6801 = vsel %vm4884, %v6721, 0
    %v6804 = vsel %vm4884, %v6722, 0
    %v6807 = vsel %vm4884, %v6723, 0
    %v6810 = vsel %vm4884, %v6724, 0
    %v6813 = vsel %vm4884, %v6725, 0
    %v6816 = vsel %vm4884, %v6726, 0
    %v6819 = vsel %vm4884, %v6727, 0
    %v6822 = vsel %vm4884, %v6728, 0
    %v6825 = vsel %vm4884, %v6729, 0
    %v6828 = vsel %vm4884, %v6730, 0
    %6830 = vmatpush.msra.mxu0 0.0
    %6831 = vmatpush.msra.mxu0 0.0
    %6832 = vmatpush.msra.mxu0 0.0
    %6833 = vmatpush.msra.mxu0 0.0
    %6834 = vmatpush.msra.mxu0 0.0
    %6835 = vmatpush.msra.mxu0 0.0
    %6836 = vmatpush.msra.mxu0 0.0
    %6837 = vmatpush.msra.mxu0 0.0
    %6838 = vmatpush.msra.mxu0 0.0
    %6839 = vmatpush.msra.mxu0 0.0
    %6840 = vmatpush.msra.mxu0 0.0
    %6841 = vmatpush.msra.mxu0 0.0
    %6842 = vmatpush.msra.mxu0 0.0
    %6843 = vmatpush.msra.mxu0 0.0
    %6844 = vmatpush.msra.mxu0 %v6733
    %6845 = vmatpush.msra.mxu0 %v6732
    %6846 = vmatmul.f32.gmra.mxu0 %v6735
    %v6847 = vpop.f32.mrf.mxu0
    %v6848 = vadd.f32 0.0, %v6847
    %6849 = vmatmul.f32.gmra.mxu0 %v6738
    %v6850 = vpop.f32.mrf.mxu0
    %v6851 = vadd.f32 0.0, %v6850
    %6852 = vmatmul.f32.gmra.mxu0 %v6741
    %v6853 = vpop.f32.mrf.mxu0
    %v6854 = vadd.f32 0.0, %v6853
    %6855 = vmatmul.f32.gmra.mxu0 %v6744
    %v6856 = vpop.f32.mrf.mxu0
    %v6857 = vadd.f32 0.0, %v6856
    %6858 = vmatmul.f32.gmra.mxu0 %v6747
    %v6859 = vpop.f32.mrf.mxu0
    %v6860 = vadd.f32 0.0, %v6859
    %6861 = vmatmul.f32.gmra.mxu0 %v6750
    %v6862 = vpop.f32.mrf.mxu0
    %v6863 = vadd.f32 0.0, %v6862
    %6864 = vmatmul.f32.gmra.mxu0 %v6753
    %v6865 = vpop.f32.mrf.mxu0
    %v6866 = vadd.f32 0.0, %v6865
    %6867 = vmatmul.f32.gmra.mxu0 %v6756
    %v6868 = vpop.f32.mrf.mxu0
    %v6869 = vadd.f32 0.0, %v6868
    %6870 = vmatmul.f32.gmra.mxu0 %v6759
    %v6871 = vpop.f32.mrf.mxu0
    %v6872 = vadd.f32 0.0, %v6871
    %6873 = vmatmul.f32.gmra.mxu0 %v6762
    %v6874 = vpop.f32.mrf.mxu0
    %v6875 = vadd.f32 0.0, %v6874
    %6876 = vmatmul.f32.gmra.mxu0 %v6765
    %v6877 = vpop.f32.mrf.mxu0
    %v6878 = vadd.f32 0.0, %v6877
    %6879 = vmatmul.f32.gmra.mxu0 %v6768
    %v6880 = vpop.f32.mrf.mxu0
    %v6881 = vadd.f32 0.0, %v6880
    %6882 = vmatmul.f32.gmra.mxu0 %v6771
    %v6883 = vpop.f32.mrf.mxu0
    %v6884 = vadd.f32 0.0, %v6883
    %6885 = vmatmul.f32.gmra.mxu0 %v6774
    %v6886 = vpop.f32.mrf.mxu0
    %v6887 = vadd.f32 0.0, %v6886
    %6888 = vmatmul.f32.gmra.mxu0 %v6777
    %v6889 = vpop.f32.mrf.mxu0
    %v6890 = vadd.f32 0.0, %v6889
    %6891 = vmatmul.f32.gmra.mxu0 %v6780
    %v6892 = vpop.f32.mrf.mxu0
    %v6893 = vadd.f32 0.0, %v6892
    %6894 = vmatmul.f32.gmra.mxu0 %v6783
    %v6895 = vpop.f32.mrf.mxu0
    %v6896 = vadd.f32 0.0, %v6895
    %6897 = vmatmul.f32.gmra.mxu0 %v6786
    %v6898 = vpop.f32.mrf.mxu0
    %v6899 = vadd.f32 0.0, %v6898
    %6900 = vmatmul.f32.gmra.mxu0 %v6789
    %v6901 = vpop.f32.mrf.mxu0
    %v6902 = vadd.f32 0.0, %v6901
    %6903 = vmatmul.f32.gmra.mxu0 %v6792
    %v6904 = vpop.f32.mrf.mxu0
    %v6905 = vadd.f32 0.0, %v6904
    %6906 = vmatmul.f32.gmra.mxu0 %v6795
    %v6907 = vpop.f32.mrf.mxu0
    %v6908 = vadd.f32 0.0, %v6907
    %6909 = vmatmul.f32.gmra.mxu0 %v6798
    %v6910 = vpop.f32.mrf.mxu0
    %v6911 = vadd.f32 0.0, %v6910
    %6912 = vmatmul.f32.gmra.mxu0 %v6801
    %v6913 = vpop.f32.mrf.mxu0
    %v6914 = vadd.f32 0.0, %v6913
    %6915 = vmatmul.f32.gmra.mxu0 %v6804
    %v6916 = vpop.f32.mrf.mxu0
    %v6917 = vadd.f32 0.0, %v6916
    %6918 = vmatmul.f32.gmra.mxu0 %v6807
    %v6919 = vpop.f32.mrf.mxu0
    %v6920 = vadd.f32 0.0, %v6919
    %6921 = vmatmul.f32.gmra.mxu0 %v6810
    %v6922 = vpop.f32.mrf.mxu0
    %v6923 = vadd.f32 0.0, %v6922
    %6924 = vmatmul.f32.gmra.mxu0 %v6813
    %v6925 = vpop.f32.mrf.mxu0
    %v6926 = vadd.f32 0.0, %v6925
    %6927 = vmatmul.f32.gmra.mxu0 %v6816
    %v6928 = vpop.f32.mrf.mxu0
    %v6929 = vadd.f32 0.0, %v6928
    %6930 = vmatmul.f32.gmra.mxu0 %v6819
    %v6931 = vpop.f32.mrf.mxu0
    %v6932 = vadd.f32 0.0, %v6931
    %6933 = vmatmul.f32.gmra.mxu0 %v6822
    %v6934 = vpop.f32.mrf.mxu0
    %v6935 = vadd.f32 0.0, %v6934
    %6936 = vmatmul.f32.gmra.mxu0 %v6825
    %v6937 = vpop.f32.mrf.mxu0
    %v6938 = vadd.f32 0.0, %v6937
    %6939 = vmatmul.f32.gmra.mxu0 %v6828
    %v6940 = vpop.f32.mrf.mxu0
    %v6941 = vadd.f32 0.0, %v6940
    %6942 = vdwg.mxu0
    %v6943 = vadd.f32 %v6666, %v6848
    %v6944 = vadd.f32 %v6667, %v6851
    %v6945 = vadd.f32 %v6668, %v6854
    %v6946 = vadd.f32 %v6669, %v6857
    %v6947 = vadd.f32 %v6670, %v6860
    %v6948 = vadd.f32 %v6671, %v6863
    %v6949 = vadd.f32 %v6672, %v6866
    %v6950 = vadd.f32 %v6673, %v6869
    %v6951 = vadd.f32 %v6674, %v6872
    %v6952 = vadd.f32 %v6675, %v6875
    %v6953 = vadd.f32 %v6676, %v6878
    %v6954 = vadd.f32 %v6677, %v6881
    %v6955 = vadd.f32 %v6678, %v6884
    %v6956 = vadd.f32 %v6679, %v6887
    %v6957 = vadd.f32 %v6680, %v6890
    %v6958 = vadd.f32 %v6681, %v6893
    %v6959 = vadd.f32 %v6682, %v6896
    %v6960 = vadd.f32 %v6683, %v6899
    %v6961 = vadd.f32 %v6684, %v6902
    %v6962 = vadd.f32 %v6685, %v6905
    %v6963 = vadd.f32 %v6686, %v6908
    %v6964 = vadd.f32 %v6687, %v6911
    %v6965 = vadd.f32 %v6688, %v6914
    %v6966 = vadd.f32 %v6689, %v6917
    %v6967 = vadd.f32 %v6690, %v6920
    %v6968 = vadd.f32 %v6691, %v6923
    %v6969 = vadd.f32 %v6692, %v6926
    %v6970 = vadd.f32 %v6693, %v6929
    %v6971 = vadd.f32 %v6694, %v6932
    %v6972 = vadd.f32 %v6695, %v6935
    %v6973 = vadd.f32 %v6696, %v6938
    %v6974 = vadd.f32 %v6697, %v6941
    %v6975 = vld [vmem:[%s6698 + $0x2] sm:$0xff]
    %v6976 = vld [vmem:[%s6698 + $0xa] sm:$0xff]
    %v6977 = vld [vmem:[%s6698 + $0x1a] sm:$0xff]
    %v6978 = vld [vmem:[%s6698 + $0x22] sm:$0xff]
    %v6979 = vld [vmem:[%s6698 + $0x32] sm:$0xff]
    %v6980 = vld [vmem:[%s6698 + $0x3a] sm:$0xff]
    %v6981 = vld [vmem:[%s6698 + $0x4a] sm:$0xff]
    %v6982 = vld [vmem:[%s6698 + $0x52] sm:$0xff]
    %v6983 = vld [vmem:[%s6698 + $0x62] sm:$0xff]
    %v6984 = vld [vmem:[%s6698 + $0x6a] sm:$0xff]
    %v6985 = vld [vmem:[%s6698 + $0x7a] sm:$0xff]
    %v6986 = vld [vmem:[%s6698 + $0x82] sm:$0xff]
    %v6987 = vld [vmem:[%s6698 + $0x92] sm:$0xff]
    %v6988 = vld [vmem:[%s6698 + $0x9a] sm:$0xff]
    %v6989 = vld [vmem:[%s6698 + $0xaa] sm:$0xff]
    %v6990 = vld [vmem:[%s6698 + $0xb2] sm:$0xff]
    %v6991 = vld [vmem:[%s6698 + $0xf2] sm:$0xff]
    %v6992 = vld [vmem:[%s6698 + $0xfa] sm:$0xff]
    %v6993 = vld [vmem:[%s6698 + $0x10a] sm:$0xff]
    %v6994 = vld [vmem:[%s6698 + $0x112] sm:$0xff]
    %v6995 = vld [vmem:[%s6698 + $0x122] sm:$0xff]
    %v6996 = vld [vmem:[%s6698 + $0x12a] sm:$0xff]
    %v6997 = vld [vmem:[%s6698 + $0x13a] sm:$0xff]
    %v6998 = vld [vmem:[%s6698 + $0x142] sm:$0xff]
    %v6999 = vld [vmem:[%s6698 + $0x152] sm:$0xff]
    %v7000 = vld [vmem:[%s6698 + $0x15a] sm:$0xff]
    %v7001 = vld [vmem:[%s6698 + $0x16a] sm:$0xff]
    %v7002 = vld [vmem:[%s6698 + $0x172] sm:$0xff]
    %v7003 = vld [vmem:[%s6698 + $0x182] sm:$0xff]
    %v7004 = vld [vmem:[%s6698 + $0x18a] sm:$0xff]
    %v7005 = vld [vmem:[%s6698 + $0x19a] sm:$0xff]
    %v7006 = vld [vmem:[%s6698 + $0x1a2] sm:$0xff]
    %s7007 = scalar_lea.vmem %s3, 112
    %v7008 = vld [vmem:[%s7007] sm:$0xff]
    %v7009 = vld [vmem:[%s7007 + $0x8] sm:$0xff]
    %v7011 = vsel %vm4884, %v6975, 0
    %v7014 = vsel %vm4884, %v6976, 0
    %v7017 = vsel %vm4884, %v6977, 0
    %v7020 = vsel %vm4884, %v6978, 0
    %v7023 = vsel %vm4884, %v6979, 0
    %v7026 = vsel %vm4884, %v6980, 0
    %v7029 = vsel %vm4884, %v6981, 0
    %v7032 = vsel %vm4884, %v6982, 0
    %v7035 = vsel %vm4884, %v6983, 0
    %v7038 = vsel %vm4884, %v6984, 0
    %v7041 = vsel %vm4884, %v6985, 0
    %v7044 = vsel %vm4884, %v6986, 0
    %v7047 = vsel %vm4884, %v6987, 0
    %v7050 = vsel %vm4884, %v6988, 0
    %v7053 = vsel %vm4884, %v6989, 0
    %v7056 = vsel %vm4884, %v6990, 0
    %v7059 = vsel %vm4884, %v6991, 0
    %v7062 = vsel %vm4884, %v6992, 0
    %v7065 = vsel %vm4884, %v6993, 0
    %v7068 = vsel %vm4884, %v6994, 0
    %v7071 = vsel %vm4884, %v6995, 0
    %v7074 = vsel %vm4884, %v6996, 0
    %v7077 = vsel %vm4884, %v6997, 0
    %v7080 = vsel %vm4884, %v6998, 0
    %v7083 = vsel %vm4884, %v6999, 0
    %v7086 = vsel %vm4884, %v7000, 0
    %v7089 = vsel %vm4884, %v7001, 0
    %v7092 = vsel %vm4884, %v7002, 0
    %v7095 = vsel %vm4884, %v7003, 0
    %v7098 = vsel %vm4884, %v7004, 0
    %v7101 = vsel %vm4884, %v7005, 0
    %v7104 = vsel %vm4884, %v7006, 0
    %7106 = vmatpush.msra.mxu0 0.0
    %7107 = vmatpush.msra.mxu0 0.0
    %7108 = vmatpush.msra.mxu0 0.0
    %7109 = vmatpush.msra.mxu0 0.0
    %7110 = vmatpush.msra.mxu0 0.0
    %7111 = vmatpush.msra.mxu0 0.0
    %7112 = vmatpush.msra.mxu0 0.0
    %7113 = vmatpush.msra.mxu0 0.0
    %7114 = vmatpush.msra.mxu0 0.0
    %7115 = vmatpush.msra.mxu0 0.0
    %7116 = vmatpush.msra.mxu0 0.0
    %7117 = vmatpush.msra.mxu0 0.0
    %7118 = vmatpush.msra.mxu0 0.0
    %7119 = vmatpush.msra.mxu0 0.0
    %7120 = vmatpush.msra.mxu0 %v7009
    %7121 = vmatpush.msra.mxu0 %v7008
    %7122 = vmatmul.f32.gmra.mxu0 %v7011
    %v7123 = vpop.f32.mrf.mxu0
    %v7124 = vadd.f32 0.0, %v7123
    %7125 = vmatmul.f32.gmra.mxu0 %v7014
    %v7126 = vpop.f32.mrf.mxu0
    %v7127 = vadd.f32 0.0, %v7126
    %7128 = vmatmul.f32.gmra.mxu0 %v7017
    %v7129 = vpop.f32.mrf.mxu0
    %v7130 = vadd.f32 0.0, %v7129
    %7131 = vmatmul.f32.gmra.mxu0 %v7020
    %v7132 = vpop.f32.mrf.mxu0
    %v7133 = vadd.f32 0.0, %v7132
    %7134 = vmatmul.f32.gmra.mxu0 %v7023
    %v7135 = vpop.f32.mrf.mxu0
    %v7136 = vadd.f32 0.0, %v7135
    %7137 = vmatmul.f32.gmra.mxu0 %v7026
    %v7138 = vpop.f32.mrf.mxu0
    %v7139 = vadd.f32 0.0, %v7138
    %7140 = vmatmul.f32.gmra.mxu0 %v7029
    %v7141 = vpop.f32.mrf.mxu0
    %v7142 = vadd.f32 0.0, %v7141
    %7143 = vmatmul.f32.gmra.mxu0 %v7032
    %v7144 = vpop.f32.mrf.mxu0
    %v7145 = vadd.f32 0.0, %v7144
    %7146 = vmatmul.f32.gmra.mxu0 %v7035
    %v7147 = vpop.f32.mrf.mxu0
    %v7148 = vadd.f32 0.0, %v7147
    %7149 = vmatmul.f32.gmra.mxu0 %v7038
    %v7150 = vpop.f32.mrf.mxu0
    %v7151 = vadd.f32 0.0, %v7150
    %7152 = vmatmul.f32.gmra.mxu0 %v7041
    %v7153 = vpop.f32.mrf.mxu0
    %v7154 = vadd.f32 0.0, %v7153
    %7155 = vmatmul.f32.gmra.mxu0 %v7044
    %v7156 = vpop.f32.mrf.mxu0
    %v7157 = vadd.f32 0.0, %v7156
    %7158 = vmatmul.f32.gmra.mxu0 %v7047
    %v7159 = vpop.f32.mrf.mxu0
    %v7160 = vadd.f32 0.0, %v7159
    %7161 = vmatmul.f32.gmra.mxu0 %v7050
    %v7162 = vpop.f32.mrf.mxu0
    %v7163 = vadd.f32 0.0, %v7162
    %7164 = vmatmul.f32.gmra.mxu0 %v7053
    %v7165 = vpop.f32.mrf.mxu0
    %v7166 = vadd.f32 0.0, %v7165
    %7167 = vmatmul.f32.gmra.mxu0 %v7056
    %v7168 = vpop.f32.mrf.mxu0
    %v7169 = vadd.f32 0.0, %v7168
    %7170 = vmatmul.f32.gmra.mxu0 %v7059
    %v7171 = vpop.f32.mrf.mxu0
    %v7172 = vadd.f32 0.0, %v7171
    %7173 = vmatmul.f32.gmra.mxu0 %v7062
    %v7174 = vpop.f32.mrf.mxu0
    %v7175 = vadd.f32 0.0, %v7174
    %7176 = vmatmul.f32.gmra.mxu0 %v7065
    %v7177 = vpop.f32.mrf.mxu0
    %v7178 = vadd.f32 0.0, %v7177
    %7179 = vmatmul.f32.gmra.mxu0 %v7068
    %v7180 = vpop.f32.mrf.mxu0
    %v7181 = vadd.f32 0.0, %v7180
    %7182 = vmatmul.f32.gmra.mxu0 %v7071
    %v7183 = vpop.f32.mrf.mxu0
    %v7184 = vadd.f32 0.0, %v7183
    %7185 = vmatmul.f32.gmra.mxu0 %v7074
    %v7186 = vpop.f32.mrf.mxu0
    %v7187 = vadd.f32 0.0, %v7186
    %7188 = vmatmul.f32.gmra.mxu0 %v7077
    %v7189 = vpop.f32.mrf.mxu0
    %v7190 = vadd.f32 0.0, %v7189
    %7191 = vmatmul.f32.gmra.mxu0 %v7080
    %v7192 = vpop.f32.mrf.mxu0
    %v7193 = vadd.f32 0.0, %v7192
    %7194 = vmatmul.f32.gmra.mxu0 %v7083
    %v7195 = vpop.f32.mrf.mxu0
    %v7196 = vadd.f32 0.0, %v7195
    %7197 = vmatmul.f32.gmra.mxu0 %v7086
    %v7198 = vpop.f32.mrf.mxu0
    %v7199 = vadd.f32 0.0, %v7198
    %7200 = vmatmul.f32.gmra.mxu0 %v7089
    %v7201 = vpop.f32.mrf.mxu0
    %v7202 = vadd.f32 0.0, %v7201
    %7203 = vmatmul.f32.gmra.mxu0 %v7092
    %v7204 = vpop.f32.mrf.mxu0
    %v7205 = vadd.f32 0.0, %v7204
    %7206 = vmatmul.f32.gmra.mxu0 %v7095
    %v7207 = vpop.f32.mrf.mxu0
    %v7208 = vadd.f32 0.0, %v7207
    %7209 = vmatmul.f32.gmra.mxu0 %v7098
    %v7210 = vpop.f32.mrf.mxu0
    %v7211 = vadd.f32 0.0, %v7210
    %7212 = vmatmul.f32.gmra.mxu0 %v7101
    %v7213 = vpop.f32.mrf.mxu0
    %v7214 = vadd.f32 0.0, %v7213
    %7215 = vmatmul.f32.gmra.mxu0 %v7104
    %v7216 = vpop.f32.mrf.mxu0
    %v7217 = vadd.f32 0.0, %v7216
    %7218 = vdwg.mxu0
    %v7219 = vadd.f32 %v6943, %v7124
    %v7220 = vadd.f32 %v6944, %v7127
    %v7221 = vadd.f32 %v6945, %v7130
    %v7222 = vadd.f32 %v6946, %v7133
    %v7223 = vadd.f32 %v6947, %v7136
    %v7224 = vadd.f32 %v6948, %v7139
    %v7225 = vadd.f32 %v6949, %v7142
    %v7226 = vadd.f32 %v6950, %v7145
    %v7227 = vadd.f32 %v6951, %v7148
    %v7228 = vadd.f32 %v6952, %v7151
    %v7229 = vadd.f32 %v6953, %v7154
    %v7230 = vadd.f32 %v6954, %v7157
    %v7231 = vadd.f32 %v6955, %v7160
    %v7232 = vadd.f32 %v6956, %v7163
    %v7233 = vadd.f32 %v6957, %v7166
    %v7234 = vadd.f32 %v6958, %v7169
    %v7235 = vadd.f32 %v6959, %v7172
    %v7236 = vadd.f32 %v6960, %v7175
    %v7237 = vadd.f32 %v6961, %v7178
    %v7238 = vadd.f32 %v6962, %v7181
    %v7239 = vadd.f32 %v6963, %v7184
    %v7240 = vadd.f32 %v6964, %v7187
    %v7241 = vadd.f32 %v6965, %v7190
    %v7242 = vadd.f32 %v6966, %v7193
    %v7243 = vadd.f32 %v6967, %v7196
    %v7244 = vadd.f32 %v6968, %v7199
    %v7245 = vadd.f32 %v6969, %v7202
    %v7246 = vadd.f32 %v6970, %v7205
    %v7247 = vadd.f32 %v6971, %v7208
    %v7248 = vadd.f32 %v6972, %v7211
    %v7249 = vadd.f32 %v6973, %v7214
    %v7250 = vadd.f32 %v6974, %v7217
    %v7251 = vld [vmem:[%s6698 + $0x4] sm:$0xff]
    %v7252 = vld [vmem:[%s6698 + $0xc] sm:$0xff]
    %v7253 = vld [vmem:[%s6698 + $0x1c] sm:$0xff]
    %v7254 = vld [vmem:[%s6698 + $0x24] sm:$0xff]
    %v7255 = vld [vmem:[%s6698 + $0x34] sm:$0xff]
    %v7256 = vld [vmem:[%s6698 + $0x3c] sm:$0xff]
    %v7257 = vld [vmem:[%s6698 + $0x4c] sm:$0xff]
    %v7258 = vld [vmem:[%s6698 + $0x54] sm:$0xff]
    %v7259 = vld [vmem:[%s6698 + $0x64] sm:$0xff]
    %v7260 = vld [vmem:[%s6698 + $0x6c] sm:$0xff]
    %v7261 = vld [vmem:[%s6698 + $0x7c] sm:$0xff]
    %v7262 = vld [vmem:[%s6698 + $0x84] sm:$0xff]
    %v7263 = vld [vmem:[%s6698 + $0x94] sm:$0xff]
    %v7264 = vld [vmem:[%s6698 + $0x9c] sm:$0xff]
    %v7265 = vld [vmem:[%s6698 + $0xac] sm:$0xff]
    %v7266 = vld [vmem:[%s6698 + $0xb4] sm:$0xff]
    %v7267 = vld [vmem:[%s6698 + $0xf4] sm:$0xff]
    %v7268 = vld [vmem:[%s6698 + $0xfc] sm:$0xff]
    %v7269 = vld [vmem:[%s6698 + $0x10c] sm:$0xff]
    %v7270 = vld [vmem:[%s6698 + $0x114] sm:$0xff]
    %v7271 = vld [vmem:[%s6698 + $0x124] sm:$0xff]
    %v7272 = vld [vmem:[%s6698 + $0x12c] sm:$0xff]
    %v7273 = vld [vmem:[%s6698 + $0x13c] sm:$0xff]
    %v7274 = vld [vmem:[%s6698 + $0x144] sm:$0xff]
    %v7275 = vld [vmem:[%s6698 + $0x154] sm:$0xff]
    %v7276 = vld [vmem:[%s6698 + $0x15c] sm:$0xff]
    %v7277 = vld [vmem:[%s6698 + $0x16c] sm:$0xff]
    %v7278 = vld [vmem:[%s6698 + $0x174] sm:$0xff]
    %v7279 = vld [vmem:[%s6698 + $0x184] sm:$0xff]
    %v7280 = vld [vmem:[%s6698 + $0x18c] sm:$0xff]
    %v7281 = vld [vmem:[%s6698 + $0x19c] sm:$0xff]
    %v7282 = vld [vmem:[%s6698 + $0x1a4] sm:$0xff]
    %s7283 = scalar_lea.vmem %s3, 128
    %v7284 = vld [vmem:[%s7283] sm:$0xff]
    %v7285 = vld [vmem:[%s7283 + $0x8] sm:$0xff]
    %v7287 = vsel %vm4884, %v7251, 0
    %v7290 = vsel %vm4884, %v7252, 0
    %v7293 = vsel %vm4884, %v7253, 0
    %v7296 = vsel %vm4884, %v7254, 0
    %v7299 = vsel %vm4884, %v7255, 0
    %v7302 = vsel %vm4884, %v7256, 0
    %v7305 = vsel %vm4884, %v7257, 0
    %v7308 = vsel %vm4884, %v7258, 0
    %v7311 = vsel %vm4884, %v7259, 0
    %v7314 = vsel %vm4884, %v7260, 0
    %v7317 = vsel %vm4884, %v7261, 0
    %v7320 = vsel %vm4884, %v7262, 0
    %v7323 = vsel %vm4884, %v7263, 0
    %v7326 = vsel %vm4884, %v7264, 0
    %v7329 = vsel %vm4884, %v7265, 0
    %v7332 = vsel %vm4884, %v7266, 0
    %v7335 = vsel %vm4884, %v7267, 0
    %v7338 = vsel %vm4884, %v7268, 0
    %v7341 = vsel %vm4884, %v7269, 0
    %v7344 = vsel %vm4884, %v7270, 0
    %v7347 = vsel %vm4884, %v7271, 0
    %v7350 = vsel %vm4884, %v7272, 0
    %v7353 = vsel %vm4884, %v7273, 0
    %v7356 = vsel %vm4884, %v7274, 0
    %v7359 = vsel %vm4884, %v7275, 0
    %v7362 = vsel %vm4884, %v7276, 0
    %v7365 = vsel %vm4884, %v7277, 0
    %v7368 = vsel %vm4884, %v7278, 0
    %v7371 = vsel %vm4884, %v7279, 0
    %v7374 = vsel %vm4884, %v7280, 0
    %v7377 = vsel %vm4884, %v7281, 0
    %v7380 = vsel %vm4884, %v7282, 0
    %7382 = vmatpush.msra.mxu0 0.0
    %7383 = vmatpush.msra.mxu0 0.0
    %7384 = vmatpush.msra.mxu0 0.0
    %7385 = vmatpush.msra.mxu0 0.0
    %7386 = vmatpush.msra.mxu0 0.0
    %7387 = vmatpush.msra.mxu0 0.0
    %7388 = vmatpush.msra.mxu0 0.0
    %7389 = vmatpush.msra.mxu0 0.0
    %7390 = vmatpush.msra.mxu0 0.0
    %7391 = vmatpush.msra.mxu0 0.0
    %7392 = vmatpush.msra.mxu0 0.0
    %7393 = vmatpush.msra.mxu0 0.0
    %7394 = vmatpush.msra.mxu0 0.0
    %7395 = vmatpush.msra.mxu0 0.0
    %7396 = vmatpush.msra.mxu0 %v7285
    %7397 = vmatpush.msra.mxu0 %v7284
    %7398 = vmatmul.f32.gmra.mxu0 %v7287
    %v7399 = vpop.f32.mrf.mxu0
    %v7400 = vadd.f32 0.0, %v7399
    %7401 = vmatmul.f32.gmra.mxu0 %v7290
    %v7402 = vpop.f32.mrf.mxu0
    %v7403 = vadd.f32 0.0, %v7402
    %7404 = vmatmul.f32.gmra.mxu0 %v7293
    %v7405 = vpop.f32.mrf.mxu0
    %v7406 = vadd.f32 0.0, %v7405
    %7407 = vmatmul.f32.gmra.mxu0 %v7296
    %v7408 = vpop.f32.mrf.mxu0
    %v7409 = vadd.f32 0.0, %v7408
    %7410 = vmatmul.f32.gmra.mxu0 %v7299
    %v7411 = vpop.f32.mrf.mxu0
    %v7412 = vadd.f32 0.0, %v7411
    %7413 = vmatmul.f32.gmra.mxu0 %v7302
    %v7414 = vpop.f32.mrf.mxu0
    %v7415 = vadd.f32 0.0, %v7414
    %7416 = vmatmul.f32.gmra.mxu0 %v7305
    %v7417 = vpop.f32.mrf.mxu0
    %v7418 = vadd.f32 0.0, %v7417
    %7419 = vmatmul.f32.gmra.mxu0 %v7308
    %v7420 = vpop.f32.mrf.mxu0
    %v7421 = vadd.f32 0.0, %v7420
    %7422 = vmatmul.f32.gmra.mxu0 %v7311
    %v7423 = vpop.f32.mrf.mxu0
    %v7424 = vadd.f32 0.0, %v7423
    %7425 = vmatmul.f32.gmra.mxu0 %v7314
    %v7426 = vpop.f32.mrf.mxu0
    %v7427 = vadd.f32 0.0, %v7426
    %7428 = vmatmul.f32.gmra.mxu0 %v7317
    %v7429 = vpop.f32.mrf.mxu0
    %v7430 = vadd.f32 0.0, %v7429
    %7431 = vmatmul.f32.gmra.mxu0 %v7320
    %v7432 = vpop.f32.mrf.mxu0
    %v7433 = vadd.f32 0.0, %v7432
    %7434 = vmatmul.f32.gmra.mxu0 %v7323
    %v7435 = vpop.f32.mrf.mxu0
    %v7436 = vadd.f32 0.0, %v7435
    %7437 = vmatmul.f32.gmra.mxu0 %v7326
    %v7438 = vpop.f32.mrf.mxu0
    %v7439 = vadd.f32 0.0, %v7438
    %7440 = vmatmul.f32.gmra.mxu0 %v7329
    %v7441 = vpop.f32.mrf.mxu0
    %v7442 = vadd.f32 0.0, %v7441
    %7443 = vmatmul.f32.gmra.mxu0 %v7332
    %v7444 = vpop.f32.mrf.mxu0
    %v7445 = vadd.f32 0.0, %v7444
    %7446 = vmatmul.f32.gmra.mxu0 %v7335
    %v7447 = vpop.f32.mrf.mxu0
    %v7448 = vadd.f32 0.0, %v7447
    %7449 = vmatmul.f32.gmra.mxu0 %v7338
    %v7450 = vpop.f32.mrf.mxu0
    %v7451 = vadd.f32 0.0, %v7450
    %7452 = vmatmul.f32.gmra.mxu0 %v7341
    %v7453 = vpop.f32.mrf.mxu0
    %v7454 = vadd.f32 0.0, %v7453
    %7455 = vmatmul.f32.gmra.mxu0 %v7344
    %v7456 = vpop.f32.mrf.mxu0
    %v7457 = vadd.f32 0.0, %v7456
    %7458 = vmatmul.f32.gmra.mxu0 %v7347
    %v7459 = vpop.f32.mrf.mxu0
    %v7460 = vadd.f32 0.0, %v7459
    %7461 = vmatmul.f32.gmra.mxu0 %v7350
    %v7462 = vpop.f32.mrf.mxu0
    %v7463 = vadd.f32 0.0, %v7462
    %7464 = vmatmul.f32.gmra.mxu0 %v7353
    %v7465 = vpop.f32.mrf.mxu0
    %v7466 = vadd.f32 0.0, %v7465
    %7467 = vmatmul.f32.gmra.mxu0 %v7356
    %v7468 = vpop.f32.mrf.mxu0
    %v7469 = vadd.f32 0.0, %v7468
    %7470 = vmatmul.f32.gmra.mxu0 %v7359
    %v7471 = vpop.f32.mrf.mxu0
    %v7472 = vadd.f32 0.0, %v7471
    %7473 = vmatmul.f32.gmra.mxu0 %v7362
    %v7474 = vpop.f32.mrf.mxu0
    %v7475 = vadd.f32 0.0, %v7474
    %7476 = vmatmul.f32.gmra.mxu0 %v7365
    %v7477 = vpop.f32.mrf.mxu0
    %v7478 = vadd.f32 0.0, %v7477
    %7479 = vmatmul.f32.gmra.mxu0 %v7368
    %v7480 = vpop.f32.mrf.mxu0
    %v7481 = vadd.f32 0.0, %v7480
    %7482 = vmatmul.f32.gmra.mxu0 %v7371
    %v7483 = vpop.f32.mrf.mxu0
    %v7484 = vadd.f32 0.0, %v7483
    %7485 = vmatmul.f32.gmra.mxu0 %v7374
    %v7486 = vpop.f32.mrf.mxu0
    %v7487 = vadd.f32 0.0, %v7486
    %7488 = vmatmul.f32.gmra.mxu0 %v7377
    %v7489 = vpop.f32.mrf.mxu0
    %v7490 = vadd.f32 0.0, %v7489
    %7491 = vmatmul.f32.gmra.mxu0 %v7380
    %v7492 = vpop.f32.mrf.mxu0
    %v7493 = vadd.f32 0.0, %v7492
    %7494 = vdwg.mxu0
    %v7495 = vadd.f32 %v7219, %v7400
    %v7496 = vadd.f32 %v7220, %v7403
    %v7497 = vadd.f32 %v7221, %v7406
    %v7498 = vadd.f32 %v7222, %v7409
    %v7499 = vadd.f32 %v7223, %v7412
    %v7500 = vadd.f32 %v7224, %v7415
    %v7501 = vadd.f32 %v7225, %v7418
    %v7502 = vadd.f32 %v7226, %v7421
    %v7503 = vadd.f32 %v7227, %v7424
    %v7504 = vadd.f32 %v7228, %v7427
    %v7505 = vadd.f32 %v7229, %v7430
    %v7506 = vadd.f32 %v7230, %v7433
    %v7507 = vadd.f32 %v7231, %v7436
    %v7508 = vadd.f32 %v7232, %v7439
    %v7509 = vadd.f32 %v7233, %v7442
    %v7510 = vadd.f32 %v7234, %v7445
    %v7511 = vadd.f32 %v7235, %v7448
    %v7512 = vadd.f32 %v7236, %v7451
    %v7513 = vadd.f32 %v7237, %v7454
    %v7514 = vadd.f32 %v7238, %v7457
    %v7515 = vadd.f32 %v7239, %v7460
    %v7516 = vadd.f32 %v7240, %v7463
    %v7517 = vadd.f32 %v7241, %v7466
    %v7518 = vadd.f32 %v7242, %v7469
    %v7519 = vadd.f32 %v7243, %v7472
    %v7520 = vadd.f32 %v7244, %v7475
    %v7521 = vadd.f32 %v7245, %v7478
    %v7522 = vadd.f32 %v7246, %v7481
    %v7523 = vadd.f32 %v7247, %v7484
    %v7524 = vadd.f32 %v7248, %v7487
    %v7525 = vadd.f32 %v7249, %v7490
    %v7526 = vadd.f32 %v7250, %v7493
    %v7527 = vld [vmem:[%s4] sm:$0x1]
    %v7529 = vperm.slane %v7527, 0
    %v7531 = vadd.f32 %v7495, %v7529
    %v7532 = vadd.f32 %v7496, %v7529
    %v7533 = vadd.f32 %v7497, %v7529
    %v7534 = vadd.f32 %v7498, %v7529
    %v7535 = vadd.f32 %v7499, %v7529
    %v7536 = vadd.f32 %v7500, %v7529
    %v7537 = vadd.f32 %v7501, %v7529
    %v7538 = vadd.f32 %v7502, %v7529
    %v7539 = vadd.f32 %v7503, %v7529
    %v7540 = vadd.f32 %v7504, %v7529
    %v7541 = vadd.f32 %v7505, %v7529
    %v7542 = vadd.f32 %v7506, %v7529
    %v7543 = vadd.f32 %v7507, %v7529
    %v7544 = vadd.f32 %v7508, %v7529
    %v7545 = vadd.f32 %v7509, %v7529
    %v7546 = vadd.f32 %v7510, %v7529
    %v7547 = vadd.f32 %v7511, %v7529
    %v7548 = vadd.f32 %v7512, %v7529
    %v7549 = vadd.f32 %v7513, %v7529
    %v7550 = vadd.f32 %v7514, %v7529
    %v7551 = vadd.f32 %v7515, %v7529
    %v7552 = vadd.f32 %v7516, %v7529
    %v7553 = vadd.f32 %v7517, %v7529
    %v7554 = vadd.f32 %v7518, %v7529
    %v7555 = vadd.f32 %v7519, %v7529
    %v7556 = vadd.f32 %v7520, %v7529
    %v7557 = vadd.f32 %v7521, %v7529
    %v7558 = vadd.f32 %v7522, %v7529
    %v7559 = vadd.f32 %v7523, %v7529
    %v7560 = vadd.f32 %v7524, %v7529
    %v7561 = vadd.f32 %v7525, %v7529
    %v7562 = vadd.f32 %v7526, %v7529
    %v7563 = vmax.f32 %v7531, 0.0
    %v7564 = vmax.f32 %v7532, 0.0
    %v7565 = vmax.f32 %v7533, 0.0
    %v7566 = vmax.f32 %v7534, 0.0
    %v7567 = vmax.f32 %v7535, 0.0
    %v7568 = vmax.f32 %v7536, 0.0
    %v7569 = vmax.f32 %v7537, 0.0
    %v7570 = vmax.f32 %v7538, 0.0
    %v7571 = vmax.f32 %v7539, 0.0
    %v7572 = vmax.f32 %v7540, 0.0
    %v7573 = vmax.f32 %v7541, 0.0
    %v7574 = vmax.f32 %v7542, 0.0
    %v7575 = vmax.f32 %v7543, 0.0
    %v7576 = vmax.f32 %v7544, 0.0
    %v7577 = vmax.f32 %v7545, 0.0
    %v7578 = vmax.f32 %v7546, 0.0
    %v7579 = vmax.f32 %v7547, 0.0
    %v7580 = vmax.f32 %v7548, 0.0
    %v7581 = vmax.f32 %v7549, 0.0
    %v7582 = vmax.f32 %v7550, 0.0
    %v7583 = vmax.f32 %v7551, 0.0
    %v7584 = vmax.f32 %v7552, 0.0
    %v7585 = vmax.f32 %v7553, 0.0
    %v7586 = vmax.f32 %v7554, 0.0
    %v7587 = vmax.f32 %v7555, 0.0
    %v7588 = vmax.f32 %v7556, 0.0
    %v7589 = vmax.f32 %v7557, 0.0
    %v7590 = vmax.f32 %v7558, 0.0
    %v7591 = vmax.f32 %v7559, 0.0
    %v7592 = vmax.f32 %v7560, 0.0
    %v7593 = vmax.f32 %v7561, 0.0
    %v7594 = vmax.f32 %v7562, 0.0
    %v7595 = vmax.f32 %v7563, %v7565
    %v7596 = vmax.f32 %v7564, %v7566
    %v7597 = vmax.f32 %v7567, %v7569
    %v7598 = vmax.f32 %v7568, %v7570
    %v7599 = vmax.f32 %v7571, %v7573
    %v7600 = vmax.f32 %v7572, %v7574
    %v7601 = vmax.f32 %v7575, %v7577
    %v7602 = vmax.f32 %v7576, %v7578
    %v7603 = vmax.f32 %v7579, %v7581
    %v7604 = vmax.f32 %v7580, %v7582
    %v7605 = vmax.f32 %v7583, %v7585
    %v7606 = vmax.f32 %v7584, %v7586
    %v7607 = vmax.f32 %v7587, %v7589
    %v7608 = vmax.f32 %v7588, %v7590
    %v7609 = vmax.f32 %v7591, %v7593
    %v7610 = vmax.f32 %v7592, %v7594
    %7611 = vst.msk [vmem:[#allocation3] sm:$0xff] %vm4884, %v7595
    %7612 = vst.msk [vmem:[#allocation3 + $0x8] sm:$0xff] %vm4884, %v7596
    %7613 = vst.msk [vmem:[#allocation3 + $0x10] sm:$0xff] %vm4884, %v7597
    %7614 = vst.msk [vmem:[#allocation3 + $0x18] sm:$0xff] %vm4884, %v7598
    %7615 = vst.msk [vmem:[#allocation3 + $0x20] sm:$0xff] %vm4884, %v7599
    %7616 = vst.msk [vmem:[#allocation3 + $0x28] sm:$0xff] %vm4884, %v7600
    %7617 = vst.msk [vmem:[#allocation3 + $0x30] sm:$0xff] %vm4884, %v7601
    %7618 = vst.msk [vmem:[#allocation3 + $0x38] sm:$0xff] %vm4884, %v7602
    %7619 = vst.msk [vmem:[#allocation3 + $0x40] sm:$0xff] %vm4884, %v7603
    %7620 = vst.msk [vmem:[#allocation3 + $0x48] sm:$0xff] %vm4884, %v7604
    %7621 = vst.msk [vmem:[#allocation3 + $0x50] sm:$0xff] %vm4884, %v7605
    %7622 = vst.msk [vmem:[#allocation3 + $0x58] sm:$0xff] %vm4884, %v7606
    %7623 = vst.msk [vmem:[#allocation3 + $0x60] sm:$0xff] %vm4884, %v7607
    %7624 = vst.msk [vmem:[#allocation3 + $0x68] sm:$0xff] %vm4884, %v7608
    %7625 = vst.msk [vmem:[#allocation3 + $0x70] sm:$0xff] %vm4884, %v7609
    %7626 = vst.msk [vmem:[#allocation3 + $0x78] sm:$0xff] %vm4884, %v7610
    %v7627 = vld [vmem:[#allocation3] sm:$0x1]
    %v7628 = vld [vmem:[#allocation3 + $0x40] sm:$0x1]
    %v7629 = vld [vmem:[#allocation3 + $0x2] sm:$0x1]
    %v7630 = vld [vmem:[#allocation3 + $0x42] sm:$0x1]
    %v7631 = vmax.f32 %v7627, %v7629
    %v7632 = vmax.f32 %v7628, %v7630
    %v7633 = vld [vmem:[%s5] sm:$0xff]
    %v7634 = vld [vmem:[%s5 + $0x8] sm:$0xff]
    %v7635 = vld [vmem:[#allocation3 + $0x4] sm:$0x1]
    %v7636 = vld [vmem:[#allocation3 + $0x44] sm:$0x1]
    %v7637 = vld [vmem:[#allocation3 + $0x6] sm:$0x1]
    %v7638 = vld [vmem:[#allocation3 + $0x46] sm:$0x1]
    %v7639 = vmax.f32 %v7635, %v7637
    %v7640 = vmax.f32 %v7636, %v7638
    %s7641 = scalar_lea.vmem %s5, 16
    %v7642 = vld [vmem:[%s7641] sm:$0xff]
    %v7643 = vld [vmem:[%s7641 + $0x8] sm:$0xff]
    %v7646 = vrot.slane %v7640, 7
    %vm7647 = vcmask 1041409
    %v7648 = vsel %vm7647, %v7646, %v7639
    %v7649 = vsel %vm4884, %v7648, 0
    %7651 = vmatpush.msra.mxu0 0.0
    %7652 = vmatpush.msra.mxu0 0.0
    %7653 = vmatpush.msra.mxu0 0.0
    %7654 = vmatpush.msra.mxu0 0.0
    %7655 = vmatpush.msra.mxu0 0.0
    %7656 = vmatpush.msra.mxu0 0.0
    %7657 = vmatpush.msra.mxu0 0.0
    %7658 = vmatpush.msra.mxu0 0.0
    %7659 = vmatpush.msra.mxu0 0.0
    %7660 = vmatpush.msra.mxu0 0.0
    %7661 = vmatpush.msra.mxu0 0.0
    %7662 = vmatpush.msra.mxu0 0.0
    %7663 = vmatpush.msra.mxu0 0.0
    %7664 = vmatpush.msra.mxu0 0.0
    %7665 = vmatpush.msra.mxu0 %v7643
    %7666 = vmatpush.msra.mxu0 %v7642
    %7667 = vmatmul.f32.gmra.mxu0 %v7649
    %v7668 = vpop.f32.mrf.mxu0
    %v7669 = vadd.f32 0.0, %v7668
    %7670 = vdwg.mxu0
    %v7673 = vrot.slane %v7632, 7
    %v7674 = vsel %vm7647, %v7673, %v7631
    %v7675 = vsel %vm4884, %v7674, 0
    %7677 = vmatpush.msra.mxu0 0.0
    %7678 = vmatpush.msra.mxu0 0.0
    %7679 = vmatpush.msra.mxu0 0.0
    %7680 = vmatpush.msra.mxu0 0.0
    %7681 = vmatpush.msra.mxu0 0.0
    %7682 = vmatpush.msra.mxu0 0.0
    %7683 = vmatpush.msra.mxu0 0.0
    %7684 = vmatpush.msra.mxu0 0.0
    %7685 = vmatpush.msra.mxu0 0.0
    %7686 = vmatpush.msra.mxu0 0.0
    %7687 = vmatpush.msra.mxu0 0.0
    %7688 = vmatpush.msra.mxu0 0.0
    %7689 = vmatpush.msra.mxu0 0.0
    %7690 = vmatpush.msra.mxu0 0.0
    %7691 = vmatpush.msra.mxu0 %v7634
    %7692 = vmatpush.msra.mxu0 %v7633
    %7693 = vmatmul.f32.gmra.mxu0 %v7675
    %v7694 = vpop.f32.mrf.mxu0
    %v7695 = vadd.f32 %v7669, %v7694
    %7696 = vdwg.mxu0
    %v7697 = vld [vmem:[#allocation3 + $0x8] sm:$0x1]
    %v7698 = vld [vmem:[#allocation3 + $0x48] sm:$0x1]
    %v7699 = vld [vmem:[#allocation3 + $0xa] sm:$0x1]
    %v7700 = vld [vmem:[#allocation3 + $0x4a] sm:$0x1]
    %v7701 = vmax.f32 %v7697, %v7699
    %v7702 = vmax.f32 %v7698, %v7700
    %s7703 = scalar_lea.vmem %s5, 32
    %v7704 = vld [vmem:[%s7703] sm:$0xff]
    %v7705 = vld [vmem:[%s7703 + $0x8] sm:$0xff]
    %v7708 = vrot.slane %v7702, 7
    %v7709 = vsel %vm7647, %v7708, %v7701
    %v7710 = vsel %vm4884, %v7709, 0
    %7712 = vmatpush.msra.mxu0 0.0
    %7713 = vmatpush.msra.mxu0 0.0
    %7714 = vmatpush.msra.mxu0 0.0
    %7715 = vmatpush.msra.mxu0 0.0
    %7716 = vmatpush.msra.mxu0 0.0
    %7717 = vmatpush.msra.mxu0 0.0
    %7718 = vmatpush.msra.mxu0 0.0
    %7719 = vmatpush.msra.mxu0 0.0
    %7720 = vmatpush.msra.mxu0 0.0
    %7721 = vmatpush.msra.mxu0 0.0
    %7722 = vmatpush.msra.mxu0 0.0
    %7723 = vmatpush.msra.mxu0 0.0
    %7724 = vmatpush.msra.mxu0 0.0
    %7725 = vmatpush.msra.mxu0 0.0
    %7726 = vmatpush.msra.mxu0 %v7705
    %7727 = vmatpush.msra.mxu0 %v7704
    %7728 = vmatmul.f32.gmra.mxu0 %v7710
    %v7729 = vpop.f32.mrf.mxu0
    %v7730 = vadd.f32 0.0, %v7729
    %7731 = vdwg.mxu0
    %v7732 = vadd.f32 %v7695, %v7730
    %v7733 = vld [vmem:[#allocation3 + $0xc] sm:$0x1]
    %v7734 = vld [vmem:[#allocation3 + $0x4c] sm:$0x1]
    %v7735 = vld [vmem:[#allocation3 + $0xe] sm:$0x1]
    %v7736 = vld [vmem:[#allocation3 + $0x4e] sm:$0x1]
    %v7737 = vmax.f32 %v7733, %v7735
    %v7738 = vmax.f32 %v7734, %v7736
    %s7739 = scalar_lea.vmem %s5, 48
    %v7740 = vld [vmem:[%s7739] sm:$0xff]
    %v7741 = vld [vmem:[%s7739 + $0x8] sm:$0xff]
    %v7744 = vrot.slane %v7738, 7
    %v7745 = vsel %vm7647, %v7744, %v7737
    %v7746 = vsel %vm4884, %v7745, 0
    %7748 = vmatpush.msra.mxu0 0.0
    %7749 = vmatpush.msra.mxu0 0.0
    %7750 = vmatpush.msra.mxu0 0.0
    %7751 = vmatpush.msra.mxu0 0.0
    %7752 = vmatpush.msra.mxu0 0.0
    %7753 = vmatpush.msra.mxu0 0.0
    %7754 = vmatpush.msra.mxu0 0.0
    %7755 = vmatpush.msra.mxu0 0.0
    %7756 = vmatpush.msra.mxu0 0.0
    %7757 = vmatpush.msra.mxu0 0.0
    %7758 = vmatpush.msra.mxu0 0.0
    %7759 = vmatpush.msra.mxu0 0.0
    %7760 = vmatpush.msra.mxu0 0.0
    %7761 = vmatpush.msra.mxu0 0.0
    %7762 = vmatpush.msra.mxu0 %v7741
    %7763 = vmatpush.msra.mxu0 %v7740
    %7764 = vmatmul.f32.gmra.mxu0 %v7746
    %v7765 = vpop.f32.mrf.mxu0
    %v7766 = vadd.f32 0.0, %v7765
    %7767 = vdwg.mxu0
    %v7768 = vadd.f32 %v7732, %v7766
    %s7769 = scalar_lea.vmem [#allocation3], 16
    %v7770 = vld [vmem:[%s7769] sm:$0x1]
    %v7771 = vld [vmem:[%s7769 + $0x40] sm:$0x1]
    %v7772 = vld [vmem:[%s7769 + $0x2] sm:$0x1]
    %v7773 = vld [vmem:[%s7769 + $0x42] sm:$0x1]
    %v7774 = vmax.f32 %v7770, %v7772
    %v7775 = vmax.f32 %v7771, %v7773
    %s7776 = scalar_lea.vmem %s5, 64
    %v7777 = vld [vmem:[%s7776] sm:$0xff]
    %v7778 = vld [vmem:[%s7776 + $0x8] sm:$0xff]
    %v7781 = vrot.slane %v7775, 7
    %v7782 = vsel %vm7647, %v7781, %v7774
    %v7783 = vsel %vm4884, %v7782, 0
    %7785 = vmatpush.msra.mxu0 0.0
    %7786 = vmatpush.msra.mxu0 0.0
    %7787 = vmatpush.msra.mxu0 0.0
    %7788 = vmatpush.msra.mxu0 0.0
    %7789 = vmatpush.msra.mxu0 0.0
    %7790 = vmatpush.msra.mxu0 0.0
    %7791 = vmatpush.msra.mxu0 0.0
    %7792 = vmatpush.msra.mxu0 0.0
    %7793 = vmatpush.msra.mxu0 0.0
    %7794 = vmatpush.msra.mxu0 0.0
    %7795 = vmatpush.msra.mxu0 0.0
    %7796 = vmatpush.msra.mxu0 0.0
    %7797 = vmatpush.msra.mxu0 0.0
    %7798 = vmatpush.msra.mxu0 0.0
    %7799 = vmatpush.msra.mxu0 %v7778
    %7800 = vmatpush.msra.mxu0 %v7777
    %7801 = vmatmul.f32.gmra.mxu0 %v7783
    %v7802 = vpop.f32.mrf.mxu0
    %v7803 = vadd.f32 0.0, %v7802
    %7804 = vdwg.mxu0
    %v7805 = vadd.f32 %v7768, %v7803
    %v7806 = vld [vmem:[%s7769 + $0x4] sm:$0x1]
    %v7807 = vld [vmem:[%s7769 + $0x44] sm:$0x1]
    %v7808 = vld [vmem:[%s7769 + $0x6] sm:$0x1]
    %v7809 = vld [vmem:[%s7769 + $0x46] sm:$0x1]
    %v7810 = vmax.f32 %v7806, %v7808
    %v7811 = vmax.f32 %v7807, %v7809
    %s7812 = scalar_lea.vmem %s5, 80
    %v7813 = vld [vmem:[%s7812] sm:$0xff]
    %v7814 = vld [vmem:[%s7812 + $0x8] sm:$0xff]
    %v7817 = vrot.slane %v7811, 7
    %v7818 = vsel %vm7647, %v7817, %v7810
    %v7819 = vsel %vm4884, %v7818, 0
    %7821 = vmatpush.msra.mxu0 0.0
    %7822 = vmatpush.msra.mxu0 0.0
    %7823 = vmatpush.msra.mxu0 0.0
    %7824 = vmatpush.msra.mxu0 0.0
    %7825 = vmatpush.msra.mxu0 0.0
    %7826 = vmatpush.msra.mxu0 0.0
    %7827 = vmatpush.msra.mxu0 0.0
    %7828 = vmatpush.msra.mxu0 0.0
    %7829 = vmatpush.msra.mxu0 0.0
    %7830 = vmatpush.msra.mxu0 0.0
    %7831 = vmatpush.msra.mxu0 0.0
    %7832 = vmatpush.msra.mxu0 0.0
    %7833 = vmatpush.msra.mxu0 0.0
    %7834 = vmatpush.msra.mxu0 0.0
    %7835 = vmatpush.msra.mxu0 %v7814
    %7836 = vmatpush.msra.mxu0 %v7813
    %7837 = vmatmul.f32.gmra.mxu0 %v7819
    %v7838 = vpop.f32.mrf.mxu0
    %v7839 = vadd.f32 0.0, %v7838
    %7840 = vdwg.mxu0
    %v7841 = vadd.f32 %v7805, %v7839
    %v7842 = vld [vmem:[%s7769 + $0x8] sm:$0x1]
    %v7843 = vld [vmem:[%s7769 + $0x48] sm:$0x1]
    %v7844 = vld [vmem:[%s7769 + $0xa] sm:$0x1]
    %v7845 = vld [vmem:[%s7769 + $0x4a] sm:$0x1]
    %v7846 = vmax.f32 %v7842, %v7844
    %v7847 = vmax.f32 %v7843, %v7845
    %s7848 = scalar_lea.vmem %s5, 96
    %v7849 = vld [vmem:[%s7848] sm:$0xff]
    %v7850 = vld [vmem:[%s7848 + $0x8] sm:$0xff]
    %v7853 = vrot.slane %v7847, 7
    %v7854 = vsel %vm7647, %v7853, %v7846
    %v7855 = vsel %vm4884, %v7854, 0
    %7857 = vmatpush.msra.mxu0 0.0
    %7858 = vmatpush.msra.mxu0 0.0
    %7859 = vmatpush.msra.mxu0 0.0
    %7860 = vmatpush.msra.mxu0 0.0
    %7861 = vmatpush.msra.mxu0 0.0
    %7862 = vmatpush.msra.mxu0 0.0
    %7863 = vmatpush.msra.mxu0 0.0
    %7864 = vmatpush.msra.mxu0 0.0
    %7865 = vmatpush.msra.mxu0 0.0
    %7866 = vmatpush.msra.mxu0 0.0
    %7867 = vmatpush.msra.mxu0 0.0
    %7868 = vmatpush.msra.mxu0 0.0
    %7869 = vmatpush.msra.mxu0 0.0
    %7870 = vmatpush.msra.mxu0 0.0
    %7871 = vmatpush.msra.mxu0 %v7850
    %7872 = vmatpush.msra.mxu0 %v7849
    %7873 = vmatmul.f32.gmra.mxu0 %v7855
    %v7874 = vpop.f32.mrf.mxu0
    %v7875 = vadd.f32 0.0, %v7874
    %7876 = vdwg.mxu0
    %v7877 = vadd.f32 %v7841, %v7875
    %v7878 = vld [vmem:[%s7769 + $0xc] sm:$0x1]
    %v7879 = vld [vmem:[%s7769 + $0x4c] sm:$0x1]
    %v7880 = vld [vmem:[%s7769 + $0xe] sm:$0x1]
    %v7881 = vld [vmem:[%s7769 + $0x4e] sm:$0x1]
    %v7882 = vmax.f32 %v7878, %v7880
    %v7883 = vmax.f32 %v7879, %v7881
    %s7884 = scalar_lea.vmem %s5, 112
    %v7885 = vld [vmem:[%s7884] sm:$0xff]
    %v7886 = vld [vmem:[%s7884 + $0x8] sm:$0xff]
    %v7889 = vrot.slane %v7883, 7
    %v7890 = vsel %vm7647, %v7889, %v7882
    %v7891 = vsel %vm4884, %v7890, 0
    %7893 = vmatpush.msra.mxu0 0.0
    %7894 = vmatpush.msra.mxu0 0.0
    %7895 = vmatpush.msra.mxu0 0.0
    %7896 = vmatpush.msra.mxu0 0.0
    %7897 = vmatpush.msra.mxu0 0.0
    %7898 = vmatpush.msra.mxu0 0.0
    %7899 = vmatpush.msra.mxu0 0.0
    %7900 = vmatpush.msra.mxu0 0.0
    %7901 = vmatpush.msra.mxu0 0.0
    %7902 = vmatpush.msra.mxu0 0.0
    %7903 = vmatpush.msra.mxu0 0.0
    %7904 = vmatpush.msra.mxu0 0.0
    %7905 = vmatpush.msra.mxu0 0.0
    %7906 = vmatpush.msra.mxu0 0.0
    %7907 = vmatpush.msra.mxu0 %v7886
    %7908 = vmatpush.msra.mxu0 %v7885
    %7909 = vmatmul.f32.gmra.mxu0 %v7891
    %v7910 = vpop.f32.mrf.mxu0
    %v7911 = vadd.f32 0.0, %v7910
    %7912 = vdwg.mxu0
    %v7913 = vadd.f32 %v7877, %v7911
    %s7914 = scalar_lea.vmem [#allocation3], 32
    %v7915 = vld [vmem:[%s7914] sm:$0x1]
    %v7916 = vld [vmem:[%s7914 + $0x40] sm:$0x1]
    %v7917 = vld [vmem:[%s7914 + $0x2] sm:$0x1]
    %v7918 = vld [vmem:[%s7914 + $0x42] sm:$0x1]
    %v7919 = vmax.f32 %v7915, %v7917
    %v7920 = vmax.f32 %v7916, %v7918
    %s7921 = scalar_lea.vmem %s5, 128
    %v7922 = vld [vmem:[%s7921] sm:$0xff]
    %v7923 = vld [vmem:[%s7921 + $0x8] sm:$0xff]
    %v7926 = vrot.slane %v7920, 7
    %v7927 = vsel %vm7647, %v7926, %v7919
    %v7928 = vsel %vm4884, %v7927, 0
    %7930 = vmatpush.msra.mxu0 0.0
    %7931 = vmatpush.msra.mxu0 0.0
    %7932 = vmatpush.msra.mxu0 0.0
    %7933 = vmatpush.msra.mxu0 0.0
    %7934 = vmatpush.msra.mxu0 0.0
    %7935 = vmatpush.msra.mxu0 0.0
    %7936 = vmatpush.msra.mxu0 0.0
    %7937 = vmatpush.msra.mxu0 0.0
    %7938 = vmatpush.msra.mxu0 0.0
    %7939 = vmatpush.msra.mxu0 0.0
    %7940 = vmatpush.msra.mxu0 0.0
    %7941 = vmatpush.msra.mxu0 0.0
    %7942 = vmatpush.msra.mxu0 0.0
    %7943 = vmatpush.msra.mxu0 0.0
    %7944 = vmatpush.msra.mxu0 %v7923
    %7945 = vmatpush.msra.mxu0 %v7922
    %7946 = vmatmul.f32.gmra.mxu0 %v7928
    %v7947 = vpop.f32.mrf.mxu0
    %v7948 = vadd.f32 0.0, %v7947
    %7949 = vdwg.mxu0
    %v7950 = vadd.f32 %v7913, %v7948
    %v7951 = vld [vmem:[%s7914 + $0x4] sm:$0x1]
    %v7952 = vld [vmem:[%s7914 + $0x44] sm:$0x1]
    %v7953 = vld [vmem:[%s7914 + $0x6] sm:$0x1]
    %v7954 = vld [vmem:[%s7914 + $0x46] sm:$0x1]
    %v7955 = vmax.f32 %v7951, %v7953
    %v7956 = vmax.f32 %v7952, %v7954
    %s7957 = scalar_lea.vmem %s5, 144
    %v7958 = vld [vmem:[%s7957] sm:$0xff]
    %v7959 = vld [vmem:[%s7957 + $0x8] sm:$0xff]
    %v7962 = vrot.slane %v7956, 7
    %v7963 = vsel %vm7647, %v7962, %v7955
    %v7964 = vsel %vm4884, %v7963, 0
    %7966 = vmatpush.msra.mxu0 0.0
    %7967 = vmatpush.msra.mxu0 0.0
    %7968 = vmatpush.msra.mxu0 0.0
    %7969 = vmatpush.msra.mxu0 0.0
    %7970 = vmatpush.msra.mxu0 0.0
    %7971 = vmatpush.msra.mxu0 0.0
    %7972 = vmatpush.msra.mxu0 0.0
    %7973 = vmatpush.msra.mxu0 0.0
    %7974 = vmatpush.msra.mxu0 0.0
    %7975 = vmatpush.msra.mxu0 0.0
    %7976 = vmatpush.msra.mxu0 0.0
    %7977 = vmatpush.msra.mxu0 0.0
    %7978 = vmatpush.msra.mxu0 0.0
    %7979 = vmatpush.msra.mxu0 0.0
    %7980 = vmatpush.msra.mxu0 %v7959
    %7981 = vmatpush.msra.mxu0 %v7958
    %7982 = vmatmul.f32.gmra.mxu0 %v7964
    %v7983 = vpop.f32.mrf.mxu0
    %v7984 = vadd.f32 0.0, %v7983
    %7985 = vdwg.mxu0
    %v7986 = vadd.f32 %v7950, %v7984
    %v7987 = vld [vmem:[%s7914 + $0x8] sm:$0x1]
    %v7988 = vld [vmem:[%s7914 + $0x48] sm:$0x1]
    %v7989 = vld [vmem:[%s7914 + $0xa] sm:$0x1]
    %v7990 = vld [vmem:[%s7914 + $0x4a] sm:$0x1]
    %v7991 = vmax.f32 %v7987, %v7989
    %v7992 = vmax.f32 %v7988, %v7990
    %s7993 = scalar_lea.vmem %s5, 160
    %v7994 = vld [vmem:[%s7993] sm:$0xff]
    %v7995 = vld [vmem:[%s7993 + $0x8] sm:$0xff]
    %v7998 = vrot.slane %v7992, 7
    %v7999 = vsel %vm7647, %v7998, %v7991
    %v8000 = vsel %vm4884, %v7999, 0
    %8002 = vmatpush.msra.mxu0 0.0
    %8003 = vmatpush.msra.mxu0 0.0
    %8004 = vmatpush.msra.mxu0 0.0
    %8005 = vmatpush.msra.mxu0 0.0
    %8006 = vmatpush.msra.mxu0 0.0
    %8007 = vmatpush.msra.mxu0 0.0
    %8008 = vmatpush.msra.mxu0 0.0
    %8009 = vmatpush.msra.mxu0 0.0
    %8010 = vmatpush.msra.mxu0 0.0
    %8011 = vmatpush.msra.mxu0 0.0
    %8012 = vmatpush.msra.mxu0 0.0
    %8013 = vmatpush.msra.mxu0 0.0
    %8014 = vmatpush.msra.mxu0 0.0
    %8015 = vmatpush.msra.mxu0 0.0
    %8016 = vmatpush.msra.mxu0 %v7995
    %8017 = vmatpush.msra.mxu0 %v7994
    %8018 = vmatmul.f32.gmra.mxu0 %v8000
    %v8019 = vpop.f32.mrf.mxu0
    %v8020 = vadd.f32 0.0, %v8019
    %8021 = vdwg.mxu0
    %v8022 = vadd.f32 %v7986, %v8020
    %v8023 = vld [vmem:[%s7914 + $0xc] sm:$0x1]
    %v8024 = vld [vmem:[%s7914 + $0x4c] sm:$0x1]
    %v8025 = vld [vmem:[%s7914 + $0xe] sm:$0x1]
    %v8026 = vld [vmem:[%s7914 + $0x4e] sm:$0x1]
    %v8027 = vmax.f32 %v8023, %v8025
    %v8028 = vmax.f32 %v8024, %v8026
    %s8029 = scalar_lea.vmem %s5, 176
    %v8030 = vld [vmem:[%s8029] sm:$0xff]
    %v8031 = vld [vmem:[%s8029 + $0x8] sm:$0xff]
    %v8034 = vrot.slane %v8028, 7
    %v8035 = vsel %vm7647, %v8034, %v8027
    %v8036 = vsel %vm4884, %v8035, 0
    %8038 = vmatpush.msra.mxu0 0.0
    %8039 = vmatpush.msra.mxu0 0.0
    %8040 = vmatpush.msra.mxu0 0.0
    %8041 = vmatpush.msra.mxu0 0.0
    %8042 = vmatpush.msra.mxu0 0.0
    %8043 = vmatpush.msra.mxu0 0.0
    %8044 = vmatpush.msra.mxu0 0.0
    %8045 = vmatpush.msra.mxu0 0.0
    %8046 = vmatpush.msra.mxu0 0.0
    %8047 = vmatpush.msra.mxu0 0.0
    %8048 = vmatpush.msra.mxu0 0.0
    %8049 = vmatpush.msra.mxu0 0.0
    %8050 = vmatpush.msra.mxu0 0.0
    %8051 = vmatpush.msra.mxu0 0.0
    %8052 = vmatpush.msra.mxu0 %v8031
    %8053 = vmatpush.msra.mxu0 %v8030
    %8054 = vmatmul.f32.gmra.mxu0 %v8036
    %v8055 = vpop.f32.mrf.mxu0
    %v8056 = vadd.f32 0.0, %v8055
    %8057 = vdwg.mxu0
    %v8058 = vadd.f32 %v8022, %v8056
    %s8059 = scalar_lea.vmem [#allocation3], 48
    %v8060 = vld [vmem:[%s8059] sm:$0x1]
    %v8061 = vld [vmem:[%s8059 + $0x40] sm:$0x1]
    %v8062 = vld [vmem:[%s8059 + $0x2] sm:$0x1]
    %v8063 = vld [vmem:[%s8059 + $0x42] sm:$0x1]
    %v8064 = vmax.f32 %v8060, %v8062
    %v8065 = vmax.f32 %v8061, %v8063
    %s8066 = scalar_lea.vmem %s5, 192
    %v8067 = vld [vmem:[%s8066] sm:$0xff]
    %v8068 = vld [vmem:[%s8066 + $0x8] sm:$0xff]
    %v8071 = vrot.slane %v8065, 7
    %v8072 = vsel %vm7647, %v8071, %v8064
    %v8073 = vsel %vm4884, %v8072, 0
    %8075 = vmatpush.msra.mxu0 0.0
    %8076 = vmatpush.msra.mxu0 0.0
    %8077 = vmatpush.msra.mxu0 0.0
    %8078 = vmatpush.msra.mxu0 0.0
    %8079 = vmatpush.msra.mxu0 0.0
    %8080 = vmatpush.msra.mxu0 0.0
    %8081 = vmatpush.msra.mxu0 0.0
    %8082 = vmatpush.msra.mxu0 0.0
    %8083 = vmatpush.msra.mxu0 0.0
    %8084 = vmatpush.msra.mxu0 0.0
    %8085 = vmatpush.msra.mxu0 0.0
    %8086 = vmatpush.msra.mxu0 0.0
    %8087 = vmatpush.msra.mxu0 0.0
    %8088 = vmatpush.msra.mxu0 0.0
    %8089 = vmatpush.msra.mxu0 %v8068
    %8090 = vmatpush.msra.mxu0 %v8067
    %8091 = vmatmul.f32.gmra.mxu0 %v8073
    %v8092 = vpop.f32.mrf.mxu0
    %v8093 = vadd.f32 0.0, %v8092
    %8094 = vdwg.mxu0
    %v8095 = vadd.f32 %v8058, %v8093
    %v8096 = vld [vmem:[%s8059 + $0x4] sm:$0x1]
    %v8097 = vld [vmem:[%s8059 + $0x44] sm:$0x1]
    %v8098 = vld [vmem:[%s8059 + $0x6] sm:$0x1]
    %v8099 = vld [vmem:[%s8059 + $0x46] sm:$0x1]
    %v8100 = vmax.f32 %v8096, %v8098
    %v8101 = vmax.f32 %v8097, %v8099
    %s8102 = scalar_lea.vmem %s5, 208
    %v8103 = vld [vmem:[%s8102] sm:$0xff]
    %v8104 = vld [vmem:[%s8102 + $0x8] sm:$0xff]
    %v8107 = vrot.slane %v8101, 7
    %v8108 = vsel %vm7647, %v8107, %v8100
    %v8109 = vsel %vm4884, %v8108, 0
    %8111 = vmatpush.msra.mxu0 0.0
    %8112 = vmatpush.msra.mxu0 0.0
    %8113 = vmatpush.msra.mxu0 0.0
    %8114 = vmatpush.msra.mxu0 0.0
    %8115 = vmatpush.msra.mxu0 0.0
    %8116 = vmatpush.msra.mxu0 0.0
    %8117 = vmatpush.msra.mxu0 0.0
    %8118 = vmatpush.msra.mxu0 0.0
    %8119 = vmatpush.msra.mxu0 0.0
    %8120 = vmatpush.msra.mxu0 0.0
    %8121 = vmatpush.msra.mxu0 0.0
    %8122 = vmatpush.msra.mxu0 0.0
    %8123 = vmatpush.msra.mxu0 0.0
    %8124 = vmatpush.msra.mxu0 0.0
    %8125 = vmatpush.msra.mxu0 %v8104
    %8126 = vmatpush.msra.mxu0 %v8103
    %8127 = vmatmul.f32.gmra.mxu0 %v8109
    %v8128 = vpop.f32.mrf.mxu0
    %v8129 = vadd.f32 0.0, %v8128
    %8130 = vdwg.mxu0
    %v8131 = vadd.f32 %v8095, %v8129
    %v8132 = vld [vmem:[%s8059 + $0x8] sm:$0x1]
    %v8133 = vld [vmem:[%s8059 + $0x48] sm:$0x1]
    %v8134 = vld [vmem:[%s8059 + $0xa] sm:$0x1]
    %v8135 = vld [vmem:[%s8059 + $0x4a] sm:$0x1]
    %v8136 = vmax.f32 %v8132, %v8134
    %v8137 = vmax.f32 %v8133, %v8135
    %s8138 = scalar_lea.vmem %s5, 224
    %v8139 = vld [vmem:[%s8138] sm:$0xff]
    %v8140 = vld [vmem:[%s8138 + $0x8] sm:$0xff]
    %v8143 = vrot.slane %v8137, 7
    %v8144 = vsel %vm7647, %v8143, %v8136
    %v8145 = vsel %vm4884, %v8144, 0
    %8147 = vmatpush.msra.mxu0 0.0
    %8148 = vmatpush.msra.mxu0 0.0
    %8149 = vmatpush.msra.mxu0 0.0
    %8150 = vmatpush.msra.mxu0 0.0
    %8151 = vmatpush.msra.mxu0 0.0
    %8152 = vmatpush.msra.mxu0 0.0
    %8153 = vmatpush.msra.mxu0 0.0
    %8154 = vmatpush.msra.mxu0 0.0
    %8155 = vmatpush.msra.mxu0 0.0
    %8156 = vmatpush.msra.mxu0 0.0
    %8157 = vmatpush.msra.mxu0 0.0
    %8158 = vmatpush.msra.mxu0 0.0
    %8159 = vmatpush.msra.mxu0 0.0
    %8160 = vmatpush.msra.mxu0 0.0
    %8161 = vmatpush.msra.mxu0 %v8140
    %8162 = vmatpush.msra.mxu0 %v8139
    %8163 = vmatmul.f32.gmra.mxu0 %v8145
    %v8164 = vpop.f32.mrf.mxu0
    %v8165 = vadd.f32 0.0, %v8164
    %8166 = vdwg.mxu0
    %v8167 = vadd.f32 %v8131, %v8165
    %v8168 = vld [vmem:[%s8059 + $0xc] sm:$0x1]
    %v8169 = vld [vmem:[%s8059 + $0x4c] sm:$0x1]
    %v8170 = vld [vmem:[%s8059 + $0xe] sm:$0x1]
    %v8171 = vld [vmem:[%s8059 + $0x4e] sm:$0x1]
    %v8172 = vmax.f32 %v8168, %v8170
    %v8173 = vmax.f32 %v8169, %v8171
    %s8174 = scalar_lea.vmem %s5, 240
    %v8175 = vld [vmem:[%s8174] sm:$0xff]
    %v8176 = vld [vmem:[%s8174 + $0x8] sm:$0xff]
    %v8179 = vrot.slane %v8173, 7
    %v8180 = vsel %vm7647, %v8179, %v8172
    %v8181 = vsel %vm4884, %v8180, 0
    %8183 = vmatpush.msra.mxu0 0.0
    %8184 = vmatpush.msra.mxu0 0.0
    %8185 = vmatpush.msra.mxu0 0.0
    %8186 = vmatpush.msra.mxu0 0.0
    %8187 = vmatpush.msra.mxu0 0.0
    %8188 = vmatpush.msra.mxu0 0.0
    %8189 = vmatpush.msra.mxu0 0.0
    %8190 = vmatpush.msra.mxu0 0.0
    %8191 = vmatpush.msra.mxu0 0.0
    %8192 = vmatpush.msra.mxu0 0.0
    %8193 = vmatpush.msra.mxu0 0.0
    %8194 = vmatpush.msra.mxu0 0.0
    %8195 = vmatpush.msra.mxu0 0.0
    %8196 = vmatpush.msra.mxu0 0.0
    %8197 = vmatpush.msra.mxu0 %v8176
    %8198 = vmatpush.msra.mxu0 %v8175
    %8199 = vmatmul.f32.gmra.mxu0 %v8181
    %v8200 = vpop.f32.mrf.mxu0
    %v8201 = vadd.f32 0.0, %v8200
    %8202 = vdwg.mxu0
    %v8203 = vadd.f32 %v8167, %v8201
    %v8204 = vld [vmem:[%s6] sm:$0x1]
    %v8206 = vperm.slane %v8204, 0
    %v8208 = vadd.f32 %v8203, %v8206
    %v8209 = vmax.f32 %v8208, 0.0
    %v8210 = vld [vmem:[%s7] sm:$0xff]
    %v8211 = vld [vmem:[%s7 + $0x8] sm:$0xff]
    %v8212 = vld [vmem:[%s7 + $0x10] sm:$0xff]
    %v8213 = vld [vmem:[%s7 + $0x18] sm:$0xff]
    %v8214 = vld [vmem:[%s7 + $0x20] sm:$0xff]
    %v8215 = vld [vmem:[%s7 + $0x28] sm:$0xff]
    %v8216 = vld [vmem:[%s7 + $0x30] sm:$0xff]
    %v8217 = vld [vmem:[%s7 + $0x38] sm:$0xff]
    %v8218 = vld [vmem:[%s7 + $0x40] sm:$0xff]
    %v8219 = vld [vmem:[%s7 + $0x48] sm:$0xff]
    %v8220 = vld [vmem:[%s7 + $0x50] sm:$0xff]
    %v8221 = vld [vmem:[%s7 + $0x58] sm:$0xff]
    %v8222 = vld [vmem:[%s7 + $0x60] sm:$0xff]
    %v8223 = vld [vmem:[%s7 + $0x68] sm:$0xff]
    %v8224 = vld [vmem:[%s7 + $0x70] sm:$0xff]
    %v8225 = vld [vmem:[%s7 + $0x78] sm:$0xff]
    %v8226 = vld [vmem:[%s8] sm:$0x1]
    %v8228 = vperm.slane %v8226, 0
    %8230 = vmatpush.msra.mxu0 %v8225
    %8231 = vmatpush.msra.mxu0 %v8224
    %8232 = vmatpush.msra.mxu0 %v8223
    %8233 = vmatpush.msra.mxu0 %v8222
    %8234 = vmatpush.msra.mxu0 %v8221
    %8235 = vmatpush.msra.mxu0 %v8220
    %8236 = vmatpush.msra.mxu0 %v8219
    %8237 = vmatpush.msra.mxu0 %v8218
    %8238 = vmatpush.msra.mxu0 %v8217
    %8239 = vmatpush.msra.mxu0 %v8216
    %8240 = vmatpush.msra.mxu0 %v8215
    %8241 = vmatpush.msra.mxu0 %v8214
    %8242 = vmatpush.msra.mxu0 %v8213
    %8243 = vmatpush.msra.mxu0 %v8212
    %8244 = vmatpush.msra.mxu0 %v8211
    %8245 = vmatpush.msra.mxu0 %v8210
    %8246 = vmatmul.f32.gmra.mxu0 %v8209
    %v8247 = vpop.f32.mrf.mxu0
    %v8248 = vadd.f32 %v8228, %v8247
    %8249 = vdwg.mxu0
    %v8250 = vmax.f32 %v8248, 0.0
    %v8251 = vld [vmem:[%s9] sm:$0xff]
    %v8252 = vld [vmem:[%s9 + $0x8] sm:$0xff]
    %v8253 = vld [vmem:[%s9 + $0x10] sm:$0xff]
    %v8254 = vld [vmem:[%s9 + $0x18] sm:$0xff]
    %v8255 = vld [vmem:[%s9 + $0x20] sm:$0xff]
    %v8256 = vld [vmem:[%s9 + $0x28] sm:$0xff]
    %v8257 = vld [vmem:[%s9 + $0x30] sm:$0xff]
    %v8258 = vld [vmem:[%s9 + $0x38] sm:$0xff]
    %v8259 = vld [vmem:[%s9 + $0x40] sm:$0xff]
    %v8260 = vld [vmem:[%s9 + $0x48] sm:$0xff]
    %v8261 = vld [vmem:[%s9 + $0x50] sm:$0xff]
    %v8262 = vld [vmem:[%s9 + $0x58] sm:$0xff]
    %v8263 = vld [vmem:[%s9 + $0x60] sm:$0xff]
    %v8264 = vld [vmem:[%s9 + $0x68] sm:$0xff]
    %v8265 = vld [vmem:[%s9 + $0x70] sm:$0xff]
    %v8266 = vld [vmem:[%s9 + $0x78] sm:$0xff]
    %v8267 = vld [vmem:[%s10] sm:$0x1]
    %v8269 = vperm.slane %v8267, 0
    %8271 = vmatpush.msra.mxu0 %v8266
    %8272 = vmatpush.msra.mxu0 %v8265
    %8273 = vmatpush.msra.mxu0 %v8264
    %8274 = vmatpush.msra.mxu0 %v8263
    %8275 = vmatpush.msra.mxu0 %v8262
    %8276 = vmatpush.msra.mxu0 %v8261
    %8277 = vmatpush.msra.mxu0 %v8260
    %8278 = vmatpush.msra.mxu0 %v8259
    %8279 = vmatpush.msra.mxu0 %v8258
    %8280 = vmatpush.msra.mxu0 %v8257
    %8281 = vmatpush.msra.mxu0 %v8256
    %8282 = vmatpush.msra.mxu0 %v8255
    %8283 = vmatpush.msra.mxu0 %v8254
    %8284 = vmatpush.msra.mxu0 %v8253
    %8285 = vmatpush.msra.mxu0 %v8252
    %8286 = vmatpush.msra.mxu0 %v8251
    %8287 = vmatmul.f32.gmra.mxu0 %v8250
    %v8288 = vpop.f32.mrf.mxu0
    %v8289 = vadd.f32 %v8269, %v8288
    %8290 = vdwg.mxu0
    %vm8291 = vcmask 25600
    %v8292 = vsel %vm8291, %v8289, -inf
    %8293 = vmax.xlane.f32.xlu0 %v8292
    %v8294 = vpop.xlane.xlu0 %8293
    %v8295 = vsub.f32 %v8289, %v8294
    %v8296 = vmul.f32 %v8295, 1.442695
    %v8297 = vpow.pop %v8296
    %v8298 = vsel %vm8291, %v8297, 0.0
    %8299 = vadd.xlane.f32.xlu0 %v8298
    %v8300 = vpop.xlane.xlu0 %8299
    %v8301 = vrcp.pop %v8300
    %v8302 = vmul.f32 %v8300, %v8301
    %v8303 = vsub.f32 1.0, %v8302
    %v8304 = vmul.f32 %v8301, %v8303
    %v8305 = vadd.f32 %v8301, %v8304
    %vm8306 = vweird.f32 %v8300
    %vm8307 = vweird.f32 %v8301
    %vm8308 = vmor %vm8306, %vm8307
    %v8309 = vsel %vm8308, %v8301, %v8305
    %v8310 = vand.u32 2147483647, %v8300
    %vm8311 = vcmp.eq.f32.partialorder %v8310, 8.507059e+37
    %v8312 = vand.u32 %v8300, 2147483648
    %v8313 = vor.u32 1.1754944e-38, %v8312
    %v8314 = vsel %vm8311, %v8313, %v8309
    %v8315 = vmul.f32 %v8297, %v8314
    %8316 = vst.msk [vmem:[#allocation4] sm:$0x3] %vm8291, %v8315
    // Predicated region
    $region46: #{actor_forward.1} parent=1 // pred_check
      _
    $region47: #{actor_forward.1} parent=1 // pred_check_branch
      %8318 = sbr.rel (0) target = $region49
    $region48: #{actor_forward.1} parent=1 // pred_region
      %8320 = vsyncadd [#allocation5], 0
      %s8322 = sshll.u32 [#allocation4], 4
      %s8323 = int_to_ptr.vmem [resolvable:$true] %s8322
      %s8324 = sshll.u32 %s11, 4
      %s8325 = int_to_ptr.hbm [resolvable:$true] %s8324
      %8327 = dma.vmem_to_hbm [thread:$0]  %s8323, 32, %s8325, [#allocation5]
    $region49: #{actor_forward.1} parent=1 // pred_fallthru
      _
    // Predicated region
    $region50: #{actor_forward.1} parent=1 // pred_check
      _
    $region51: #{actor_forward.1} parent=1 // pred_check_branch
      %8329 = sbr.rel (0) target = $region53
    $region52: #{actor_forward.1} parent=1 // pred_region
      %8331 = dma.done [#allocation5], 32
    $region53: #{actor_forward.1} parent=1 // pred_fallthru
      _
    %8332 = vsyncpa [#allocation5], 1

</llo_original>
